<compile_context>
chip_gen: v6e
topology: v6e:2x2x1
jax: 0.10.0
libtpu: 0.0.40
codegen_flags: <defaults>
</compile_context>

<pallas_src>
from functools import partial

import jax
import jax.numpy as jnp
from jax.experimental import pallas as pl
from jax.experimental.pallas import tpu as pltpu

# MXU operand dtype: ~2x matmul throughput on v6e/v7x and half the weight/activation DMA.
# Accumulation stays f32 via preferred_element_type.
MATMUL_DTYPE = jnp.bfloat16
# Inter-layer activation dtype (halves epilogue stores and the next layer's x stream —
# matters most on v5e's slower HBM / single vector-store slot).
ACT_DTYPE = jnp.bfloat16

TILE_N = 256   # output-feature tile; lane-dense, and N//tn >= 2 at production widths so
               # the "parallel" N axis spans both v7x TensorCores.
TILE_K = 512   # contraction tile for the K-streamed fallback (fills the 256-wide
               # v6e/v7x MXU; still a 128-multiple for v5e's 128-wide MXU).
TILE_F = 512   # feature tile for the loss kernel's single pass over h.

# Keep the full [2B, K] activation resident in VMEM (constant index_map -> DMA'd once and
# reused by every N tile) whenever it fits comfortably; otherwise fall back to K-streaming.
X_RESIDENT_MAX_BYTES = 24 * 1024 * 1024
# v5e/v6e have 128 MiB physical VMEM, v7x 64 MiB — actual live usage of these kernels at
# the chosen tiles stays far below this cap on all three generations.
VMEM_LIMIT_BYTES = 64 * 1024 * 1024


# ----------------------------- helpers -------------------------------------

def _pick_tile(dim, pref):
    """Largest of (pref, 512, 256, 128) that divides `dim`, else the full dim."""
    for t in (pref, 512, 256, 128):
        if t <= dim and dim % t == 0:
            return t
    return dim


def _sum_all(a):
    """Full reduction of a 2-D block, kept as a (1, 1) array."""
    return jnp.sum(jnp.sum(a, axis=1, keepdims=True), axis=0, keepdims=True)


def _bn_relu_epilogue(get_rows, b, g, beta, o_ref, view_rows):
    # BatchNorm1d (training batch stats, biased var, eps=1e-5) + affine + ReLU,
    # computed PER VIEW (rows [0,B) and [B,2B)) one slab at a time so the live f32
    # working set stays at (view_rows, tn) rather than (2B, tn).
    for v in range(2):
        lo = v * view_rows
        hi = lo + view_rows
        hv = get_rows(lo, hi) + b
        mean = jnp.mean(hv, axis=0, keepdims=True)
        var = jnp.mean((hv - mean) ** 2, axis=0, keepdims=True)   # biased (train mode)
        xhat = (hv - mean) * jax.lax.rsqrt(var + 1e-5)            # EUP rsqrt
        o_ref[lo:hi, :] = jnp.maximum(xhat * g + beta, 0.0).astype(o_ref.dtype)


# --------------------- linear kernels: resident-x path ---------------------
# grid = (N_tiles,); x is the full [2B, K] block (constant index -> DMA'd once),
# the weight block is the full-K (K, tn) slab streamed (double-buffered) per N tile.

def _linear_bias_resident_kernel(x_ref, w_ref, b_ref, o_ref):
    h = jnp.dot(x_ref[...], w_ref[...], preferred_element_type=jnp.float32)
    o_ref[...] = (h + b_ref[...]).astype(o_ref.dtype)


def _linear_bn_relu_resident_kernel(x_ref, w_ref, b_ref, g_ref, beta_ref, o_ref,
                                    *, view_rows):
    h = jnp.dot(x_ref[...], w_ref[...], preferred_element_type=jnp.float32)
    _bn_relu_epilogue(lambda lo, hi: h[lo:hi, :],
                      b_ref[...], g_ref[...], beta_ref[...], o_ref, view_rows)


# --------------------- linear kernels: K-streamed fallback -----------------
# grid = (N_tiles, K_tiles); f32 VMEM accumulator resident across K, epilogue under
# pl.when at the last K step.  Used when 2B*K is too large to keep x resident.

def _linear_bias_streamed_kernel(x_ref, w_ref, b_ref, o_ref, acc_ref):
    k = pl.program_id(1)

    @pl.when(k == 0)
    def _():
        acc_ref[...] = jnp.zeros_like(acc_ref)

    acc_ref[...] += jnp.dot(x_ref[...], w_ref[...],
                            preferred_element_type=jnp.float32)

    @pl.when(k == pl.num_programs(1) - 1)
    def _():
        o_ref[...] = (acc_ref[...] + b_ref[...]).astype(o_ref.dtype)


def _linear_bn_relu_streamed_kernel(x_ref, w_ref, b_ref, g_ref, beta_ref, o_ref,
                                    acc_ref, *, view_rows):
    k = pl.program_id(1)

    @pl.when(k == 0)
    def _():
        acc_ref[...] = jnp.zeros_like(acc_ref)

    acc_ref[...] += jnp.dot(x_ref[...], w_ref[...],
                            preferred_element_type=jnp.float32)

    @pl.when(k == pl.num_programs(1) - 1)
    def _():
        _bn_relu_epilogue(lambda lo, hi: acc_ref[lo:hi, :],
                          b_ref[...], g_ref[...], beta_ref[...], o_ref, view_rows)


# ----------------------------- VICReg loss kernel ---------------------------
# One pass over the feature axis (grid = (F // tf,)).  For each [B, tf] slab per view:
#   - invariance MSE partial sum (raw features)
#   - per-feature unbiased variance -> std hinge + diag(C)^2 correction
#   - [B, B] Gram accumulation (contracting over the feature tile, MXU, f32 acc)
# Final step: sum(offdiag(C)^2) = ||G||_F^2/(B-1)^2 - sum(diag(C)^2) per view.

def _vicreg_loss_kernel(x_ref, y_ref, o_ref,
                        gx_acc, gy_acc, inv_acc, hinge_acc, diagsq_acc,
                        *, inv_nm1, inv_scale, std_scale, cov_scale,
                        inv_coeff, std_coeff, cov_coeff):
    f = pl.program_id(0)

    @pl.when(f == 0)
    def _():
        gx_acc[...] = jnp.zeros_like(gx_acc)
        gy_acc[...] = jnp.zeros_like(gy_acc)
        inv_acc[...] = jnp.zeros_like(inv_acc)
        hinge_acc[...] = jnp.zeros_like(hinge_acc)
        diagsq_acc[...] = jnp.zeros_like(diagsq_acc)

    x = x_ref[...].astype(jnp.float32)   # [B, tf]
    y = y_ref[...].astype(jnp.float32)

    # Invariance MSE on the raw (pre-centering) features, as in the reference.
    d = x - y
    inv_acc[...] += _sum_all(d * d)

    # Center each feature over the batch axis (per view).
    xc = x - jnp.mean(x, axis=0, keepdims=True)
    yc = y - jnp.mean(y, axis=0, keepdims=True)

    # Per-feature unbiased variance == diag of the covariance matrix.
    var_x = jnp.sum(xc * xc, axis=0, keepdims=True) * inv_nm1
    var_y = jnp.sum(yc * yc, axis=0, keepdims=True) * inv_nm1
    hinge = (jnp.maximum(1.0 - jnp.sqrt(var_x + 1e-4), 0.0)
             + jnp.maximum(1.0 - jnp.sqrt(var_y + 1e-4), 0.0))
    hinge_acc[...] += jnp.sum(hinge, axis=1, keepdims=True)
    diagsq_acc[...] += _sum_all(var_x * var_x + var_y * var_y)

    # Gram accumulation: G += Xc_tile @ Xc_tile^T  (contract over the feature tile).
    dnums = (((1,), (1,)), ((), ()))
    xcm = xc.astype(MATMUL_DTYPE)
    ycm = yc.astype(MATMUL_DTYPE)
    gx_acc[...] += jax.lax.dot_general(xcm, xcm, dnums,
                                       preferred_element_type=jnp.float32)
    gy_acc[...] += jax.lax.dot_general(ycm, ycm, dnums,
                                       preferred_element_type=jnp.float32)

    @pl.when(f == pl.num_programs(0) - 1)
    def _():
        gram_sq = _sum_all(gx_acc[...] * gx_acc[...] + gy_acc[...] * gy_acc[...])
        cov_sq = gram_sq * (inv_nm1 * inv_nm1)          # sum(C^2), both views
        inv_loss = inv_acc[...] * inv_scale
        std_loss = hinge_acc[...] * std_scale
        cov_loss = (cov_sq - diagsq_acc[...]) * cov_scale
        o_ref[...] = (inv_coeff * inv_loss
                      + std_coeff * std_loss
                      + cov_coeff * cov_loss)


# ----------------------------- wrappers ------------------------------------

def _launch_linear(x, w, vecs, *, out_dtype, bn_view_rows=None, force_mode=None):
    m, kdim = x.shape
    kdim_w, n = w.shape
    assert kdim == kdim_w
    x = x.astype(MATMUL_DTYPE)
    w = w.astype(MATMUL_DTYPE)
    vec_ops = [jnp.reshape(v, (1, n)).astype(jnp.float32) for v in vecs]
    tn = _pick_tile(n, TILE_N)

    resident = (m * kdim * x.dtype.itemsize) <= X_RESIDENT_MAX_BYTES
    if force_mode == "resident":
        resident = True
    elif force_mode == "streamed":
        resident = False

    if bn_view_rows is None:
        kern_res = _linear_bias_resident_kernel
        kern_str = _linear_bias_streamed_kernel
    else:
        kern_res = partial(_linear_bn_relu_resident_kernel, view_rows=bn_view_rows)
        kern_str = partial(_linear_bn_relu_streamed_kernel, view_rows=bn_view_rows)

    flops = 2 * m * kdim * n
    bytes_accessed = (x.dtype.itemsize * m * kdim + w.dtype.itemsize * kdim * n
                      + jnp.dtype(out_dtype).itemsize * m * n + 4 * n * len(vec_ops))
    cost = pl.CostEstimate(flops=flops, transcendentals=0,
                           bytes_accessed=bytes_accessed)

    if resident:
        grid = (n // tn,)
        in_specs = ([pl.BlockSpec((m, kdim), lambda ni: (0, 0)),       # x: resident
                     pl.BlockSpec((kdim, tn), lambda ni: (0, ni))]     # w: streamed
                    + [pl.BlockSpec((1, tn), lambda ni: (0, ni))] * len(vec_ops))
        out_specs = pl.BlockSpec((m, tn), lambda ni: (0, ni))
        grid_spec = pltpu.PrefetchScalarGridSpec(
            num_scalar_prefetch=0, grid=grid,
            in_specs=in_specs, out_specs=out_specs)
        dims = ("parallel",)
        kernel = kern_res
    else:
        tk = _pick_tile(kdim, TILE_K)
        grid = (n // tn, kdim // tk)
        in_specs = ([pl.BlockSpec((m, tk), lambda ni, ki: (0, ki)),
                     pl.BlockSpec((tk, tn), lambda ni, ki: (ki, ni))]
                    + [pl.BlockSpec((1, tn), lambda ni, ki: (0, ni))] * len(vec_ops))
        out_specs = pl.BlockSpec((m, tn), lambda ni, ki: (0, ni))
        grid_spec = pltpu.PrefetchScalarGridSpec(
            num_scalar_prefetch=0, grid=grid,
            in_specs=in_specs, out_specs=out_specs,
            scratch_shapes=[pltpu.VMEM((m, tn), jnp.float32)])
        dims = ("parallel", "arbitrary")
        kernel = kern_str

    return pl.pallas_call(
        kernel,
        out_shape=jax.ShapeDtypeStruct((m, n), out_dtype),
        grid_spec=grid_spec,
        compiler_params=pltpu.CompilerParams(
            dimension_semantics=dims,
            vmem_limit_bytes=VMEM_LIMIT_BYTES,
        ),
        cost_estimate=cost,
    )(x, w, *vec_ops)


def pallas_linear(x, w, b=None, *, out_dtype=None, force_mode=None):
    n = w.shape[1]
    if b is None:
        # bias-free Linear (projector's last layer): a zero bias is mathematically
        # identical and keeps the kernel count down.
        b = jnp.zeros((n,), jnp.float32)
    return _launch_linear(x, w, [b], out_dtype=out_dtype or ACT_DTYPE,
                          force_mode=force_mode)


def pallas_linear_bn_relu(x, w, b, gamma, beta, *, view_rows, force_mode=None):
    return _launch_linear(x, w, [b, gamma, beta], out_dtype=ACT_DTYPE,
                          bn_view_rows=view_rows, force_mode=force_mode)


def pallas_vicreg_loss(h, view_rows, *, inv_coeff=25.0, std_coeff=25.0, cov_coeff=1.0):
    """h: [2B, F] stacked projector outputs (view 1 rows [0,B), view 2 rows [B,2B))."""
    m, feat = h.shape
    assert m == 2 * view_rows
    tf = _pick_tile(feat, TILE_F)
    n_tiles = feat // tf
    b = view_rows

    kern = partial(
        _vicreg_loss_kernel,
        inv_nm1=1.0 / (b - 1),
        inv_scale=1.0 / (b * feat),
        std_scale=1.0 / (2.0 * feat),
        cov_scale=1.0 / feat,        # reference: num_features == projector_dims[-1]
        inv_coeff=inv_coeff,
        std_coeff=std_coeff,
        cov_coeff=cov_coeff,
    )

    view_block = (view_rows, tf)
    grid_spec = pltpu.PrefetchScalarGridSpec(
        num_scalar_prefetch=0,
        grid=(n_tiles,),
        in_specs=[
            pl.BlockSpec(view_block, lambda f: (0, f)),   # view 1 feature slab
            pl.BlockSpec(view_block, lambda f: (1, f)),   # view 2 feature slab
        ],
        out_specs=pl.BlockSpec((1, 1), lambda f: (0, 0)),
        scratch_shapes=[
            pltpu.VMEM((view_rows, view_rows), jnp.float32),   # Gram view 1
            pltpu.VMEM((view_rows, view_rows), jnp.float32),   # Gram view 2
            pltpu.VMEM((1, 1), jnp.float32),                   # inv acc
            pltpu.VMEM((1, 1), jnp.float32),                   # hinge acc
            pltpu.VMEM((1, 1), jnp.float32),                   # diag(C)^2 acc
        ],
    )
    out = pl.pallas_call(
        kern,
        out_shape=jax.ShapeDtypeStruct((1, 1), jnp.float32),
        grid_spec=grid_spec,
        compiler_params=pltpu.CompilerParams(
            dimension_semantics=("arbitrary",),
            vmem_limit_bytes=VMEM_LIMIT_BYTES,
        ),
    )(h, h)
    return out[0, 0]


def encode_and_project(z, params, *, view_rows):
    # synthetic encoder: per-sample flatten -> Linear to projector_dims[0]
    h = pallas_linear(z, params["w_enc"], params["b_enc"])
    # projector: (Linear + BN + ReLU) x 2, each ONE fused gridded kernel,
    # then a bias-free Linear.  Final output in f32 for loss fidelity (read once).
    h = pallas_linear_bn_relu(h, params["w1"], params["b1"],
                              params["g1"], params["beta1"], view_rows=view_rows)
    h = pallas_linear_bn_relu(h, params["w2"], params["b2"],
                              params["g2"], params["beta2"], view_rows=view_rows)
    h = pallas_linear(h, params["w3"], out_dtype=jnp.float32)  # no bias
    return h


def vicreg_forward(batch, params, *, inv_coeff=25.0, std_coeff=25.0, cov_coeff=1.0):
    # batch: [B, 2, H, W] float32
    b, n_views, hh, ww = batch.shape
    assert n_views == 2
    # bf16 per-view epilogue slices need the per-view batch to be a 16-multiple
    # (bf16 sublane packing); 16 also satisfies the f32 (8-sublane) constraints.
    assert b % 16 == 0
    x_in = batch[:, 0, :, :].reshape(b, hh * ww)   # view 1 (PyTorch: unsqueeze(1))
    y_in = batch[:, 1, :, :].reshape(b, hh * ww)   # view 2 (PyTorch: unsqueeze(0))
    # Stack the two views along batch so every weight tile is DMA'd once and reused
    # for 2B rows; BN statistics stay per view inside the fused kernels.
    z = jnp.concatenate([x_in, y_in], axis=0)      # [2B, H*W]
    feats = encode_and_project(z, params, view_rows=b)
    return pallas_vicreg_loss(feats, b, inv_coeff=inv_coeff,
                              std_coeff=std_coeff, cov_coeff=cov_coeff)


# ----------------------------- pure-JAX reference ---------------------------

def vicreg_reference(batch, params):
    f32 = jnp.float32
    b = batch.shape[0]
    xv = batch[:, 0].reshape(b, -1).astype(f32)
    yv = batch[:, 1].reshape(b, -1).astype(f32)

    def proj(z):
        h = z @ params["w_enc"].astype(f32) + params["b_enc"]
        for wk, bk, gk, bek in (("w1", "b1", "g1", "beta1"),
                                ("w2", "b2", "g2", "beta2")):
            h = h @ params[wk].astype(f32) + params[bk]
            mu = h.mean(axis=0)
            var = ((h - mu) ** 2).mean(axis=0)
            h = (h - mu) * jax.lax.rsqrt(var + 1e-5) * params[gk] + params[bek]
            h = jnp.maximum(h, 0.0)
        return h @ params["w3"].astype(f32)

    x = proj(xv)
    y = proj(yv)
    inv = jnp.mean((x - y) ** 2)
    xc = x - x.mean(axis=0)
    yc = y - y.mean(axis=0)
    std_x = jnp.sqrt(jnp.var(xc, axis=0, ddof=1) + 1e-4)
    std_y = jnp.sqrt(jnp.var(yc, axis=0, ddof=1) + 1e-4)
    std_l = (jnp.mean(jnp.maximum(1.0 - std_x, 0.0)) / 2
             + jnp.mean(jnp.maximum(1.0 - std_y, 0.0)) / 2)
    feat = x.shape[1]
    cov_x = xc.T @ xc / (b - 1)
    cov_y = yc.T @ yc / (b - 1)
    off = lambda c: jnp.sum(c ** 2) - jnp.sum(jnp.diag(c) ** 2)
    cov_l = off(cov_x) / feat + off(cov_y) / feat
    return 25.0 * inv + 25.0 * std_l + 1.0 * cov_l


# ----------------------------- main -----------------------------------------

def make_params(key, d_in, dims):
    ks = jax.random.split(key, 4)
    scale = 0.05
    d0, d1, d2, d3 = dims

    def w(k, i, o):
        # Weights stored in the MXU dtype so the kernels stream half the bytes and no
        # per-call cast is needed.
        return (scale * jax.random.normal(k, (i, o), jnp.float32)).astype(MATMUL_DTYPE)

    return {
        "w_enc": w(ks[0], d_in, d0), "b_enc": jnp.zeros((d0,), jnp.float32),
        "w1": w(ks[1], d0, d1), "b1": jnp.zeros((d1,), jnp.float32),
        "g1": jnp.ones((d1,), jnp.float32), "beta1": jnp.zeros((d1,), jnp.float32),
        "w2": w(ks[2], d1, d2), "b2": jnp.zeros((d2,), jnp.float32),
        "g2": jnp.ones((d2,), jnp.float32), "beta2": jnp.zeros((d2,), jnp.float32),
        "w3": w(ks[3], d2, d3),
    }


if __name__ == "__main__":
    B, H, W = 16, 32, 32
    # Scaled-down analogue of the reference (4096, 4096, 4096, 8192): all dims are
    # 128-multiples (lane-dense blocks), F=1024 exercises the multi-tile Gram pass.
    projector_dims = (256, 256, 256, 1024)

    key = jax.random.PRNGKey(0)
    k_batch, k_params = jax.random.split(key)
    batch = jax.random.normal(k_batch, (B, 2, H, W), dtype=jnp.float32)
    params = make_params(k_params, H * W, projector_dims)

    loss = jax.jit(vicreg_forward)(batch, params)
    jax.block_until_ready(loss)
    assert loss.shape == () and bool(jnp.isfinite(loss))

    # Correctness check vs a pure-JAX f32 reference (bf16 activations -> loose tol).
    loss_ref = vicreg_reference(batch, params)
    rel = abs(float(loss) - float(loss_ref)) / max(abs(float(loss_ref)), 1e-6)
    assert rel < 0.1, (float(loss), float(loss_ref), rel)

    # Cross-check the K-streamed fallback (used when 2B*K is too big to keep x
    # resident) against the resident-x path on the first two layers.
    z = jnp.concatenate([batch[:, 0].reshape(B, -1), batch[:, 1].reshape(B, -1)], 0)
    h_res = pallas_linear(z, params["w_enc"], params["b_enc"], force_mode="resident")
    h_str = pallas_linear(z, params["w_enc"], params["b_enc"], force_mode="streamed")
    assert jnp.allclose(h_res.astype(jnp.float32), h_str.astype(jnp.float32),
                        atol=1e-2, rtol=1e-2)
    h1_res = pallas_linear_bn_relu(h_res, params["w1"], params["b1"], params["g1"],
                                   params["beta1"], view_rows=B, force_mode="resident")
    h1_str = pallas_linear_bn_relu(h_res, params["w1"], params["b1"], params["g1"],
                                   params["beta1"], view_rows=B, force_mode="streamed")
    assert jnp.allclose(h1_res.astype(jnp.float32), h1_str.astype(jnp.float32),
                        atol=1e-2, rtol=1e-2)
    jax.block_until_ready(h1_str)

    print("KERNEL_OK")
</pallas_src>

<mosaic_0001>
module attributes {stable_mosaic.version = 11 : i64} {
  func.func @_linear_bias_resident_kernel(%arg0: i32, %arg1: memref<32x1024xbf16, #tpu.memory_space<vmem>>, %arg2: memref<1024x256xbf16, #tpu.memory_space<vmem>>, %arg3: memref<1x256xf32, #tpu.memory_space<vmem>>, %arg4: memref<32x256xbf16, #tpu.memory_space<vmem>>) attributes {dimension_semantics = [#tpu.dimension_semantics<parallel>], iteration_bounds = array<i64: 1>, scalar_prefetch = 0 : i64, scratch_operands = 0 : i64, tpu.core_type = #tpu.core_type<tc>, window_params = [{pipeline_mode = #tpu.pipeline_mode<synchronous>, transform_indices = @transform_0, window_bounds = array<i64: 32, 1024>}, {transform_indices = @transform_1, window_bounds = array<i64: 1024, 256>}, {transform_indices = @transform_2, window_bounds = array<i64: 1, 256>}, {transform_indices = @transform_3, window_bounds = array<i64: 32, 256>}]} {
    %c0 = arith.constant 0 : index
    %c0_0 = arith.constant 0 : index
    %0 = vector.load %arg1[%c0, %c0_0] : memref<32x1024xbf16, #tpu.memory_space<vmem>>, vector<32x1024xbf16>
    %c0_1 = arith.constant 0 : index
    %c0_2 = arith.constant 0 : index
    %1 = vector.load %arg2[%c0_1, %c0_2] : memref<1024x256xbf16, #tpu.memory_space<vmem>>, vector<1024x256xbf16>
    %cst = arith.constant dense<0.000000e+00> : vector<32x256xf32>
    %2 = tpu.matmul %0, %1, %cst {dimension_numbers = #tpu.dot_dimension_numbers<[1], [0], [0], [1], [0, 0, 1, 1], [], []>} : vector<32x1024xbf16>, vector<1024x256xbf16>, vector<32x256xf32> -> vector<32x256xf32>
    %c0_3 = arith.constant 0 : index
    %c0_4 = arith.constant 0 : index
    %3 = vector.load %arg3[%c0_3, %c0_4] : memref<1x256xf32, #tpu.memory_space<vmem>>, vector<1x256xf32>
    %4 = vector.broadcast %3 : vector<1x256xf32> to vector<32x256xf32>
    %5 = arith.addf %2, %4 : vector<32x256xf32>
    %6 = arith.truncf %5 : vector<32x256xf32> to vector<32x256xbf16>
    %c0_5 = arith.constant 0 : index
    %c0_6 = arith.constant 0 : index
    %7 = vector.load %arg4[%c0_5, %c0_6] : memref<32x256xbf16, #tpu.memory_space<vmem>>, vector<32x256xbf16>
    tpu.vector_store %arg4[%c0_5, %c0_6], %6 {strides = array<i32>} : memref<32x256xbf16, #tpu.memory_space<vmem>>, vector<32x256xbf16>,
    return
  }
  func.func @transform_0(%arg0: i32) -> (i32, i32) {
    %c0_i32 = arith.constant 0 : i32
    %c0_i32_0 = arith.constant 0 : i32
    %c0_i32_1 = arith.constant 0 : i32
    return %c0_i32, %c0_i32_0 : i32, i32
  }
  func.func @transform_1(%arg0: i32) -> (i32, i32) {
    %c0_i32 = arith.constant 0 : i32
    %c0_i32_0 = arith.constant 0 : i32
    return %c0_i32, %arg0 : i32, i32
  }
  func.func @transform_2(%arg0: i32) -> (i32, i32) {
    %c0_i32 = arith.constant 0 : i32
    %c0_i32_0 = arith.constant 0 : i32
    return %c0_i32, %arg0 : i32, i32
  }
  func.func @transform_3(%arg0: i32) -> (i32, i32) {
    %c0_i32 = arith.constant 0 : i32
    %c0_i32_0 = arith.constant 0 : i32
    return %c0_i32, %arg0 : i32, i32
  }
}

module attributes {stable_mosaic.version = 11 : i64} {
  func.func @_linear_bn_relu_resident_kernel(%arg0: i32, %arg1: memref<32x256xbf16, #tpu.memory_space<vmem>>, %arg2: memref<256x256xbf16, #tpu.memory_space<vmem>>, %arg3: memref<1x256xf32, #tpu.memory_space<vmem>>, %arg4: memref<1x256xf32, #tpu.memory_space<vmem>>, %arg5: memref<1x256xf32, #tpu.memory_space<vmem>>, %arg6: memref<32x256xbf16, #tpu.memory_space<vmem>>) attributes {dimension_semantics = [#tpu.dimension_semantics<parallel>], iteration_bounds = array<i64: 1>, scalar_prefetch = 0 : i64, scratch_operands = 0 : i64, tpu.core_type = #tpu.core_type<tc>, window_params = [{pipeline_mode = #tpu.pipeline_mode<synchronous>, transform_indices = @transform_0, window_bounds = array<i64: 32, 256>}, {transform_indices = @transform_1, window_bounds = array<i64: 256, 256>}, {transform_indices = @transform_2, window_bounds = array<i64: 1, 256>}, {transform_indices = @transform_3, window_bounds = array<i64: 1, 256>}, {transform_indices = @transform_4, window_bounds = array<i64: 1, 256>}, {transform_indices = @transform_5, window_bounds = array<i64: 32, 256>}]} {
    %c0 = arith.constant 0 : index
    %c0_0 = arith.constant 0 : index
    %0 = vector.load %arg1[%c0, %c0_0] : memref<32x256xbf16, #tpu.memory_space<vmem>>, vector<32x256xbf16>
    %c0_1 = arith.constant 0 : index
    %c0_2 = arith.constant 0 : index
    %1 = vector.load %arg2[%c0_1, %c0_2] : memref<256x256xbf16, #tpu.memory_space<vmem>>, vector<256x256xbf16>
    %cst = arith.constant dense<0.000000e+00> : vector<32x256xf32>
    %2 = tpu.matmul %0, %1, %cst {dimension_numbers = #tpu.dot_dimension_numbers<[1], [0], [0], [1], [0, 0, 1, 1], [], []>} : vector<32x256xbf16>, vector<256x256xbf16>, vector<32x256xf32> -> vector<32x256xf32>
    %c0_3 = arith.constant 0 : index
    %c0_4 = arith.constant 0 : index
    %3 = vector.load %arg3[%c0_3, %c0_4] : memref<1x256xf32, #tpu.memory_space<vmem>>, vector<1x256xf32>
    %c0_5 = arith.constant 0 : index
    %c0_6 = arith.constant 0 : index
    %4 = vector.load %arg4[%c0_5, %c0_6] : memref<1x256xf32, #tpu.memory_space<vmem>>, vector<1x256xf32>
    %c0_7 = arith.constant 0 : index
    %c0_8 = arith.constant 0 : index
    %5 = vector.load %arg5[%c0_7, %c0_8] : memref<1x256xf32, #tpu.memory_space<vmem>>, vector<1x256xf32>
    %6 = vector.extract_strided_slice %2 {offsets = [0, 0], sizes = [16, 256], strides = [1, 1]} : vector<32x256xf32> to vector<16x256xf32>
    %7 = vector.broadcast %3 : vector<1x256xf32> to vector<16x256xf32>
    %8 = arith.addf %6, %7 : vector<16x256xf32>
    %cst_9 = arith.constant dense<0.000000e+00> : vector<256xf32>
    %9 = vector.multi_reduction <add>, %8, %cst_9 [0] : vector<16x256xf32> to vector<256xf32>
    %10 = vector.shape_cast %9 : vector<256xf32> to vector<1x256xf32>
    %cst_10 = arith.constant 1.600000e+01 : f32
    %11 = vector.broadcast %cst_10 : f32 to vector<1x256xf32>
    %12 = arith.divf %10, %11 : vector<1x256xf32>
    %13 = vector.broadcast %12 : vector<1x256xf32> to vector<16x256xf32>
    %14 = arith.subf %8, %13 : vector<16x256xf32>
    %15 = arith.mulf %14, %14 : vector<16x256xf32>
    %cst_11 = arith.constant dense<0.000000e+00> : vector<256xf32>
    %16 = vector.multi_reduction <add>, %15, %cst_11 [0] : vector<16x256xf32> to vector<256xf32>
    %17 = vector.shape_cast %16 : vector<256xf32> to vector<1x256xf32>
    %cst_12 = arith.constant 1.600000e+01 : f32
    %18 = vector.broadcast %cst_12 : f32 to vector<1x256xf32>
    %19 = arith.divf %17, %18 : vector<1x256xf32>
    %20 = vector.broadcast %12 : vector<1x256xf32> to vector<16x256xf32>
    %21 = arith.subf %8, %20 : vector<16x256xf32>
    %cst_13 = arith.constant 9.99999974E-6 : f32
    %22 = vector.broadcast %cst_13 : f32 to vector<1x256xf32>
    %23 = arith.addf %19, %22 : vector<1x256xf32>
    %24 = math.rsqrt %23 : vector<1x256xf32>
    %25 = vector.broadcast %24 : vector<1x256xf32> to vector<16x256xf32>
    %26 = arith.mulf %21, %25 : vector<16x256xf32>
    %27 = vector.broadcast %4 : vector<1x256xf32> to vector<16x256xf32>
    %28 = arith.mulf %26, %27 : vector<16x256xf32>
    %29 = vector.broadcast %5 : vector<1x256xf32> to vector<16x256xf32>
    %30 = arith.addf %28, %29 : vector<16x256xf32>
    %cst_14 = arith.constant 0.000000e+00 : f32
    %31 = vector.broadcast %cst_14 : f32 to vector<16x256xf32>
    %32 = arith.maximumf %30, %31 : vector<16x256xf32>
    %33 = arith.truncf %32 : vector<16x256xf32> to vector<16x256xbf16>
    %c0_15 = arith.constant 0 : index
    %c0_16 = arith.constant 0 : index
    %34 = vector.load %arg6[%c0_15, %c0_16] : memref<32x256xbf16, #tpu.memory_space<vmem>>, vector<16x256xbf16>
    tpu.vector_store %arg6[%c0_15, %c0_16], %33 {strides = array<i32>} : memref<32x256xbf16, #tpu.memory_space<vmem>>, vector<16x256xbf16>,
    %35 = vector.extract_strided_slice %2 {offsets = [16, 0], sizes = [16, 256], strides = [1, 1]} : vector<32x256xf32> to vector<16x256xf32>
    %36 = vector.broadcast %3 : vector<1x256xf32> to vector<16x256xf32>
    %37 = arith.addf %35, %36 : vector<16x256xf32>
    %cst_17 = arith.constant dense<0.000000e+00> : vector<256xf32>
    %38 = vector.multi_reduction <add>, %37, %cst_17 [0] : vector<16x256xf32> to vector<256xf32>
    %39 = vector.shape_cast %38 : vector<256xf32> to vector<1x256xf32>
    %cst_18 = arith.constant 1.600000e+01 : f32
    %40 = vector.broadcast %cst_18 : f32 to vector<1x256xf32>
    %41 = arith.divf %39, %40 : vector<1x256xf32>
    %42 = vector.broadcast %41 : vector<1x256xf32> to vector<16x256xf32>
    %43 = arith.subf %37, %42 : vector<16x256xf32>
    %44 = arith.mulf %43, %43 : vector<16x256xf32>
    %cst_19 = arith.constant dense<0.000000e+00> : vector<256xf32>
    %45 = vector.multi_reduction <add>, %44, %cst_19 [0] : vector<16x256xf32> to vector<256xf32>
    %46 = vector.shape_cast %45 : vector<256xf32> to vector<1x256xf32>
    %cst_20 = arith.constant 1.600000e+01 : f32
    %47 = vector.broadcast %cst_20 : f32 to vector<1x256xf32>
    %48 = arith.divf %46, %47 : vector<1x256xf32>
    %49 = vector.broadcast %41 : vector<1x256xf32> to vector<16x256xf32>
    %50 = arith.subf %37, %49 : vector<16x256xf32>
    %cst_21 = arith.constant 9.99999974E-6 : f32
    %51 = vector.broadcast %cst_21 : f32 to vector<1x256xf32>
    %52 = arith.addf %48, %51 : vector<1x256xf32>
    %53 = math.rsqrt %52 : vector<1x256xf32>
    %54 = vector.broadcast %53 : vector<1x256xf32> to vector<16x256xf32>
    %55 = arith.mulf %50, %54 : vector<16x256xf32>
    %56 = vector.broadcast %4 : vector<1x256xf32> to vector<16x256xf32>
    %57 = arith.mulf %55, %56 : vector<16x256xf32>
    %58 = vector.broadcast %5 : vector<1x256xf32> to vector<16x256xf32>
    %59 = arith.addf %57, %58 : vector<16x256xf32>
    %cst_22 = arith.constant 0.000000e+00 : f32
    %60 = vector.broadcast %cst_22 : f32 to vector<16x256xf32>
    %61 = arith.maximumf %59, %60 : vector<16x256xf32>
    %62 = arith.truncf %61 : vector<16x256xf32> to vector<16x256xbf16>
    %c16 = arith.constant 16 : index
    %c0_23 = arith.constant 0 : index
    %63 = vector.load %arg6[%c16, %c0_23] : memref<32x256xbf16, #tpu.memory_space<vmem>>, vector<16x256xbf16>
    tpu.vector_store %arg6[%c16, %c0_23], %62 {strides = array<i32>} : memref<32x256xbf16, #tpu.memory_space<vmem>>, vector<16x256xbf16>,
    return
  }
  func.func @transform_0(%arg0: i32) -> (i32, i32) {
    %c0_i32 = arith.constant 0 : i32
    %c0_i32_0 = arith.constant 0 : i32
    %c0_i32_1 = arith.constant 0 : i32
    return %c0_i32, %c0_i32_0 : i32, i32
  }
  func.func @transform_1(%arg0: i32) -> (i32, i32) {
    %c0_i32 = arith.constant 0 : i32
    %c0_i32_0 = arith.constant 0 : i32
    return %c0_i32, %arg0 : i32, i32
  }
  func.func @transform_2(%arg0: i32) -> (i32, i32) {
    %c0_i32 = arith.constant 0 : i32
    %c0_i32_0 = arith.constant 0 : i32
    return %c0_i32, %arg0 : i32, i32
  }
  func.func @transform_3(%arg0: i32) -> (i32, i32) {
    %c0_i32 = arith.constant 0 : i32
    %c0_i32_0 = arith.constant 0 : i32
    return %c0_i32, %arg0 : i32, i32
  }
  func.func @transform_4(%arg0: i32) -> (i32, i32) {
    %c0_i32 = arith.constant 0 : i32
    %c0_i32_0 = arith.constant 0 : i32
    return %c0_i32, %arg0 : i32, i32
  }
  func.func @transform_5(%arg0: i32) -> (i32, i32) {
    %c0_i32 = arith.constant 0 : i32
    %c0_i32_0 = arith.constant 0 : i32
    return %c0_i32, %arg0 : i32, i32
  }
}

module attributes {stable_mosaic.version = 11 : i64} {
  func.func @_linear_bias_resident_kernel(%arg0: i32, %arg1: memref<32x256xbf16, #tpu.memory_space<vmem>>, %arg2: memref<256x256xbf16, #tpu.memory_space<vmem>>, %arg3: memref<1x256xf32, #tpu.memory_space<vmem>>, %arg4: memref<32x256xf32, #tpu.memory_space<vmem>>) attributes {dimension_semantics = [#tpu.dimension_semantics<parallel>], iteration_bounds = array<i64: 4>, scalar_prefetch = 0 : i64, scratch_operands = 0 : i64, tpu.core_type = #tpu.core_type<tc>, window_params = [{pipeline_mode = #tpu.pipeline_mode<synchronous>, transform_indices = @transform_0, window_bounds = array<i64: 32, 256>}, {transform_indices = @transform_1, window_bounds = array<i64: 256, 256>}, {transform_indices = @transform_2, window_bounds = array<i64: 1, 256>}, {transform_indices = @transform_3, window_bounds = array<i64: 32, 256>}]} {
    %c0 = arith.constant 0 : index
    %c0_0 = arith.constant 0 : index
    %0 = vector.load %arg1[%c0, %c0_0] : memref<32x256xbf16, #tpu.memory_space<vmem>>, vector<32x256xbf16>
    %c0_1 = arith.constant 0 : index
    %c0_2 = arith.constant 0 : index
    %1 = vector.load %arg2[%c0_1, %c0_2] : memref<256x256xbf16, #tpu.memory_space<vmem>>, vector<256x256xbf16>
    %cst = arith.constant dense<0.000000e+00> : vector<32x256xf32>
    %2 = tpu.matmul %0, %1, %cst {dimension_numbers = #tpu.dot_dimension_numbers<[1], [0], [0], [1], [0, 0, 1, 1], [], []>} : vector<32x256xbf16>, vector<256x256xbf16>, vector<32x256xf32> -> vector<32x256xf32>
    %c0_3 = arith.constant 0 : index
    %c0_4 = arith.constant 0 : index
    %3 = vector.load %arg3[%c0_3, %c0_4] : memref<1x256xf32, #tpu.memory_space<vmem>>, vector<1x256xf32>
    %4 = vector.broadcast %3 : vector<1x256xf32> to vector<32x256xf32>
    %5 = arith.addf %2, %4 : vector<32x256xf32>
    %c0_5 = arith.constant 0 : index
    %c0_6 = arith.constant 0 : index
    %6 = vector.load %arg4[%c0_5, %c0_6] : memref<32x256xf32, #tpu.memory_space<vmem>>, vector<32x256xf32>
    tpu.vector_store %arg4[%c0_5, %c0_6], %5 {strides = array<i32>} : memref<32x256xf32, #tpu.memory_space<vmem>>, vector<32x256xf32>,
    return
  }
  func.func @transform_0(%arg0: i32) -> (i32, i32) {
    %c0_i32 = arith.constant 0 : i32
    %c0_i32_0 = arith.constant 0 : i32
    %c0_i32_1 = arith.constant 0 : i32
    return %c0_i32, %c0_i32_0 : i32, i32
  }
  func.func @transform_1(%arg0: i32) -> (i32, i32) {
    %c0_i32 = arith.constant 0 : i32
    %c0_i32_0 = arith.constant 0 : i32
    return %c0_i32, %arg0 : i32, i32
  }
  func.func @transform_2(%arg0: i32) -> (i32, i32) {
    %c0_i32 = arith.constant 0 : i32
    %c0_i32_0 = arith.constant 0 : i32
    return %c0_i32, %arg0 : i32, i32
  }
  func.func @transform_3(%arg0: i32) -> (i32, i32) {
    %c0_i32 = arith.constant 0 : i32
    %c0_i32_0 = arith.constant 0 : i32
    return %c0_i32, %arg0 : i32, i32
  }
}

module attributes {stable_mosaic.version = 11 : i64} {
  func.func @_vicreg_loss_kernel(%arg0: i32, %arg1: memref<16x512xf32, #tpu.memory_space<vmem>>, %arg2: memref<16x512xf32, #tpu.memory_space<vmem>>, %arg3: memref<1x1xf32, #tpu.memory_space<vmem>>, %arg4: memref<16x16xf32, #tpu.memory_space<vmem>>, %arg5: memref<16x16xf32, #tpu.memory_space<vmem>>, %arg6: memref<1x1xf32, #tpu.memory_space<vmem>>, %arg7: memref<1x1xf32, #tpu.memory_space<vmem>>, %arg8: memref<1x1xf32, #tpu.memory_space<vmem>>) attributes {dimension_semantics = [#tpu.dimension_semantics<arbitrary>], iteration_bounds = array<i64: 2>, scalar_prefetch = 0 : i64, scratch_operands = 5 : i64, tpu.core_type = #tpu.core_type<tc>, window_params = [{transform_indices = @transform_0, window_bounds = array<i64: 16, 512>}, {transform_indices = @transform_1, window_bounds = array<i64: 16, 512>}, {pipeline_mode = #tpu.pipeline_mode<synchronous>, transform_indices = @transform_2, window_bounds = array<i64: 1, 1>}]} {
    %c0_i32 = arith.constant 0 : i32
    %0 = arith.cmpi eq, %arg0, %c0_i32 : i32
    %1 = arith.extui %0 : i1 to i32
    %c0_i32_0 = arith.constant 0 : i32
    %2 = arith.cmpi ne, %1, %c0_i32_0 : i32
    scf.if %2 {
      %cst_45 = arith.constant 0.000000e+00 : f32
      %79 = vector.broadcast %cst_45 : f32 to vector<16x16xf32>
      %c0_46 = arith.constant 0 : index
      %c0_47 = arith.constant 0 : index
      %80 = vector.load %arg4[%c0_46, %c0_47] : memref<16x16xf32, #tpu.memory_space<vmem>>, vector<16x16xf32>
      tpu.vector_store %arg4[%c0_46, %c0_47], %79 {strides = array<i32>} : memref<16x16xf32, #tpu.memory_space<vmem>>, vector<16x16xf32>,
      %cst_48 = arith.constant 0.000000e+00 : f32
      %81 = vector.broadcast %cst_48 : f32 to vector<16x16xf32>
      %c0_49 = arith.constant 0 : index
      %c0_50 = arith.constant 0 : index
      %82 = vector.load %arg5[%c0_49, %c0_50] : memref<16x16xf32, #tpu.memory_space<vmem>>, vector<16x16xf32>
      tpu.vector_store %arg5[%c0_49, %c0_50], %81 {strides = array<i32>} : memref<16x16xf32, #tpu.memory_space<vmem>>, vector<16x16xf32>,
      %cst_51 = arith.constant 0.000000e+00 : f32
      %83 = vector.broadcast %cst_51 : f32 to vector<1x1xf32>
      %c0_52 = arith.constant 0 : index
      %c0_53 = arith.constant 0 : index
      %84 = vector.load %arg6[%c0_52, %c0_53] : memref<1x1xf32, #tpu.memory_space<vmem>>, vector<1x1xf32>
      tpu.vector_store %arg6[%c0_52, %c0_53], %83 {strides = array<i32>} : memref<1x1xf32, #tpu.memory_space<vmem>>, vector<1x1xf32>,
      %cst_54 = arith.constant 0.000000e+00 : f32
      %85 = vector.broadcast %cst_54 : f32 to vector<1x1xf32>
      %c0_55 = arith.constant 0 : index
      %c0_56 = arith.constant 0 : index
      %86 = vector.load %arg7[%c0_55, %c0_56] : memref<1x1xf32, #tpu.memory_space<vmem>>, vector<1x1xf32>
      tpu.vector_store %arg7[%c0_55, %c0_56], %85 {strides = array<i32>} : memref<1x1xf32, #tpu.memory_space<vmem>>, vector<1x1xf32>,
      %cst_57 = arith.constant 0.000000e+00 : f32
      %87 = vector.broadcast %cst_57 : f32 to vector<1x1xf32>
      %c0_58 = arith.constant 0 : index
      %c0_59 = arith.constant 0 : index
      %88 = vector.load %arg8[%c0_58, %c0_59] : memref<1x1xf32, #tpu.memory_space<vmem>>, vector<1x1xf32>
      tpu.vector_store %arg8[%c0_58, %c0_59], %87 {strides = array<i32>} : memref<1x1xf32, #tpu.memory_space<vmem>>, vector<1x1xf32>,
    } else {
    }
    %c0 = arith.constant 0 : index
    %c0_1 = arith.constant 0 : index
    %3 = vector.load %arg1[%c0, %c0_1] : memref<16x512xf32, #tpu.memory_space<vmem>>, vector<16x512xf32>
    %c0_2 = arith.constant 0 : index
    %c0_3 = arith.constant 0 : index
    %4 = vector.load %arg2[%c0_2, %c0_3] : memref<16x512xf32, #tpu.memory_space<vmem>>, vector<16x512xf32>
    %5 = arith.subf %3, %4 : vector<16x512xf32>
    %c0_4 = arith.constant 0 : index
    %c0_5 = arith.constant 0 : index
    %6 = vector.load %arg6[%c0_4, %c0_5] : memref<1x1xf32, #tpu.memory_space<vmem>>, vector<1x1xf32>
    %7 = arith.mulf %5, %5 : vector<16x512xf32>
    %cst = arith.constant dense<0.000000e+00> : vector<16xf32>
    %8 = vector.multi_reduction <add>, %7, %cst [1] : vector<16x512xf32> to vector<16xf32>
    %9 = vector.shape_cast %8 : vector<16xf32> to vector<16x1xf32>
    %cst_6 = arith.constant dense<0.000000e+00> : vector<1xf32>
    %10 = vector.multi_reduction <add>, %9, %cst_6 [0] : vector<16x1xf32> to vector<1xf32>
    %11 = vector.shape_cast %10 : vector<1xf32> to vector<1x1xf32>
    %12 = arith.addf %6, %11 : vector<1x1xf32>
    %c0_7 = arith.constant 0 : index
    %c0_8 = arith.constant 0 : index
    %13 = vector.load %arg6[%c0_7, %c0_8] : memref<1x1xf32, #tpu.memory_space<vmem>>, vector<1x1xf32>
    tpu.vector_store %arg6[%c0_7, %c0_8], %12 {strides = array<i32>} : memref<1x1xf32, #tpu.memory_space<vmem>>, vector<1x1xf32>,
    %cst_9 = arith.constant dense<0.000000e+00> : vector<512xf32>
    %14 = vector.multi_reduction <add>, %3, %cst_9 [0] : vector<16x512xf32> to vector<512xf32>
    %15 = vector.shape_cast %14 : vector<512xf32> to vector<1x512xf32>
    %cst_10 = arith.constant 1.600000e+01 : f32
    %16 = vector.broadcast %cst_10 : f32 to vector<1x512xf32>
    %17 = arith.divf %15, %16 : vector<1x512xf32>
    %18 = vector.broadcast %17 : vector<1x512xf32> to vector<16x512xf32>
    %19 = arith.subf %3, %18 : vector<16x512xf32>
    %cst_11 = arith.constant dense<0.000000e+00> : vector<512xf32>
    %20 = vector.multi_reduction <add>, %4, %cst_11 [0] : vector<16x512xf32> to vector<512xf32>
    %21 = vector.shape_cast %20 : vector<512xf32> to vector<1x512xf32>
    %cst_12 = arith.constant 1.600000e+01 : f32
    %22 = vector.broadcast %cst_12 : f32 to vector<1x512xf32>
    %23 = arith.divf %21, %22 : vector<1x512xf32>
    %24 = vector.broadcast %23 : vector<1x512xf32> to vector<16x512xf32>
    %25 = arith.subf %4, %24 : vector<16x512xf32>
    %26 = arith.mulf %19, %19 : vector<16x512xf32>
    %cst_13 = arith.constant dense<0.000000e+00> : vector<512xf32>
    %27 = vector.multi_reduction <add>, %26, %cst_13 [0] : vector<16x512xf32> to vector<512xf32>
    %28 = vector.shape_cast %27 : vector<512xf32> to vector<1x512xf32>
    %cst_14 = arith.constant 0.0666666701 : f32
    %29 = vector.broadcast %cst_14 : f32 to vector<1x512xf32>
    %30 = arith.mulf %28, %29 : vector<1x512xf32>
    %31 = arith.mulf %25, %25 : vector<16x512xf32>
    %cst_15 = arith.constant dense<0.000000e+00> : vector<512xf32>
    %32 = vector.multi_reduction <add>, %31, %cst_15 [0] : vector<16x512xf32> to vector<512xf32>
    %33 = vector.shape_cast %32 : vector<512xf32> to vector<1x512xf32>
    %cst_16 = arith.constant 0.0666666701 : f32
    %34 = vector.broadcast %cst_16 : f32 to vector<1x512xf32>
    %35 = arith.mulf %33, %34 : vector<1x512xf32>
    %cst_17 = arith.constant 9.99999974E-5 : f32
    %36 = vector.broadcast %cst_17 : f32 to vector<1x512xf32>
    %37 = arith.addf %30, %36 : vector<1x512xf32>
    %38 = math.sqrt %37 : vector<1x512xf32>
    %cst_18 = arith.constant 1.000000e+00 : f32
    %39 = vector.broadcast %cst_18 : f32 to vector<1x512xf32>
    %40 = arith.subf %39, %38 : vector<1x512xf32>
    %cst_19 = arith.constant 0.000000e+00 : f32
    %41 = vector.broadcast %cst_19 : f32 to vector<1x512xf32>
    %42 = arith.maximumf %40, %41 : vector<1x512xf32>
    %cst_20 = arith.constant 9.99999974E-5 : f32
    %43 = vector.broadcast %cst_20 : f32 to vector<1x512xf32>
    %44 = arith.addf %35, %43 : vector<1x512xf32>
    %45 = math.sqrt %44 : vector<1x512xf32>
    %cst_21 = arith.constant 1.000000e+00 : f32
    %46 = vector.broadcast %cst_21 : f32 to vector<1x512xf32>
    %47 = arith.subf %46, %45 : vector<1x512xf32>
    %cst_22 = arith.constant 0.000000e+00 : f32
    %48 = vector.broadcast %cst_22 : f32 to vector<1x512xf32>
    %49 = arith.maximumf %47, %48 : vector<1x512xf32>
    %50 = arith.addf %42, %49 : vector<1x512xf32>
    %c0_23 = arith.constant 0 : index
    %c0_24 = arith.constant 0 : index
    %51 = vector.load %arg7[%c0_23, %c0_24] : memref<1x1xf32, #tpu.memory_space<vmem>>, vector<1x1xf32>
    %cst_25 = arith.constant dense<0.000000e+00> : vector<1xf32>
    %52 = vector.multi_reduction <add>, %50, %cst_25 [1] : vector<1x512xf32> to vector<1xf32>
    %53 = vector.shape_cast %52 : vector<1xf32> to vector<1x1xf32>
    %54 = arith.addf %51, %53 : vector<1x1xf32>
    %c0_26 = arith.constant 0 : index
    %c0_27 = arith.constant 0 : index
    %55 = vector.load %arg7[%c0_26, %c0_27] : memref<1x1xf32, #tpu.memory_space<vmem>>, vector<1x1xf32>
    tpu.vector_store %arg7[%c0_26, %c0_27], %54 {strides = array<i32>} : memref<1x1xf32, #tpu.memory_space<vmem>>, vector<1x1xf32>,
    %c0_28 = arith.constant 0 : index
    %c0_29 = arith.constant 0 : index
    %56 = vector.load %arg8[%c0_28, %c0_29] : memref<1x1xf32, #tpu.memory_space<vmem>>, vector<1x1xf32>
    %57 = arith.mulf %30, %30 : vector<1x512xf32>
    %58 = arith.mulf %35, %35 : vector<1x512xf32>
    %59 = arith.addf %57, %58 : vector<1x512xf32>
    %cst_30 = arith.constant dense<0.000000e+00> : vector<1xf32>
    %60 = vector.multi_reduction <add>, %59, %cst_30 [1] : vector<1x512xf32> to vector<1xf32>
    %61 = vector.shape_cast %60 : vector<1xf32> to vector<1x1xf32>
    %cst_31 = arith.constant dense<0.000000e+00> : vector<1xf32>
    %62 = vector.multi_reduction <add>, %61, %cst_31 [0] : vector<1x1xf32> to vector<1xf32>
    %63 = vector.shape_cast %62 : vector<1xf32> to vector<1x1xf32>
    %64 = arith.addf %56, %63 : vector<1x1xf32>
    %c0_32 = arith.constant 0 : index
    %c0_33 = arith.constant 0 : index
    %65 = vector.load %arg8[%c0_32, %c0_33] : memref<1x1xf32, #tpu.memory_space<vmem>>, vector<1x1xf32>
    tpu.vector_store %arg8[%c0_32, %c0_33], %64 {strides = array<i32>} : memref<1x1xf32, #tpu.memory_space<vmem>>, vector<1x1xf32>,
    %66 = arith.truncf %19 : vector<16x512xf32> to vector<16x512xbf16>
    %67 = arith.truncf %25 : vector<16x512xf32> to vector<16x512xbf16>
    %c0_34 = arith.constant 0 : index
    %c0_35 = arith.constant 0 : index
    %68 = vector.load %arg4[%c0_34, %c0_35] : memref<16x16xf32, #tpu.memory_space<vmem>>, vector<16x16xf32>
    %cst_36 = arith.constant dense<0.000000e+00> : vector<16x16xf32>
    %69 = tpu.matmul %66, %66, %cst_36 {dimension_numbers = #tpu.dot_dimension_numbers<[1], [1], [0], [0], [0, 0, 1, 0], [], []>} : vector<16x512xbf16>, vector<16x512xbf16>, vector<16x16xf32> -> vector<16x16xf32>
    %70 = arith.addf %68, %69 : vector<16x16xf32>
    %c0_37 = arith.constant 0 : index
    %c0_38 = arith.constant 0 : index
    %71 = vector.load %arg4[%c0_37, %c0_38] : memref<16x16xf32, #tpu.memory_space<vmem>>, vector<16x16xf32>
    tpu.vector_store %arg4[%c0_37, %c0_38], %70 {strides = array<i32>} : memref<16x16xf32, #tpu.memory_space<vmem>>, vector<16x16xf32>,
    %c0_39 = arith.constant 0 : index
    %c0_40 = arith.constant 0 : index
    %72 = vector.load %arg5[%c0_39, %c0_40] : memref<16x16xf32, #tpu.memory_space<vmem>>, vector<16x16xf32>
    %cst_41 = arith.constant dense<0.000000e+00> : vector<16x16xf32>
    %73 = tpu.matmul %67, %67, %cst_41 {dimension_numbers = #tpu.dot_dimension_numbers<[1], [1], [0], [0], [0, 0, 1, 0], [], []>} : vector<16x512xbf16>, vector<16x512xbf16>, vector<16x16xf32> -> vector<16x16xf32>
    %74 = arith.addf %72, %73 : vector<16x16xf32>
    %c0_42 = arith.constant 0 : index
    %c0_43 = arith.constant 0 : index
    %75 = vector.load %arg5[%c0_42, %c0_43] : memref<16x16xf32, #tpu.memory_space<vmem>>, vector<16x16xf32>
    tpu.vector_store %arg5[%c0_42, %c0_43], %74 {strides = array<i32>} : memref<16x16xf32, #tpu.memory_space<vmem>>, vector<16x16xf32>,
    %c1_i32 = arith.constant 1 : i32
    %76 = arith.cmpi eq, %arg0, %c1_i32 : i32
    %77 = arith.extui %76 : i1 to i32
    %c0_i32_44 = arith.constant 0 : i32
    %78 = arith.cmpi ne, %77, %c0_i32_44 : i32
    scf.if %78 {
      %c0_45 = arith.constant 0 : index
      %c0_46 = arith.constant 0 : index
      %79 = vector.load %arg4[%c0_45, %c0_46] : memref<16x16xf32, #tpu.memory_space<vmem>>, vector<16x16xf32>
      %c0_47 = arith.constant 0 : index
      %c0_48 = arith.constant 0 : index
      %80 = vector.load %arg4[%c0_47, %c0_48] : memref<16x16xf32, #tpu.memory_space<vmem>>, vector<16x16xf32>
      %81 = arith.mulf %79, %80 : vector<16x16xf32>
      %c0_49 = arith.constant 0 : index
      %c0_50 = arith.constant 0 : index
      %82 = vector.load %arg5[%c0_49, %c0_50] : memref<16x16xf32, #tpu.memory_space<vmem>>, vector<16x16xf32>
      %c0_51 = arith.constant 0 : index
      %c0_52 = arith.constant 0 : index
      %83 = vector.load %arg5[%c0_51, %c0_52] : memref<16x16xf32, #tpu.memory_space<vmem>>, vector<16x16xf32>
      %84 = arith.mulf %82, %83 : vector<16x16xf32>
      %85 = arith.addf %81, %84 : vector<16x16xf32>
      %cst_53 = arith.constant dense<0.000000e+00> : vector<16xf32>
      %86 = vector.multi_reduction <add>, %85, %cst_53 [1] : vector<16x16xf32> to vector<16xf32>
      %87 = vector.shape_cast %86 : vector<16xf32> to vector<16x1xf32>
      %cst_54 = arith.constant dense<0.000000e+00> : vector<1xf32>
      %88 = vector.multi_reduction <add>, %87, %cst_54 [0] : vector<16x1xf32> to vector<1xf32>
      %89 = vector.shape_cast %88 : vector<1xf32> to vector<1x1xf32>
      %cst_55 = arith.constant 0.00444444455 : f32
      %90 = vector.broadcast %cst_55 : f32 to vector<1x1xf32>
      %91 = arith.mulf %89, %90 : vector<1x1xf32>
      %c0_56 = arith.constant 0 : index
      %c0_57 = arith.constant 0 : index
      %92 = vector.load %arg6[%c0_56, %c0_57] : memref<1x1xf32, #tpu.memory_space<vmem>>, vector<1x1xf32>
      %cst_58 = arith.constant 6.10351563E-5 : f32
      %93 = vector.broadcast %cst_58 : f32 to vector<1x1xf32>
      %94 = arith.mulf %92, %93 : vector<1x1xf32>
      %c0_59 = arith.constant 0 : index
      %c0_60 = arith.constant 0 : index
      %95 = vector.load %arg7[%c0_59, %c0_60] : memref<1x1xf32, #tpu.memory_space<vmem>>, vector<1x1xf32>
      %cst_61 = arith.constant 4.8828125E-4 : f32
      %96 = vector.broadcast %cst_61 : f32 to vector<1x1xf32>
      %97 = arith.mulf %95, %96 : vector<1x1xf32>
      %c0_62 = arith.constant 0 : index
      %c0_63 = arith.constant 0 : index
      %98 = vector.load %arg8[%c0_62, %c0_63] : memref<1x1xf32, #tpu.memory_space<vmem>>, vector<1x1xf32>
      %99 = arith.subf %91, %98 : vector<1x1xf32>
      %cst_64 = arith.constant 9.765625E-4 : f32
      %100 = vector.broadcast %cst_64 : f32 to vector<1x1xf32>
      %101 = arith.mulf %99, %100 : vector<1x1xf32>
      %cst_65 = arith.constant 2.500000e+01 : f32
      %102 = vector.broadcast %cst_65 : f32 to vector<1x1xf32>
      %103 = arith.mulf %102, %94 : vector<1x1xf32>
      %cst_66 = arith.constant 2.500000e+01 : f32
      %104 = vector.broadcast %cst_66 : f32 to vector<1x1xf32>
      %105 = arith.mulf %104, %97 : vector<1x1xf32>
      %106 = arith.addf %103, %105 : vector<1x1xf32>
      %cst_67 = arith.constant 1.000000e+00 : f32
      %107 = vector.broadcast %cst_67 : f32 to vector<1x1xf32>
      %108 = arith.mulf %107, %101 : vector<1x1xf32>
      %109 = arith.addf %106, %108 : vector<1x1xf32>
      %c0_68 = arith.constant 0 : index
      %c0_69 = arith.constant 0 : index
      %110 = vector.load %arg3[%c0_68, %c0_69] : memref<1x1xf32, #tpu.memory_space<vmem>>, vector<1x1xf32>
      tpu.vector_store %arg3[%c0_68, %c0_69], %109 {strides = array<i32>} : memref<1x1xf32, #tpu.memory_space<vmem>>, vector<1x1xf32>,
    } else {
    }
    return
  }
  func.func @transform_0(%arg0: i32) -> (i32, i32) {
    %c0_i32 = arith.constant 0 : i32
    %c0_i32_0 = arith.constant 0 : i32
    return %c0_i32, %arg0 : i32, i32
  }
  func.func @transform_1(%arg0: i32) -> (i32, i32) {
    %c1_i32 = arith.constant 1 : i32
    %c0_i32 = arith.constant 0 : i32
    return %c1_i32, %arg0 : i32, i32
  }
  func.func @transform_2(%arg0: i32) -> (i32, i32) {
    %c0_i32 = arith.constant 0 : i32
    %c0_i32_0 = arith.constant 0 : i32
    %c0_i32_1 = arith.constant 0 : i32
    return %c0_i32, %c0_i32_0 : i32, i32
  }
}

</mosaic_0001>

<llo_original>
// kernel: squeeze.0
$region0: #{squeeze.0}
  %s0 = inlined_call_operand.vmem [shape: bf16[16,1,32,32], index: 0, kind: input, shape index: {}]
  %s1 = inlined_call_operand.vmem [shape: bf16[16,1024], index: 1, kind: output, shape index: {}]
  $region1: #{squeeze.0} parent=0
    #allocation0 [shape = 'u8[65536]{0}', space=vmem, size = 0x10000, scoped, tag = 'scoped mem for output reshape']
    #allocation1 [shape = 'u8[262144]{0}', space=vmem, size = 0x40000, scoped, tag = 'scoped mem for input reshape']
    %s3 = smul.u32 4, 2
    %s4 = sshll.u32 1, %s3
    %s5 = ssub.s32 %s4, 1
    %s6 = smul.addr 4, 63
    %s7 = scalar_lea.vmem %s0, %s6
    %s8 = sshrl.u32 %s5, 1
    %s9 = sor.u32 %s5, %s8
    %s10 = sand.u32 %s9, 85
    %s11 = sshrl.u32 %s10, 1
    %s12 = sor.u32 %s10, %s11
    %s13 = sand.u32 51, %s12
    %s14 = sshrl.u32 %s13, 2
    %s15 = sor.u32 %s13, %s14
    %s16 = sand.u32 15, %s15
    %v17 = vld [vmem:[%s7] sm:%s16]
    %v18 = vunpack.c.l.bf16 %v17
    %v19 = vunpack.c.h.bf16 %v17
    %s20 = scalar_lea.vmem [#allocation1], 504
    %21 = vst [vmem:[%s20] sm:%s5] %v18
    %s22 = smul.addr 4, 62
    %s23 = scalar_lea.vmem %s0, %s22
    %s24 = sshrl.u32 %s5, 1
    %s25 = sor.u32 %s5, %s24
    %s26 = sand.u32 %s25, 85
    %s27 = sshrl.u32 %s26, 1
    %s28 = sor.u32 %s26, %s27
    %s29 = sand.u32 51, %s28
    %s30 = sshrl.u32 %s29, 2
    %s31 = sor.u32 %s29, %s30
    %s32 = sand.u32 15, %s31
    %v33 = vld [vmem:[%s23] sm:%s32]
    %v34 = vunpack.c.l.bf16 %v33
    %v35 = vunpack.c.h.bf16 %v33
    %s36 = scalar_lea.vmem [#allocation1], 496
    %37 = vst [vmem:[%s36] sm:%s5] %v34
    %s38 = smul.addr 4, 61
    %s39 = scalar_lea.vmem %s0, %s38
    %s40 = sshrl.u32 %s5, 1
    %s41 = sor.u32 %s5, %s40
    %s42 = sand.u32 %s41, 85
    %s43 = sshrl.u32 %s42, 1
    %s44 = sor.u32 %s42, %s43
    %s45 = sand.u32 51, %s44
    %s46 = sshrl.u32 %s45, 2
    %s47 = sor.u32 %s45, %s46
    %s48 = sand.u32 15, %s47
    %v49 = vld [vmem:[%s39] sm:%s48]
    %v50 = vunpack.c.l.bf16 %v49
    %v51 = vunpack.c.h.bf16 %v49
    %s52 = scalar_lea.vmem [#allocation1], 488
    %53 = vst [vmem:[%s52] sm:%s5] %v50
    %s54 = smul.addr 4, 60
    %s55 = scalar_lea.vmem %s0, %s54
    %s56 = sshrl.u32 %s5, 1
    %s57 = sor.u32 %s5, %s56
    %s58 = sand.u32 %s57, 85
    %s59 = sshrl.u32 %s58, 1
    %s60 = sor.u32 %s58, %s59
    %s61 = sand.u32 51, %s60
    %s62 = sshrl.u32 %s61, 2
    %s63 = sor.u32 %s61, %s62
    %s64 = sand.u32 15, %s63
    %v65 = vld [vmem:[%s55] sm:%s64]
    %v66 = vunpack.c.l.bf16 %v65
    %v67 = vunpack.c.h.bf16 %v65
    %s68 = scalar_lea.vmem [#allocation1], 480
    %69 = vst [vmem:[%s68] sm:%s5] %v66
    %s70 = smul.addr 4, 59
    %s71 = scalar_lea.vmem %s0, %s70
    %s72 = sshrl.u32 %s5, 1
    %s73 = sor.u32 %s5, %s72
    %s74 = sand.u32 %s73, 85
    %s75 = sshrl.u32 %s74, 1
    %s76 = sor.u32 %s74, %s75
    %s77 = sand.u32 51, %s76
    %s78 = sshrl.u32 %s77, 2
    %s79 = sor.u32 %s77, %s78
    %s80 = sand.u32 15, %s79
    %v81 = vld [vmem:[%s71] sm:%s80]
    %v82 = vunpack.c.l.bf16 %v81
    %v83 = vunpack.c.h.bf16 %v81
    %s84 = scalar_lea.vmem [#allocation1], 472
    %85 = vst [vmem:[%s84] sm:%s5] %v82
    %s86 = smul.addr 4, 58
    %s87 = scalar_lea.vmem %s0, %s86
    %s88 = sshrl.u32 %s5, 1
    %s89 = sor.u32 %s5, %s88
    %s90 = sand.u32 %s89, 85
    %s91 = sshrl.u32 %s90, 1
    %s92 = sor.u32 %s90, %s91
    %s93 = sand.u32 51, %s92
    %s94 = sshrl.u32 %s93, 2
    %s95 = sor.u32 %s93, %s94
    %s96 = sand.u32 15, %s95
    %v97 = vld [vmem:[%s87] sm:%s96]
    %v98 = vunpack.c.l.bf16 %v97
    %v99 = vunpack.c.h.bf16 %v97
    %s100 = scalar_lea.vmem [#allocation1], 464
    %101 = vst [vmem:[%s100] sm:%s5] %v98
    %s102 = smul.addr 4, 57
    %s103 = scalar_lea.vmem %s0, %s102
    %s104 = sshrl.u32 %s5, 1
    %s105 = sor.u32 %s5, %s104
    %s106 = sand.u32 %s105, 85
    %s107 = sshrl.u32 %s106, 1
    %s108 = sor.u32 %s106, %s107
    %s109 = sand.u32 51, %s108
    %s110 = sshrl.u32 %s109, 2
    %s111 = sor.u32 %s109, %s110
    %s112 = sand.u32 15, %s111
    %v113 = vld [vmem:[%s103] sm:%s112]
    %v114 = vunpack.c.l.bf16 %v113
    %v115 = vunpack.c.h.bf16 %v113
    %s116 = scalar_lea.vmem [#allocation1], 456
    %117 = vst [vmem:[%s116] sm:%s5] %v114
    %s118 = smul.addr 4, 56
    %s119 = scalar_lea.vmem %s0, %s118
    %s120 = sshrl.u32 %s5, 1
    %s121 = sor.u32 %s5, %s120
    %s122 = sand.u32 %s121, 85
    %s123 = sshrl.u32 %s122, 1
    %s124 = sor.u32 %s122, %s123
    %s125 = sand.u32 51, %s124
    %s126 = sshrl.u32 %s125, 2
    %s127 = sor.u32 %s125, %s126
    %s128 = sand.u32 15, %s127
    %v129 = vld [vmem:[%s119] sm:%s128]
    %v130 = vunpack.c.l.bf16 %v129
    %v131 = vunpack.c.h.bf16 %v129
    %s132 = scalar_lea.vmem [#allocation1], 448
    %133 = vst [vmem:[%s132] sm:%s5] %v130
    %s134 = smul.addr 4, 55
    %s135 = scalar_lea.vmem %s0, %s134
    %s136 = sshrl.u32 %s5, 1
    %s137 = sor.u32 %s5, %s136
    %s138 = sand.u32 %s137, 85
    %s139 = sshrl.u32 %s138, 1
    %s140 = sor.u32 %s138, %s139
    %s141 = sand.u32 51, %s140
    %s142 = sshrl.u32 %s141, 2
    %s143 = sor.u32 %s141, %s142
    %s144 = sand.u32 15, %s143
    %v145 = vld [vmem:[%s135] sm:%s144]
    %v146 = vunpack.c.l.bf16 %v145
    %v147 = vunpack.c.h.bf16 %v145
    %s148 = scalar_lea.vmem [#allocation1], 440
    %149 = vst [vmem:[%s148] sm:%s5] %v146
    %s150 = smul.addr 4, 54
    %s151 = scalar_lea.vmem %s0, %s150
    %s152 = sshrl.u32 %s5, 1
    %s153 = sor.u32 %s5, %s152
    %s154 = sand.u32 %s153, 85
    %s155 = sshrl.u32 %s154, 1
    %s156 = sor.u32 %s154, %s155
    %s157 = sand.u32 51, %s156
    %s158 = sshrl.u32 %s157, 2
    %s159 = sor.u32 %s157, %s158
    %s160 = sand.u32 15, %s159
    %v161 = vld [vmem:[%s151] sm:%s160]
    %v162 = vunpack.c.l.bf16 %v161
    %v163 = vunpack.c.h.bf16 %v161
    %s164 = scalar_lea.vmem [#allocation1], 432
    %165 = vst [vmem:[%s164] sm:%s5] %v162
    %s166 = smul.addr 4, 53
    %s167 = scalar_lea.vmem %s0, %s166
    %s168 = sshrl.u32 %s5, 1
    %s169 = sor.u32 %s5, %s168
    %s170 = sand.u32 %s169, 85
    %s171 = sshrl.u32 %s170, 1
    %s172 = sor.u32 %s170, %s171
    %s173 = sand.u32 51, %s172
    %s174 = sshrl.u32 %s173, 2
    %s175 = sor.u32 %s173, %s174
    %s176 = sand.u32 15, %s175
    %v177 = vld [vmem:[%s167] sm:%s176]
    %v178 = vunpack.c.l.bf16 %v177
    %v179 = vunpack.c.h.bf16 %v177
    %s180 = scalar_lea.vmem [#allocation1], 424
    %181 = vst [vmem:[%s180] sm:%s5] %v178
    %s182 = smul.addr 4, 52
    %s183 = scalar_lea.vmem %s0, %s182
    %s184 = sshrl.u32 %s5, 1
    %s185 = sor.u32 %s5, %s184
    %s186 = sand.u32 %s185, 85
    %s187 = sshrl.u32 %s186, 1
    %s188 = sor.u32 %s186, %s187
    %s189 = sand.u32 51, %s188
    %s190 = sshrl.u32 %s189, 2
    %s191 = sor.u32 %s189, %s190
    %s192 = sand.u32 15, %s191
    %v193 = vld [vmem:[%s183] sm:%s192]
    %v194 = vunpack.c.l.bf16 %v193
    %v195 = vunpack.c.h.bf16 %v193
    %s196 = scalar_lea.vmem [#allocation1], 416
    %197 = vst [vmem:[%s196] sm:%s5] %v194
    %s198 = smul.addr 4, 51
    %s199 = scalar_lea.vmem %s0, %s198
    %s200 = sshrl.u32 %s5, 1
    %s201 = sor.u32 %s5, %s200
    %s202 = sand.u32 %s201, 85
    %s203 = sshrl.u32 %s202, 1
    %s204 = sor.u32 %s202, %s203
    %s205 = sand.u32 51, %s204
    %s206 = sshrl.u32 %s205, 2
    %s207 = sor.u32 %s205, %s206
    %s208 = sand.u32 15, %s207
    %v209 = vld [vmem:[%s199] sm:%s208]
    %v210 = vunpack.c.l.bf16 %v209
    %v211 = vunpack.c.h.bf16 %v209
    %s212 = scalar_lea.vmem [#allocation1], 408
    %213 = vst [vmem:[%s212] sm:%s5] %v210
    %s214 = smul.addr 4, 50
    %s215 = scalar_lea.vmem %s0, %s214
    %s216 = sshrl.u32 %s5, 1
    %s217 = sor.u32 %s5, %s216
    %s218 = sand.u32 %s217, 85
    %s219 = sshrl.u32 %s218, 1
    %s220 = sor.u32 %s218, %s219
    %s221 = sand.u32 51, %s220
    %s222 = sshrl.u32 %s221, 2
    %s223 = sor.u32 %s221, %s222
    %s224 = sand.u32 15, %s223
    %v225 = vld [vmem:[%s215] sm:%s224]
    %v226 = vunpack.c.l.bf16 %v225
    %v227 = vunpack.c.h.bf16 %v225
    %s228 = scalar_lea.vmem [#allocation1], 400
    %229 = vst [vmem:[%s228] sm:%s5] %v226
    %s230 = smul.addr 4, 49
    %s231 = scalar_lea.vmem %s0, %s230
    %s232 = sshrl.u32 %s5, 1
    %s233 = sor.u32 %s5, %s232
    %s234 = sand.u32 %s233, 85
    %s235 = sshrl.u32 %s234, 1
    %s236 = sor.u32 %s234, %s235
    %s237 = sand.u32 51, %s236
    %s238 = sshrl.u32 %s237, 2
    %s239 = sor.u32 %s237, %s238
    %s240 = sand.u32 15, %s239
    %v241 = vld [vmem:[%s231] sm:%s240]
    %v242 = vunpack.c.l.bf16 %v241
    %v243 = vunpack.c.h.bf16 %v241
    %s244 = scalar_lea.vmem [#allocation1], 392
    %245 = vst [vmem:[%s244] sm:%s5] %v242
    %s246 = smul.addr 4, 48
    %s247 = scalar_lea.vmem %s0, %s246
    %s248 = sshrl.u32 %s5, 1
    %s249 = sor.u32 %s5, %s248
    %s250 = sand.u32 %s249, 85
    %s251 = sshrl.u32 %s250, 1
    %s252 = sor.u32 %s250, %s251
    %s253 = sand.u32 51, %s252
    %s254 = sshrl.u32 %s253, 2
    %s255 = sor.u32 %s253, %s254
    %s256 = sand.u32 15, %s255
    %v257 = vld [vmem:[%s247] sm:%s256]
    %v258 = vunpack.c.l.bf16 %v257
    %v259 = vunpack.c.h.bf16 %v257
    %s260 = scalar_lea.vmem [#allocation1], 384
    %261 = vst [vmem:[%s260] sm:%s5] %v258
    %s262 = smul.addr 4, 47
    %s263 = scalar_lea.vmem %s0, %s262
    %s264 = sshrl.u32 %s5, 1
    %s265 = sor.u32 %s5, %s264
    %s266 = sand.u32 %s265, 85
    %s267 = sshrl.u32 %s266, 1
    %s268 = sor.u32 %s266, %s267
    %s269 = sand.u32 51, %s268
    %s270 = sshrl.u32 %s269, 2
    %s271 = sor.u32 %s269, %s270
    %s272 = sand.u32 15, %s271
    %v273 = vld [vmem:[%s263] sm:%s272]
    %v274 = vunpack.c.l.bf16 %v273
    %v275 = vunpack.c.h.bf16 %v273
    %s276 = scalar_lea.vmem [#allocation1], 376
    %277 = vst [vmem:[%s276] sm:%s5] %v274
    %s278 = smul.addr 4, 46
    %s279 = scalar_lea.vmem %s0, %s278
    %s280 = sshrl.u32 %s5, 1
    %s281 = sor.u32 %s5, %s280
    %s282 = sand.u32 %s281, 85
    %s283 = sshrl.u32 %s282, 1
    %s284 = sor.u32 %s282, %s283
    %s285 = sand.u32 51, %s284
    %s286 = sshrl.u32 %s285, 2
    %s287 = sor.u32 %s285, %s286
    %s288 = sand.u32 15, %s287
    %v289 = vld [vmem:[%s279] sm:%s288]
    %v290 = vunpack.c.l.bf16 %v289
    %v291 = vunpack.c.h.bf16 %v289
    %s292 = scalar_lea.vmem [#allocation1], 368
    %293 = vst [vmem:[%s292] sm:%s5] %v290
    %s294 = smul.addr 4, 45
    %s295 = scalar_lea.vmem %s0, %s294
    %s296 = sshrl.u32 %s5, 1
    %s297 = sor.u32 %s5, %s296
    %s298 = sand.u32 %s297, 85
    %s299 = sshrl.u32 %s298, 1
    %s300 = sor.u32 %s298, %s299
    %s301 = sand.u32 51, %s300
    %s302 = sshrl.u32 %s301, 2
    %s303 = sor.u32 %s301, %s302
    %s304 = sand.u32 15, %s303
    %v305 = vld [vmem:[%s295] sm:%s304]
    %v306 = vunpack.c.l.bf16 %v305
    %v307 = vunpack.c.h.bf16 %v305
    %s308 = scalar_lea.vmem [#allocation1], 360
    %309 = vst [vmem:[%s308] sm:%s5] %v306
    %s310 = smul.addr 4, 44
    %s311 = scalar_lea.vmem %s0, %s310
    %s312 = sshrl.u32 %s5, 1
    %s313 = sor.u32 %s5, %s312
    %s314 = sand.u32 %s313, 85
    %s315 = sshrl.u32 %s314, 1
    %s316 = sor.u32 %s314, %s315
    %s317 = sand.u32 51, %s316
    %s318 = sshrl.u32 %s317, 2
    %s319 = sor.u32 %s317, %s318
    %s320 = sand.u32 15, %s319
    %v321 = vld [vmem:[%s311] sm:%s320]
    %v322 = vunpack.c.l.bf16 %v321
    %v323 = vunpack.c.h.bf16 %v321
    %s324 = scalar_lea.vmem [#allocation1], 352
    %325 = vst [vmem:[%s324] sm:%s5] %v322
    %s326 = smul.addr 4, 43
    %s327 = scalar_lea.vmem %s0, %s326
    %s328 = sshrl.u32 %s5, 1
    %s329 = sor.u32 %s5, %s328
    %s330 = sand.u32 %s329, 85
    %s331 = sshrl.u32 %s330, 1
    %s332 = sor.u32 %s330, %s331
    %s333 = sand.u32 51, %s332
    %s334 = sshrl.u32 %s333, 2
    %s335 = sor.u32 %s333, %s334
    %s336 = sand.u32 15, %s335
    %v337 = vld [vmem:[%s327] sm:%s336]
    %v338 = vunpack.c.l.bf16 %v337
    %v339 = vunpack.c.h.bf16 %v337
    %s340 = scalar_lea.vmem [#allocation1], 344
    %341 = vst [vmem:[%s340] sm:%s5] %v338
    %s342 = smul.addr 4, 42
    %s343 = scalar_lea.vmem %s0, %s342
    %s344 = sshrl.u32 %s5, 1
    %s345 = sor.u32 %s5, %s344
    %s346 = sand.u32 %s345, 85
    %s347 = sshrl.u32 %s346, 1
    %s348 = sor.u32 %s346, %s347
    %s349 = sand.u32 51, %s348
    %s350 = sshrl.u32 %s349, 2
    %s351 = sor.u32 %s349, %s350
    %s352 = sand.u32 15, %s351
    %v353 = vld [vmem:[%s343] sm:%s352]
    %v354 = vunpack.c.l.bf16 %v353
    %v355 = vunpack.c.h.bf16 %v353
    %s356 = scalar_lea.vmem [#allocation1], 336
    %357 = vst [vmem:[%s356] sm:%s5] %v354
    %s358 = smul.addr 4, 41
    %s359 = scalar_lea.vmem %s0, %s358
    %s360 = sshrl.u32 %s5, 1
    %s361 = sor.u32 %s5, %s360
    %s362 = sand.u32 %s361, 85
    %s363 = sshrl.u32 %s362, 1
    %s364 = sor.u32 %s362, %s363
    %s365 = sand.u32 51, %s364
    %s366 = sshrl.u32 %s365, 2
    %s367 = sor.u32 %s365, %s366
    %s368 = sand.u32 15, %s367
    %v369 = vld [vmem:[%s359] sm:%s368]
    %v370 = vunpack.c.l.bf16 %v369
    %v371 = vunpack.c.h.bf16 %v369
    %s372 = scalar_lea.vmem [#allocation1], 328
    %373 = vst [vmem:[%s372] sm:%s5] %v370
    %s374 = smul.addr 4, 40
    %s375 = scalar_lea.vmem %s0, %s374
    %s376 = sshrl.u32 %s5, 1
    %s377 = sor.u32 %s5, %s376
    %s378 = sand.u32 %s377, 85
    %s379 = sshrl.u32 %s378, 1
    %s380 = sor.u32 %s378, %s379
    %s381 = sand.u32 51, %s380
    %s382 = sshrl.u32 %s381, 2
    %s383 = sor.u32 %s381, %s382
    %s384 = sand.u32 15, %s383
    %v385 = vld [vmem:[%s375] sm:%s384]
    %v386 = vunpack.c.l.bf16 %v385
    %v387 = vunpack.c.h.bf16 %v385
    %s388 = scalar_lea.vmem [#allocation1], 320
    %389 = vst [vmem:[%s388] sm:%s5] %v386
    %s390 = smul.addr 4, 39
    %s391 = scalar_lea.vmem %s0, %s390
    %s392 = sshrl.u32 %s5, 1
    %s393 = sor.u32 %s5, %s392
    %s394 = sand.u32 %s393, 85
    %s395 = sshrl.u32 %s394, 1
    %s396 = sor.u32 %s394, %s395
    %s397 = sand.u32 51, %s396
    %s398 = sshrl.u32 %s397, 2
    %s399 = sor.u32 %s397, %s398
    %s400 = sand.u32 15, %s399
    %v401 = vld [vmem:[%s391] sm:%s400]
    %v402 = vunpack.c.l.bf16 %v401
    %v403 = vunpack.c.h.bf16 %v401
    %s404 = scalar_lea.vmem [#allocation1], 312
    %405 = vst [vmem:[%s404] sm:%s5] %v402
    %s406 = smul.addr 4, 38
    %s407 = scalar_lea.vmem %s0, %s406
    %s408 = sshrl.u32 %s5, 1
    %s409 = sor.u32 %s5, %s408
    %s410 = sand.u32 %s409, 85
    %s411 = sshrl.u32 %s410, 1
    %s412 = sor.u32 %s410, %s411
    %s413 = sand.u32 51, %s412
    %s414 = sshrl.u32 %s413, 2
    %s415 = sor.u32 %s413, %s414
    %s416 = sand.u32 15, %s415
    %v417 = vld [vmem:[%s407] sm:%s416]
    %v418 = vunpack.c.l.bf16 %v417
    %v419 = vunpack.c.h.bf16 %v417
    %s420 = scalar_lea.vmem [#allocation1], 304
    %421 = vst [vmem:[%s420] sm:%s5] %v418
    %s422 = smul.addr 4, 37
    %s423 = scalar_lea.vmem %s0, %s422
    %s424 = sshrl.u32 %s5, 1
    %s425 = sor.u32 %s5, %s424
    %s426 = sand.u32 %s425, 85
    %s427 = sshrl.u32 %s426, 1
    %s428 = sor.u32 %s426, %s427
    %s429 = sand.u32 51, %s428
    %s430 = sshrl.u32 %s429, 2
    %s431 = sor.u32 %s429, %s430
    %s432 = sand.u32 15, %s431
    %v433 = vld [vmem:[%s423] sm:%s432]
    %v434 = vunpack.c.l.bf16 %v433
    %v435 = vunpack.c.h.bf16 %v433
    %s436 = scalar_lea.vmem [#allocation1], 296
    %437 = vst [vmem:[%s436] sm:%s5] %v434
    %s438 = smul.addr 4, 36
    %s439 = scalar_lea.vmem %s0, %s438
    %s440 = sshrl.u32 %s5, 1
    %s441 = sor.u32 %s5, %s440
    %s442 = sand.u32 %s441, 85
    %s443 = sshrl.u32 %s442, 1
    %s444 = sor.u32 %s442, %s443
    %s445 = sand.u32 51, %s444
    %s446 = sshrl.u32 %s445, 2
    %s447 = sor.u32 %s445, %s446
    %s448 = sand.u32 15, %s447
    %v449 = vld [vmem:[%s439] sm:%s448]
    %v450 = vunpack.c.l.bf16 %v449
    %v451 = vunpack.c.h.bf16 %v449
    %s452 = scalar_lea.vmem [#allocation1], 288
    %453 = vst [vmem:[%s452] sm:%s5] %v450
    %s454 = smul.addr 4, 35
    %s455 = scalar_lea.vmem %s0, %s454
    %s456 = sshrl.u32 %s5, 1
    %s457 = sor.u32 %s5, %s456
    %s458 = sand.u32 %s457, 85
    %s459 = sshrl.u32 %s458, 1
    %s460 = sor.u32 %s458, %s459
    %s461 = sand.u32 51, %s460
    %s462 = sshrl.u32 %s461, 2
    %s463 = sor.u32 %s461, %s462
    %s464 = sand.u32 15, %s463
    %v465 = vld [vmem:[%s455] sm:%s464]
    %v466 = vunpack.c.l.bf16 %v465
    %v467 = vunpack.c.h.bf16 %v465
    %s468 = scalar_lea.vmem [#allocation1], 280
    %469 = vst [vmem:[%s468] sm:%s5] %v466
    %s470 = smul.addr 4, 34
    %s471 = scalar_lea.vmem %s0, %s470
    %s472 = sshrl.u32 %s5, 1
    %s473 = sor.u32 %s5, %s472
    %s474 = sand.u32 %s473, 85
    %s475 = sshrl.u32 %s474, 1
    %s476 = sor.u32 %s474, %s475
    %s477 = sand.u32 51, %s476
    %s478 = sshrl.u32 %s477, 2
    %s479 = sor.u32 %s477, %s478
    %s480 = sand.u32 15, %s479
    %v481 = vld [vmem:[%s471] sm:%s480]
    %v482 = vunpack.c.l.bf16 %v481
    %v483 = vunpack.c.h.bf16 %v481
    %s484 = scalar_lea.vmem [#allocation1], 272
    %485 = vst [vmem:[%s484] sm:%s5] %v482
    %s486 = smul.addr 4, 33
    %s487 = scalar_lea.vmem %s0, %s486
    %s488 = sshrl.u32 %s5, 1
    %s489 = sor.u32 %s5, %s488
    %s490 = sand.u32 %s489, 85
    %s491 = sshrl.u32 %s490, 1
    %s492 = sor.u32 %s490, %s491
    %s493 = sand.u32 51, %s492
    %s494 = sshrl.u32 %s493, 2
    %s495 = sor.u32 %s493, %s494
    %s496 = sand.u32 15, %s495
    %v497 = vld [vmem:[%s487] sm:%s496]
    %v498 = vunpack.c.l.bf16 %v497
    %v499 = vunpack.c.h.bf16 %v497
    %s500 = scalar_lea.vmem [#allocation1], 264
    %501 = vst [vmem:[%s500] sm:%s5] %v498
    %s502 = smul.addr 4, 32
    %s503 = scalar_lea.vmem %s0, %s502
    %s504 = sshrl.u32 %s5, 1
    %s505 = sor.u32 %s5, %s504
    %s506 = sand.u32 %s505, 85
    %s507 = sshrl.u32 %s506, 1
    %s508 = sor.u32 %s506, %s507
    %s509 = sand.u32 51, %s508
    %s510 = sshrl.u32 %s509, 2
    %s511 = sor.u32 %s509, %s510
    %s512 = sand.u32 15, %s511
    %v513 = vld [vmem:[%s503] sm:%s512]
    %v514 = vunpack.c.l.bf16 %v513
    %v515 = vunpack.c.h.bf16 %v513
    %s516 = scalar_lea.vmem [#allocation1], 256
    %517 = vst [vmem:[%s516] sm:%s5] %v514
    %s518 = smul.addr 4, 31
    %s519 = scalar_lea.vmem %s0, %s518
    %s520 = sshrl.u32 %s5, 1
    %s521 = sor.u32 %s5, %s520
    %s522 = sand.u32 %s521, 85
    %s523 = sshrl.u32 %s522, 1
    %s524 = sor.u32 %s522, %s523
    %s525 = sand.u32 51, %s524
    %s526 = sshrl.u32 %s525, 2
    %s527 = sor.u32 %s525, %s526
    %s528 = sand.u32 15, %s527
    %v529 = vld [vmem:[%s519] sm:%s528]
    %v530 = vunpack.c.l.bf16 %v529
    %v531 = vunpack.c.h.bf16 %v529
    %s532 = scalar_lea.vmem [#allocation1], 248
    %533 = vst [vmem:[%s532] sm:%s5] %v530
    %s534 = smul.addr 4, 30
    %s535 = scalar_lea.vmem %s0, %s534
    %s536 = sshrl.u32 %s5, 1
    %s537 = sor.u32 %s5, %s536
    %s538 = sand.u32 %s537, 85
    %s539 = sshrl.u32 %s538, 1
    %s540 = sor.u32 %s538, %s539
    %s541 = sand.u32 51, %s540
    %s542 = sshrl.u32 %s541, 2
    %s543 = sor.u32 %s541, %s542
    %s544 = sand.u32 15, %s543
    %v545 = vld [vmem:[%s535] sm:%s544]
    %v546 = vunpack.c.l.bf16 %v545
    %v547 = vunpack.c.h.bf16 %v545
    %s548 = scalar_lea.vmem [#allocation1], 240
    %549 = vst [vmem:[%s548] sm:%s5] %v546
    %s550 = smul.addr 4, 29
    %s551 = scalar_lea.vmem %s0, %s550
    %s552 = sshrl.u32 %s5, 1
    %s553 = sor.u32 %s5, %s552
    %s554 = sand.u32 %s553, 85
    %s555 = sshrl.u32 %s554, 1
    %s556 = sor.u32 %s554, %s555
    %s557 = sand.u32 51, %s556
    %s558 = sshrl.u32 %s557, 2
    %s559 = sor.u32 %s557, %s558
    %s560 = sand.u32 15, %s559
    %v561 = vld [vmem:[%s551] sm:%s560]
    %v562 = vunpack.c.l.bf16 %v561
    %v563 = vunpack.c.h.bf16 %v561
    %s564 = scalar_lea.vmem [#allocation1], 232
    %565 = vst [vmem:[%s564] sm:%s5] %v562
    %s566 = smul.addr 4, 28
    %s567 = scalar_lea.vmem %s0, %s566
    %s568 = sshrl.u32 %s5, 1
    %s569 = sor.u32 %s5, %s568
    %s570 = sand.u32 %s569, 85
    %s571 = sshrl.u32 %s570, 1
    %s572 = sor.u32 %s570, %s571
    %s573 = sand.u32 51, %s572
    %s574 = sshrl.u32 %s573, 2
    %s575 = sor.u32 %s573, %s574
    %s576 = sand.u32 15, %s575
    %v577 = vld [vmem:[%s567] sm:%s576]
    %v578 = vunpack.c.l.bf16 %v577
    %v579 = vunpack.c.h.bf16 %v577
    %s580 = scalar_lea.vmem [#allocation1], 224
    %581 = vst [vmem:[%s580] sm:%s5] %v578
    %s582 = smul.addr 4, 27
    %s583 = scalar_lea.vmem %s0, %s582
    %s584 = sshrl.u32 %s5, 1
    %s585 = sor.u32 %s5, %s584
    %s586 = sand.u32 %s585, 85
    %s587 = sshrl.u32 %s586, 1
    %s588 = sor.u32 %s586, %s587
    %s589 = sand.u32 51, %s588
    %s590 = sshrl.u32 %s589, 2
    %s591 = sor.u32 %s589, %s590
    %s592 = sand.u32 15, %s591
    %v593 = vld [vmem:[%s583] sm:%s592]
    %v594 = vunpack.c.l.bf16 %v593
    %v595 = vunpack.c.h.bf16 %v593
    %s596 = scalar_lea.vmem [#allocation1], 216
    %597 = vst [vmem:[%s596] sm:%s5] %v594
    %s598 = smul.addr 4, 26
    %s599 = scalar_lea.vmem %s0, %s598
    %s600 = sshrl.u32 %s5, 1
    %s601 = sor.u32 %s5, %s600
    %s602 = sand.u32 %s601, 85
    %s603 = sshrl.u32 %s602, 1
    %s604 = sor.u32 %s602, %s603
    %s605 = sand.u32 51, %s604
    %s606 = sshrl.u32 %s605, 2
    %s607 = sor.u32 %s605, %s606
    %s608 = sand.u32 15, %s607
    %v609 = vld [vmem:[%s599] sm:%s608]
    %v610 = vunpack.c.l.bf16 %v609
    %v611 = vunpack.c.h.bf16 %v609
    %s612 = scalar_lea.vmem [#allocation1], 208
    %613 = vst [vmem:[%s612] sm:%s5] %v610
    %s614 = smul.addr 4, 25
    %s615 = scalar_lea.vmem %s0, %s614
    %s616 = sshrl.u32 %s5, 1
    %s617 = sor.u32 %s5, %s616
    %s618 = sand.u32 %s617, 85
    %s619 = sshrl.u32 %s618, 1
    %s620 = sor.u32 %s618, %s619
    %s621 = sand.u32 51, %s620
    %s622 = sshrl.u32 %s621, 2
    %s623 = sor.u32 %s621, %s622
    %s624 = sand.u32 15, %s623
    %v625 = vld [vmem:[%s615] sm:%s624]
    %v626 = vunpack.c.l.bf16 %v625
    %v627 = vunpack.c.h.bf16 %v625
    %s628 = scalar_lea.vmem [#allocation1], 200
    %629 = vst [vmem:[%s628] sm:%s5] %v626
    %s630 = smul.addr 4, 24
    %s631 = scalar_lea.vmem %s0, %s630
    %s632 = sshrl.u32 %s5, 1
    %s633 = sor.u32 %s5, %s632
    %s634 = sand.u32 %s633, 85
    %s635 = sshrl.u32 %s634, 1
    %s636 = sor.u32 %s634, %s635
    %s637 = sand.u32 51, %s636
    %s638 = sshrl.u32 %s637, 2
    %s639 = sor.u32 %s637, %s638
    %s640 = sand.u32 15, %s639
    %v641 = vld [vmem:[%s631] sm:%s640]
    %v642 = vunpack.c.l.bf16 %v641
    %v643 = vunpack.c.h.bf16 %v641
    %s644 = scalar_lea.vmem [#allocation1], 192
    %645 = vst [vmem:[%s644] sm:%s5] %v642
    %s646 = smul.addr 4, 23
    %s647 = scalar_lea.vmem %s0, %s646
    %s648 = sshrl.u32 %s5, 1
    %s649 = sor.u32 %s5, %s648
    %s650 = sand.u32 %s649, 85
    %s651 = sshrl.u32 %s650, 1
    %s652 = sor.u32 %s650, %s651
    %s653 = sand.u32 51, %s652
    %s654 = sshrl.u32 %s653, 2
    %s655 = sor.u32 %s653, %s654
    %s656 = sand.u32 15, %s655
    %v657 = vld [vmem:[%s647] sm:%s656]
    %v658 = vunpack.c.l.bf16 %v657
    %v659 = vunpack.c.h.bf16 %v657
    %s660 = scalar_lea.vmem [#allocation1], 184
    %661 = vst [vmem:[%s660] sm:%s5] %v658
    %s662 = smul.addr 4, 22
    %s663 = scalar_lea.vmem %s0, %s662
    %s664 = sshrl.u32 %s5, 1
    %s665 = sor.u32 %s5, %s664
    %s666 = sand.u32 %s665, 85
    %s667 = sshrl.u32 %s666, 1
    %s668 = sor.u32 %s666, %s667
    %s669 = sand.u32 51, %s668
    %s670 = sshrl.u32 %s669, 2
    %s671 = sor.u32 %s669, %s670
    %s672 = sand.u32 15, %s671
    %v673 = vld [vmem:[%s663] sm:%s672]
    %v674 = vunpack.c.l.bf16 %v673
    %v675 = vunpack.c.h.bf16 %v673
    %s676 = scalar_lea.vmem [#allocation1], 176
    %677 = vst [vmem:[%s676] sm:%s5] %v674
    %s678 = smul.addr 4, 21
    %s679 = scalar_lea.vmem %s0, %s678
    %s680 = sshrl.u32 %s5, 1
    %s681 = sor.u32 %s5, %s680
    %s682 = sand.u32 %s681, 85
    %s683 = sshrl.u32 %s682, 1
    %s684 = sor.u32 %s682, %s683
    %s685 = sand.u32 51, %s684
    %s686 = sshrl.u32 %s685, 2
    %s687 = sor.u32 %s685, %s686
    %s688 = sand.u32 15, %s687
    %v689 = vld [vmem:[%s679] sm:%s688]
    %v690 = vunpack.c.l.bf16 %v689
    %v691 = vunpack.c.h.bf16 %v689
    %s692 = scalar_lea.vmem [#allocation1], 168
    %693 = vst [vmem:[%s692] sm:%s5] %v690
    %s694 = smul.addr 4, 20
    %s695 = scalar_lea.vmem %s0, %s694
    %s696 = sshrl.u32 %s5, 1
    %s697 = sor.u32 %s5, %s696
    %s698 = sand.u32 %s697, 85
    %s699 = sshrl.u32 %s698, 1
    %s700 = sor.u32 %s698, %s699
    %s701 = sand.u32 51, %s700
    %s702 = sshrl.u32 %s701, 2
    %s703 = sor.u32 %s701, %s702
    %s704 = sand.u32 15, %s703
    %v705 = vld [vmem:[%s695] sm:%s704]
    %v706 = vunpack.c.l.bf16 %v705
    %v707 = vunpack.c.h.bf16 %v705
    %s708 = scalar_lea.vmem [#allocation1], 160
    %709 = vst [vmem:[%s708] sm:%s5] %v706
    %s710 = smul.addr 4, 19
    %s711 = scalar_lea.vmem %s0, %s710
    %s712 = sshrl.u32 %s5, 1
    %s713 = sor.u32 %s5, %s712
    %s714 = sand.u32 %s713, 85
    %s715 = sshrl.u32 %s714, 1
    %s716 = sor.u32 %s714, %s715
    %s717 = sand.u32 51, %s716
    %s718 = sshrl.u32 %s717, 2
    %s719 = sor.u32 %s717, %s718
    %s720 = sand.u32 15, %s719
    %v721 = vld [vmem:[%s711] sm:%s720]
    %v722 = vunpack.c.l.bf16 %v721
    %v723 = vunpack.c.h.bf16 %v721
    %s724 = scalar_lea.vmem [#allocation1], 152
    %725 = vst [vmem:[%s724] sm:%s5] %v722
    %s726 = smul.addr 4, 18
    %s727 = scalar_lea.vmem %s0, %s726
    %s728 = sshrl.u32 %s5, 1
    %s729 = sor.u32 %s5, %s728
    %s730 = sand.u32 %s729, 85
    %s731 = sshrl.u32 %s730, 1
    %s732 = sor.u32 %s730, %s731
    %s733 = sand.u32 51, %s732
    %s734 = sshrl.u32 %s733, 2
    %s735 = sor.u32 %s733, %s734
    %s736 = sand.u32 15, %s735
    %v737 = vld [vmem:[%s727] sm:%s736]
    %v738 = vunpack.c.l.bf16 %v737
    %v739 = vunpack.c.h.bf16 %v737
    %s740 = scalar_lea.vmem [#allocation1], 144
    %741 = vst [vmem:[%s740] sm:%s5] %v738
    %s742 = smul.addr 4, 17
    %s743 = scalar_lea.vmem %s0, %s742
    %s744 = sshrl.u32 %s5, 1
    %s745 = sor.u32 %s5, %s744
    %s746 = sand.u32 %s745, 85
    %s747 = sshrl.u32 %s746, 1
    %s748 = sor.u32 %s746, %s747
    %s749 = sand.u32 51, %s748
    %s750 = sshrl.u32 %s749, 2
    %s751 = sor.u32 %s749, %s750
    %s752 = sand.u32 15, %s751
    %v753 = vld [vmem:[%s743] sm:%s752]
    %v754 = vunpack.c.l.bf16 %v753
    %v755 = vunpack.c.h.bf16 %v753
    %s756 = scalar_lea.vmem [#allocation1], 136
    %757 = vst [vmem:[%s756] sm:%s5] %v754
    %s758 = smul.addr 4, 16
    %s759 = scalar_lea.vmem %s0, %s758
    %s760 = sshrl.u32 %s5, 1
    %s761 = sor.u32 %s5, %s760
    %s762 = sand.u32 %s761, 85
    %s763 = sshrl.u32 %s762, 1
    %s764 = sor.u32 %s762, %s763
    %s765 = sand.u32 51, %s764
    %s766 = sshrl.u32 %s765, 2
    %s767 = sor.u32 %s765, %s766
    %s768 = sand.u32 15, %s767
    %v769 = vld [vmem:[%s759] sm:%s768]
    %v770 = vunpack.c.l.bf16 %v769
    %v771 = vunpack.c.h.bf16 %v769
    %s772 = scalar_lea.vmem [#allocation1], 128
    %773 = vst [vmem:[%s772] sm:%s5] %v770
    %s774 = smul.addr 4, 15
    %s775 = scalar_lea.vmem %s0, %s774
    %s776 = sshrl.u32 %s5, 1
    %s777 = sor.u32 %s5, %s776
    %s778 = sand.u32 %s777, 85
    %s779 = sshrl.u32 %s778, 1
    %s780 = sor.u32 %s778, %s779
    %s781 = sand.u32 51, %s780
    %s782 = sshrl.u32 %s781, 2
    %s783 = sor.u32 %s781, %s782
    %s784 = sand.u32 15, %s783
    %v785 = vld [vmem:[%s775] sm:%s784]
    %v786 = vunpack.c.l.bf16 %v785
    %v787 = vunpack.c.h.bf16 %v785
    %s788 = scalar_lea.vmem [#allocation1], 120
    %789 = vst [vmem:[%s788] sm:%s5] %v786
    %s790 = smul.addr 4, 14
    %s791 = scalar_lea.vmem %s0, %s790
    %s792 = sshrl.u32 %s5, 1
    %s793 = sor.u32 %s5, %s792
    %s794 = sand.u32 %s793, 85
    %s795 = sshrl.u32 %s794, 1
    %s796 = sor.u32 %s794, %s795
    %s797 = sand.u32 51, %s796
    %s798 = sshrl.u32 %s797, 2
    %s799 = sor.u32 %s797, %s798
    %s800 = sand.u32 15, %s799
    %v801 = vld [vmem:[%s791] sm:%s800]
    %v802 = vunpack.c.l.bf16 %v801
    %v803 = vunpack.c.h.bf16 %v801
    %s804 = scalar_lea.vmem [#allocation1], 112
    %805 = vst [vmem:[%s804] sm:%s5] %v802
    %s806 = smul.addr 4, 13
    %s807 = scalar_lea.vmem %s0, %s806
    %s808 = sshrl.u32 %s5, 1
    %s809 = sor.u32 %s5, %s808
    %s810 = sand.u32 %s809, 85
    %s811 = sshrl.u32 %s810, 1
    %s812 = sor.u32 %s810, %s811
    %s813 = sand.u32 51, %s812
    %s814 = sshrl.u32 %s813, 2
    %s815 = sor.u32 %s813, %s814
    %s816 = sand.u32 15, %s815
    %v817 = vld [vmem:[%s807] sm:%s816]
    %v818 = vunpack.c.l.bf16 %v817
    %v819 = vunpack.c.h.bf16 %v817
    %s820 = scalar_lea.vmem [#allocation1], 104
    %821 = vst [vmem:[%s820] sm:%s5] %v818
    %s822 = smul.addr 4, 12
    %s823 = scalar_lea.vmem %s0, %s822
    %s824 = sshrl.u32 %s5, 1
    %s825 = sor.u32 %s5, %s824
    %s826 = sand.u32 %s825, 85
    %s827 = sshrl.u32 %s826, 1
    %s828 = sor.u32 %s826, %s827
    %s829 = sand.u32 51, %s828
    %s830 = sshrl.u32 %s829, 2
    %s831 = sor.u32 %s829, %s830
    %s832 = sand.u32 15, %s831
    %v833 = vld [vmem:[%s823] sm:%s832]
    %v834 = vunpack.c.l.bf16 %v833
    %v835 = vunpack.c.h.bf16 %v833
    %s836 = scalar_lea.vmem [#allocation1], 96
    %837 = vst [vmem:[%s836] sm:%s5] %v834
    %s838 = smul.addr 4, 11
    %s839 = scalar_lea.vmem %s0, %s838
    %s840 = sshrl.u32 %s5, 1
    %s841 = sor.u32 %s5, %s840
    %s842 = sand.u32 %s841, 85
    %s843 = sshrl.u32 %s842, 1
    %s844 = sor.u32 %s842, %s843
    %s845 = sand.u32 51, %s844
    %s846 = sshrl.u32 %s845, 2
    %s847 = sor.u32 %s845, %s846
    %s848 = sand.u32 15, %s847
    %v849 = vld [vmem:[%s839] sm:%s848]
    %v850 = vunpack.c.l.bf16 %v849
    %v851 = vunpack.c.h.bf16 %v849
    %s852 = scalar_lea.vmem [#allocation1], 88
    %853 = vst [vmem:[%s852] sm:%s5] %v850
    %s854 = smul.addr 4, 10
    %s855 = scalar_lea.vmem %s0, %s854
    %s856 = sshrl.u32 %s5, 1
    %s857 = sor.u32 %s5, %s856
    %s858 = sand.u32 %s857, 85
    %s859 = sshrl.u32 %s858, 1
    %s860 = sor.u32 %s858, %s859
    %s861 = sand.u32 51, %s860
    %s862 = sshrl.u32 %s861, 2
    %s863 = sor.u32 %s861, %s862
    %s864 = sand.u32 15, %s863
    %v865 = vld [vmem:[%s855] sm:%s864]
    %v866 = vunpack.c.l.bf16 %v865
    %v867 = vunpack.c.h.bf16 %v865
    %s868 = scalar_lea.vmem [#allocation1], 80
    %869 = vst [vmem:[%s868] sm:%s5] %v866
    %s870 = smul.addr 4, 9
    %s871 = scalar_lea.vmem %s0, %s870
    %s872 = sshrl.u32 %s5, 1
    %s873 = sor.u32 %s5, %s872
    %s874 = sand.u32 %s873, 85
    %s875 = sshrl.u32 %s874, 1
    %s876 = sor.u32 %s874, %s875
    %s877 = sand.u32 51, %s876
    %s878 = sshrl.u32 %s877, 2
    %s879 = sor.u32 %s877, %s878
    %s880 = sand.u32 15, %s879
    %v881 = vld [vmem:[%s871] sm:%s880]
    %v882 = vunpack.c.l.bf16 %v881
    %v883 = vunpack.c.h.bf16 %v881
    %s884 = scalar_lea.vmem [#allocation1], 72
    %885 = vst [vmem:[%s884] sm:%s5] %v882
    %s886 = smul.addr 4, 8
    %s887 = scalar_lea.vmem %s0, %s886
    %s888 = sshrl.u32 %s5, 1
    %s889 = sor.u32 %s5, %s888
    %s890 = sand.u32 %s889, 85
    %s891 = sshrl.u32 %s890, 1
    %s892 = sor.u32 %s890, %s891
    %s893 = sand.u32 51, %s892
    %s894 = sshrl.u32 %s893, 2
    %s895 = sor.u32 %s893, %s894
    %s896 = sand.u32 15, %s895
    %v897 = vld [vmem:[%s887] sm:%s896]
    %v898 = vunpack.c.l.bf16 %v897
    %v899 = vunpack.c.h.bf16 %v897
    %s900 = scalar_lea.vmem [#allocation1], 64
    %901 = vst [vmem:[%s900] sm:%s5] %v898
    %s902 = smul.addr 4, 7
    %s903 = scalar_lea.vmem %s0, %s902
    %s904 = sshrl.u32 %s5, 1
    %s905 = sor.u32 %s5, %s904
    %s906 = sand.u32 %s905, 85
    %s907 = sshrl.u32 %s906, 1
    %s908 = sor.u32 %s906, %s907
    %s909 = sand.u32 51, %s908
    %s910 = sshrl.u32 %s909, 2
    %s911 = sor.u32 %s909, %s910
    %s912 = sand.u32 15, %s911
    %v913 = vld [vmem:[%s903] sm:%s912]
    %v914 = vunpack.c.l.bf16 %v913
    %v915 = vunpack.c.h.bf16 %v913
    %s916 = scalar_lea.vmem [#allocation1], 56
    %917 = vst [vmem:[%s916] sm:%s5] %v914
    %s918 = smul.addr 4, 6
    %s919 = scalar_lea.vmem %s0, %s918
    %s920 = sshrl.u32 %s5, 1
    %s921 = sor.u32 %s5, %s920
    %s922 = sand.u32 %s921, 85
    %s923 = sshrl.u32 %s922, 1
    %s924 = sor.u32 %s922, %s923
    %s925 = sand.u32 51, %s924
    %s926 = sshrl.u32 %s925, 2
    %s927 = sor.u32 %s925, %s926
    %s928 = sand.u32 15, %s927
    %v929 = vld [vmem:[%s919] sm:%s928]
    %v930 = vunpack.c.l.bf16 %v929
    %v931 = vunpack.c.h.bf16 %v929
    %s932 = scalar_lea.vmem [#allocation1], 48
    %933 = vst [vmem:[%s932] sm:%s5] %v930
    %s934 = smul.addr 4, 5
    %s935 = scalar_lea.vmem %s0, %s934
    %s936 = sshrl.u32 %s5, 1
    %s937 = sor.u32 %s5, %s936
    %s938 = sand.u32 %s937, 85
    %s939 = sshrl.u32 %s938, 1
    %s940 = sor.u32 %s938, %s939
    %s941 = sand.u32 51, %s940
    %s942 = sshrl.u32 %s941, 2
    %s943 = sor.u32 %s941, %s942
    %s944 = sand.u32 15, %s943
    %v945 = vld [vmem:[%s935] sm:%s944]
    %v946 = vunpack.c.l.bf16 %v945
    %v947 = vunpack.c.h.bf16 %v945
    %s948 = scalar_lea.vmem [#allocation1], 40
    %949 = vst [vmem:[%s948] sm:%s5] %v946
    %s950 = smul.addr 4, 4
    %s951 = scalar_lea.vmem %s0, %s950
    %s952 = sshrl.u32 %s5, 1
    %s953 = sor.u32 %s5, %s952
    %s954 = sand.u32 %s953, 85
    %s955 = sshrl.u32 %s954, 1
    %s956 = sor.u32 %s954, %s955
    %s957 = sand.u32 51, %s956
    %s958 = sshrl.u32 %s957, 2
    %s959 = sor.u32 %s957, %s958
    %s960 = sand.u32 15, %s959
    %v961 = vld [vmem:[%s951] sm:%s960]
    %v962 = vunpack.c.l.bf16 %v961
    %v963 = vunpack.c.h.bf16 %v961
    %s964 = scalar_lea.vmem [#allocation1], 32
    %965 = vst [vmem:[%s964] sm:%s5] %v962
    %s966 = smul.addr 4, 3
    %s967 = scalar_lea.vmem %s0, %s966
    %s968 = sshrl.u32 %s5, 1
    %s969 = sor.u32 %s5, %s968
    %s970 = sand.u32 %s969, 85
    %s971 = sshrl.u32 %s970, 1
    %s972 = sor.u32 %s970, %s971
    %s973 = sand.u32 51, %s972
    %s974 = sshrl.u32 %s973, 2
    %s975 = sor.u32 %s973, %s974
    %s976 = sand.u32 15, %s975
    %v977 = vld [vmem:[%s967] sm:%s976]
    %v978 = vunpack.c.l.bf16 %v977
    %v979 = vunpack.c.h.bf16 %v977
    %s980 = scalar_lea.vmem [#allocation1], 24
    %981 = vst [vmem:[%s980] sm:%s5] %v978
    %s982 = smul.addr 4, 2
    %s983 = scalar_lea.vmem %s0, %s982
    %s984 = sshrl.u32 %s5, 1
    %s985 = sor.u32 %s5, %s984
    %s986 = sand.u32 %s985, 85
    %s987 = sshrl.u32 %s986, 1
    %s988 = sor.u32 %s986, %s987
    %s989 = sand.u32 51, %s988
    %s990 = sshrl.u32 %s989, 2
    %s991 = sor.u32 %s989, %s990
    %s992 = sand.u32 15, %s991
    %v993 = vld [vmem:[%s983] sm:%s992]
    %v994 = vunpack.c.l.bf16 %v993
    %v995 = vunpack.c.h.bf16 %v993
    %s996 = scalar_lea.vmem [#allocation1], 16
    %997 = vst [vmem:[%s996] sm:%s5] %v994
    %s998 = scalar_lea.vmem %s0, 4
    %s999 = sshrl.u32 %s5, 1
    %s1000 = sor.u32 %s5, %s999
    %s1001 = sand.u32 %s1000, 85
    %s1002 = sshrl.u32 %s1001, 1
    %s1003 = sor.u32 %s1001, %s1002
    %s1004 = sand.u32 51, %s1003
    %s1005 = sshrl.u32 %s1004, 2
    %s1006 = sor.u32 %s1004, %s1005
    %s1007 = sand.u32 15, %s1006
    %v1008 = vld [vmem:[%s998] sm:%s1007]
    %v1009 = vunpack.c.l.bf16 %v1008
    %v1010 = vunpack.c.h.bf16 %v1008
    %s1011 = scalar_lea.vmem [#allocation1], 8
    %1012 = vst [vmem:[%s1011] sm:%s5] %v1009
    %s1013 = sshrl.u32 %s5, 1
    %s1014 = sor.u32 %s5, %s1013
    %s1015 = sand.u32 %s1014, 85
    %s1016 = sshrl.u32 %s1015, 1
    %s1017 = sor.u32 %s1015, %s1016
    %s1018 = sand.u32 51, %s1017
    %s1019 = sshrl.u32 %s1018, 2
    %s1020 = sor.u32 %s1018, %s1019
    %s1021 = sand.u32 15, %s1020
    %v1022 = vld [vmem:[%s0] sm:%s1021]
    %v1023 = vunpack.c.l.bf16 %v1022
    %v1024 = vunpack.c.h.bf16 %v1022
    %1025 = vst [vmem:[#allocation1] sm:%s5] %v1023
    %v1026 = vld [vmem:[#allocation1] ss:$4 sm:$0xff]
    %vm1027 = vcmask 261120
    %1028 = vst.msk [vmem:[#allocation0] ss:$8 sm:$0xf] %vm1027, %v1026
    %1029 = vst.msk [vmem:[#allocation0] ss:$8 sm:$0xf0] %vm1027, %v1026
    %s1030 = scalar_lea.vmem [#allocation1], 32
    %v1031 = vld [vmem:[%s1030] ss:$4 sm:$0xff]
    %vm1032 = vcmask 261120
    %s1033 = scalar_lea.vmem [#allocation0], 1
    %1034 = vst.msk [vmem:[%s1033] ss:$8 sm:$0xf] %vm1032, %v1031
    %s1035 = scalar_lea.vmem [#allocation0], 1
    %1036 = vst.msk [vmem:[%s1035] ss:$8 sm:$0xf0] %vm1032, %v1031
    %s1037 = scalar_lea.vmem [#allocation1], 64
    %v1038 = vld [vmem:[%s1037] ss:$4 sm:$0xff]
    %vm1039 = vcmask 261120
    %s1040 = scalar_lea.vmem [#allocation0], 2
    %1041 = vst.msk [vmem:[%s1040] ss:$8 sm:$0xf] %vm1039, %v1038
    %s1042 = scalar_lea.vmem [#allocation0], 2
    %1043 = vst.msk [vmem:[%s1042] ss:$8 sm:$0xf0] %vm1039, %v1038
    %s1044 = scalar_lea.vmem [#allocation1], 96
    %v1045 = vld [vmem:[%s1044] ss:$4 sm:$0xff]
    %vm1046 = vcmask 261120
    %s1047 = scalar_lea.vmem [#allocation0], 3
    %1048 = vst.msk [vmem:[%s1047] ss:$8 sm:$0xf] %vm1046, %v1045
    %s1049 = scalar_lea.vmem [#allocation0], 3
    %1050 = vst.msk [vmem:[%s1049] ss:$8 sm:$0xf0] %vm1046, %v1045
    %s1051 = scalar_lea.vmem [#allocation1], 128
    %v1052 = vld [vmem:[%s1051] ss:$4 sm:$0xff]
    %vm1053 = vcmask 261120
    %s1054 = scalar_lea.vmem [#allocation0], 4
    %1055 = vst.msk [vmem:[%s1054] ss:$8 sm:$0xf] %vm1053, %v1052
    %s1056 = scalar_lea.vmem [#allocation0], 4
    %1057 = vst.msk [vmem:[%s1056] ss:$8 sm:$0xf0] %vm1053, %v1052
    %s1058 = scalar_lea.vmem [#allocation1], 160
    %v1059 = vld [vmem:[%s1058] ss:$4 sm:$0xff]
    %vm1060 = vcmask 261120
    %s1061 = scalar_lea.vmem [#allocation0], 5
    %1062 = vst.msk [vmem:[%s1061] ss:$8 sm:$0xf] %vm1060, %v1059
    %s1063 = scalar_lea.vmem [#allocation0], 5
    %1064 = vst.msk [vmem:[%s1063] ss:$8 sm:$0xf0] %vm1060, %v1059
    %s1065 = scalar_lea.vmem [#allocation1], 192
    %v1066 = vld [vmem:[%s1065] ss:$4 sm:$0xff]
    %vm1067 = vcmask 261120
    %s1068 = scalar_lea.vmem [#allocation0], 6
    %1069 = vst.msk [vmem:[%s1068] ss:$8 sm:$0xf] %vm1067, %v1066
    %s1070 = scalar_lea.vmem [#allocation0], 6
    %1071 = vst.msk [vmem:[%s1070] ss:$8 sm:$0xf0] %vm1067, %v1066
    %s1072 = scalar_lea.vmem [#allocation1], 224
    %v1073 = vld [vmem:[%s1072] ss:$4 sm:$0xff]
    %vm1074 = vcmask 261120
    %s1075 = scalar_lea.vmem [#allocation0], 7
    %1076 = vst.msk [vmem:[%s1075] ss:$8 sm:$0xf] %vm1074, %v1073
    %s1077 = scalar_lea.vmem [#allocation0], 7
    %1078 = vst.msk [vmem:[%s1077] ss:$8 sm:$0xf0] %vm1074, %v1073
    %s1079 = scalar_lea.vmem [#allocation1], 256
    %v1080 = vld [vmem:[%s1079] ss:$4 sm:$0xff]
    %vm1081 = vcmask 261120
    %s1082 = scalar_lea.vmem [#allocation0], 64
    %1083 = vst.msk [vmem:[%s1082] ss:$8 sm:$0xf] %vm1081, %v1080
    %s1084 = scalar_lea.vmem [#allocation0], 64
    %1085 = vst.msk [vmem:[%s1084] ss:$8 sm:$0xf0] %vm1081, %v1080
    %s1086 = scalar_lea.vmem [#allocation1], 288
    %v1087 = vld [vmem:[%s1086] ss:$4 sm:$0xff]
    %vm1088 = vcmask 261120
    %s1089 = scalar_lea.vmem [#allocation0], 65
    %1090 = vst.msk [vmem:[%s1089] ss:$8 sm:$0xf] %vm1088, %v1087
    %s1091 = scalar_lea.vmem [#allocation0], 65
    %1092 = vst.msk [vmem:[%s1091] ss:$8 sm:$0xf0] %vm1088, %v1087
    %s1093 = scalar_lea.vmem [#allocation1], 320
    %v1094 = vld [vmem:[%s1093] ss:$4 sm:$0xff]
    %vm1095 = vcmask 261120
    %s1096 = scalar_lea.vmem [#allocation0], 66
    %1097 = vst.msk [vmem:[%s1096] ss:$8 sm:$0xf] %vm1095, %v1094
    %s1098 = scalar_lea.vmem [#allocation0], 66
    %1099 = vst.msk [vmem:[%s1098] ss:$8 sm:$0xf0] %vm1095, %v1094
    %s1100 = scalar_lea.vmem [#allocation1], 352
    %v1101 = vld [vmem:[%s1100] ss:$4 sm:$0xff]
    %vm1102 = vcmask 261120
    %s1103 = scalar_lea.vmem [#allocation0], 67
    %1104 = vst.msk [vmem:[%s1103] ss:$8 sm:$0xf] %vm1102, %v1101
    %s1105 = scalar_lea.vmem [#allocation0], 67
    %1106 = vst.msk [vmem:[%s1105] ss:$8 sm:$0xf0] %vm1102, %v1101
    %s1107 = scalar_lea.vmem [#allocation1], 384
    %v1108 = vld [vmem:[%s1107] ss:$4 sm:$0xff]
    %vm1109 = vcmask 261120
    %s1110 = scalar_lea.vmem [#allocation0], 68
    %1111 = vst.msk [vmem:[%s1110] ss:$8 sm:$0xf] %vm1109, %v1108
    %s1112 = scalar_lea.vmem [#allocation0], 68
    %1113 = vst.msk [vmem:[%s1112] ss:$8 sm:$0xf0] %vm1109, %v1108
    %s1114 = scalar_lea.vmem [#allocation1], 416
    %v1115 = vld [vmem:[%s1114] ss:$4 sm:$0xff]
    %vm1116 = vcmask 261120
    %s1117 = scalar_lea.vmem [#allocation0], 69
    %1118 = vst.msk [vmem:[%s1117] ss:$8 sm:$0xf] %vm1116, %v1115
    %s1119 = scalar_lea.vmem [#allocation0], 69
    %1120 = vst.msk [vmem:[%s1119] ss:$8 sm:$0xf0] %vm1116, %v1115
    %s1121 = scalar_lea.vmem [#allocation1], 448
    %v1122 = vld [vmem:[%s1121] ss:$4 sm:$0xff]
    %vm1123 = vcmask 261120
    %s1124 = scalar_lea.vmem [#allocation0], 70
    %1125 = vst.msk [vmem:[%s1124] ss:$8 sm:$0xf] %vm1123, %v1122
    %s1126 = scalar_lea.vmem [#allocation0], 70
    %1127 = vst.msk [vmem:[%s1126] ss:$8 sm:$0xf0] %vm1123, %v1122
    %s1128 = scalar_lea.vmem [#allocation1], 480
    %v1129 = vld [vmem:[%s1128] ss:$4 sm:$0xff]
    %vm1130 = vcmask 261120
    %s1131 = scalar_lea.vmem [#allocation0], 71
    %1132 = vst.msk [vmem:[%s1131] ss:$8 sm:$0xf] %vm1130, %v1129
    %s1133 = scalar_lea.vmem [#allocation0], 71
    %1134 = vst.msk [vmem:[%s1133] ss:$8 sm:$0xf0] %vm1130, %v1129
    %s1135 = scalar_lea.vmem [#allocation1], 3
    %v1136 = vld [vmem:[%s1135] sm:$0x1]
    %s1137 = scalar_lea.vmem [#allocation1], 34
    %v1138 = vld [vmem:[%s1137] sm:$0x2]
    %vm1139 = vcmask 1041409
    %v1140 = vsel %vm1139, %v1138, %v1136
    %s1141 = scalar_lea.vmem [#allocation1], 65
    %v1142 = vld [vmem:[%s1141] sm:$0x4]
    %vm1143 = vcmask 1042434
    %v1144 = vsel %vm1143, %v1142, %v1140
    %s1145 = scalar_lea.vmem [#allocation1], 96
    %v1146 = vld [vmem:[%s1145] sm:$0x8]
    %vm1147 = vcmask 1043459
    %v1148 = vsel %vm1147, %v1146, %v1144
    %s1149 = scalar_lea.vmem [#allocation1], 127
    %v1150 = vld [vmem:[%s1149] sm:$0x10]
    %vm1151 = vcmask 1044484
    %v1152 = vsel %vm1151, %v1150, %v1148
    %s1153 = scalar_lea.vmem [#allocation1], 158
    %v1154 = vld [vmem:[%s1153] sm:$0x20]
    %vm1155 = vcmask 1045509
    %v1156 = vsel %vm1155, %v1154, %v1152
    %s1157 = scalar_lea.vmem [#allocation1], 189
    %v1158 = vld [vmem:[%s1157] sm:$0x40]
    %vm1159 = vcmask 1046534
    %v1160 = vsel %vm1159, %v1158, %v1156
    %s1161 = scalar_lea.vmem [#allocation1], 220
    %v1162 = vld [vmem:[%s1161] sm:$0x80]
    %vm1163 = vcmask 1047559
    %v1164 = vsel %vm1163, %v1162, %v1160
    %1165 = vrot.lane.b32.xlu0 %v1164, 96
    %v1166 = vpop.permute.xlu0 %1165
    %vm1167 = vcmask 1048320
    %1168 = vst.msk [vmem:[#allocation0] sm:$0xff] %vm1167, %v1166
    %s1169 = scalar_lea.vmem [#allocation1], 19
    %v1170 = vld [vmem:[%s1169] sm:$0x1]
    %s1171 = scalar_lea.vmem [#allocation1], 50
    %v1172 = vld [vmem:[%s1171] sm:$0x2]
    %vm1173 = vcmask 1041409
    %v1174 = vsel %vm1173, %v1172, %v1170
    %s1175 = scalar_lea.vmem [#allocation1], 81
    %v1176 = vld [vmem:[%s1175] sm:$0x4]
    %vm1177 = vcmask 1042434
    %v1178 = vsel %vm1177, %v1176, %v1174
    %s1179 = scalar_lea.vmem [#allocation1], 112
    %v1180 = vld [vmem:[%s1179] sm:$0x8]
    %vm1181 = vcmask 1043459
    %v1182 = vsel %vm1181, %v1180, %v1178
    %s1183 = scalar_lea.vmem [#allocation1], 143
    %v1184 = vld [vmem:[%s1183] sm:$0x10]
    %vm1185 = vcmask 1044484
    %v1186 = vsel %vm1185, %v1184, %v1182
    %s1187 = scalar_lea.vmem [#allocation1], 174
    %v1188 = vld [vmem:[%s1187] sm:$0x20]
    %vm1189 = vcmask 1045509
    %v1190 = vsel %vm1189, %v1188, %v1186
    %s1191 = scalar_lea.vmem [#allocation1], 205
    %v1192 = vld [vmem:[%s1191] sm:$0x40]
    %vm1193 = vcmask 1046534
    %v1194 = vsel %vm1193, %v1192, %v1190
    %s1195 = scalar_lea.vmem [#allocation1], 236
    %v1196 = vld [vmem:[%s1195] sm:$0x80]
    %vm1197 = vcmask 1047559
    %v1198 = vsel %vm1197, %v1196, %v1194
    %1199 = vrot.lane.b32.xlu0 %v1198, 96
    %v1200 = vpop.permute.xlu0 %1199
    %vm1201 = vcmask 1048320
    %s1202 = scalar_lea.vmem [#allocation0], 32
    %1203 = vst.msk [vmem:[%s1202] sm:$0xff] %vm1201, %v1200
    %s1204 = scalar_lea.vmem [#allocation1], 259
    %v1205 = vld [vmem:[%s1204] sm:$0x1]
    %s1206 = scalar_lea.vmem [#allocation1], 290
    %v1207 = vld [vmem:[%s1206] sm:$0x2]
    %vm1208 = vcmask 1041409
    %v1209 = vsel %vm1208, %v1207, %v1205
    %s1210 = scalar_lea.vmem [#allocation1], 321
    %v1211 = vld [vmem:[%s1210] sm:$0x4]
    %vm1212 = vcmask 1042434
    %v1213 = vsel %vm1212, %v1211, %v1209
    %s1214 = scalar_lea.vmem [#allocation1], 352
    %v1215 = vld [vmem:[%s1214] sm:$0x8]
    %vm1216 = vcmask 1043459
    %v1217 = vsel %vm1216, %v1215, %v1213
    %s1218 = scalar_lea.vmem [#allocation1], 383
    %v1219 = vld [vmem:[%s1218] sm:$0x10]
    %vm1220 = vcmask 1044484
    %v1221 = vsel %vm1220, %v1219, %v1217
    %s1222 = scalar_lea.vmem [#allocation1], 414
    %v1223 = vld [vmem:[%s1222] sm:$0x20]
    %vm1224 = vcmask 1045509
    %v1225 = vsel %vm1224, %v1223, %v1221
    %s1226 = scalar_lea.vmem [#allocation1], 445
    %v1227 = vld [vmem:[%s1226] sm:$0x40]
    %vm1228 = vcmask 1046534
    %v1229 = vsel %vm1228, %v1227, %v1225
    %s1230 = scalar_lea.vmem [#allocation1], 476
    %v1231 = vld [vmem:[%s1230] sm:$0x80]
    %vm1232 = vcmask 1047559
    %v1233 = vsel %vm1232, %v1231, %v1229
    %1234 = vrot.lane.b32.xlu0 %v1233, 96
    %v1235 = vpop.permute.xlu0 %1234
    %vm1236 = vcmask 1048320
    %s1237 = scalar_lea.vmem [#allocation0], 64
    %1238 = vst.msk [vmem:[%s1237] sm:$0xff] %vm1236, %v1235
    %s1239 = scalar_lea.vmem [#allocation1], 275
    %v1240 = vld [vmem:[%s1239] sm:$0x1]
    %s1241 = scalar_lea.vmem [#allocation1], 306
    %v1242 = vld [vmem:[%s1241] sm:$0x2]
    %vm1243 = vcmask 1041409
    %v1244 = vsel %vm1243, %v1242, %v1240
    %s1245 = scalar_lea.vmem [#allocation1], 337
    %v1246 = vld [vmem:[%s1245] sm:$0x4]
    %vm1247 = vcmask 1042434
    %v1248 = vsel %vm1247, %v1246, %v1244
    %s1249 = scalar_lea.vmem [#allocation1], 368
    %v1250 = vld [vmem:[%s1249] sm:$0x8]
    %vm1251 = vcmask 1043459
    %v1252 = vsel %vm1251, %v1250, %v1248
    %s1253 = scalar_lea.vmem [#allocation1], 399
    %v1254 = vld [vmem:[%s1253] sm:$0x10]
    %vm1255 = vcmask 1044484
    %v1256 = vsel %vm1255, %v1254, %v1252
    %s1257 = scalar_lea.vmem [#allocation1], 430
    %v1258 = vld [vmem:[%s1257] sm:$0x20]
    %vm1259 = vcmask 1045509
    %v1260 = vsel %vm1259, %v1258, %v1256
    %s1261 = scalar_lea.vmem [#allocation1], 461
    %v1262 = vld [vmem:[%s1261] sm:$0x40]
    %vm1263 = vcmask 1046534
    %v1264 = vsel %vm1263, %v1262, %v1260
    %s1265 = scalar_lea.vmem [#allocation1], 492
    %v1266 = vld [vmem:[%s1265] sm:$0x80]
    %vm1267 = vcmask 1047559
    %v1268 = vsel %vm1267, %v1266, %v1264
    %1269 = vrot.lane.b32.xlu0 %v1268, 96
    %v1270 = vpop.permute.xlu0 %1269
    %vm1271 = vcmask 1048320
    %s1272 = scalar_lea.vmem [#allocation0], 96
    %1273 = vst.msk [vmem:[%s1272] sm:$0xff] %vm1271, %v1270
    %s1274 = scalar_lea.vmem [#allocation1], 7
    %v1275 = vld [vmem:[%s1274] sm:$0x1]
    %s1276 = scalar_lea.vmem [#allocation1], 38
    %v1277 = vld [vmem:[%s1276] sm:$0x2]
    %vm1278 = vcmask 1041409
    %v1279 = vsel %vm1278, %v1277, %v1275
    %s1280 = scalar_lea.vmem [#allocation1], 69
    %v1281 = vld [vmem:[%s1280] sm:$0x4]
    %vm1282 = vcmask 1042434
    %v1283 = vsel %vm1282, %v1281, %v1279
    %s1284 = scalar_lea.vmem [#allocation1], 100
    %v1285 = vld [vmem:[%s1284] sm:$0x8]
    %vm1286 = vcmask 1043459
    %v1287 = vsel %vm1286, %v1285, %v1283
    %s1288 = scalar_lea.vmem [#allocation1], 131
    %v1289 = vld [vmem:[%s1288] sm:$0x10]
    %vm1290 = vcmask 1044484
    %v1291 = vsel %vm1290, %v1289, %v1287
    %s1292 = scalar_lea.vmem [#allocation1], 162
    %v1293 = vld [vmem:[%s1292] sm:$0x20]
    %vm1294 = vcmask 1045509
    %v1295 = vsel %vm1294, %v1293, %v1291
    %s1296 = scalar_lea.vmem [#allocation1], 193
    %v1297 = vld [vmem:[%s1296] sm:$0x40]
    %vm1298 = vcmask 1046534
    %v1299 = vsel %vm1298, %v1297, %v1295
    %s1300 = scalar_lea.vmem [#allocation1], 224
    %v1301 = vld [vmem:[%s1300] sm:$0x80]
    %vm1302 = vcmask 1047559
    %v1303 = vsel %vm1302, %v1301, %v1299
    %1304 = vrot.lane.b32.xlu0 %v1303, 96
    %v1305 = vpop.permute.xlu0 %1304
    %vm1306 = vcmask 1048320
    %s1307 = scalar_lea.vmem [#allocation0], 8
    %1308 = vst.msk [vmem:[%s1307] sm:$0xff] %vm1306, %v1305
    %s1309 = scalar_lea.vmem [#allocation1], 23
    %v1310 = vld [vmem:[%s1309] sm:$0x1]
    %s1311 = scalar_lea.vmem [#allocation1], 54
    %v1312 = vld [vmem:[%s1311] sm:$0x2]
    %vm1313 = vcmask 1041409
    %v1314 = vsel %vm1313, %v1312, %v1310
    %s1315 = scalar_lea.vmem [#allocation1], 85
    %v1316 = vld [vmem:[%s1315] sm:$0x4]
    %vm1317 = vcmask 1042434
    %v1318 = vsel %vm1317, %v1316, %v1314
    %s1319 = scalar_lea.vmem [#allocation1], 116
    %v1320 = vld [vmem:[%s1319] sm:$0x8]
    %vm1321 = vcmask 1043459
    %v1322 = vsel %vm1321, %v1320, %v1318
    %s1323 = scalar_lea.vmem [#allocation1], 147
    %v1324 = vld [vmem:[%s1323] sm:$0x10]
    %vm1325 = vcmask 1044484
    %v1326 = vsel %vm1325, %v1324, %v1322
    %s1327 = scalar_lea.vmem [#allocation1], 178
    %v1328 = vld [vmem:[%s1327] sm:$0x20]
    %vm1329 = vcmask 1045509
    %v1330 = vsel %vm1329, %v1328, %v1326
    %s1331 = scalar_lea.vmem [#allocation1], 209
    %v1332 = vld [vmem:[%s1331] sm:$0x40]
    %vm1333 = vcmask 1046534
    %v1334 = vsel %vm1333, %v1332, %v1330
    %s1335 = scalar_lea.vmem [#allocation1], 240
    %v1336 = vld [vmem:[%s1335] sm:$0x80]
    %vm1337 = vcmask 1047559
    %v1338 = vsel %vm1337, %v1336, %v1334
    %1339 = vrot.lane.b32.xlu0 %v1338, 96
    %v1340 = vpop.permute.xlu0 %1339
    %vm1341 = vcmask 1048320
    %s1342 = scalar_lea.vmem [#allocation0], 40
    %1343 = vst.msk [vmem:[%s1342] sm:$0xff] %vm1341, %v1340
    %s1344 = scalar_lea.vmem [#allocation1], 263
    %v1345 = vld [vmem:[%s1344] sm:$0x1]
    %s1346 = scalar_lea.vmem [#allocation1], 294
    %v1347 = vld [vmem:[%s1346] sm:$0x2]
    %vm1348 = vcmask 1041409
    %v1349 = vsel %vm1348, %v1347, %v1345
    %s1350 = scalar_lea.vmem [#allocation1], 325
    %v1351 = vld [vmem:[%s1350] sm:$0x4]
    %vm1352 = vcmask 1042434
    %v1353 = vsel %vm1352, %v1351, %v1349
    %s1354 = scalar_lea.vmem [#allocation1], 356
    %v1355 = vld [vmem:[%s1354] sm:$0x8]
    %vm1356 = vcmask 1043459
    %v1357 = vsel %vm1356, %v1355, %v1353
    %s1358 = scalar_lea.vmem [#allocation1], 387
    %v1359 = vld [vmem:[%s1358] sm:$0x10]
    %vm1360 = vcmask 1044484
    %v1361 = vsel %vm1360, %v1359, %v1357
    %s1362 = scalar_lea.vmem [#allocation1], 418
    %v1363 = vld [vmem:[%s1362] sm:$0x20]
    %vm1364 = vcmask 1045509
    %v1365 = vsel %vm1364, %v1363, %v1361
    %s1366 = scalar_lea.vmem [#allocation1], 449
    %v1367 = vld [vmem:[%s1366] sm:$0x40]
    %vm1368 = vcmask 1046534
    %v1369 = vsel %vm1368, %v1367, %v1365
    %s1370 = scalar_lea.vmem [#allocation1], 480
    %v1371 = vld [vmem:[%s1370] sm:$0x80]
    %vm1372 = vcmask 1047559
    %v1373 = vsel %vm1372, %v1371, %v1369
    %1374 = vrot.lane.b32.xlu0 %v1373, 96
    %v1375 = vpop.permute.xlu0 %1374
    %vm1376 = vcmask 1048320
    %s1377 = scalar_lea.vmem [#allocation0], 72
    %1378 = vst.msk [vmem:[%s1377] sm:$0xff] %vm1376, %v1375
    %s1379 = scalar_lea.vmem [#allocation1], 279
    %v1380 = vld [vmem:[%s1379] sm:$0x1]
    %s1381 = scalar_lea.vmem [#allocation1], 310
    %v1382 = vld [vmem:[%s1381] sm:$0x2]
    %vm1383 = vcmask 1041409
    %v1384 = vsel %vm1383, %v1382, %v1380
    %s1385 = scalar_lea.vmem [#allocation1], 341
    %v1386 = vld [vmem:[%s1385] sm:$0x4]
    %vm1387 = vcmask 1042434
    %v1388 = vsel %vm1387, %v1386, %v1384
    %s1389 = scalar_lea.vmem [#allocation1], 372
    %v1390 = vld [vmem:[%s1389] sm:$0x8]
    %vm1391 = vcmask 1043459
    %v1392 = vsel %vm1391, %v1390, %v1388
    %s1393 = scalar_lea.vmem [#allocation1], 403
    %v1394 = vld [vmem:[%s1393] sm:$0x10]
    %vm1395 = vcmask 1044484
    %v1396 = vsel %vm1395, %v1394, %v1392
    %s1397 = scalar_lea.vmem [#allocation1], 434
    %v1398 = vld [vmem:[%s1397] sm:$0x20]
    %vm1399 = vcmask 1045509
    %v1400 = vsel %vm1399, %v1398, %v1396
    %s1401 = scalar_lea.vmem [#allocation1], 465
    %v1402 = vld [vmem:[%s1401] sm:$0x40]
    %vm1403 = vcmask 1046534
    %v1404 = vsel %vm1403, %v1402, %v1400
    %s1405 = scalar_lea.vmem [#allocation1], 496
    %v1406 = vld [vmem:[%s1405] sm:$0x80]
    %vm1407 = vcmask 1047559
    %v1408 = vsel %vm1407, %v1406, %v1404
    %1409 = vrot.lane.b32.xlu0 %v1408, 96
    %v1410 = vpop.permute.xlu0 %1409
    %vm1411 = vcmask 1048320
    %s1412 = scalar_lea.vmem [#allocation0], 104
    %1413 = vst.msk [vmem:[%s1412] sm:$0xff] %vm1411, %v1410
    %s1414 = scalar_lea.vmem [#allocation1], 11
    %v1415 = vld [vmem:[%s1414] sm:$0x1]
    %s1416 = scalar_lea.vmem [#allocation1], 42
    %v1417 = vld [vmem:[%s1416] sm:$0x2]
    %vm1418 = vcmask 1041409
    %v1419 = vsel %vm1418, %v1417, %v1415
    %s1420 = scalar_lea.vmem [#allocation1], 73
    %v1421 = vld [vmem:[%s1420] sm:$0x4]
    %vm1422 = vcmask 1042434
    %v1423 = vsel %vm1422, %v1421, %v1419
    %s1424 = scalar_lea.vmem [#allocation1], 104
    %v1425 = vld [vmem:[%s1424] sm:$0x8]
    %vm1426 = vcmask 1043459
    %v1427 = vsel %vm1426, %v1425, %v1423
    %s1428 = scalar_lea.vmem [#allocation1], 135
    %v1429 = vld [vmem:[%s1428] sm:$0x10]
    %vm1430 = vcmask 1044484
    %v1431 = vsel %vm1430, %v1429, %v1427
    %s1432 = scalar_lea.vmem [#allocation1], 166
    %v1433 = vld [vmem:[%s1432] sm:$0x20]
    %vm1434 = vcmask 1045509
    %v1435 = vsel %vm1434, %v1433, %v1431
    %s1436 = scalar_lea.vmem [#allocation1], 197
    %v1437 = vld [vmem:[%s1436] sm:$0x40]
    %vm1438 = vcmask 1046534
    %v1439 = vsel %vm1438, %v1437, %v1435
    %s1440 = scalar_lea.vmem [#allocation1], 228
    %v1441 = vld [vmem:[%s1440] sm:$0x80]
    %vm1442 = vcmask 1047559
    %v1443 = vsel %vm1442, %v1441, %v1439
    %1444 = vrot.lane.b32.xlu0 %v1443, 96
    %v1445 = vpop.permute.xlu0 %1444
    %vm1446 = vcmask 1048320
    %s1447 = scalar_lea.vmem [#allocation0], 16
    %1448 = vst.msk [vmem:[%s1447] sm:$0xff] %vm1446, %v1445
    %s1449 = scalar_lea.vmem [#allocation1], 27
    %v1450 = vld [vmem:[%s1449] sm:$0x1]
    %s1451 = scalar_lea.vmem [#allocation1], 58
    %v1452 = vld [vmem:[%s1451] sm:$0x2]
    %vm1453 = vcmask 1041409
    %v1454 = vsel %vm1453, %v1452, %v1450
    %s1455 = scalar_lea.vmem [#allocation1], 89
    %v1456 = vld [vmem:[%s1455] sm:$0x4]
    %vm1457 = vcmask 1042434
    %v1458 = vsel %vm1457, %v1456, %v1454
    %s1459 = scalar_lea.vmem [#allocation1], 120
    %v1460 = vld [vmem:[%s1459] sm:$0x8]
    %vm1461 = vcmask 1043459
    %v1462 = vsel %vm1461, %v1460, %v1458
    %s1463 = scalar_lea.vmem [#allocation1], 151
    %v1464 = vld [vmem:[%s1463] sm:$0x10]
    %vm1465 = vcmask 1044484
    %v1466 = vsel %vm1465, %v1464, %v1462
    %s1467 = scalar_lea.vmem [#allocation1], 182
    %v1468 = vld [vmem:[%s1467] sm:$0x20]
    %vm1469 = vcmask 1045509
    %v1470 = vsel %vm1469, %v1468, %v1466
    %s1471 = scalar_lea.vmem [#allocation1], 213
    %v1472 = vld [vmem:[%s1471] sm:$0x40]
    %vm1473 = vcmask 1046534
    %v1474 = vsel %vm1473, %v1472, %v1470
    %s1475 = scalar_lea.vmem [#allocation1], 244
    %v1476 = vld [vmem:[%s1475] sm:$0x80]
    %vm1477 = vcmask 1047559
    %v1478 = vsel %vm1477, %v1476, %v1474
    %1479 = vrot.lane.b32.xlu0 %v1478, 96
    %v1480 = vpop.permute.xlu0 %1479
    %vm1481 = vcmask 1048320
    %s1482 = scalar_lea.vmem [#allocation0], 48
    %1483 = vst.msk [vmem:[%s1482] sm:$0xff] %vm1481, %v1480
    %s1484 = scalar_lea.vmem [#allocation1], 267
    %v1485 = vld [vmem:[%s1484] sm:$0x1]
    %s1486 = scalar_lea.vmem [#allocation1], 298
    %v1487 = vld [vmem:[%s1486] sm:$0x2]
    %vm1488 = vcmask 1041409
    %v1489 = vsel %vm1488, %v1487, %v1485
    %s1490 = scalar_lea.vmem [#allocation1], 329
    %v1491 = vld [vmem:[%s1490] sm:$0x4]
    %vm1492 = vcmask 1042434
    %v1493 = vsel %vm1492, %v1491, %v1489
    %s1494 = scalar_lea.vmem [#allocation1], 360
    %v1495 = vld [vmem:[%s1494] sm:$0x8]
    %vm1496 = vcmask 1043459
    %v1497 = vsel %vm1496, %v1495, %v1493
    %s1498 = scalar_lea.vmem [#allocation1], 391
    %v1499 = vld [vmem:[%s1498] sm:$0x10]
    %vm1500 = vcmask 1044484
    %v1501 = vsel %vm1500, %v1499, %v1497
    %s1502 = scalar_lea.vmem [#allocation1], 422
    %v1503 = vld [vmem:[%s1502] sm:$0x20]
    %vm1504 = vcmask 1045509
    %v1505 = vsel %vm1504, %v1503, %v1501
    %s1506 = scalar_lea.vmem [#allocation1], 453
    %v1507 = vld [vmem:[%s1506] sm:$0x40]
    %vm1508 = vcmask 1046534
    %v1509 = vsel %vm1508, %v1507, %v1505
    %s1510 = scalar_lea.vmem [#allocation1], 484
    %v1511 = vld [vmem:[%s1510] sm:$0x80]
    %vm1512 = vcmask 1047559
    %v1513 = vsel %vm1512, %v1511, %v1509
    %1514 = vrot.lane.b32.xlu0 %v1513, 96
    %v1515 = vpop.permute.xlu0 %1514
    %vm1516 = vcmask 1048320
    %s1517 = scalar_lea.vmem [#allocation0], 80
    %1518 = vst.msk [vmem:[%s1517] sm:$0xff] %vm1516, %v1515
    %s1519 = scalar_lea.vmem [#allocation1], 283
    %v1520 = vld [vmem:[%s1519] sm:$0x1]
    %s1521 = scalar_lea.vmem [#allocation1], 314
    %v1522 = vld [vmem:[%s1521] sm:$0x2]
    %vm1523 = vcmask 1041409
    %v1524 = vsel %vm1523, %v1522, %v1520
    %s1525 = scalar_lea.vmem [#allocation1], 345
    %v1526 = vld [vmem:[%s1525] sm:$0x4]
    %vm1527 = vcmask 1042434
    %v1528 = vsel %vm1527, %v1526, %v1524
    %s1529 = scalar_lea.vmem [#allocation1], 376
    %v1530 = vld [vmem:[%s1529] sm:$0x8]
    %vm1531 = vcmask 1043459
    %v1532 = vsel %vm1531, %v1530, %v1528
    %s1533 = scalar_lea.vmem [#allocation1], 407
    %v1534 = vld [vmem:[%s1533] sm:$0x10]
    %vm1535 = vcmask 1044484
    %v1536 = vsel %vm1535, %v1534, %v1532
    %s1537 = scalar_lea.vmem [#allocation1], 438
    %v1538 = vld [vmem:[%s1537] sm:$0x20]
    %vm1539 = vcmask 1045509
    %v1540 = vsel %vm1539, %v1538, %v1536
    %s1541 = scalar_lea.vmem [#allocation1], 469
    %v1542 = vld [vmem:[%s1541] sm:$0x40]
    %vm1543 = vcmask 1046534
    %v1544 = vsel %vm1543, %v1542, %v1540
    %s1545 = scalar_lea.vmem [#allocation1], 500
    %v1546 = vld [vmem:[%s1545] sm:$0x80]
    %vm1547 = vcmask 1047559
    %v1548 = vsel %vm1547, %v1546, %v1544
    %1549 = vrot.lane.b32.xlu0 %v1548, 96
    %v1550 = vpop.permute.xlu0 %1549
    %vm1551 = vcmask 1048320
    %s1552 = scalar_lea.vmem [#allocation0], 112
    %1553 = vst.msk [vmem:[%s1552] sm:$0xff] %vm1551, %v1550
    %s1554 = scalar_lea.vmem [#allocation1], 15
    %v1555 = vld [vmem:[%s1554] sm:$0x1]
    %s1556 = scalar_lea.vmem [#allocation1], 46
    %v1557 = vld [vmem:[%s1556] sm:$0x2]
    %vm1558 = vcmask 1041409
    %v1559 = vsel %vm1558, %v1557, %v1555
    %s1560 = scalar_lea.vmem [#allocation1], 77
    %v1561 = vld [vmem:[%s1560] sm:$0x4]
    %vm1562 = vcmask 1042434
    %v1563 = vsel %vm1562, %v1561, %v1559
    %s1564 = scalar_lea.vmem [#allocation1], 108
    %v1565 = vld [vmem:[%s1564] sm:$0x8]
    %vm1566 = vcmask 1043459
    %v1567 = vsel %vm1566, %v1565, %v1563
    %s1568 = scalar_lea.vmem [#allocation1], 139
    %v1569 = vld [vmem:[%s1568] sm:$0x10]
    %vm1570 = vcmask 1044484
    %v1571 = vsel %vm1570, %v1569, %v1567
    %s1572 = scalar_lea.vmem [#allocation1], 170
    %v1573 = vld [vmem:[%s1572] sm:$0x20]
    %vm1574 = vcmask 1045509
    %v1575 = vsel %vm1574, %v1573, %v1571
    %s1576 = scalar_lea.vmem [#allocation1], 201
    %v1577 = vld [vmem:[%s1576] sm:$0x40]
    %vm1578 = vcmask 1046534
    %v1579 = vsel %vm1578, %v1577, %v1575
    %s1580 = scalar_lea.vmem [#allocation1], 232
    %v1581 = vld [vmem:[%s1580] sm:$0x80]
    %vm1582 = vcmask 1047559
    %v1583 = vsel %vm1582, %v1581, %v1579
    %1584 = vrot.lane.b32.xlu0 %v1583, 96
    %v1585 = vpop.permute.xlu0 %1584
    %vm1586 = vcmask 1048320
    %s1587 = scalar_lea.vmem [#allocation0], 24
    %1588 = vst.msk [vmem:[%s1587] sm:$0xff] %vm1586, %v1585
    %s1589 = scalar_lea.vmem [#allocation1], 31
    %v1590 = vld [vmem:[%s1589] sm:$0x1]
    %s1591 = scalar_lea.vmem [#allocation1], 62
    %v1592 = vld [vmem:[%s1591] sm:$0x2]
    %vm1593 = vcmask 1041409
    %v1594 = vsel %vm1593, %v1592, %v1590
    %s1595 = scalar_lea.vmem [#allocation1], 93
    %v1596 = vld [vmem:[%s1595] sm:$0x4]
    %vm1597 = vcmask 1042434
    %v1598 = vsel %vm1597, %v1596, %v1594
    %s1599 = scalar_lea.vmem [#allocation1], 124
    %v1600 = vld [vmem:[%s1599] sm:$0x8]
    %vm1601 = vcmask 1043459
    %v1602 = vsel %vm1601, %v1600, %v1598
    %s1603 = scalar_lea.vmem [#allocation1], 155
    %v1604 = vld [vmem:[%s1603] sm:$0x10]
    %vm1605 = vcmask 1044484
    %v1606 = vsel %vm1605, %v1604, %v1602
    %s1607 = scalar_lea.vmem [#allocation1], 186
    %v1608 = vld [vmem:[%s1607] sm:$0x20]
    %vm1609 = vcmask 1045509
    %v1610 = vsel %vm1609, %v1608, %v1606
    %s1611 = scalar_lea.vmem [#allocation1], 217
    %v1612 = vld [vmem:[%s1611] sm:$0x40]
    %vm1613 = vcmask 1046534
    %v1614 = vsel %vm1613, %v1612, %v1610
    %s1615 = scalar_lea.vmem [#allocation1], 248
    %v1616 = vld [vmem:[%s1615] sm:$0x80]
    %vm1617 = vcmask 1047559
    %v1618 = vsel %vm1617, %v1616, %v1614
    %1619 = vrot.lane.b32.xlu0 %v1618, 96
    %v1620 = vpop.permute.xlu0 %1619
    %vm1621 = vcmask 1048320
    %s1622 = scalar_lea.vmem [#allocation0], 56
    %1623 = vst.msk [vmem:[%s1622] sm:$0xff] %vm1621, %v1620
    %s1624 = scalar_lea.vmem [#allocation1], 271
    %v1625 = vld [vmem:[%s1624] sm:$0x1]
    %s1626 = scalar_lea.vmem [#allocation1], 302
    %v1627 = vld [vmem:[%s1626] sm:$0x2]
    %vm1628 = vcmask 1041409
    %v1629 = vsel %vm1628, %v1627, %v1625
    %s1630 = scalar_lea.vmem [#allocation1], 333
    %v1631 = vld [vmem:[%s1630] sm:$0x4]
    %vm1632 = vcmask 1042434
    %v1633 = vsel %vm1632, %v1631, %v1629
    %s1634 = scalar_lea.vmem [#allocation1], 364
    %v1635 = vld [vmem:[%s1634] sm:$0x8]
    %vm1636 = vcmask 1043459
    %v1637 = vsel %vm1636, %v1635, %v1633
    %s1638 = scalar_lea.vmem [#allocation1], 395
    %v1639 = vld [vmem:[%s1638] sm:$0x10]
    %vm1640 = vcmask 1044484
    %v1641 = vsel %vm1640, %v1639, %v1637
    %s1642 = scalar_lea.vmem [#allocation1], 426
    %v1643 = vld [vmem:[%s1642] sm:$0x20]
    %vm1644 = vcmask 1045509
    %v1645 = vsel %vm1644, %v1643, %v1641
    %s1646 = scalar_lea.vmem [#allocation1], 457
    %v1647 = vld [vmem:[%s1646] sm:$0x40]
    %vm1648 = vcmask 1046534
    %v1649 = vsel %vm1648, %v1647, %v1645
    %s1650 = scalar_lea.vmem [#allocation1], 488
    %v1651 = vld [vmem:[%s1650] sm:$0x80]
    %vm1652 = vcmask 1047559
    %v1653 = vsel %vm1652, %v1651, %v1649
    %1654 = vrot.lane.b32.xlu0 %v1653, 96
    %v1655 = vpop.permute.xlu0 %1654
    %vm1656 = vcmask 1048320
    %s1657 = scalar_lea.vmem [#allocation0], 88
    %1658 = vst.msk [vmem:[%s1657] sm:$0xff] %vm1656, %v1655
    %s1659 = scalar_lea.vmem [#allocation1], 287
    %v1660 = vld [vmem:[%s1659] sm:$0x1]
    %s1661 = scalar_lea.vmem [#allocation1], 318
    %v1662 = vld [vmem:[%s1661] sm:$0x2]
    %vm1663 = vcmask 1041409
    %v1664 = vsel %vm1663, %v1662, %v1660
    %s1665 = scalar_lea.vmem [#allocation1], 349
    %v1666 = vld [vmem:[%s1665] sm:$0x4]
    %vm1667 = vcmask 1042434
    %v1668 = vsel %vm1667, %v1666, %v1664
    %s1669 = scalar_lea.vmem [#allocation1], 380
    %v1670 = vld [vmem:[%s1669] sm:$0x8]
    %vm1671 = vcmask 1043459
    %v1672 = vsel %vm1671, %v1670, %v1668
    %s1673 = scalar_lea.vmem [#allocation1], 411
    %v1674 = vld [vmem:[%s1673] sm:$0x10]
    %vm1675 = vcmask 1044484
    %v1676 = vsel %vm1675, %v1674, %v1672
    %s1677 = scalar_lea.vmem [#allocation1], 442
    %v1678 = vld [vmem:[%s1677] sm:$0x20]
    %vm1679 = vcmask 1045509
    %v1680 = vsel %vm1679, %v1678, %v1676
    %s1681 = scalar_lea.vmem [#allocation1], 473
    %v1682 = vld [vmem:[%s1681] sm:$0x40]
    %vm1683 = vcmask 1046534
    %v1684 = vsel %vm1683, %v1682, %v1680
    %s1685 = scalar_lea.vmem [#allocation1], 504
    %v1686 = vld [vmem:[%s1685] sm:$0x80]
    %vm1687 = vcmask 1047559
    %v1688 = vsel %vm1687, %v1686, %v1684
    %1689 = vrot.lane.b32.xlu0 %v1688, 96
    %v1690 = vpop.permute.xlu0 %1689
    %vm1691 = vcmask 1048320
    %s1692 = scalar_lea.vmem [#allocation0], 120
    %1693 = vst.msk [vmem:[%s1692] sm:$0xff] %vm1691, %v1690
    %s1694 = scalar_lea.vmem [#allocation1], 2
    %v1695 = vld [vmem:[%s1694] sm:$0x1]
    %s1696 = scalar_lea.vmem [#allocation1], 33
    %v1697 = vld [vmem:[%s1696] sm:$0x2]
    %vm1698 = vcmask 1041409
    %v1699 = vsel %vm1698, %v1697, %v1695
    %s1700 = scalar_lea.vmem [#allocation1], 64
    %v1701 = vld [vmem:[%s1700] sm:$0x4]
    %vm1702 = vcmask 1042434
    %v1703 = vsel %vm1702, %v1701, %v1699
    %s1704 = scalar_lea.vmem [#allocation1], 95
    %v1705 = vld [vmem:[%s1704] sm:$0x8]
    %vm1706 = vcmask 1043459
    %v1707 = vsel %vm1706, %v1705, %v1703
    %s1708 = scalar_lea.vmem [#allocation1], 126
    %v1709 = vld [vmem:[%s1708] sm:$0x10]
    %vm1710 = vcmask 1044484
    %v1711 = vsel %vm1710, %v1709, %v1707
    %s1712 = scalar_lea.vmem [#allocation1], 157
    %v1713 = vld [vmem:[%s1712] sm:$0x20]
    %vm1714 = vcmask 1045509
    %v1715 = vsel %vm1714, %v1713, %v1711
    %s1716 = scalar_lea.vmem [#allocation1], 188
    %v1717 = vld [vmem:[%s1716] sm:$0x40]
    %vm1718 = vcmask 1046534
    %v1719 = vsel %vm1718, %v1717, %v1715
    %s1720 = scalar_lea.vmem [#allocation1], 219
    %v1721 = vld [vmem:[%s1720] sm:$0x80]
    %vm1722 = vcmask 1047559
    %v1723 = vsel %vm1722, %v1721, %v1719
    %1724 = vrot.lane.b32.xlu0 %v1723, 64
    %v1725 = vpop.permute.xlu0 %1724
    %vm1726 = vcmask 785920
    %1727 = vst.msk [vmem:[#allocation0] sm:$0xff] %vm1726, %v1725
    %s1728 = scalar_lea.vmem [#allocation1], 18
    %v1729 = vld [vmem:[%s1728] sm:$0x1]
    %s1730 = scalar_lea.vmem [#allocation1], 49
    %v1731 = vld [vmem:[%s1730] sm:$0x2]
    %vm1732 = vcmask 1041409
    %v1733 = vsel %vm1732, %v1731, %v1729
    %s1734 = scalar_lea.vmem [#allocation1], 80
    %v1735 = vld [vmem:[%s1734] sm:$0x4]
    %vm1736 = vcmask 1042434
    %v1737 = vsel %vm1736, %v1735, %v1733
    %s1738 = scalar_lea.vmem [#allocation1], 111
    %v1739 = vld [vmem:[%s1738] sm:$0x8]
    %vm1740 = vcmask 1043459
    %v1741 = vsel %vm1740, %v1739, %v1737
    %s1742 = scalar_lea.vmem [#allocation1], 142
    %v1743 = vld [vmem:[%s1742] sm:$0x10]
    %vm1744 = vcmask 1044484
    %v1745 = vsel %vm1744, %v1743, %v1741
    %s1746 = scalar_lea.vmem [#allocation1], 173
    %v1747 = vld [vmem:[%s1746] sm:$0x20]
    %vm1748 = vcmask 1045509
    %v1749 = vsel %vm1748, %v1747, %v1745
    %s1750 = scalar_lea.vmem [#allocation1], 204
    %v1751 = vld [vmem:[%s1750] sm:$0x40]
    %vm1752 = vcmask 1046534
    %v1753 = vsel %vm1752, %v1751, %v1749
    %s1754 = scalar_lea.vmem [#allocation1], 235
    %v1755 = vld [vmem:[%s1754] sm:$0x80]
    %vm1756 = vcmask 1047559
    %v1757 = vsel %vm1756, %v1755, %v1753
    %1758 = vrot.lane.b32.xlu0 %v1757, 64
    %v1759 = vpop.permute.xlu0 %1758
    %vm1760 = vcmask 785920
    %s1761 = scalar_lea.vmem [#allocation0], 32
    %1762 = vst.msk [vmem:[%s1761] sm:$0xff] %vm1760, %v1759
    %s1763 = scalar_lea.vmem [#allocation1], 258
    %v1764 = vld [vmem:[%s1763] sm:$0x1]
    %s1765 = scalar_lea.vmem [#allocation1], 289
    %v1766 = vld [vmem:[%s1765] sm:$0x2]
    %vm1767 = vcmask 1041409
    %v1768 = vsel %vm1767, %v1766, %v1764
    %s1769 = scalar_lea.vmem [#allocation1], 320
    %v1770 = vld [vmem:[%s1769] sm:$0x4]
    %vm1771 = vcmask 1042434
    %v1772 = vsel %vm1771, %v1770, %v1768
    %s1773 = scalar_lea.vmem [#allocation1], 351
    %v1774 = vld [vmem:[%s1773] sm:$0x8]
    %vm1775 = vcmask 1043459
    %v1776 = vsel %vm1775, %v1774, %v1772
    %s1777 = scalar_lea.vmem [#allocation1], 382
    %v1778 = vld [vmem:[%s1777] sm:$0x10]
    %vm1779 = vcmask 1044484
    %v1780 = vsel %vm1779, %v1778, %v1776
    %s1781 = scalar_lea.vmem [#allocation1], 413
    %v1782 = vld [vmem:[%s1781] sm:$0x20]
    %vm1783 = vcmask 1045509
    %v1784 = vsel %vm1783, %v1782, %v1780
    %s1785 = scalar_lea.vmem [#allocation1], 444
    %v1786 = vld [vmem:[%s1785] sm:$0x40]
    %vm1787 = vcmask 1046534
    %v1788 = vsel %vm1787, %v1786, %v1784
    %s1789 = scalar_lea.vmem [#allocation1], 475
    %v1790 = vld [vmem:[%s1789] sm:$0x80]
    %vm1791 = vcmask 1047559
    %v1792 = vsel %vm1791, %v1790, %v1788
    %1793 = vrot.lane.b32.xlu0 %v1792, 64
    %v1794 = vpop.permute.xlu0 %1793
    %vm1795 = vcmask 785920
    %s1796 = scalar_lea.vmem [#allocation0], 64
    %1797 = vst.msk [vmem:[%s1796] sm:$0xff] %vm1795, %v1794
    %s1798 = scalar_lea.vmem [#allocation1], 274
    %v1799 = vld [vmem:[%s1798] sm:$0x1]
    %s1800 = scalar_lea.vmem [#allocation1], 305
    %v1801 = vld [vmem:[%s1800] sm:$0x2]
    %vm1802 = vcmask 1041409
    %v1803 = vsel %vm1802, %v1801, %v1799
    %s1804 = scalar_lea.vmem [#allocation1], 336
    %v1805 = vld [vmem:[%s1804] sm:$0x4]
    %vm1806 = vcmask 1042434
    %v1807 = vsel %vm1806, %v1805, %v1803
    %s1808 = scalar_lea.vmem [#allocation1], 367
    %v1809 = vld [vmem:[%s1808] sm:$0x8]
    %vm1810 = vcmask 1043459
    %v1811 = vsel %vm1810, %v1809, %v1807
    %s1812 = scalar_lea.vmem [#allocation1], 398
    %v1813 = vld [vmem:[%s1812] sm:$0x10]
    %vm1814 = vcmask 1044484
    %v1815 = vsel %vm1814, %v1813, %v1811
    %s1816 = scalar_lea.vmem [#allocation1], 429
    %v1817 = vld [vmem:[%s1816] sm:$0x20]
    %vm1818 = vcmask 1045509
    %v1819 = vsel %vm1818, %v1817, %v1815
    %s1820 = scalar_lea.vmem [#allocation1], 460
    %v1821 = vld [vmem:[%s1820] sm:$0x40]
    %vm1822 = vcmask 1046534
    %v1823 = vsel %vm1822, %v1821, %v1819
    %s1824 = scalar_lea.vmem [#allocation1], 491
    %v1825 = vld [vmem:[%s1824] sm:$0x80]
    %vm1826 = vcmask 1047559
    %v1827 = vsel %vm1826, %v1825, %v1823
    %1828 = vrot.lane.b32.xlu0 %v1827, 64
    %v1829 = vpop.permute.xlu0 %1828
    %vm1830 = vcmask 785920
    %s1831 = scalar_lea.vmem [#allocation0], 96
    %1832 = vst.msk [vmem:[%s1831] sm:$0xff] %vm1830, %v1829
    %s1833 = scalar_lea.vmem [#allocation1], 6
    %v1834 = vld [vmem:[%s1833] sm:$0x1]
    %s1835 = scalar_lea.vmem [#allocation1], 37
    %v1836 = vld [vmem:[%s1835] sm:$0x2]
    %vm1837 = vcmask 1041409
    %v1838 = vsel %vm1837, %v1836, %v1834
    %s1839 = scalar_lea.vmem [#allocation1], 68
    %v1840 = vld [vmem:[%s1839] sm:$0x4]
    %vm1841 = vcmask 1042434
    %v1842 = vsel %vm1841, %v1840, %v1838
    %s1843 = scalar_lea.vmem [#allocation1], 99
    %v1844 = vld [vmem:[%s1843] sm:$0x8]
    %vm1845 = vcmask 1043459
    %v1846 = vsel %vm1845, %v1844, %v1842
    %s1847 = scalar_lea.vmem [#allocation1], 130
    %v1848 = vld [vmem:[%s1847] sm:$0x10]
    %vm1849 = vcmask 1044484
    %v1850 = vsel %vm1849, %v1848, %v1846
    %s1851 = scalar_lea.vmem [#allocation1], 161
    %v1852 = vld [vmem:[%s1851] sm:$0x20]
    %vm1853 = vcmask 1045509
    %v1854 = vsel %vm1853, %v1852, %v1850
    %s1855 = scalar_lea.vmem [#allocation1], 192
    %v1856 = vld [vmem:[%s1855] sm:$0x40]
    %vm1857 = vcmask 1046534
    %v1858 = vsel %vm1857, %v1856, %v1854
    %s1859 = scalar_lea.vmem [#allocation1], 223
    %v1860 = vld [vmem:[%s1859] sm:$0x80]
    %vm1861 = vcmask 1047559
    %v1862 = vsel %vm1861, %v1860, %v1858
    %1863 = vrot.lane.b32.xlu0 %v1862, 64
    %v1864 = vpop.permute.xlu0 %1863
    %vm1865 = vcmask 785920
    %s1866 = scalar_lea.vmem [#allocation0], 8
    %1867 = vst.msk [vmem:[%s1866] sm:$0xff] %vm1865, %v1864
    %s1868 = scalar_lea.vmem [#allocation1], 22
    %v1869 = vld [vmem:[%s1868] sm:$0x1]
    %s1870 = scalar_lea.vmem [#allocation1], 53
    %v1871 = vld [vmem:[%s1870] sm:$0x2]
    %vm1872 = vcmask 1041409
    %v1873 = vsel %vm1872, %v1871, %v1869
    %s1874 = scalar_lea.vmem [#allocation1], 84
    %v1875 = vld [vmem:[%s1874] sm:$0x4]
    %vm1876 = vcmask 1042434
    %v1877 = vsel %vm1876, %v1875, %v1873
    %s1878 = scalar_lea.vmem [#allocation1], 115
    %v1879 = vld [vmem:[%s1878] sm:$0x8]
    %vm1880 = vcmask 1043459
    %v1881 = vsel %vm1880, %v1879, %v1877
    %s1882 = scalar_lea.vmem [#allocation1], 146
    %v1883 = vld [vmem:[%s1882] sm:$0x10]
    %vm1884 = vcmask 1044484
    %v1885 = vsel %vm1884, %v1883, %v1881
    %s1886 = scalar_lea.vmem [#allocation1], 177
    %v1887 = vld [vmem:[%s1886] sm:$0x20]
    %vm1888 = vcmask 1045509
    %v1889 = vsel %vm1888, %v1887, %v1885
    %s1890 = scalar_lea.vmem [#allocation1], 208
    %v1891 = vld [vmem:[%s1890] sm:$0x40]
    %vm1892 = vcmask 1046534
    %v1893 = vsel %vm1892, %v1891, %v1889
    %s1894 = scalar_lea.vmem [#allocation1], 239
    %v1895 = vld [vmem:[%s1894] sm:$0x80]
    %vm1896 = vcmask 1047559
    %v1897 = vsel %vm1896, %v1895, %v1893
    %1898 = vrot.lane.b32.xlu0 %v1897, 64
    %v1899 = vpop.permute.xlu0 %1898
    %vm1900 = vcmask 785920
    %s1901 = scalar_lea.vmem [#allocation0], 40
    %1902 = vst.msk [vmem:[%s1901] sm:$0xff] %vm1900, %v1899
    %s1903 = scalar_lea.vmem [#allocation1], 262
    %v1904 = vld [vmem:[%s1903] sm:$0x1]
    %s1905 = scalar_lea.vmem [#allocation1], 293
    %v1906 = vld [vmem:[%s1905] sm:$0x2]
    %vm1907 = vcmask 1041409
    %v1908 = vsel %vm1907, %v1906, %v1904
    %s1909 = scalar_lea.vmem [#allocation1], 324
    %v1910 = vld [vmem:[%s1909] sm:$0x4]
    %vm1911 = vcmask 1042434
    %v1912 = vsel %vm1911, %v1910, %v1908
    %s1913 = scalar_lea.vmem [#allocation1], 355
    %v1914 = vld [vmem:[%s1913] sm:$0x8]
    %vm1915 = vcmask 1043459
    %v1916 = vsel %vm1915, %v1914, %v1912
    %s1917 = scalar_lea.vmem [#allocation1], 386
    %v1918 = vld [vmem:[%s1917] sm:$0x10]
    %vm1919 = vcmask 1044484
    %v1920 = vsel %vm1919, %v1918, %v1916
    %s1921 = scalar_lea.vmem [#allocation1], 417
    %v1922 = vld [vmem:[%s1921] sm:$0x20]
    %vm1923 = vcmask 1045509
    %v1924 = vsel %vm1923, %v1922, %v1920
    %s1925 = scalar_lea.vmem [#allocation1], 448
    %v1926 = vld [vmem:[%s1925] sm:$0x40]
    %vm1927 = vcmask 1046534
    %v1928 = vsel %vm1927, %v1926, %v1924
    %s1929 = scalar_lea.vmem [#allocation1], 479
    %v1930 = vld [vmem:[%s1929] sm:$0x80]
    %vm1931 = vcmask 1047559
    %v1932 = vsel %vm1931, %v1930, %v1928
    %1933 = vrot.lane.b32.xlu0 %v1932, 64
    %v1934 = vpop.permute.xlu0 %1933
    %vm1935 = vcmask 785920
    %s1936 = scalar_lea.vmem [#allocation0], 72
    %1937 = vst.msk [vmem:[%s1936] sm:$0xff] %vm1935, %v1934
    %s1938 = scalar_lea.vmem [#allocation1], 278
    %v1939 = vld [vmem:[%s1938] sm:$0x1]
    %s1940 = scalar_lea.vmem [#allocation1], 309
    %v1941 = vld [vmem:[%s1940] sm:$0x2]
    %vm1942 = vcmask 1041409
    %v1943 = vsel %vm1942, %v1941, %v1939
    %s1944 = scalar_lea.vmem [#allocation1], 340
    %v1945 = vld [vmem:[%s1944] sm:$0x4]
    %vm1946 = vcmask 1042434
    %v1947 = vsel %vm1946, %v1945, %v1943
    %s1948 = scalar_lea.vmem [#allocation1], 371
    %v1949 = vld [vmem:[%s1948] sm:$0x8]
    %vm1950 = vcmask 1043459
    %v1951 = vsel %vm1950, %v1949, %v1947
    %s1952 = scalar_lea.vmem [#allocation1], 402
    %v1953 = vld [vmem:[%s1952] sm:$0x10]
    %vm1954 = vcmask 1044484
    %v1955 = vsel %vm1954, %v1953, %v1951
    %s1956 = scalar_lea.vmem [#allocation1], 433
    %v1957 = vld [vmem:[%s1956] sm:$0x20]
    %vm1958 = vcmask 1045509
    %v1959 = vsel %vm1958, %v1957, %v1955
    %s1960 = scalar_lea.vmem [#allocation1], 464
    %v1961 = vld [vmem:[%s1960] sm:$0x40]
    %vm1962 = vcmask 1046534
    %v1963 = vsel %vm1962, %v1961, %v1959
    %s1964 = scalar_lea.vmem [#allocation1], 495
    %v1965 = vld [vmem:[%s1964] sm:$0x80]
    %vm1966 = vcmask 1047559
    %v1967 = vsel %vm1966, %v1965, %v1963
    %1968 = vrot.lane.b32.xlu0 %v1967, 64
    %v1969 = vpop.permute.xlu0 %1968
    %vm1970 = vcmask 785920
    %s1971 = scalar_lea.vmem [#allocation0], 104
    %1972 = vst.msk [vmem:[%s1971] sm:$0xff] %vm1970, %v1969
    %s1973 = scalar_lea.vmem [#allocation1], 10
    %v1974 = vld [vmem:[%s1973] sm:$0x1]
    %s1975 = scalar_lea.vmem [#allocation1], 41
    %v1976 = vld [vmem:[%s1975] sm:$0x2]
    %vm1977 = vcmask 1041409
    %v1978 = vsel %vm1977, %v1976, %v1974
    %s1979 = scalar_lea.vmem [#allocation1], 72
    %v1980 = vld [vmem:[%s1979] sm:$0x4]
    %vm1981 = vcmask 1042434
    %v1982 = vsel %vm1981, %v1980, %v1978
    %s1983 = scalar_lea.vmem [#allocation1], 103
    %v1984 = vld [vmem:[%s1983] sm:$0x8]
    %vm1985 = vcmask 1043459
    %v1986 = vsel %vm1985, %v1984, %v1982
    %s1987 = scalar_lea.vmem [#allocation1], 134
    %v1988 = vld [vmem:[%s1987] sm:$0x10]
    %vm1989 = vcmask 1044484
    %v1990 = vsel %vm1989, %v1988, %v1986
    %s1991 = scalar_lea.vmem [#allocation1], 165
    %v1992 = vld [vmem:[%s1991] sm:$0x20]
    %vm1993 = vcmask 1045509
    %v1994 = vsel %vm1993, %v1992, %v1990
    %s1995 = scalar_lea.vmem [#allocation1], 196
    %v1996 = vld [vmem:[%s1995] sm:$0x40]
    %vm1997 = vcmask 1046534
    %v1998 = vsel %vm1997, %v1996, %v1994
    %s1999 = scalar_lea.vmem [#allocation1], 227
    %v2000 = vld [vmem:[%s1999] sm:$0x80]
    %vm2001 = vcmask 1047559
    %v2002 = vsel %vm2001, %v2000, %v1998
    %2003 = vrot.lane.b32.xlu0 %v2002, 64
    %v2004 = vpop.permute.xlu0 %2003
    %vm2005 = vcmask 785920
    %s2006 = scalar_lea.vmem [#allocation0], 16
    %2007 = vst.msk [vmem:[%s2006] sm:$0xff] %vm2005, %v2004
    %s2008 = scalar_lea.vmem [#allocation1], 26
    %v2009 = vld [vmem:[%s2008] sm:$0x1]
    %s2010 = scalar_lea.vmem [#allocation1], 57
    %v2011 = vld [vmem:[%s2010] sm:$0x2]
    %vm2012 = vcmask 1041409
    %v2013 = vsel %vm2012, %v2011, %v2009
    %s2014 = scalar_lea.vmem [#allocation1], 88
    %v2015 = vld [vmem:[%s2014] sm:$0x4]
    %vm2016 = vcmask 1042434
    %v2017 = vsel %vm2016, %v2015, %v2013
    %s2018 = scalar_lea.vmem [#allocation1], 119
    %v2019 = vld [vmem:[%s2018] sm:$0x8]
    %vm2020 = vcmask 1043459
    %v2021 = vsel %vm2020, %v2019, %v2017
    %s2022 = scalar_lea.vmem [#allocation1], 150
    %v2023 = vld [vmem:[%s2022] sm:$0x10]
    %vm2024 = vcmask 1044484
    %v2025 = vsel %vm2024, %v2023, %v2021
    %s2026 = scalar_lea.vmem [#allocation1], 181
    %v2027 = vld [vmem:[%s2026] sm:$0x20]
    %vm2028 = vcmask 1045509
    %v2029 = vsel %vm2028, %v2027, %v2025
    %s2030 = scalar_lea.vmem [#allocation1], 212
    %v2031 = vld [vmem:[%s2030] sm:$0x40]
    %vm2032 = vcmask 1046534
    %v2033 = vsel %vm2032, %v2031, %v2029
    %s2034 = scalar_lea.vmem [#allocation1], 243
    %v2035 = vld [vmem:[%s2034] sm:$0x80]
    %vm2036 = vcmask 1047559
    %v2037 = vsel %vm2036, %v2035, %v2033
    %2038 = vrot.lane.b32.xlu0 %v2037, 64
    %v2039 = vpop.permute.xlu0 %2038
    %vm2040 = vcmask 785920
    %s2041 = scalar_lea.vmem [#allocation0], 48
    %2042 = vst.msk [vmem:[%s2041] sm:$0xff] %vm2040, %v2039
    %s2043 = scalar_lea.vmem [#allocation1], 266
    %v2044 = vld [vmem:[%s2043] sm:$0x1]
    %s2045 = scalar_lea.vmem [#allocation1], 297
    %v2046 = vld [vmem:[%s2045] sm:$0x2]
    %vm2047 = vcmask 1041409
    %v2048 = vsel %vm2047, %v2046, %v2044
    %s2049 = scalar_lea.vmem [#allocation1], 328
    %v2050 = vld [vmem:[%s2049] sm:$0x4]
    %vm2051 = vcmask 1042434
    %v2052 = vsel %vm2051, %v2050, %v2048
    %s2053 = scalar_lea.vmem [#allocation1], 359
    %v2054 = vld [vmem:[%s2053] sm:$0x8]
    %vm2055 = vcmask 1043459
    %v2056 = vsel %vm2055, %v2054, %v2052
    %s2057 = scalar_lea.vmem [#allocation1], 390
    %v2058 = vld [vmem:[%s2057] sm:$0x10]
    %vm2059 = vcmask 1044484
    %v2060 = vsel %vm2059, %v2058, %v2056
    %s2061 = scalar_lea.vmem [#allocation1], 421
    %v2062 = vld [vmem:[%s2061] sm:$0x20]
    %vm2063 = vcmask 1045509
    %v2064 = vsel %vm2063, %v2062, %v2060
    %s2065 = scalar_lea.vmem [#allocation1], 452
    %v2066 = vld [vmem:[%s2065] sm:$0x40]
    %vm2067 = vcmask 1046534
    %v2068 = vsel %vm2067, %v2066, %v2064
    %s2069 = scalar_lea.vmem [#allocation1], 483
    %v2070 = vld [vmem:[%s2069] sm:$0x80]
    %vm2071 = vcmask 1047559
    %v2072 = vsel %vm2071, %v2070, %v2068
    %2073 = vrot.lane.b32.xlu0 %v2072, 64
    %v2074 = vpop.permute.xlu0 %2073
    %vm2075 = vcmask 785920
    %s2076 = scalar_lea.vmem [#allocation0], 80
    %2077 = vst.msk [vmem:[%s2076] sm:$0xff] %vm2075, %v2074
    %s2078 = scalar_lea.vmem [#allocation1], 282
    %v2079 = vld [vmem:[%s2078] sm:$0x1]
    %s2080 = scalar_lea.vmem [#allocation1], 313
    %v2081 = vld [vmem:[%s2080] sm:$0x2]
    %vm2082 = vcmask 1041409
    %v2083 = vsel %vm2082, %v2081, %v2079
    %s2084 = scalar_lea.vmem [#allocation1], 344
    %v2085 = vld [vmem:[%s2084] sm:$0x4]
    %vm2086 = vcmask 1042434
    %v2087 = vsel %vm2086, %v2085, %v2083
    %s2088 = scalar_lea.vmem [#allocation1], 375
    %v2089 = vld [vmem:[%s2088] sm:$0x8]
    %vm2090 = vcmask 1043459
    %v2091 = vsel %vm2090, %v2089, %v2087
    %s2092 = scalar_lea.vmem [#allocation1], 406
    %v2093 = vld [vmem:[%s2092] sm:$0x10]
    %vm2094 = vcmask 1044484
    %v2095 = vsel %vm2094, %v2093, %v2091
    %s2096 = scalar_lea.vmem [#allocation1], 437
    %v2097 = vld [vmem:[%s2096] sm:$0x20]
    %vm2098 = vcmask 1045509
    %v2099 = vsel %vm2098, %v2097, %v2095
    %s2100 = scalar_lea.vmem [#allocation1], 468
    %v2101 = vld [vmem:[%s2100] sm:$0x40]
    %vm2102 = vcmask 1046534
    %v2103 = vsel %vm2102, %v2101, %v2099
    %s2104 = scalar_lea.vmem [#allocation1], 499
    %v2105 = vld [vmem:[%s2104] sm:$0x80]
    %vm2106 = vcmask 1047559
    %v2107 = vsel %vm2106, %v2105, %v2103
    %2108 = vrot.lane.b32.xlu0 %v2107, 64
    %v2109 = vpop.permute.xlu0 %2108
    %vm2110 = vcmask 785920
    %s2111 = scalar_lea.vmem [#allocation0], 112
    %2112 = vst.msk [vmem:[%s2111] sm:$0xff] %vm2110, %v2109
    %s2113 = scalar_lea.vmem [#allocation1], 14
    %v2114 = vld [vmem:[%s2113] sm:$0x1]
    %s2115 = scalar_lea.vmem [#allocation1], 45
    %v2116 = vld [vmem:[%s2115] sm:$0x2]
    %vm2117 = vcmask 1041409
    %v2118 = vsel %vm2117, %v2116, %v2114
    %s2119 = scalar_lea.vmem [#allocation1], 76
    %v2120 = vld [vmem:[%s2119] sm:$0x4]
    %vm2121 = vcmask 1042434
    %v2122 = vsel %vm2121, %v2120, %v2118
    %s2123 = scalar_lea.vmem [#allocation1], 107
    %v2124 = vld [vmem:[%s2123] sm:$0x8]
    %vm2125 = vcmask 1043459
    %v2126 = vsel %vm2125, %v2124, %v2122
    %s2127 = scalar_lea.vmem [#allocation1], 138
    %v2128 = vld [vmem:[%s2127] sm:$0x10]
    %vm2129 = vcmask 1044484
    %v2130 = vsel %vm2129, %v2128, %v2126
    %s2131 = scalar_lea.vmem [#allocation1], 169
    %v2132 = vld [vmem:[%s2131] sm:$0x20]
    %vm2133 = vcmask 1045509
    %v2134 = vsel %vm2133, %v2132, %v2130
    %s2135 = scalar_lea.vmem [#allocation1], 200
    %v2136 = vld [vmem:[%s2135] sm:$0x40]
    %vm2137 = vcmask 1046534
    %v2138 = vsel %vm2137, %v2136, %v2134
    %s2139 = scalar_lea.vmem [#allocation1], 231
    %v2140 = vld [vmem:[%s2139] sm:$0x80]
    %vm2141 = vcmask 1047559
    %v2142 = vsel %vm2141, %v2140, %v2138
    %2143 = vrot.lane.b32.xlu0 %v2142, 64
    %v2144 = vpop.permute.xlu0 %2143
    %vm2145 = vcmask 785920
    %s2146 = scalar_lea.vmem [#allocation0], 24
    %2147 = vst.msk [vmem:[%s2146] sm:$0xff] %vm2145, %v2144
    %s2148 = scalar_lea.vmem [#allocation1], 30
    %v2149 = vld [vmem:[%s2148] sm:$0x1]
    %s2150 = scalar_lea.vmem [#allocation1], 61
    %v2151 = vld [vmem:[%s2150] sm:$0x2]
    %vm2152 = vcmask 1041409
    %v2153 = vsel %vm2152, %v2151, %v2149
    %s2154 = scalar_lea.vmem [#allocation1], 92
    %v2155 = vld [vmem:[%s2154] sm:$0x4]
    %vm2156 = vcmask 1042434
    %v2157 = vsel %vm2156, %v2155, %v2153
    %s2158 = scalar_lea.vmem [#allocation1], 123
    %v2159 = vld [vmem:[%s2158] sm:$0x8]
    %vm2160 = vcmask 1043459
    %v2161 = vsel %vm2160, %v2159, %v2157
    %s2162 = scalar_lea.vmem [#allocation1], 154
    %v2163 = vld [vmem:[%s2162] sm:$0x10]
    %vm2164 = vcmask 1044484
    %v2165 = vsel %vm2164, %v2163, %v2161
    %s2166 = scalar_lea.vmem [#allocation1], 185
    %v2167 = vld [vmem:[%s2166] sm:$0x20]
    %vm2168 = vcmask 1045509
    %v2169 = vsel %vm2168, %v2167, %v2165
    %s2170 = scalar_lea.vmem [#allocation1], 216
    %v2171 = vld [vmem:[%s2170] sm:$0x40]
    %vm2172 = vcmask 1046534
    %v2173 = vsel %vm2172, %v2171, %v2169
    %s2174 = scalar_lea.vmem [#allocation1], 247
    %v2175 = vld [vmem:[%s2174] sm:$0x80]
    %vm2176 = vcmask 1047559
    %v2177 = vsel %vm2176, %v2175, %v2173
    %2178 = vrot.lane.b32.xlu0 %v2177, 64
    %v2179 = vpop.permute.xlu0 %2178
    %vm2180 = vcmask 785920
    %s2181 = scalar_lea.vmem [#allocation0], 56
    %2182 = vst.msk [vmem:[%s2181] sm:$0xff] %vm2180, %v2179
    %s2183 = scalar_lea.vmem [#allocation1], 270
    %v2184 = vld [vmem:[%s2183] sm:$0x1]
    %s2185 = scalar_lea.vmem [#allocation1], 301
    %v2186 = vld [vmem:[%s2185] sm:$0x2]
    %vm2187 = vcmask 1041409
    %v2188 = vsel %vm2187, %v2186, %v2184
    %s2189 = scalar_lea.vmem [#allocation1], 332
    %v2190 = vld [vmem:[%s2189] sm:$0x4]
    %vm2191 = vcmask 1042434
    %v2192 = vsel %vm2191, %v2190, %v2188
    %s2193 = scalar_lea.vmem [#allocation1], 363
    %v2194 = vld [vmem:[%s2193] sm:$0x8]
    %vm2195 = vcmask 1043459
    %v2196 = vsel %vm2195, %v2194, %v2192
    %s2197 = scalar_lea.vmem [#allocation1], 394
    %v2198 = vld [vmem:[%s2197] sm:$0x10]
    %vm2199 = vcmask 1044484
    %v2200 = vsel %vm2199, %v2198, %v2196
    %s2201 = scalar_lea.vmem [#allocation1], 425
    %v2202 = vld [vmem:[%s2201] sm:$0x20]
    %vm2203 = vcmask 1045509
    %v2204 = vsel %vm2203, %v2202, %v2200
    %s2205 = scalar_lea.vmem [#allocation1], 456
    %v2206 = vld [vmem:[%s2205] sm:$0x40]
    %vm2207 = vcmask 1046534
    %v2208 = vsel %vm2207, %v2206, %v2204
    %s2209 = scalar_lea.vmem [#allocation1], 487
    %v2210 = vld [vmem:[%s2209] sm:$0x80]
    %vm2211 = vcmask 1047559
    %v2212 = vsel %vm2211, %v2210, %v2208
    %2213 = vrot.lane.b32.xlu0 %v2212, 64
    %v2214 = vpop.permute.xlu0 %2213
    %vm2215 = vcmask 785920
    %s2216 = scalar_lea.vmem [#allocation0], 88
    %2217 = vst.msk [vmem:[%s2216] sm:$0xff] %vm2215, %v2214
    %s2218 = scalar_lea.vmem [#allocation1], 286
    %v2219 = vld [vmem:[%s2218] sm:$0x1]
    %s2220 = scalar_lea.vmem [#allocation1], 317
    %v2221 = vld [vmem:[%s2220] sm:$0x2]
    %vm2222 = vcmask 1041409
    %v2223 = vsel %vm2222, %v2221, %v2219
    %s2224 = scalar_lea.vmem [#allocation1], 348
    %v2225 = vld [vmem:[%s2224] sm:$0x4]
    %vm2226 = vcmask 1042434
    %v2227 = vsel %vm2226, %v2225, %v2223
    %s2228 = scalar_lea.vmem [#allocation1], 379
    %v2229 = vld [vmem:[%s2228] sm:$0x8]
    %vm2230 = vcmask 1043459
    %v2231 = vsel %vm2230, %v2229, %v2227
    %s2232 = scalar_lea.vmem [#allocation1], 410
    %v2233 = vld [vmem:[%s2232] sm:$0x10]
    %vm2234 = vcmask 1044484
    %v2235 = vsel %vm2234, %v2233, %v2231
    %s2236 = scalar_lea.vmem [#allocation1], 441
    %v2237 = vld [vmem:[%s2236] sm:$0x20]
    %vm2238 = vcmask 1045509
    %v2239 = vsel %vm2238, %v2237, %v2235
    %s2240 = scalar_lea.vmem [#allocation1], 472
    %v2241 = vld [vmem:[%s2240] sm:$0x40]
    %vm2242 = vcmask 1046534
    %v2243 = vsel %vm2242, %v2241, %v2239
    %s2244 = scalar_lea.vmem [#allocation1], 503
    %v2245 = vld [vmem:[%s2244] sm:$0x80]
    %vm2246 = vcmask 1047559
    %v2247 = vsel %vm2246, %v2245, %v2243
    %2248 = vrot.lane.b32.xlu0 %v2247, 64
    %v2249 = vpop.permute.xlu0 %2248
    %vm2250 = vcmask 785920
    %s2251 = scalar_lea.vmem [#allocation0], 120
    %2252 = vst.msk [vmem:[%s2251] sm:$0xff] %vm2250, %v2249
    %s2253 = scalar_lea.vmem [#allocation1], 1
    %v2254 = vld [vmem:[%s2253] sm:$0x1]
    %s2255 = scalar_lea.vmem [#allocation1], 32
    %v2256 = vld [vmem:[%s2255] sm:$0x2]
    %vm2257 = vcmask 1041409
    %v2258 = vsel %vm2257, %v2256, %v2254
    %s2259 = scalar_lea.vmem [#allocation1], 63
    %v2260 = vld [vmem:[%s2259] sm:$0x4]
    %vm2261 = vcmask 1042434
    %v2262 = vsel %vm2261, %v2260, %v2258
    %s2263 = scalar_lea.vmem [#allocation1], 94
    %v2264 = vld [vmem:[%s2263] sm:$0x8]
    %vm2265 = vcmask 1043459
    %v2266 = vsel %vm2265, %v2264, %v2262
    %s2267 = scalar_lea.vmem [#allocation1], 125
    %v2268 = vld [vmem:[%s2267] sm:$0x10]
    %vm2269 = vcmask 1044484
    %v2270 = vsel %vm2269, %v2268, %v2266
    %s2271 = scalar_lea.vmem [#allocation1], 156
    %v2272 = vld [vmem:[%s2271] sm:$0x20]
    %vm2273 = vcmask 1045509
    %v2274 = vsel %vm2273, %v2272, %v2270
    %s2275 = scalar_lea.vmem [#allocation1], 187
    %v2276 = vld [vmem:[%s2275] sm:$0x40]
    %vm2277 = vcmask 1046534
    %v2278 = vsel %vm2277, %v2276, %v2274
    %s2279 = scalar_lea.vmem [#allocation1], 218
    %v2280 = vld [vmem:[%s2279] sm:$0x80]
    %vm2281 = vcmask 1047559
    %v2282 = vsel %vm2281, %v2280, %v2278
    %2283 = vrot.lane.b32.xlu0 %v2282, 32
    %v2284 = vpop.permute.xlu0 %2283
    %vm2285 = vcmask 523520
    %2286 = vst.msk [vmem:[#allocation0] sm:$0xff] %vm2285, %v2284
    %s2287 = scalar_lea.vmem [#allocation1], 17
    %v2288 = vld [vmem:[%s2287] sm:$0x1]
    %s2289 = scalar_lea.vmem [#allocation1], 48
    %v2290 = vld [vmem:[%s2289] sm:$0x2]
    %vm2291 = vcmask 1041409
    %v2292 = vsel %vm2291, %v2290, %v2288
    %s2293 = scalar_lea.vmem [#allocation1], 79
    %v2294 = vld [vmem:[%s2293] sm:$0x4]
    %vm2295 = vcmask 1042434
    %v2296 = vsel %vm2295, %v2294, %v2292
    %s2297 = scalar_lea.vmem [#allocation1], 110
    %v2298 = vld [vmem:[%s2297] sm:$0x8]
    %vm2299 = vcmask 1043459
    %v2300 = vsel %vm2299, %v2298, %v2296
    %s2301 = scalar_lea.vmem [#allocation1], 141
    %v2302 = vld [vmem:[%s2301] sm:$0x10]
    %vm2303 = vcmask 1044484
    %v2304 = vsel %vm2303, %v2302, %v2300
    %s2305 = scalar_lea.vmem [#allocation1], 172
    %v2306 = vld [vmem:[%s2305] sm:$0x20]
    %vm2307 = vcmask 1045509
    %v2308 = vsel %vm2307, %v2306, %v2304
    %s2309 = scalar_lea.vmem [#allocation1], 203
    %v2310 = vld [vmem:[%s2309] sm:$0x40]
    %vm2311 = vcmask 1046534
    %v2312 = vsel %vm2311, %v2310, %v2308
    %s2313 = scalar_lea.vmem [#allocation1], 234
    %v2314 = vld [vmem:[%s2313] sm:$0x80]
    %vm2315 = vcmask 1047559
    %v2316 = vsel %vm2315, %v2314, %v2312
    %2317 = vrot.lane.b32.xlu0 %v2316, 32
    %v2318 = vpop.permute.xlu0 %2317
    %vm2319 = vcmask 523520
    %s2320 = scalar_lea.vmem [#allocation0], 32
    %2321 = vst.msk [vmem:[%s2320] sm:$0xff] %vm2319, %v2318
    %s2322 = scalar_lea.vmem [#allocation1], 257
    %v2323 = vld [vmem:[%s2322] sm:$0x1]
    %s2324 = scalar_lea.vmem [#allocation1], 288
    %v2325 = vld [vmem:[%s2324] sm:$0x2]
    %vm2326 = vcmask 1041409
    %v2327 = vsel %vm2326, %v2325, %v2323
    %s2328 = scalar_lea.vmem [#allocation1], 319
    %v2329 = vld [vmem:[%s2328] sm:$0x4]
    %vm2330 = vcmask 1042434
    %v2331 = vsel %vm2330, %v2329, %v2327
    %s2332 = scalar_lea.vmem [#allocation1], 350
    %v2333 = vld [vmem:[%s2332] sm:$0x8]
    %vm2334 = vcmask 1043459
    %v2335 = vsel %vm2334, %v2333, %v2331
    %s2336 = scalar_lea.vmem [#allocation1], 381
    %v2337 = vld [vmem:[%s2336] sm:$0x10]
    %vm2338 = vcmask 1044484
    %v2339 = vsel %vm2338, %v2337, %v2335
    %s2340 = scalar_lea.vmem [#allocation1], 412
    %v2341 = vld [vmem:[%s2340] sm:$0x20]
    %vm2342 = vcmask 1045509
    %v2343 = vsel %vm2342, %v2341, %v2339
    %s2344 = scalar_lea.vmem [#allocation1], 443
    %v2345 = vld [vmem:[%s2344] sm:$0x40]
    %vm2346 = vcmask 1046534
    %v2347 = vsel %vm2346, %v2345, %v2343
    %s2348 = scalar_lea.vmem [#allocation1], 474
    %v2349 = vld [vmem:[%s2348] sm:$0x80]
    %vm2350 = vcmask 1047559
    %v2351 = vsel %vm2350, %v2349, %v2347
    %2352 = vrot.lane.b32.xlu0 %v2351, 32
    %v2353 = vpop.permute.xlu0 %2352
    %vm2354 = vcmask 523520
    %s2355 = scalar_lea.vmem [#allocation0], 64
    %2356 = vst.msk [vmem:[%s2355] sm:$0xff] %vm2354, %v2353
    %s2357 = scalar_lea.vmem [#allocation1], 273
    %v2358 = vld [vmem:[%s2357] sm:$0x1]
    %s2359 = scalar_lea.vmem [#allocation1], 304
    %v2360 = vld [vmem:[%s2359] sm:$0x2]
    %vm2361 = vcmask 1041409
    %v2362 = vsel %vm2361, %v2360, %v2358
    %s2363 = scalar_lea.vmem [#allocation1], 335
    %v2364 = vld [vmem:[%s2363] sm:$0x4]
    %vm2365 = vcmask 1042434
    %v2366 = vsel %vm2365, %v2364, %v2362
    %s2367 = scalar_lea.vmem [#allocation1], 366
    %v2368 = vld [vmem:[%s2367] sm:$0x8]
    %vm2369 = vcmask 1043459
    %v2370 = vsel %vm2369, %v2368, %v2366
    %s2371 = scalar_lea.vmem [#allocation1], 397
    %v2372 = vld [vmem:[%s2371] sm:$0x10]
    %vm2373 = vcmask 1044484
    %v2374 = vsel %vm2373, %v2372, %v2370
    %s2375 = scalar_lea.vmem [#allocation1], 428
    %v2376 = vld [vmem:[%s2375] sm:$0x20]
    %vm2377 = vcmask 1045509
    %v2378 = vsel %vm2377, %v2376, %v2374
    %s2379 = scalar_lea.vmem [#allocation1], 459
    %v2380 = vld [vmem:[%s2379] sm:$0x40]
    %vm2381 = vcmask 1046534
    %v2382 = vsel %vm2381, %v2380, %v2378
    %s2383 = scalar_lea.vmem [#allocation1], 490
    %v2384 = vld [vmem:[%s2383] sm:$0x80]
    %vm2385 = vcmask 1047559
    %v2386 = vsel %vm2385, %v2384, %v2382
    %2387 = vrot.lane.b32.xlu0 %v2386, 32
    %v2388 = vpop.permute.xlu0 %2387
    %vm2389 = vcmask 523520
    %s2390 = scalar_lea.vmem [#allocation0], 96
    %2391 = vst.msk [vmem:[%s2390] sm:$0xff] %vm2389, %v2388
    %s2392 = scalar_lea.vmem [#allocation1], 5
    %v2393 = vld [vmem:[%s2392] sm:$0x1]
    %s2394 = scalar_lea.vmem [#allocation1], 36
    %v2395 = vld [vmem:[%s2394] sm:$0x2]
    %vm2396 = vcmask 1041409
    %v2397 = vsel %vm2396, %v2395, %v2393
    %s2398 = scalar_lea.vmem [#allocation1], 67
    %v2399 = vld [vmem:[%s2398] sm:$0x4]
    %vm2400 = vcmask 1042434
    %v2401 = vsel %vm2400, %v2399, %v2397
    %s2402 = scalar_lea.vmem [#allocation1], 98
    %v2403 = vld [vmem:[%s2402] sm:$0x8]
    %vm2404 = vcmask 1043459
    %v2405 = vsel %vm2404, %v2403, %v2401
    %s2406 = scalar_lea.vmem [#allocation1], 129
    %v2407 = vld [vmem:[%s2406] sm:$0x10]
    %vm2408 = vcmask 1044484
    %v2409 = vsel %vm2408, %v2407, %v2405
    %s2410 = scalar_lea.vmem [#allocation1], 160
    %v2411 = vld [vmem:[%s2410] sm:$0x20]
    %vm2412 = vcmask 1045509
    %v2413 = vsel %vm2412, %v2411, %v2409
    %s2414 = scalar_lea.vmem [#allocation1], 191
    %v2415 = vld [vmem:[%s2414] sm:$0x40]
    %vm2416 = vcmask 1046534
    %v2417 = vsel %vm2416, %v2415, %v2413
    %s2418 = scalar_lea.vmem [#allocation1], 222
    %v2419 = vld [vmem:[%s2418] sm:$0x80]
    %vm2420 = vcmask 1047559
    %v2421 = vsel %vm2420, %v2419, %v2417
    %2422 = vrot.lane.b32.xlu0 %v2421, 32
    %v2423 = vpop.permute.xlu0 %2422
    %vm2424 = vcmask 523520
    %s2425 = scalar_lea.vmem [#allocation0], 8
    %2426 = vst.msk [vmem:[%s2425] sm:$0xff] %vm2424, %v2423
    %s2427 = scalar_lea.vmem [#allocation1], 21
    %v2428 = vld [vmem:[%s2427] sm:$0x1]
    %s2429 = scalar_lea.vmem [#allocation1], 52
    %v2430 = vld [vmem:[%s2429] sm:$0x2]
    %vm2431 = vcmask 1041409
    %v2432 = vsel %vm2431, %v2430, %v2428
    %s2433 = scalar_lea.vmem [#allocation1], 83
    %v2434 = vld [vmem:[%s2433] sm:$0x4]
    %vm2435 = vcmask 1042434
    %v2436 = vsel %vm2435, %v2434, %v2432
    %s2437 = scalar_lea.vmem [#allocation1], 114
    %v2438 = vld [vmem:[%s2437] sm:$0x8]
    %vm2439 = vcmask 1043459
    %v2440 = vsel %vm2439, %v2438, %v2436
    %s2441 = scalar_lea.vmem [#allocation1], 145
    %v2442 = vld [vmem:[%s2441] sm:$0x10]
    %vm2443 = vcmask 1044484
    %v2444 = vsel %vm2443, %v2442, %v2440
    %s2445 = scalar_lea.vmem [#allocation1], 176
    %v2446 = vld [vmem:[%s2445] sm:$0x20]
    %vm2447 = vcmask 1045509
    %v2448 = vsel %vm2447, %v2446, %v2444
    %s2449 = scalar_lea.vmem [#allocation1], 207
    %v2450 = vld [vmem:[%s2449] sm:$0x40]
    %vm2451 = vcmask 1046534
    %v2452 = vsel %vm2451, %v2450, %v2448
    %s2453 = scalar_lea.vmem [#allocation1], 238
    %v2454 = vld [vmem:[%s2453] sm:$0x80]
    %vm2455 = vcmask 1047559
    %v2456 = vsel %vm2455, %v2454, %v2452
    %2457 = vrot.lane.b32.xlu0 %v2456, 32
    %v2458 = vpop.permute.xlu0 %2457
    %vm2459 = vcmask 523520
    %s2460 = scalar_lea.vmem [#allocation0], 40
    %2461 = vst.msk [vmem:[%s2460] sm:$0xff] %vm2459, %v2458
    %s2462 = scalar_lea.vmem [#allocation1], 261
    %v2463 = vld [vmem:[%s2462] sm:$0x1]
    %s2464 = scalar_lea.vmem [#allocation1], 292
    %v2465 = vld [vmem:[%s2464] sm:$0x2]
    %vm2466 = vcmask 1041409
    %v2467 = vsel %vm2466, %v2465, %v2463
    %s2468 = scalar_lea.vmem [#allocation1], 323
    %v2469 = vld [vmem:[%s2468] sm:$0x4]
    %vm2470 = vcmask 1042434
    %v2471 = vsel %vm2470, %v2469, %v2467
    %s2472 = scalar_lea.vmem [#allocation1], 354
    %v2473 = vld [vmem:[%s2472] sm:$0x8]
    %vm2474 = vcmask 1043459
    %v2475 = vsel %vm2474, %v2473, %v2471
    %s2476 = scalar_lea.vmem [#allocation1], 385
    %v2477 = vld [vmem:[%s2476] sm:$0x10]
    %vm2478 = vcmask 1044484
    %v2479 = vsel %vm2478, %v2477, %v2475
    %s2480 = scalar_lea.vmem [#allocation1], 416
    %v2481 = vld [vmem:[%s2480] sm:$0x20]
    %vm2482 = vcmask 1045509
    %v2483 = vsel %vm2482, %v2481, %v2479
    %s2484 = scalar_lea.vmem [#allocation1], 447
    %v2485 = vld [vmem:[%s2484] sm:$0x40]
    %vm2486 = vcmask 1046534
    %v2487 = vsel %vm2486, %v2485, %v2483
    %s2488 = scalar_lea.vmem [#allocation1], 478
    %v2489 = vld [vmem:[%s2488] sm:$0x80]
    %vm2490 = vcmask 1047559
    %v2491 = vsel %vm2490, %v2489, %v2487
    %2492 = vrot.lane.b32.xlu0 %v2491, 32
    %v2493 = vpop.permute.xlu0 %2492
    %vm2494 = vcmask 523520
    %s2495 = scalar_lea.vmem [#allocation0], 72
    %2496 = vst.msk [vmem:[%s2495] sm:$0xff] %vm2494, %v2493
    %s2497 = scalar_lea.vmem [#allocation1], 277
    %v2498 = vld [vmem:[%s2497] sm:$0x1]
    %s2499 = scalar_lea.vmem [#allocation1], 308
    %v2500 = vld [vmem:[%s2499] sm:$0x2]
    %vm2501 = vcmask 1041409
    %v2502 = vsel %vm2501, %v2500, %v2498
    %s2503 = scalar_lea.vmem [#allocation1], 339
    %v2504 = vld [vmem:[%s2503] sm:$0x4]
    %vm2505 = vcmask 1042434
    %v2506 = vsel %vm2505, %v2504, %v2502
    %s2507 = scalar_lea.vmem [#allocation1], 370
    %v2508 = vld [vmem:[%s2507] sm:$0x8]
    %vm2509 = vcmask 1043459
    %v2510 = vsel %vm2509, %v2508, %v2506
    %s2511 = scalar_lea.vmem [#allocation1], 401
    %v2512 = vld [vmem:[%s2511] sm:$0x10]
    %vm2513 = vcmask 1044484
    %v2514 = vsel %vm2513, %v2512, %v2510
    %s2515 = scalar_lea.vmem [#allocation1], 432
    %v2516 = vld [vmem:[%s2515] sm:$0x20]
    %vm2517 = vcmask 1045509
    %v2518 = vsel %vm2517, %v2516, %v2514
    %s2519 = scalar_lea.vmem [#allocation1], 463
    %v2520 = vld [vmem:[%s2519] sm:$0x40]
    %vm2521 = vcmask 1046534
    %v2522 = vsel %vm2521, %v2520, %v2518
    %s2523 = scalar_lea.vmem [#allocation1], 494
    %v2524 = vld [vmem:[%s2523] sm:$0x80]
    %vm2525 = vcmask 1047559
    %v2526 = vsel %vm2525, %v2524, %v2522
    %2527 = vrot.lane.b32.xlu0 %v2526, 32
    %v2528 = vpop.permute.xlu0 %2527
    %vm2529 = vcmask 523520
    %s2530 = scalar_lea.vmem [#allocation0], 104
    %2531 = vst.msk [vmem:[%s2530] sm:$0xff] %vm2529, %v2528
    %s2532 = scalar_lea.vmem [#allocation1], 9
    %v2533 = vld [vmem:[%s2532] sm:$0x1]
    %s2534 = scalar_lea.vmem [#allocation1], 40
    %v2535 = vld [vmem:[%s2534] sm:$0x2]
    %vm2536 = vcmask 1041409
    %v2537 = vsel %vm2536, %v2535, %v2533
    %s2538 = scalar_lea.vmem [#allocation1], 71
    %v2539 = vld [vmem:[%s2538] sm:$0x4]
    %vm2540 = vcmask 1042434
    %v2541 = vsel %vm2540, %v2539, %v2537
    %s2542 = scalar_lea.vmem [#allocation1], 102
    %v2543 = vld [vmem:[%s2542] sm:$0x8]
    %vm2544 = vcmask 1043459
    %v2545 = vsel %vm2544, %v2543, %v2541
    %s2546 = scalar_lea.vmem [#allocation1], 133
    %v2547 = vld [vmem:[%s2546] sm:$0x10]
    %vm2548 = vcmask 1044484
    %v2549 = vsel %vm2548, %v2547, %v2545
    %s2550 = scalar_lea.vmem [#allocation1], 164
    %v2551 = vld [vmem:[%s2550] sm:$0x20]
    %vm2552 = vcmask 1045509
    %v2553 = vsel %vm2552, %v2551, %v2549
    %s2554 = scalar_lea.vmem [#allocation1], 195
    %v2555 = vld [vmem:[%s2554] sm:$0x40]
    %vm2556 = vcmask 1046534
    %v2557 = vsel %vm2556, %v2555, %v2553
    %s2558 = scalar_lea.vmem [#allocation1], 226
    %v2559 = vld [vmem:[%s2558] sm:$0x80]
    %vm2560 = vcmask 1047559
    %v2561 = vsel %vm2560, %v2559, %v2557
    %2562 = vrot.lane.b32.xlu0 %v2561, 32
    %v2563 = vpop.permute.xlu0 %2562
    %vm2564 = vcmask 523520
    %s2565 = scalar_lea.vmem [#allocation0], 16
    %2566 = vst.msk [vmem:[%s2565] sm:$0xff] %vm2564, %v2563
    %s2567 = scalar_lea.vmem [#allocation1], 25
    %v2568 = vld [vmem:[%s2567] sm:$0x1]
    %s2569 = scalar_lea.vmem [#allocation1], 56
    %v2570 = vld [vmem:[%s2569] sm:$0x2]
    %vm2571 = vcmask 1041409
    %v2572 = vsel %vm2571, %v2570, %v2568
    %s2573 = scalar_lea.vmem [#allocation1], 87
    %v2574 = vld [vmem:[%s2573] sm:$0x4]
    %vm2575 = vcmask 1042434
    %v2576 = vsel %vm2575, %v2574, %v2572
    %s2577 = scalar_lea.vmem [#allocation1], 118
    %v2578 = vld [vmem:[%s2577] sm:$0x8]
    %vm2579 = vcmask 1043459
    %v2580 = vsel %vm2579, %v2578, %v2576
    %s2581 = scalar_lea.vmem [#allocation1], 149
    %v2582 = vld [vmem:[%s2581] sm:$0x10]
    %vm2583 = vcmask 1044484
    %v2584 = vsel %vm2583, %v2582, %v2580
    %s2585 = scalar_lea.vmem [#allocation1], 180
    %v2586 = vld [vmem:[%s2585] sm:$0x20]
    %vm2587 = vcmask 1045509
    %v2588 = vsel %vm2587, %v2586, %v2584
    %s2589 = scalar_lea.vmem [#allocation1], 211
    %v2590 = vld [vmem:[%s2589] sm:$0x40]
    %vm2591 = vcmask 1046534
    %v2592 = vsel %vm2591, %v2590, %v2588
    %s2593 = scalar_lea.vmem [#allocation1], 242
    %v2594 = vld [vmem:[%s2593] sm:$0x80]
    %vm2595 = vcmask 1047559
    %v2596 = vsel %vm2595, %v2594, %v2592
    %2597 = vrot.lane.b32.xlu0 %v2596, 32
    %v2598 = vpop.permute.xlu0 %2597
    %vm2599 = vcmask 523520
    %s2600 = scalar_lea.vmem [#allocation0], 48
    %2601 = vst.msk [vmem:[%s2600] sm:$0xff] %vm2599, %v2598
    %s2602 = scalar_lea.vmem [#allocation1], 265
    %v2603 = vld [vmem:[%s2602] sm:$0x1]
    %s2604 = scalar_lea.vmem [#allocation1], 296
    %v2605 = vld [vmem:[%s2604] sm:$0x2]
    %vm2606 = vcmask 1041409
    %v2607 = vsel %vm2606, %v2605, %v2603
    %s2608 = scalar_lea.vmem [#allocation1], 327
    %v2609 = vld [vmem:[%s2608] sm:$0x4]
    %vm2610 = vcmask 1042434
    %v2611 = vsel %vm2610, %v2609, %v2607
    %s2612 = scalar_lea.vmem [#allocation1], 358
    %v2613 = vld [vmem:[%s2612] sm:$0x8]
    %vm2614 = vcmask 1043459
    %v2615 = vsel %vm2614, %v2613, %v2611
    %s2616 = scalar_lea.vmem [#allocation1], 389
    %v2617 = vld [vmem:[%s2616] sm:$0x10]
    %vm2618 = vcmask 1044484
    %v2619 = vsel %vm2618, %v2617, %v2615
    %s2620 = scalar_lea.vmem [#allocation1], 420
    %v2621 = vld [vmem:[%s2620] sm:$0x20]
    %vm2622 = vcmask 1045509
    %v2623 = vsel %vm2622, %v2621, %v2619
    %s2624 = scalar_lea.vmem [#allocation1], 451
    %v2625 = vld [vmem:[%s2624] sm:$0x40]
    %vm2626 = vcmask 1046534
    %v2627 = vsel %vm2626, %v2625, %v2623
    %s2628 = scalar_lea.vmem [#allocation1], 482
    %v2629 = vld [vmem:[%s2628] sm:$0x80]
    %vm2630 = vcmask 1047559
    %v2631 = vsel %vm2630, %v2629, %v2627
    %2632 = vrot.lane.b32.xlu0 %v2631, 32
    %v2633 = vpop.permute.xlu0 %2632
    %vm2634 = vcmask 523520
    %s2635 = scalar_lea.vmem [#allocation0], 80
    %2636 = vst.msk [vmem:[%s2635] sm:$0xff] %vm2634, %v2633
    %s2637 = scalar_lea.vmem [#allocation1], 281
    %v2638 = vld [vmem:[%s2637] sm:$0x1]
    %s2639 = scalar_lea.vmem [#allocation1], 312
    %v2640 = vld [vmem:[%s2639] sm:$0x2]
    %vm2641 = vcmask 1041409
    %v2642 = vsel %vm2641, %v2640, %v2638
    %s2643 = scalar_lea.vmem [#allocation1], 343
    %v2644 = vld [vmem:[%s2643] sm:$0x4]
    %vm2645 = vcmask 1042434
    %v2646 = vsel %vm2645, %v2644, %v2642
    %s2647 = scalar_lea.vmem [#allocation1], 374
    %v2648 = vld [vmem:[%s2647] sm:$0x8]
    %vm2649 = vcmask 1043459
    %v2650 = vsel %vm2649, %v2648, %v2646
    %s2651 = scalar_lea.vmem [#allocation1], 405
    %v2652 = vld [vmem:[%s2651] sm:$0x10]
    %vm2653 = vcmask 1044484
    %v2654 = vsel %vm2653, %v2652, %v2650
    %s2655 = scalar_lea.vmem [#allocation1], 436
    %v2656 = vld [vmem:[%s2655] sm:$0x20]
    %vm2657 = vcmask 1045509
    %v2658 = vsel %vm2657, %v2656, %v2654
    %s2659 = scalar_lea.vmem [#allocation1], 467
    %v2660 = vld [vmem:[%s2659] sm:$0x40]
    %vm2661 = vcmask 1046534
    %v2662 = vsel %vm2661, %v2660, %v2658
    %s2663 = scalar_lea.vmem [#allocation1], 498
    %v2664 = vld [vmem:[%s2663] sm:$0x80]
    %vm2665 = vcmask 1047559
    %v2666 = vsel %vm2665, %v2664, %v2662
    %2667 = vrot.lane.b32.xlu0 %v2666, 32
    %v2668 = vpop.permute.xlu0 %2667
    %vm2669 = vcmask 523520
    %s2670 = scalar_lea.vmem [#allocation0], 112
    %2671 = vst.msk [vmem:[%s2670] sm:$0xff] %vm2669, %v2668
    %s2672 = scalar_lea.vmem [#allocation1], 13
    %v2673 = vld [vmem:[%s2672] sm:$0x1]
    %s2674 = scalar_lea.vmem [#allocation1], 44
    %v2675 = vld [vmem:[%s2674] sm:$0x2]
    %vm2676 = vcmask 1041409
    %v2677 = vsel %vm2676, %v2675, %v2673
    %s2678 = scalar_lea.vmem [#allocation1], 75
    %v2679 = vld [vmem:[%s2678] sm:$0x4]
    %vm2680 = vcmask 1042434
    %v2681 = vsel %vm2680, %v2679, %v2677
    %s2682 = scalar_lea.vmem [#allocation1], 106
    %v2683 = vld [vmem:[%s2682] sm:$0x8]
    %vm2684 = vcmask 1043459
    %v2685 = vsel %vm2684, %v2683, %v2681
    %s2686 = scalar_lea.vmem [#allocation1], 137
    %v2687 = vld [vmem:[%s2686] sm:$0x10]
    %vm2688 = vcmask 1044484
    %v2689 = vsel %vm2688, %v2687, %v2685
    %s2690 = scalar_lea.vmem [#allocation1], 168
    %v2691 = vld [vmem:[%s2690] sm:$0x20]
    %vm2692 = vcmask 1045509
    %v2693 = vsel %vm2692, %v2691, %v2689
    %s2694 = scalar_lea.vmem [#allocation1], 199
    %v2695 = vld [vmem:[%s2694] sm:$0x40]
    %vm2696 = vcmask 1046534
    %v2697 = vsel %vm2696, %v2695, %v2693
    %s2698 = scalar_lea.vmem [#allocation1], 230
    %v2699 = vld [vmem:[%s2698] sm:$0x80]
    %vm2700 = vcmask 1047559
    %v2701 = vsel %vm2700, %v2699, %v2697
    %2702 = vrot.lane.b32.xlu0 %v2701, 32
    %v2703 = vpop.permute.xlu0 %2702
    %vm2704 = vcmask 523520
    %s2705 = scalar_lea.vmem [#allocation0], 24
    %2706 = vst.msk [vmem:[%s2705] sm:$0xff] %vm2704, %v2703
    %s2707 = scalar_lea.vmem [#allocation1], 29
    %v2708 = vld [vmem:[%s2707] sm:$0x1]
    %s2709 = scalar_lea.vmem [#allocation1], 60
    %v2710 = vld [vmem:[%s2709] sm:$0x2]
    %vm2711 = vcmask 1041409
    %v2712 = vsel %vm2711, %v2710, %v2708
    %s2713 = scalar_lea.vmem [#allocation1], 91
    %v2714 = vld [vmem:[%s2713] sm:$0x4]
    %vm2715 = vcmask 1042434
    %v2716 = vsel %vm2715, %v2714, %v2712
    %s2717 = scalar_lea.vmem [#allocation1], 122
    %v2718 = vld [vmem:[%s2717] sm:$0x8]
    %vm2719 = vcmask 1043459
    %v2720 = vsel %vm2719, %v2718, %v2716
    %s2721 = scalar_lea.vmem [#allocation1], 153
    %v2722 = vld [vmem:[%s2721] sm:$0x10]
    %vm2723 = vcmask 1044484
    %v2724 = vsel %vm2723, %v2722, %v2720
    %s2725 = scalar_lea.vmem [#allocation1], 184
    %v2726 = vld [vmem:[%s2725] sm:$0x20]
    %vm2727 = vcmask 1045509
    %v2728 = vsel %vm2727, %v2726, %v2724
    %s2729 = scalar_lea.vmem [#allocation1], 215
    %v2730 = vld [vmem:[%s2729] sm:$0x40]
    %vm2731 = vcmask 1046534
    %v2732 = vsel %vm2731, %v2730, %v2728
    %s2733 = scalar_lea.vmem [#allocation1], 246
    %v2734 = vld [vmem:[%s2733] sm:$0x80]
    %vm2735 = vcmask 1047559
    %v2736 = vsel %vm2735, %v2734, %v2732
    %2737 = vrot.lane.b32.xlu0 %v2736, 32
    %v2738 = vpop.permute.xlu0 %2737
    %vm2739 = vcmask 523520
    %s2740 = scalar_lea.vmem [#allocation0], 56
    %2741 = vst.msk [vmem:[%s2740] sm:$0xff] %vm2739, %v2738
    %s2742 = scalar_lea.vmem [#allocation1], 269
    %v2743 = vld [vmem:[%s2742] sm:$0x1]
    %s2744 = scalar_lea.vmem [#allocation1], 300
    %v2745 = vld [vmem:[%s2744] sm:$0x2]
    %vm2746 = vcmask 1041409
    %v2747 = vsel %vm2746, %v2745, %v2743
    %s2748 = scalar_lea.vmem [#allocation1], 331
    %v2749 = vld [vmem:[%s2748] sm:$0x4]
    %vm2750 = vcmask 1042434
    %v2751 = vsel %vm2750, %v2749, %v2747
    %s2752 = scalar_lea.vmem [#allocation1], 362
    %v2753 = vld [vmem:[%s2752] sm:$0x8]
    %vm2754 = vcmask 1043459
    %v2755 = vsel %vm2754, %v2753, %v2751
    %s2756 = scalar_lea.vmem [#allocation1], 393
    %v2757 = vld [vmem:[%s2756] sm:$0x10]
    %vm2758 = vcmask 1044484
    %v2759 = vsel %vm2758, %v2757, %v2755
    %s2760 = scalar_lea.vmem [#allocation1], 424
    %v2761 = vld [vmem:[%s2760] sm:$0x20]
    %vm2762 = vcmask 1045509
    %v2763 = vsel %vm2762, %v2761, %v2759
    %s2764 = scalar_lea.vmem [#allocation1], 455
    %v2765 = vld [vmem:[%s2764] sm:$0x40]
    %vm2766 = vcmask 1046534
    %v2767 = vsel %vm2766, %v2765, %v2763
    %s2768 = scalar_lea.vmem [#allocation1], 486
    %v2769 = vld [vmem:[%s2768] sm:$0x80]
    %vm2770 = vcmask 1047559
    %v2771 = vsel %vm2770, %v2769, %v2767
    %2772 = vrot.lane.b32.xlu0 %v2771, 32
    %v2773 = vpop.permute.xlu0 %2772
    %vm2774 = vcmask 523520
    %s2775 = scalar_lea.vmem [#allocation0], 88
    %2776 = vst.msk [vmem:[%s2775] sm:$0xff] %vm2774, %v2773
    %s2777 = scalar_lea.vmem [#allocation1], 285
    %v2778 = vld [vmem:[%s2777] sm:$0x1]
    %s2779 = scalar_lea.vmem [#allocation1], 316
    %v2780 = vld [vmem:[%s2779] sm:$0x2]
    %vm2781 = vcmask 1041409
    %v2782 = vsel %vm2781, %v2780, %v2778
    %s2783 = scalar_lea.vmem [#allocation1], 347
    %v2784 = vld [vmem:[%s2783] sm:$0x4]
    %vm2785 = vcmask 1042434
    %v2786 = vsel %vm2785, %v2784, %v2782
    %s2787 = scalar_lea.vmem [#allocation1], 378
    %v2788 = vld [vmem:[%s2787] sm:$0x8]
    %vm2789 = vcmask 1043459
    %v2790 = vsel %vm2789, %v2788, %v2786
    %s2791 = scalar_lea.vmem [#allocation1], 409
    %v2792 = vld [vmem:[%s2791] sm:$0x10]
    %vm2793 = vcmask 1044484
    %v2794 = vsel %vm2793, %v2792, %v2790
    %s2795 = scalar_lea.vmem [#allocation1], 440
    %v2796 = vld [vmem:[%s2795] sm:$0x20]
    %vm2797 = vcmask 1045509
    %v2798 = vsel %vm2797, %v2796, %v2794
    %s2799 = scalar_lea.vmem [#allocation1], 471
    %v2800 = vld [vmem:[%s2799] sm:$0x40]
    %vm2801 = vcmask 1046534
    %v2802 = vsel %vm2801, %v2800, %v2798
    %s2803 = scalar_lea.vmem [#allocation1], 502
    %v2804 = vld [vmem:[%s2803] sm:$0x80]
    %vm2805 = vcmask 1047559
    %v2806 = vsel %vm2805, %v2804, %v2802
    %2807 = vrot.lane.b32.xlu0 %v2806, 32
    %v2808 = vpop.permute.xlu0 %2807
    %vm2809 = vcmask 523520
    %s2810 = scalar_lea.vmem [#allocation0], 120
    %2811 = vst.msk [vmem:[%s2810] sm:$0xff] %vm2809, %v2808
    %s2813 = smul.u32 4, 2
    %s2814 = sshll.u32 1, %s2813
    %s2815 = ssub.s32 %s2814, 1
    %s2816 = sshrl.u32 %s2813, 1
    %v2817 = vld [vmem:[#allocation0] sm:%s2815]
    %v2818 = vpack.c.bf16 0.0, %v2817
    %s2819 = sshll.u32 1, %s2816
    %s2820 = ssub.s32 %s2819, 1
    %2821 = vst [vmem:[%s1] sm:%s2820] %v2818
    %s2822 = scalar_lea.vmem [#allocation0], 8
    %v2823 = vld [vmem:[%s2822] sm:%s2815]
    %v2824 = vpack.c.bf16 0.0, %v2823
    %s2825 = sshll.u32 1, %s2816
    %s2826 = ssub.s32 %s2825, 1
    %s2827 = scalar_lea.vmem %s1, 4
    %2828 = vst [vmem:[%s2827] sm:%s2826] %v2824
    %s2829 = scalar_lea.vmem [#allocation0], 16
    %v2830 = vld [vmem:[%s2829] sm:%s2815]
    %v2831 = vpack.c.bf16 0.0, %v2830
    %s2832 = sshll.u32 1, %s2816
    %s2833 = ssub.s32 %s2832, 1
    %s2834 = smul.addr 4, 2
    %s2835 = scalar_lea.vmem %s1, %s2834
    %2836 = vst [vmem:[%s2835] sm:%s2833] %v2831
    %s2837 = scalar_lea.vmem [#allocation0], 24
    %v2838 = vld [vmem:[%s2837] sm:%s2815]
    %v2839 = vpack.c.bf16 0.0, %v2838
    %s2840 = sshll.u32 1, %s2816
    %s2841 = ssub.s32 %s2840, 1
    %s2842 = smul.addr 4, 3
    %s2843 = scalar_lea.vmem %s1, %s2842
    %2844 = vst [vmem:[%s2843] sm:%s2841] %v2839
    %s2845 = scalar_lea.vmem [#allocation0], 32
    %v2846 = vld [vmem:[%s2845] sm:%s2815]
    %v2847 = vpack.c.bf16 0.0, %v2846
    %s2848 = sshll.u32 1, %s2816
    %s2849 = ssub.s32 %s2848, 1
    %s2850 = smul.addr 4, 4
    %s2851 = scalar_lea.vmem %s1, %s2850
    %2852 = vst [vmem:[%s2851] sm:%s2849] %v2847
    %s2853 = scalar_lea.vmem [#allocation0], 40
    %v2854 = vld [vmem:[%s2853] sm:%s2815]
    %v2855 = vpack.c.bf16 0.0, %v2854
    %s2856 = sshll.u32 1, %s2816
    %s2857 = ssub.s32 %s2856, 1
    %s2858 = smul.addr 4, 5
    %s2859 = scalar_lea.vmem %s1, %s2858
    %2860 = vst [vmem:[%s2859] sm:%s2857] %v2855
    %s2861 = scalar_lea.vmem [#allocation0], 48
    %v2862 = vld [vmem:[%s2861] sm:%s2815]
    %v2863 = vpack.c.bf16 0.0, %v2862
    %s2864 = sshll.u32 1, %s2816
    %s2865 = ssub.s32 %s2864, 1
    %s2866 = smul.addr 4, 6
    %s2867 = scalar_lea.vmem %s1, %s2866
    %2868 = vst [vmem:[%s2867] sm:%s2865] %v2863
    %s2869 = scalar_lea.vmem [#allocation0], 56
    %v2870 = vld [vmem:[%s2869] sm:%s2815]
    %v2871 = vpack.c.bf16 0.0, %v2870
    %s2872 = sshll.u32 1, %s2816
    %s2873 = ssub.s32 %s2872, 1
    %s2874 = smul.addr 4, 7
    %s2875 = scalar_lea.vmem %s1, %s2874
    %2876 = vst [vmem:[%s2875] sm:%s2873] %v2871
    %s2877 = scalar_lea.vmem [#allocation0], 64
    %v2878 = vld [vmem:[%s2877] sm:%s2815]
    %v2879 = vpack.c.bf16 0.0, %v2878
    %s2880 = sshll.u32 1, %s2816
    %s2881 = ssub.s32 %s2880, 1
    %s2882 = smul.addr 4, 8
    %s2883 = scalar_lea.vmem %s1, %s2882
    %2884 = vst [vmem:[%s2883] sm:%s2881] %v2879
    %s2885 = scalar_lea.vmem [#allocation0], 72
    %v2886 = vld [vmem:[%s2885] sm:%s2815]
    %v2887 = vpack.c.bf16 0.0, %v2886
    %s2888 = sshll.u32 1, %s2816
    %s2889 = ssub.s32 %s2888, 1
    %s2890 = smul.addr 4, 9
    %s2891 = scalar_lea.vmem %s1, %s2890
    %2892 = vst [vmem:[%s2891] sm:%s2889] %v2887
    %s2893 = scalar_lea.vmem [#allocation0], 80
    %v2894 = vld [vmem:[%s2893] sm:%s2815]
    %v2895 = vpack.c.bf16 0.0, %v2894
    %s2896 = sshll.u32 1, %s2816
    %s2897 = ssub.s32 %s2896, 1
    %s2898 = smul.addr 4, 10
    %s2899 = scalar_lea.vmem %s1, %s2898
    %2900 = vst [vmem:[%s2899] sm:%s2897] %v2895
    %s2901 = scalar_lea.vmem [#allocation0], 88
    %v2902 = vld [vmem:[%s2901] sm:%s2815]
    %v2903 = vpack.c.bf16 0.0, %v2902
    %s2904 = sshll.u32 1, %s2816
    %s2905 = ssub.s32 %s2904, 1
    %s2906 = smul.addr 4, 11
    %s2907 = scalar_lea.vmem %s1, %s2906
    %2908 = vst [vmem:[%s2907] sm:%s2905] %v2903
    %s2909 = scalar_lea.vmem [#allocation0], 96
    %v2910 = vld [vmem:[%s2909] sm:%s2815]
    %v2911 = vpack.c.bf16 0.0, %v2910
    %s2912 = sshll.u32 1, %s2816
    %s2913 = ssub.s32 %s2912, 1
    %s2914 = smul.addr 4, 12
    %s2915 = scalar_lea.vmem %s1, %s2914
    %2916 = vst [vmem:[%s2915] sm:%s2913] %v2911
    %s2917 = scalar_lea.vmem [#allocation0], 104
    %v2918 = vld [vmem:[%s2917] sm:%s2815]
    %v2919 = vpack.c.bf16 0.0, %v2918
    %s2920 = sshll.u32 1, %s2816
    %s2921 = ssub.s32 %s2920, 1
    %s2922 = smul.addr 4, 13
    %s2923 = scalar_lea.vmem %s1, %s2922
    %2924 = vst [vmem:[%s2923] sm:%s2921] %v2919
    %s2925 = scalar_lea.vmem [#allocation0], 112
    %v2926 = vld [vmem:[%s2925] sm:%s2815]
    %v2927 = vpack.c.bf16 0.0, %v2926
    %s2928 = sshll.u32 1, %s2816
    %s2929 = ssub.s32 %s2928, 1
    %s2930 = smul.addr 4, 14
    %s2931 = scalar_lea.vmem %s1, %s2930
    %2932 = vst [vmem:[%s2931] sm:%s2929] %v2927
    %s2933 = scalar_lea.vmem [#allocation0], 120
    %v2934 = vld [vmem:[%s2933] sm:%s2815]
    %v2935 = vpack.c.bf16 0.0, %v2934
    %s2936 = sshll.u32 1, %s2816
    %s2937 = ssub.s32 %s2936, 1
    %s2938 = smul.addr 4, 15
    %s2939 = scalar_lea.vmem %s1, %s2938
    %2940 = vst [vmem:[%s2939] sm:%s2937] %v2935

// kernel: vicreg_forward.6
$region0: #{vicreg_forward.6}
  #allocation0 [shape = 'u32[]', space=smem, size = 0x4, offset = 0x4, fixed_abs, tag = 'smem constant byte address 0x4 - core index']
  #allocation1 [shape = 'u32[144,128]{1,0:T(1,128)}', space=vmem, size = 0x12000, scoped, tag = 'internal scratch']
  %s0 = inlined_call_operand.vmem [shape: bf16[32,256], index: 0, kind: input, shape index: {}]
  %s1 = inlined_call_operand.vmem [shape: bf16[256,256], index: 1, kind: input, shape index: {}]
  %s2 = inlined_call_operand.vmem [shape: f32[1,256], index: 2, kind: input, shape index: {}]
  %s3 = inlined_call_operand.vmem [shape: f32[1,256], index: 3, kind: input, shape index: {}]
  %s4 = inlined_call_operand.vmem [shape: f32[1,256], index: 4, kind: input, shape index: {}]
  %s5 = inlined_call_operand.vmem [shape: bf16[32,256], index: 5, kind: output, shape index: {}]
  %s6 = sld [smem:[#allocation0]]
  $region30: #{vicreg_forward.6} parent=0
    _
  %s8 = ssub.s32 1, %s6
  %s9 = scalar_select 0, %s8, %s6
  // Predicated region
  $region2: #{vicreg_forward.6} parent=0 // pred_check
    _
  $region3: #{vicreg_forward.6} parent=0 // pred_check_branch
    %11 = sbr.rel (0) target = $region5
  $region4: #{vicreg_forward.6} parent=0 // pred_region
    _
  $region5: #{vicreg_forward.6} parent=0 // pred_fallthru
    _
  // Predicated region
  $region6: #{vicreg_forward.6} parent=0 // pred_check
    _
  $region7: #{vicreg_forward.6} parent=0 // pred_check_branch
    %13 = sbr.rel (0) target = $region9
  $region8: #{vicreg_forward.6} parent=0 // pred_region
    _
  $region9: #{vicreg_forward.6} parent=0 // pred_fallthru
    _
  // Predicated region
  $region10: #{vicreg_forward.6} parent=0 // pred_check
    _
  $region11: #{vicreg_forward.6} parent=0 // pred_check_branch
    %15 = sbr.rel (0) target = $region13
  $region12: #{vicreg_forward.6} parent=0 // pred_region
    _
  $region13: #{vicreg_forward.6} parent=0 // pred_fallthru
    _
  // Predicated region
  $region14: #{vicreg_forward.6} parent=0 // pred_check
    _
  $region15: #{vicreg_forward.6} parent=0 // pred_check_branch
    %17 = sbr.rel (0) target = $region17
  $region16: #{vicreg_forward.6} parent=0 // pred_region
    _
  $region17: #{vicreg_forward.6} parent=0 // pred_fallthru
    _
  // Predicated region
  $region18: #{vicreg_forward.6} parent=0 // pred_check
    _
  $region19: #{vicreg_forward.6} parent=0 // pred_check_branch
    %19 = sbr.rel (0) target = $region21
  $region20: #{vicreg_forward.6} parent=0 // pred_region
    _
  $region21: #{vicreg_forward.6} parent=0 // pred_fallthru
    _
  %v20 = vld [vmem:[%s0] sm:$0xff]
  %v21 = vld [vmem:[%s0 + $0x8] sm:$0xff]
  %v22 = vld [vmem:[%s0 + $0x10] sm:$0xff]
  %v23 = vld [vmem:[%s0 + $0x18] sm:$0xff]
  %v24 = vld [vmem:[%s1] sm:$0xff]
  %v25 = vld [vmem:[%s1 + $0x8] sm:$0xff]
  %v26 = vld [vmem:[%s1 + $0x10] sm:$0xff]
  %v27 = vld [vmem:[%s1 + $0x18] sm:$0xff]
  %v28 = vld [vmem:[%s1 + $0x20] sm:$0xff]
  %v29 = vld [vmem:[%s1 + $0x28] sm:$0xff]
  %v30 = vld [vmem:[%s1 + $0x30] sm:$0xff]
  %v31 = vld [vmem:[%s1 + $0x38] sm:$0xff]
  %v32 = vld [vmem:[%s1 + $0x40] sm:$0xff]
  %v33 = vld [vmem:[%s1 + $0x48] sm:$0xff]
  %v34 = vld [vmem:[%s1 + $0x50] sm:$0xff]
  %v35 = vld [vmem:[%s1 + $0x58] sm:$0xff]
  %v36 = vld [vmem:[%s1 + $0x60] sm:$0xff]
  %v37 = vld [vmem:[%s1 + $0x68] sm:$0xff]
  %v38 = vld [vmem:[%s1 + $0x70] sm:$0xff]
  %v39 = vld [vmem:[%s1 + $0x78] sm:$0xff]
  %v40 = vld [vmem:[%s1 + $0x80] sm:$0xff]
  %v41 = vld [vmem:[%s1 + $0x88] sm:$0xff]
  %v42 = vld [vmem:[%s1 + $0x90] sm:$0xff]
  %v43 = vld [vmem:[%s1 + $0x98] sm:$0xff]
  %v44 = vld [vmem:[%s1 + $0xa0] sm:$0xff]
  %v45 = vld [vmem:[%s1 + $0xa8] sm:$0xff]
  %v46 = vld [vmem:[%s1 + $0xb0] sm:$0xff]
  %v47 = vld [vmem:[%s1 + $0xb8] sm:$0xff]
  %v48 = vld [vmem:[%s1 + $0xc0] sm:$0xff]
  %v49 = vld [vmem:[%s1 + $0xc8] sm:$0xff]
  %v50 = vld [vmem:[%s1 + $0xd0] sm:$0xff]
  %v51 = vld [vmem:[%s1 + $0xd8] sm:$0xff]
  %v52 = vld [vmem:[%s1 + $0xe0] sm:$0xff]
  %v53 = vld [vmem:[%s1 + $0xe8] sm:$0xff]
  %v54 = vld [vmem:[%s1 + $0xf0] sm:$0xff]
  %v55 = vld [vmem:[%s1 + $0xf8] sm:$0xff]
  %v60 = vunpack.c.l.b16 %v20
  %v61 = vunpack.c.h.b16 %v20
  %v62 = vunpack.c.l.b16 %v21
  %v63 = vunpack.c.h.b16 %v21
  %v64 = vunpack.c.l.b16 %v22
  %v65 = vunpack.c.h.b16 %v22
  %v66 = vunpack.c.l.b16 %v23
  %v67 = vunpack.c.h.b16 %v23
  %v68 = vpack.c.b16 %v62, %v60
  %v69 = vpack.c.b16 %v63, %v61
  %v70 = vpack.c.b16 %v66, %v64
  %v71 = vpack.c.b16 %v67, %v65
  %v108 = vunpack.c.l.b16 %v24
  %v109 = vunpack.c.h.b16 %v24
  %v110 = vunpack.c.l.b16 %v25
  %v111 = vunpack.c.h.b16 %v25
  %v112 = vunpack.c.l.b16 %v26
  %v113 = vunpack.c.h.b16 %v26
  %v114 = vunpack.c.l.b16 %v27
  %v115 = vunpack.c.h.b16 %v27
  %v116 = vunpack.c.l.b16 %v28
  %v117 = vunpack.c.h.b16 %v28
  %v118 = vunpack.c.l.b16 %v29
  %v119 = vunpack.c.h.b16 %v29
  %v120 = vunpack.c.l.b16 %v30
  %v121 = vunpack.c.h.b16 %v30
  %v122 = vunpack.c.l.b16 %v31
  %v123 = vunpack.c.h.b16 %v31
  %v124 = vunpack.c.l.b16 %v32
  %v125 = vunpack.c.h.b16 %v32
  %v126 = vunpack.c.l.b16 %v33
  %v127 = vunpack.c.h.b16 %v33
  %v128 = vunpack.c.l.b16 %v34
  %v129 = vunpack.c.h.b16 %v34
  %v130 = vunpack.c.l.b16 %v35
  %v131 = vunpack.c.h.b16 %v35
  %v132 = vunpack.c.l.b16 %v36
  %v133 = vunpack.c.h.b16 %v36
  %v134 = vunpack.c.l.b16 %v37
  %v135 = vunpack.c.h.b16 %v37
  %v136 = vunpack.c.l.b16 %v38
  %v137 = vunpack.c.h.b16 %v38
  %v138 = vunpack.c.l.b16 %v39
  %v139 = vunpack.c.h.b16 %v39
  %v140 = vunpack.c.l.b16 %v40
  %v141 = vunpack.c.h.b16 %v40
  %v142 = vunpack.c.l.b16 %v41
  %v143 = vunpack.c.h.b16 %v41
  %v144 = vunpack.c.l.b16 %v42
  %v145 = vunpack.c.h.b16 %v42
  %v146 = vunpack.c.l.b16 %v43
  %v147 = vunpack.c.h.b16 %v43
  %v148 = vunpack.c.l.b16 %v44
  %v149 = vunpack.c.h.b16 %v44
  %v150 = vunpack.c.l.b16 %v45
  %v151 = vunpack.c.h.b16 %v45
  %v152 = vunpack.c.l.b16 %v46
  %v153 = vunpack.c.h.b16 %v46
  %v154 = vunpack.c.l.b16 %v47
  %v155 = vunpack.c.h.b16 %v47
  %v156 = vunpack.c.l.b16 %v48
  %v157 = vunpack.c.h.b16 %v48
  %v158 = vunpack.c.l.b16 %v49
  %v159 = vunpack.c.h.b16 %v49
  %v160 = vunpack.c.l.b16 %v50
  %v161 = vunpack.c.h.b16 %v50
  %v162 = vunpack.c.l.b16 %v51
  %v163 = vunpack.c.h.b16 %v51
  %v164 = vunpack.c.l.b16 %v52
  %v165 = vunpack.c.h.b16 %v52
  %v166 = vunpack.c.l.b16 %v53
  %v167 = vunpack.c.h.b16 %v53
  %v168 = vunpack.c.l.b16 %v54
  %v169 = vunpack.c.h.b16 %v54
  %v170 = vunpack.c.l.b16 %v55
  %v171 = vunpack.c.h.b16 %v55
  %v172 = vpack.c.b16 %v110, %v108
  %v173 = vpack.c.b16 %v111, %v109
  %v174 = vpack.c.b16 %v114, %v112
  %v175 = vpack.c.b16 %v115, %v113
  %v176 = vpack.c.b16 %v118, %v116
  %v177 = vpack.c.b16 %v119, %v117
  %v178 = vpack.c.b16 %v122, %v120
  %v179 = vpack.c.b16 %v123, %v121
  %v180 = vpack.c.b16 %v126, %v124
  %v181 = vpack.c.b16 %v127, %v125
  %v182 = vpack.c.b16 %v130, %v128
  %v183 = vpack.c.b16 %v131, %v129
  %v184 = vpack.c.b16 %v134, %v132
  %v185 = vpack.c.b16 %v135, %v133
  %v186 = vpack.c.b16 %v138, %v136
  %v187 = vpack.c.b16 %v139, %v137
  %v188 = vpack.c.b16 %v142, %v140
  %v189 = vpack.c.b16 %v143, %v141
  %v190 = vpack.c.b16 %v146, %v144
  %v191 = vpack.c.b16 %v147, %v145
  %v192 = vpack.c.b16 %v150, %v148
  %v193 = vpack.c.b16 %v151, %v149
  %v194 = vpack.c.b16 %v154, %v152
  %v195 = vpack.c.b16 %v155, %v153
  %v196 = vpack.c.b16 %v158, %v156
  %v197 = vpack.c.b16 %v159, %v157
  %v198 = vpack.c.b16 %v162, %v160
  %v199 = vpack.c.b16 %v163, %v161
  %v200 = vpack.c.b16 %v166, %v164
  %v201 = vpack.c.b16 %v167, %v165
  %v202 = vpack.c.b16 %v170, %v168
  %v203 = vpack.c.b16 %v171, %v169
  %236 = vmatprep.subr.bf16.mxu0 %v187
  %237 = vmatpush1.bf16.msra.mxu0 %v186
  %238 = vmatprep.subr.bf16.mxu0 %v185
  %239 = vmatpush1.bf16.msra.mxu0 %v184
  %240 = vmatprep.subr.bf16.mxu0 %v183
  %241 = vmatpush1.bf16.msra.mxu0 %v182
  %242 = vmatprep.subr.bf16.mxu0 %v181
  %243 = vmatpush1.bf16.msra.mxu0 %v180
  %244 = vmatprep.subr.bf16.mxu0 %v179
  %245 = vmatpush1.bf16.msra.mxu0 %v178
  %246 = vmatprep.subr.bf16.mxu0 %v177
  %247 = vmatpush1.bf16.msra.mxu0 %v176
  %248 = vmatprep.subr.bf16.mxu0 %v175
  %249 = vmatpush1.bf16.msra.mxu0 %v174
  %250 = vmatprep.subr.bf16.mxu0 %v173
  %251 = vmatpush1.bf16.msra.mxu0 %v172
  %252 = vmatprep.subr.bf16.mxu0 %v203
  %253 = vmatpush2.bf16.msra.mxu0 %v202
  %254 = vmatprep.subr.bf16.mxu0 %v201
  %255 = vmatpush2.bf16.msra.mxu0 %v200
  %256 = vmatprep.subr.bf16.mxu0 %v199
  %257 = vmatpush2.bf16.msra.mxu0 %v198
  %258 = vmatprep.subr.bf16.mxu0 %v197
  %259 = vmatpush2.bf16.msra.mxu0 %v196
  %260 = vmatprep.subr.bf16.mxu0 %v195
  %261 = vmatpush2.bf16.msra.mxu0 %v194
  %262 = vmatprep.subr.bf16.mxu0 %v193
  %263 = vmatpush2.bf16.msra.mxu0 %v192
  %264 = vmatprep.subr.bf16.mxu0 %v191
  %265 = vmatpush2.bf16.msra.mxu0 %v190
  %266 = vmatprep.subr.bf16.mxu0 %v189
  %267 = vmatpush2.bf16.msra.mxu0 %v188
  %268 = vmatprep.mubr.bf16.mxu0 %v69
  %269 = vmatmul.mubr.bf16.gmra.mxu0 %v68
  %v270 = vpop.f32.mrf.mxu0
  %v271 = vadd.f32 0.0, %v270
  %v272 = vpop.f32.mrf.mxu0
  %v273 = vadd.f32 0.0, %v272
  %v274 = vpop.f32.mrf.mxu0
  %v275 = vadd.f32 0.0, %v274
  %v276 = vpop.f32.mrf.mxu0
  %v277 = vadd.f32 0.0, %v276
  %278 = vmatprep.mubr.bf16.mxu0 %v71
  %279 = vmatmul.mubr.bf16.gmra.mxu0 %v70
  %v280 = vpop.f32.mrf.mxu0
  %v281 = vadd.f32 0.0, %v280
  %v282 = vpop.f32.mrf.mxu0
  %v283 = vadd.f32 0.0, %v282
  %v284 = vpop.f32.mrf.mxu0
  %v285 = vadd.f32 0.0, %v284
  %v286 = vpop.f32.mrf.mxu0
  %v287 = vadd.f32 0.0, %v286
  %288 = vdwg.mxu0
  %v289 = vld [vmem:[%s2] sm:$0x3]
  %v290 = vld [vmem:[%s3] sm:$0x3]
  %v291 = vld [vmem:[%s4] sm:$0x3]
  %v293 = vlaneseq
  %v294 = vshrl.u32 %v293, 7
  %v295 = vsub.s32 0, %v294
  %v296 = vrot.slane %v289, %v295
  %v297 = vlaneseq
  %v298 = vshrl.u32 %v297, 7
  %v299 = vsub.s32 1, %v298
  %v300 = vrot.slane %v289, %v299
  %v303 = vadd.f32 %v271, %v296
  %v304 = vadd.f32 %v273, %v300
  %v305 = vadd.f32 %v275, %v296
  %v306 = vadd.f32 %v277, %v300
  %v307 = vadd.f32 %v303, %v305
  %v308 = vrot.slane %v307, 4
  %v309 = vadd.f32 %v307, %v308
  %v310 = vrot.slane %v309, 2
  %v311 = vadd.f32 %v309, %v310
  %v312 = vrot.slane %v311, 1
  %v313 = vadd.f32 %v311, %v312
  %v314 = vadd.f32 %v304, %v306
  %v315 = vrot.slane %v314, 4
  %v316 = vadd.f32 %v314, %v315
  %v317 = vrot.slane %v316, 2
  %v318 = vadd.f32 %v316, %v317
  %v319 = vrot.slane %v318, 1
  %v320 = vadd.f32 %v318, %v319
  %v321 = vrcp.pop 16.0
  %v322 = vmul.f32 %v313, %v321
  %v323 = vmul.f32 %v320, %v321
  %v324 = vsub.f32 %v303, %v322
  %v325 = vsub.f32 %v304, %v323
  %v326 = vsub.f32 %v305, %v322
  %v327 = vsub.f32 %v306, %v323
  %v328 = vmul.f32 %v324, %v324
  %v329 = vmul.f32 %v325, %v325
  %v330 = vmul.f32 %v326, %v326
  %v331 = vmul.f32 %v327, %v327
  %v332 = vadd.f32 %v328, %v330
  %v333 = vrot.slane %v332, 4
  %v334 = vadd.f32 %v332, %v333
  %v335 = vrot.slane %v334, 2
  %v336 = vadd.f32 %v334, %v335
  %v337 = vrot.slane %v336, 1
  %v338 = vadd.f32 %v336, %v337
  %v339 = vadd.f32 %v329, %v331
  %v340 = vrot.slane %v339, 4
  %v341 = vadd.f32 %v339, %v340
  %v342 = vrot.slane %v341, 2
  %v343 = vadd.f32 %v341, %v342
  %v344 = vrot.slane %v343, 1
  %v345 = vadd.f32 %v343, %v344
  %v346 = vmul.f32 %v338, %v321
  %v347 = vmul.f32 %v345, %v321
  %v348 = vadd.f32 %v346, 1e-05
  %v349 = vadd.f32 %v347, 1e-05
  %v350 = vrsqrt.pop %v348
  %v351 = vrsqrt.pop %v349
  %v352 = vmul.f32 %v324, %v350
  %v353 = vmul.f32 %v325, %v351
  %v354 = vmul.f32 %v326, %v350
  %v355 = vmul.f32 %v327, %v351
  %v357 = vlaneseq
  %v358 = vshrl.u32 %v357, 7
  %v359 = vsub.s32 0, %v358
  %v360 = vrot.slane %v290, %v359
  %v361 = vlaneseq
  %v362 = vshrl.u32 %v361, 7
  %v363 = vsub.s32 1, %v362
  %v364 = vrot.slane %v290, %v363
  %v367 = vmul.f32 %v352, %v360
  %v368 = vmul.f32 %v353, %v364
  %v369 = vmul.f32 %v354, %v360
  %v370 = vmul.f32 %v355, %v364
  %v372 = vlaneseq
  %v373 = vshrl.u32 %v372, 7
  %v374 = vsub.s32 0, %v373
  %v375 = vrot.slane %v291, %v374
  %v376 = vlaneseq
  %v377 = vshrl.u32 %v376, 7
  %v378 = vsub.s32 1, %v377
  %v379 = vrot.slane %v291, %v378
  %v382 = vadd.f32 %v367, %v375
  %v383 = vadd.f32 %v368, %v379
  %v384 = vadd.f32 %v369, %v375
  %v385 = vadd.f32 %v370, %v379
  %v386 = vmax.f32 %v382, 0.0
  %v387 = vmax.f32 %v383, 0.0
  %v388 = vmax.f32 %v384, 0.0
  %v389 = vmax.f32 %v385, 0.0
  %v390 = vpack.c.bf16 %v388, %v386
  %v391 = vpack.c.bf16 %v389, %v387
  %v394 = vunpack.c.l.b16 %v390
  %v395 = vunpack.c.l.b16 %v391
  %v396 = vunpack.c.h.b16 %v390
  %v397 = vunpack.c.h.b16 %v391
  %v398 = vpack.c.b16 %v395, %v394
  %v399 = vpack.c.b16 %v397, %v396
  %402 = vst [vmem:[%s5] sm:$0xff] %v398
  %403 = vst [vmem:[%s5 + $0x8] sm:$0xff] %v399
  %v404 = vadd.f32 %v281, %v296
  %v405 = vadd.f32 %v283, %v300
  %v406 = vadd.f32 %v285, %v296
  %v407 = vadd.f32 %v287, %v300
  %v408 = vadd.f32 %v404, %v406
  %v409 = vrot.slane %v408, 4
  %v410 = vadd.f32 %v408, %v409
  %v411 = vrot.slane %v410, 2
  %v412 = vadd.f32 %v410, %v411
  %v413 = vrot.slane %v412, 1
  %v414 = vadd.f32 %v412, %v413
  %v415 = vadd.f32 %v405, %v407
  %v416 = vrot.slane %v415, 4
  %v417 = vadd.f32 %v415, %v416
  %v418 = vrot.slane %v417, 2
  %v419 = vadd.f32 %v417, %v418
  %v420 = vrot.slane %v419, 1
  %v421 = vadd.f32 %v419, %v420
  %v422 = vmul.f32 %v414, %v321
  %v423 = vmul.f32 %v421, %v321
  %v424 = vsub.f32 %v404, %v422
  %v425 = vsub.f32 %v405, %v423
  %v426 = vsub.f32 %v406, %v422
  %v427 = vsub.f32 %v407, %v423
  %v428 = vmul.f32 %v424, %v424
  %v429 = vmul.f32 %v425, %v425
  %v430 = vmul.f32 %v426, %v426
  %v431 = vmul.f32 %v427, %v427
  %v432 = vadd.f32 %v428, %v430
  %v433 = vrot.slane %v432, 4
  %v434 = vadd.f32 %v432, %v433
  %v435 = vrot.slane %v434, 2
  %v436 = vadd.f32 %v434, %v435
  %v437 = vrot.slane %v436, 1
  %v438 = vadd.f32 %v436, %v437
  %v439 = vadd.f32 %v429, %v431
  %v440 = vrot.slane %v439, 4
  %v441 = vadd.f32 %v439, %v440
  %v442 = vrot.slane %v441, 2
  %v443 = vadd.f32 %v441, %v442
  %v444 = vrot.slane %v443, 1
  %v445 = vadd.f32 %v443, %v444
  %v446 = vmul.f32 %v438, %v321
  %v447 = vmul.f32 %v445, %v321
  %v448 = vadd.f32 %v446, 1e-05
  %v449 = vadd.f32 %v447, 1e-05
  %v450 = vrsqrt.pop %v448
  %v451 = vrsqrt.pop %v449
  %v452 = vmul.f32 %v424, %v450
  %v453 = vmul.f32 %v425, %v451
  %v454 = vmul.f32 %v426, %v450
  %v455 = vmul.f32 %v427, %v451
  %v456 = vmul.f32 %v452, %v360
  %v457 = vmul.f32 %v453, %v364
  %v458 = vmul.f32 %v454, %v360
  %v459 = vmul.f32 %v455, %v364
  %v460 = vadd.f32 %v456, %v375
  %v461 = vadd.f32 %v457, %v379
  %v462 = vadd.f32 %v458, %v375
  %v463 = vadd.f32 %v459, %v379
  %v464 = vmax.f32 %v460, 0.0
  %v465 = vmax.f32 %v461, 0.0
  %v466 = vmax.f32 %v462, 0.0
  %v467 = vmax.f32 %v463, 0.0
  %v468 = vpack.c.bf16 %v466, %v464
  %v469 = vpack.c.bf16 %v467, %v465
  %v472 = vunpack.c.l.b16 %v468
  %v473 = vunpack.c.l.b16 %v469
  %v474 = vunpack.c.h.b16 %v468
  %v475 = vunpack.c.h.b16 %v469
  %v476 = vpack.c.b16 %v473, %v472
  %v477 = vpack.c.b16 %v475, %v474
  %480 = vst [vmem:[%s5 + $0x10] sm:$0xff] %v476
  %481 = vst [vmem:[%s5 + $0x18] sm:$0xff] %v477
  // Predicated region
  $region22: #{vicreg_forward.6} parent=0 // pred_check
    _
  $region23: #{vicreg_forward.6} parent=0 // pred_check_branch
    %483 = sbr.rel (0) target = $region25
  $region24: #{vicreg_forward.6} parent=0 // pred_region
    _
  $region25: #{vicreg_forward.6} parent=0 // pred_fallthru
    _
  // Predicated region
  $region26: #{vicreg_forward.6} parent=0 // pred_check
    _
  $region27: #{vicreg_forward.6} parent=0 // pred_check_branch
    %485 = sbr.rel (0) target = $region29
  $region28: #{vicreg_forward.6} parent=0 // pred_region
    _
  $region29: #{vicreg_forward.6} parent=0 // pred_fallthru
    _

// kernel: vicreg_forward.5
$region0: #{vicreg_forward.5}
  #allocation0 [shape = 'u32[]', space=smem, size = 0x4, offset = 0x4, fixed_abs, tag = 'smem constant byte address 0x4 - core index']
  #allocation1 [shape = 'u32[144,128]{1,0:T(1,128)}', space=vmem, size = 0x12000, scoped, tag = 'internal scratch']
  %s0 = inlined_call_operand.vmem [shape: bf16[32,1024], index: 0, kind: input, shape index: {}]
  %s1 = inlined_call_operand.vmem [shape: bf16[1024,256], index: 1, kind: input, shape index: {}]
  %s2 = inlined_call_operand.vmem [shape: f32[1,256], index: 2, kind: input, shape index: {}]
  %s3 = inlined_call_operand.vmem [shape: bf16[32,256], index: 3, kind: output, shape index: {}]
  %s4 = sld [smem:[#allocation0]]
  $region22: #{vicreg_forward.5} parent=0
    _
  %s6 = ssub.s32 1, %s4
  %s7 = scalar_select 0, %s6, %s4
  // Predicated region
  $region2: #{vicreg_forward.5} parent=0 // pred_check
    _
  $region3: #{vicreg_forward.5} parent=0 // pred_check_branch
    %9 = sbr.rel (0) target = $region5
  $region4: #{vicreg_forward.5} parent=0 // pred_region
    _
  $region5: #{vicreg_forward.5} parent=0 // pred_fallthru
    _
  // Predicated region
  $region6: #{vicreg_forward.5} parent=0 // pred_check
    _
  $region7: #{vicreg_forward.5} parent=0 // pred_check_branch
    %11 = sbr.rel (0) target = $region9
  $region8: #{vicreg_forward.5} parent=0 // pred_region
    _
  $region9: #{vicreg_forward.5} parent=0 // pred_fallthru
    _
  // Predicated region
  $region10: #{vicreg_forward.5} parent=0 // pred_check
    _
  $region11: #{vicreg_forward.5} parent=0 // pred_check_branch
    %13 = sbr.rel (0) target = $region13
  $region12: #{vicreg_forward.5} parent=0 // pred_region
    _
  $region13: #{vicreg_forward.5} parent=0 // pred_fallthru
    _
  %v14 = vld [vmem:[%s0] sm:$0xff]
  %v15 = vld [vmem:[%s0 + $0x8] sm:$0xff]
  %v16 = vld [vmem:[%s0 + $0x10] sm:$0xff]
  %v17 = vld [vmem:[%s0 + $0x18] sm:$0xff]
  %v18 = vld [vmem:[%s0 + $0x20] sm:$0xff]
  %v19 = vld [vmem:[%s0 + $0x28] sm:$0xff]
  %v20 = vld [vmem:[%s0 + $0x30] sm:$0xff]
  %v21 = vld [vmem:[%s0 + $0x38] sm:$0xff]
  %v22 = vld [vmem:[%s0 + $0x40] sm:$0xff]
  %v23 = vld [vmem:[%s0 + $0x48] sm:$0xff]
  %v24 = vld [vmem:[%s0 + $0x50] sm:$0xff]
  %v25 = vld [vmem:[%s0 + $0x58] sm:$0xff]
  %v26 = vld [vmem:[%s0 + $0x60] sm:$0xff]
  %v27 = vld [vmem:[%s0 + $0x68] sm:$0xff]
  %v28 = vld [vmem:[%s0 + $0x70] sm:$0xff]
  %v29 = vld [vmem:[%s0 + $0x78] sm:$0xff]
  %v30 = vld [vmem:[%s1] sm:$0xff]
  %v31 = vld [vmem:[%s1 + $0x8] sm:$0xff]
  %v32 = vld [vmem:[%s1 + $0x10] sm:$0xff]
  %v33 = vld [vmem:[%s1 + $0x18] sm:$0xff]
  %v34 = vld [vmem:[%s1 + $0x20] sm:$0xff]
  %v35 = vld [vmem:[%s1 + $0x28] sm:$0xff]
  %v36 = vld [vmem:[%s1 + $0x30] sm:$0xff]
  %v37 = vld [vmem:[%s1 + $0x38] sm:$0xff]
  %v38 = vld [vmem:[%s1 + $0x40] sm:$0xff]
  %v39 = vld [vmem:[%s1 + $0x48] sm:$0xff]
  %v40 = vld [vmem:[%s1 + $0x50] sm:$0xff]
  %v41 = vld [vmem:[%s1 + $0x58] sm:$0xff]
  %v42 = vld [vmem:[%s1 + $0x60] sm:$0xff]
  %v43 = vld [vmem:[%s1 + $0x68] sm:$0xff]
  %v44 = vld [vmem:[%s1 + $0x70] sm:$0xff]
  %v45 = vld [vmem:[%s1 + $0x78] sm:$0xff]
  %v46 = vld [vmem:[%s1 + $0x80] sm:$0xff]
  %v47 = vld [vmem:[%s1 + $0x88] sm:$0xff]
  %v48 = vld [vmem:[%s1 + $0x90] sm:$0xff]
  %v49 = vld [vmem:[%s1 + $0x98] sm:$0xff]
  %v50 = vld [vmem:[%s1 + $0xa0] sm:$0xff]
  %v51 = vld [vmem:[%s1 + $0xa8] sm:$0xff]
  %v52 = vld [vmem:[%s1 + $0xb0] sm:$0xff]
  %v53 = vld [vmem:[%s1 + $0xb8] sm:$0xff]
  %v54 = vld [vmem:[%s1 + $0xc0] sm:$0xff]
  %v55 = vld [vmem:[%s1 + $0xc8] sm:$0xff]
  %v56 = vld [vmem:[%s1 + $0xd0] sm:$0xff]
  %v57 = vld [vmem:[%s1 + $0xd8] sm:$0xff]
  %v58 = vld [vmem:[%s1 + $0xe0] sm:$0xff]
  %v59 = vld [vmem:[%s1 + $0xe8] sm:$0xff]
  %v60 = vld [vmem:[%s1 + $0xf0] sm:$0xff]
  %v61 = vld [vmem:[%s1 + $0xf8] sm:$0xff]
  %v62 = vld [vmem:[%s1 + $0x100] sm:$0xff]
  %v63 = vld [vmem:[%s1 + $0x108] sm:$0xff]
  %v64 = vld [vmem:[%s1 + $0x110] sm:$0xff]
  %v65 = vld [vmem:[%s1 + $0x118] sm:$0xff]
  %v66 = vld [vmem:[%s1 + $0x120] sm:$0xff]
  %v67 = vld [vmem:[%s1 + $0x128] sm:$0xff]
  %v68 = vld [vmem:[%s1 + $0x130] sm:$0xff]
  %v69 = vld [vmem:[%s1 + $0x138] sm:$0xff]
  %v70 = vld [vmem:[%s1 + $0x140] sm:$0xff]
  %v71 = vld [vmem:[%s1 + $0x148] sm:$0xff]
  %v72 = vld [vmem:[%s1 + $0x150] sm:$0xff]
  %v73 = vld [vmem:[%s1 + $0x158] sm:$0xff]
  %v74 = vld [vmem:[%s1 + $0x160] sm:$0xff]
  %v75 = vld [vmem:[%s1 + $0x168] sm:$0xff]
  %v76 = vld [vmem:[%s1 + $0x170] sm:$0xff]
  %v77 = vld [vmem:[%s1 + $0x178] sm:$0xff]
  %v78 = vld [vmem:[%s1 + $0x180] sm:$0xff]
  %v79 = vld [vmem:[%s1 + $0x188] sm:$0xff]
  %v80 = vld [vmem:[%s1 + $0x190] sm:$0xff]
  %v81 = vld [vmem:[%s1 + $0x198] sm:$0xff]
  %v82 = vld [vmem:[%s1 + $0x1a0] sm:$0xff]
  %v83 = vld [vmem:[%s1 + $0x1a8] sm:$0xff]
  %v84 = vld [vmem:[%s1 + $0x1b0] sm:$0xff]
  %v85 = vld [vmem:[%s1 + $0x1b8] sm:$0xff]
  %v86 = vld [vmem:[%s1 + $0x1c0] sm:$0xff]
  %v87 = vld [vmem:[%s1 + $0x1c8] sm:$0xff]
  %v88 = vld [vmem:[%s1 + $0x1d0] sm:$0xff]
  %v89 = vld [vmem:[%s1 + $0x1d8] sm:$0xff]
  %v90 = vld [vmem:[%s1 + $0x1e0] sm:$0xff]
  %v91 = vld [vmem:[%s1 + $0x1e8] sm:$0xff]
  %v92 = vld [vmem:[%s1 + $0x1f0] sm:$0xff]
  %v93 = vld [vmem:[%s1 + $0x1f8] sm:$0xff]
  %v94 = vld [vmem:[%s1 + $0x200] sm:$0xff]
  %v95 = vld [vmem:[%s1 + $0x208] sm:$0xff]
  %v96 = vld [vmem:[%s1 + $0x210] sm:$0xff]
  %v97 = vld [vmem:[%s1 + $0x218] sm:$0xff]
  %v98 = vld [vmem:[%s1 + $0x220] sm:$0xff]
  %v99 = vld [vmem:[%s1 + $0x228] sm:$0xff]
  %v100 = vld [vmem:[%s1 + $0x230] sm:$0xff]
  %v101 = vld [vmem:[%s1 + $0x238] sm:$0xff]
  %v102 = vld [vmem:[%s1 + $0x240] sm:$0xff]
  %v103 = vld [vmem:[%s1 + $0x248] sm:$0xff]
  %v104 = vld [vmem:[%s1 + $0x250] sm:$0xff]
  %v105 = vld [vmem:[%s1 + $0x258] sm:$0xff]
  %v106 = vld [vmem:[%s1 + $0x260] sm:$0xff]
  %v107 = vld [vmem:[%s1 + $0x268] sm:$0xff]
  %v108 = vld [vmem:[%s1 + $0x270] sm:$0xff]
  %v109 = vld [vmem:[%s1 + $0x278] sm:$0xff]
  %v110 = vld [vmem:[%s1 + $0x280] sm:$0xff]
  %v111 = vld [vmem:[%s1 + $0x288] sm:$0xff]
  %v112 = vld [vmem:[%s1 + $0x290] sm:$0xff]
  %v113 = vld [vmem:[%s1 + $0x298] sm:$0xff]
  %v114 = vld [vmem:[%s1 + $0x2a0] sm:$0xff]
  %v115 = vld [vmem:[%s1 + $0x2a8] sm:$0xff]
  %v116 = vld [vmem:[%s1 + $0x2b0] sm:$0xff]
  %v117 = vld [vmem:[%s1 + $0x2b8] sm:$0xff]
  %v118 = vld [vmem:[%s1 + $0x2c0] sm:$0xff]
  %v119 = vld [vmem:[%s1 + $0x2c8] sm:$0xff]
  %v120 = vld [vmem:[%s1 + $0x2d0] sm:$0xff]
  %v121 = vld [vmem:[%s1 + $0x2d8] sm:$0xff]
  %v122 = vld [vmem:[%s1 + $0x2e0] sm:$0xff]
  %v123 = vld [vmem:[%s1 + $0x2e8] sm:$0xff]
  %v124 = vld [vmem:[%s1 + $0x2f0] sm:$0xff]
  %v125 = vld [vmem:[%s1 + $0x2f8] sm:$0xff]
  %v126 = vld [vmem:[%s1 + $0x300] sm:$0xff]
  %v127 = vld [vmem:[%s1 + $0x308] sm:$0xff]
  %v128 = vld [vmem:[%s1 + $0x310] sm:$0xff]
  %v129 = vld [vmem:[%s1 + $0x318] sm:$0xff]
  %v130 = vld [vmem:[%s1 + $0x320] sm:$0xff]
  %v131 = vld [vmem:[%s1 + $0x328] sm:$0xff]
  %v132 = vld [vmem:[%s1 + $0x330] sm:$0xff]
  %v133 = vld [vmem:[%s1 + $0x338] sm:$0xff]
  %v134 = vld [vmem:[%s1 + $0x340] sm:$0xff]
  %v135 = vld [vmem:[%s1 + $0x348] sm:$0xff]
  %v136 = vld [vmem:[%s1 + $0x350] sm:$0xff]
  %v137 = vld [vmem:[%s1 + $0x358] sm:$0xff]
  %v138 = vld [vmem:[%s1 + $0x360] sm:$0xff]
  %v139 = vld [vmem:[%s1 + $0x368] sm:$0xff]
  %v140 = vld [vmem:[%s1 + $0x370] sm:$0xff]
  %v141 = vld [vmem:[%s1 + $0x378] sm:$0xff]
  %v142 = vld [vmem:[%s1 + $0x380] sm:$0xff]
  %v143 = vld [vmem:[%s1 + $0x388] sm:$0xff]
  %v144 = vld [vmem:[%s1 + $0x390] sm:$0xff]
  %v145 = vld [vmem:[%s1 + $0x398] sm:$0xff]
  %v146 = vld [vmem:[%s1 + $0x3a0] sm:$0xff]
  %v147 = vld [vmem:[%s1 + $0x3a8] sm:$0xff]
  %v148 = vld [vmem:[%s1 + $0x3b0] sm:$0xff]
  %v149 = vld [vmem:[%s1 + $0x3b8] sm:$0xff]
  %v150 = vld [vmem:[%s1 + $0x3c0] sm:$0xff]
  %v151 = vld [vmem:[%s1 + $0x3c8] sm:$0xff]
  %v152 = vld [vmem:[%s1 + $0x3d0] sm:$0xff]
  %v153 = vld [vmem:[%s1 + $0x3d8] sm:$0xff]
  %v154 = vld [vmem:[%s1 + $0x3e0] sm:$0xff]
  %v155 = vld [vmem:[%s1 + $0x3e8] sm:$0xff]
  %v156 = vld [vmem:[%s1 + $0x3f0] sm:$0xff]
  %v157 = vld [vmem:[%s1 + $0x3f8] sm:$0xff]
  %v158 = vld [vmem:[%s2] sm:$0x3]
  %v160 = vlaneseq
  %v161 = vshrl.u32 %v160, 7
  %v162 = vsub.s32 0, %v161
  %v163 = vrot.slane %v158, %v162
  %v164 = vlaneseq
  %v165 = vshrl.u32 %v164, 7
  %v166 = vsub.s32 1, %v165
  %v167 = vrot.slane %v158, %v166
  %v186 = vunpack.c.l.b16 %v14
  %v187 = vunpack.c.h.b16 %v14
  %v188 = vunpack.c.l.b16 %v15
  %v189 = vunpack.c.h.b16 %v15
  %v190 = vunpack.c.l.b16 %v16
  %v191 = vunpack.c.h.b16 %v16
  %v192 = vunpack.c.l.b16 %v17
  %v193 = vunpack.c.h.b16 %v17
  %v194 = vunpack.c.l.b16 %v18
  %v195 = vunpack.c.h.b16 %v18
  %v196 = vunpack.c.l.b16 %v19
  %v197 = vunpack.c.h.b16 %v19
  %v198 = vunpack.c.l.b16 %v20
  %v199 = vunpack.c.h.b16 %v20
  %v200 = vunpack.c.l.b16 %v21
  %v201 = vunpack.c.h.b16 %v21
  %v202 = vunpack.c.l.b16 %v22
  %v203 = vunpack.c.h.b16 %v22
  %v204 = vunpack.c.l.b16 %v23
  %v205 = vunpack.c.h.b16 %v23
  %v206 = vunpack.c.l.b16 %v24
  %v207 = vunpack.c.h.b16 %v24
  %v208 = vunpack.c.l.b16 %v25
  %v209 = vunpack.c.h.b16 %v25
  %v210 = vunpack.c.l.b16 %v26
  %v211 = vunpack.c.h.b16 %v26
  %v212 = vunpack.c.l.b16 %v27
  %v213 = vunpack.c.h.b16 %v27
  %v214 = vunpack.c.l.b16 %v28
  %v215 = vunpack.c.h.b16 %v28
  %v216 = vunpack.c.l.b16 %v29
  %v217 = vunpack.c.h.b16 %v29
  %v218 = vpack.c.b16 %v194, %v186
  %v219 = vpack.c.b16 %v195, %v187
  %v220 = vpack.c.b16 %v196, %v188
  %v221 = vpack.c.b16 %v197, %v189
  %v222 = vpack.c.b16 %v198, %v190
  %v223 = vpack.c.b16 %v199, %v191
  %v224 = vpack.c.b16 %v200, %v192
  %v225 = vpack.c.b16 %v201, %v193
  %v226 = vpack.c.b16 %v210, %v202
  %v227 = vpack.c.b16 %v211, %v203
  %v228 = vpack.c.b16 %v212, %v204
  %v229 = vpack.c.b16 %v213, %v205
  %v230 = vpack.c.b16 %v214, %v206
  %v231 = vpack.c.b16 %v215, %v207
  %v232 = vpack.c.b16 %v216, %v208
  %v233 = vpack.c.b16 %v217, %v209
  %v378 = vunpack.c.l.b16 %v30
  %v379 = vunpack.c.h.b16 %v30
  %v380 = vunpack.c.l.b16 %v31
  %v381 = vunpack.c.h.b16 %v31
  %v382 = vunpack.c.l.b16 %v32
  %v383 = vunpack.c.h.b16 %v32
  %v384 = vunpack.c.l.b16 %v33
  %v385 = vunpack.c.h.b16 %v33
  %v386 = vunpack.c.l.b16 %v34
  %v387 = vunpack.c.h.b16 %v34
  %v388 = vunpack.c.l.b16 %v35
  %v389 = vunpack.c.h.b16 %v35
  %v390 = vunpack.c.l.b16 %v36
  %v391 = vunpack.c.h.b16 %v36
  %v392 = vunpack.c.l.b16 %v37
  %v393 = vunpack.c.h.b16 %v37
  %v394 = vunpack.c.l.b16 %v38
  %v395 = vunpack.c.h.b16 %v38
  %v396 = vunpack.c.l.b16 %v39
  %v397 = vunpack.c.h.b16 %v39
  %v398 = vunpack.c.l.b16 %v40
  %v399 = vunpack.c.h.b16 %v40
  %v400 = vunpack.c.l.b16 %v41
  %v401 = vunpack.c.h.b16 %v41
  %v402 = vunpack.c.l.b16 %v42
  %v403 = vunpack.c.h.b16 %v42
  %v404 = vunpack.c.l.b16 %v43
  %v405 = vunpack.c.h.b16 %v43
  %v406 = vunpack.c.l.b16 %v44
  %v407 = vunpack.c.h.b16 %v44
  %v408 = vunpack.c.l.b16 %v45
  %v409 = vunpack.c.h.b16 %v45
  %v410 = vunpack.c.l.b16 %v46
  %v411 = vunpack.c.h.b16 %v46
  %v412 = vunpack.c.l.b16 %v47
  %v413 = vunpack.c.h.b16 %v47
  %v414 = vunpack.c.l.b16 %v48
  %v415 = vunpack.c.h.b16 %v48
  %v416 = vunpack.c.l.b16 %v49
  %v417 = vunpack.c.h.b16 %v49
  %v418 = vunpack.c.l.b16 %v50
  %v419 = vunpack.c.h.b16 %v50
  %v420 = vunpack.c.l.b16 %v51
  %v421 = vunpack.c.h.b16 %v51
  %v422 = vunpack.c.l.b16 %v52
  %v423 = vunpack.c.h.b16 %v52
  %v424 = vunpack.c.l.b16 %v53
  %v425 = vunpack.c.h.b16 %v53
  %v426 = vunpack.c.l.b16 %v54
  %v427 = vunpack.c.h.b16 %v54
  %v428 = vunpack.c.l.b16 %v55
  %v429 = vunpack.c.h.b16 %v55
  %v430 = vunpack.c.l.b16 %v56
  %v431 = vunpack.c.h.b16 %v56
  %v432 = vunpack.c.l.b16 %v57
  %v433 = vunpack.c.h.b16 %v57
  %v434 = vunpack.c.l.b16 %v58
  %v435 = vunpack.c.h.b16 %v58
  %v436 = vunpack.c.l.b16 %v59
  %v437 = vunpack.c.h.b16 %v59
  %v438 = vunpack.c.l.b16 %v60
  %v439 = vunpack.c.h.b16 %v60
  %v440 = vunpack.c.l.b16 %v61
  %v441 = vunpack.c.h.b16 %v61
  %v442 = vunpack.c.l.b16 %v62
  %v443 = vunpack.c.h.b16 %v62
  %v444 = vunpack.c.l.b16 %v63
  %v445 = vunpack.c.h.b16 %v63
  %v446 = vunpack.c.l.b16 %v64
  %v447 = vunpack.c.h.b16 %v64
  %v448 = vunpack.c.l.b16 %v65
  %v449 = vunpack.c.h.b16 %v65
  %v450 = vunpack.c.l.b16 %v66
  %v451 = vunpack.c.h.b16 %v66
  %v452 = vunpack.c.l.b16 %v67
  %v453 = vunpack.c.h.b16 %v67
  %v454 = vunpack.c.l.b16 %v68
  %v455 = vunpack.c.h.b16 %v68
  %v456 = vunpack.c.l.b16 %v69
  %v457 = vunpack.c.h.b16 %v69
  %v458 = vunpack.c.l.b16 %v70
  %v459 = vunpack.c.h.b16 %v70
  %v460 = vunpack.c.l.b16 %v71
  %v461 = vunpack.c.h.b16 %v71
  %v462 = vunpack.c.l.b16 %v72
  %v463 = vunpack.c.h.b16 %v72
  %v464 = vunpack.c.l.b16 %v73
  %v465 = vunpack.c.h.b16 %v73
  %v466 = vunpack.c.l.b16 %v74
  %v467 = vunpack.c.h.b16 %v74
  %v468 = vunpack.c.l.b16 %v75
  %v469 = vunpack.c.h.b16 %v75
  %v470 = vunpack.c.l.b16 %v76
  %v471 = vunpack.c.h.b16 %v76
  %v472 = vunpack.c.l.b16 %v77
  %v473 = vunpack.c.h.b16 %v77
  %v474 = vunpack.c.l.b16 %v78
  %v475 = vunpack.c.h.b16 %v78
  %v476 = vunpack.c.l.b16 %v79
  %v477 = vunpack.c.h.b16 %v79
  %v478 = vunpack.c.l.b16 %v80
  %v479 = vunpack.c.h.b16 %v80
  %v480 = vunpack.c.l.b16 %v81
  %v481 = vunpack.c.h.b16 %v81
  %v482 = vunpack.c.l.b16 %v82
  %v483 = vunpack.c.h.b16 %v82
  %v484 = vunpack.c.l.b16 %v83
  %v485 = vunpack.c.h.b16 %v83
  %v486 = vunpack.c.l.b16 %v84
  %v487 = vunpack.c.h.b16 %v84
  %v488 = vunpack.c.l.b16 %v85
  %v489 = vunpack.c.h.b16 %v85
  %v490 = vunpack.c.l.b16 %v86
  %v491 = vunpack.c.h.b16 %v86
  %v492 = vunpack.c.l.b16 %v87
  %v493 = vunpack.c.h.b16 %v87
  %v494 = vunpack.c.l.b16 %v88
  %v495 = vunpack.c.h.b16 %v88
  %v496 = vunpack.c.l.b16 %v89
  %v497 = vunpack.c.h.b16 %v89
  %v498 = vunpack.c.l.b16 %v90
  %v499 = vunpack.c.h.b16 %v90
  %v500 = vunpack.c.l.b16 %v91
  %v501 = vunpack.c.h.b16 %v91
  %v502 = vunpack.c.l.b16 %v92
  %v503 = vunpack.c.h.b16 %v92
  %v504 = vunpack.c.l.b16 %v93
  %v505 = vunpack.c.h.b16 %v93
  %v506 = vunpack.c.l.b16 %v94
  %v507 = vunpack.c.h.b16 %v94
  %v508 = vunpack.c.l.b16 %v95
  %v509 = vunpack.c.h.b16 %v95
  %v510 = vunpack.c.l.b16 %v96
  %v511 = vunpack.c.h.b16 %v96
  %v512 = vunpack.c.l.b16 %v97
  %v513 = vunpack.c.h.b16 %v97
  %v514 = vunpack.c.l.b16 %v98
  %v515 = vunpack.c.h.b16 %v98
  %v516 = vunpack.c.l.b16 %v99
  %v517 = vunpack.c.h.b16 %v99
  %v518 = vunpack.c.l.b16 %v100
  %v519 = vunpack.c.h.b16 %v100
  %v520 = vunpack.c.l.b16 %v101
  %v521 = vunpack.c.h.b16 %v101
  %v522 = vunpack.c.l.b16 %v102
  %v523 = vunpack.c.h.b16 %v102
  %v524 = vunpack.c.l.b16 %v103
  %v525 = vunpack.c.h.b16 %v103
  %v526 = vunpack.c.l.b16 %v104
  %v527 = vunpack.c.h.b16 %v104
  %v528 = vunpack.c.l.b16 %v105
  %v529 = vunpack.c.h.b16 %v105
  %v530 = vunpack.c.l.b16 %v106
  %v531 = vunpack.c.h.b16 %v106
  %v532 = vunpack.c.l.b16 %v107
  %v533 = vunpack.c.h.b16 %v107
  %v534 = vunpack.c.l.b16 %v108
  %v535 = vunpack.c.h.b16 %v108
  %v536 = vunpack.c.l.b16 %v109
  %v537 = vunpack.c.h.b16 %v109
  %v538 = vunpack.c.l.b16 %v110
  %v539 = vunpack.c.h.b16 %v110
  %v540 = vunpack.c.l.b16 %v111
  %v541 = vunpack.c.h.b16 %v111
  %v542 = vunpack.c.l.b16 %v112
  %v543 = vunpack.c.h.b16 %v112
  %v544 = vunpack.c.l.b16 %v113
  %v545 = vunpack.c.h.b16 %v113
  %v546 = vunpack.c.l.b16 %v114
  %v547 = vunpack.c.h.b16 %v114
  %v548 = vunpack.c.l.b16 %v115
  %v549 = vunpack.c.h.b16 %v115
  %v550 = vunpack.c.l.b16 %v116
  %v551 = vunpack.c.h.b16 %v116
  %v552 = vunpack.c.l.b16 %v117
  %v553 = vunpack.c.h.b16 %v117
  %v554 = vunpack.c.l.b16 %v118
  %v555 = vunpack.c.h.b16 %v118
  %v556 = vunpack.c.l.b16 %v119
  %v557 = vunpack.c.h.b16 %v119
  %v558 = vunpack.c.l.b16 %v120
  %v559 = vunpack.c.h.b16 %v120
  %v560 = vunpack.c.l.b16 %v121
  %v561 = vunpack.c.h.b16 %v121
  %v562 = vunpack.c.l.b16 %v122
  %v563 = vunpack.c.h.b16 %v122
  %v564 = vunpack.c.l.b16 %v123
  %v565 = vunpack.c.h.b16 %v123
  %v566 = vunpack.c.l.b16 %v124
  %v567 = vunpack.c.h.b16 %v124
  %v568 = vunpack.c.l.b16 %v125
  %v569 = vunpack.c.h.b16 %v125
  %v570 = vunpack.c.l.b16 %v126
  %v571 = vunpack.c.h.b16 %v126
  %v572 = vunpack.c.l.b16 %v127
  %v573 = vunpack.c.h.b16 %v127
  %v574 = vunpack.c.l.b16 %v128
  %v575 = vunpack.c.h.b16 %v128
  %v576 = vunpack.c.l.b16 %v129
  %v577 = vunpack.c.h.b16 %v129
  %v578 = vunpack.c.l.b16 %v130
  %v579 = vunpack.c.h.b16 %v130
  %v580 = vunpack.c.l.b16 %v131
  %v581 = vunpack.c.h.b16 %v131
  %v582 = vunpack.c.l.b16 %v132
  %v583 = vunpack.c.h.b16 %v132
  %v584 = vunpack.c.l.b16 %v133
  %v585 = vunpack.c.h.b16 %v133
  %v586 = vunpack.c.l.b16 %v134
  %v587 = vunpack.c.h.b16 %v134
  %v588 = vunpack.c.l.b16 %v135
  %v589 = vunpack.c.h.b16 %v135
  %v590 = vunpack.c.l.b16 %v136
  %v591 = vunpack.c.h.b16 %v136
  %v592 = vunpack.c.l.b16 %v137
  %v593 = vunpack.c.h.b16 %v137
  %v594 = vunpack.c.l.b16 %v138
  %v595 = vunpack.c.h.b16 %v138
  %v596 = vunpack.c.l.b16 %v139
  %v597 = vunpack.c.h.b16 %v139
  %v598 = vunpack.c.l.b16 %v140
  %v599 = vunpack.c.h.b16 %v140
  %v600 = vunpack.c.l.b16 %v141
  %v601 = vunpack.c.h.b16 %v141
  %v602 = vunpack.c.l.b16 %v142
  %v603 = vunpack.c.h.b16 %v142
  %v604 = vunpack.c.l.b16 %v143
  %v605 = vunpack.c.h.b16 %v143
  %v606 = vunpack.c.l.b16 %v144
  %v607 = vunpack.c.h.b16 %v144
  %v608 = vunpack.c.l.b16 %v145
  %v609 = vunpack.c.h.b16 %v145
  %v610 = vunpack.c.l.b16 %v146
  %v611 = vunpack.c.h.b16 %v146
  %v612 = vunpack.c.l.b16 %v147
  %v613 = vunpack.c.h.b16 %v147
  %v614 = vunpack.c.l.b16 %v148
  %v615 = vunpack.c.h.b16 %v148
  %v616 = vunpack.c.l.b16 %v149
  %v617 = vunpack.c.h.b16 %v149
  %v618 = vunpack.c.l.b16 %v150
  %v619 = vunpack.c.h.b16 %v150
  %v620 = vunpack.c.l.b16 %v151
  %v621 = vunpack.c.h.b16 %v151
  %v622 = vunpack.c.l.b16 %v152
  %v623 = vunpack.c.h.b16 %v152
  %v624 = vunpack.c.l.b16 %v153
  %v625 = vunpack.c.h.b16 %v153
  %v626 = vunpack.c.l.b16 %v154
  %v627 = vunpack.c.h.b16 %v154
  %v628 = vunpack.c.l.b16 %v155
  %v629 = vunpack.c.h.b16 %v155
  %v630 = vunpack.c.l.b16 %v156
  %v631 = vunpack.c.h.b16 %v156
  %v632 = vunpack.c.l.b16 %v157
  %v633 = vunpack.c.h.b16 %v157
  %v634 = vpack.c.b16 %v380, %v378
  %v635 = vpack.c.b16 %v381, %v379
  %v636 = vpack.c.b16 %v384, %v382
  %v637 = vpack.c.b16 %v385, %v383
  %v638 = vpack.c.b16 %v388, %v386
  %v639 = vpack.c.b16 %v389, %v387
  %v640 = vpack.c.b16 %v392, %v390
  %v641 = vpack.c.b16 %v393, %v391
  %v642 = vpack.c.b16 %v396, %v394
  %v643 = vpack.c.b16 %v397, %v395
  %v644 = vpack.c.b16 %v400, %v398
  %v645 = vpack.c.b16 %v401, %v399
  %v646 = vpack.c.b16 %v404, %v402
  %v647 = vpack.c.b16 %v405, %v403
  %v648 = vpack.c.b16 %v408, %v406
  %v649 = vpack.c.b16 %v409, %v407
  %v650 = vpack.c.b16 %v412, %v410
  %v651 = vpack.c.b16 %v413, %v411
  %v652 = vpack.c.b16 %v416, %v414
  %v653 = vpack.c.b16 %v417, %v415
  %v654 = vpack.c.b16 %v420, %v418
  %v655 = vpack.c.b16 %v421, %v419
  %v656 = vpack.c.b16 %v424, %v422
  %v657 = vpack.c.b16 %v425, %v423
  %v658 = vpack.c.b16 %v428, %v426
  %v659 = vpack.c.b16 %v429, %v427
  %v660 = vpack.c.b16 %v432, %v430
  %v661 = vpack.c.b16 %v433, %v431
  %v662 = vpack.c.b16 %v436, %v434
  %v663 = vpack.c.b16 %v437, %v435
  %v664 = vpack.c.b16 %v440, %v438
  %v665 = vpack.c.b16 %v441, %v439
  %v666 = vpack.c.b16 %v444, %v442
  %v667 = vpack.c.b16 %v445, %v443
  %v668 = vpack.c.b16 %v448, %v446
  %v669 = vpack.c.b16 %v449, %v447
  %v670 = vpack.c.b16 %v452, %v450
  %v671 = vpack.c.b16 %v453, %v451
  %v672 = vpack.c.b16 %v456, %v454
  %v673 = vpack.c.b16 %v457, %v455
  %v674 = vpack.c.b16 %v460, %v458
  %v675 = vpack.c.b16 %v461, %v459
  %v676 = vpack.c.b16 %v464, %v462
  %v677 = vpack.c.b16 %v465, %v463
  %v678 = vpack.c.b16 %v468, %v466
  %v679 = vpack.c.b16 %v469, %v467
  %v680 = vpack.c.b16 %v472, %v470
  %v681 = vpack.c.b16 %v473, %v471
  %v682 = vpack.c.b16 %v476, %v474
  %v683 = vpack.c.b16 %v477, %v475
  %v684 = vpack.c.b16 %v480, %v478
  %v685 = vpack.c.b16 %v481, %v479
  %v686 = vpack.c.b16 %v484, %v482
  %v687 = vpack.c.b16 %v485, %v483
  %v688 = vpack.c.b16 %v488, %v486
  %v689 = vpack.c.b16 %v489, %v487
  %v690 = vpack.c.b16 %v492, %v490
  %v691 = vpack.c.b16 %v493, %v491
  %v692 = vpack.c.b16 %v496, %v494
  %v693 = vpack.c.b16 %v497, %v495
  %v694 = vpack.c.b16 %v500, %v498
  %v695 = vpack.c.b16 %v501, %v499
  %v696 = vpack.c.b16 %v504, %v502
  %v697 = vpack.c.b16 %v505, %v503
  %v698 = vpack.c.b16 %v508, %v506
  %v699 = vpack.c.b16 %v509, %v507
  %v700 = vpack.c.b16 %v512, %v510
  %v701 = vpack.c.b16 %v513, %v511
  %v702 = vpack.c.b16 %v516, %v514
  %v703 = vpack.c.b16 %v517, %v515
  %v704 = vpack.c.b16 %v520, %v518
  %v705 = vpack.c.b16 %v521, %v519
  %v706 = vpack.c.b16 %v524, %v522
  %v707 = vpack.c.b16 %v525, %v523
  %v708 = vpack.c.b16 %v528, %v526
  %v709 = vpack.c.b16 %v529, %v527
  %v710 = vpack.c.b16 %v532, %v530
  %v711 = vpack.c.b16 %v533, %v531
  %v712 = vpack.c.b16 %v536, %v534
  %v713 = vpack.c.b16 %v537, %v535
  %v714 = vpack.c.b16 %v540, %v538
  %v715 = vpack.c.b16 %v541, %v539
  %v716 = vpack.c.b16 %v544, %v542
  %v717 = vpack.c.b16 %v545, %v543
  %v718 = vpack.c.b16 %v548, %v546
  %v719 = vpack.c.b16 %v549, %v547
  %v720 = vpack.c.b16 %v552, %v550
  %v721 = vpack.c.b16 %v553, %v551
  %v722 = vpack.c.b16 %v556, %v554
  %v723 = vpack.c.b16 %v557, %v555
  %v724 = vpack.c.b16 %v560, %v558
  %v725 = vpack.c.b16 %v561, %v559
  %v726 = vpack.c.b16 %v564, %v562
  %v727 = vpack.c.b16 %v565, %v563
  %v728 = vpack.c.b16 %v568, %v566
  %v729 = vpack.c.b16 %v569, %v567
  %v730 = vpack.c.b16 %v572, %v570
  %v731 = vpack.c.b16 %v573, %v571
  %v732 = vpack.c.b16 %v576, %v574
  %v733 = vpack.c.b16 %v577, %v575
  %v734 = vpack.c.b16 %v580, %v578
  %v735 = vpack.c.b16 %v581, %v579
  %v736 = vpack.c.b16 %v584, %v582
  %v737 = vpack.c.b16 %v585, %v583
  %v738 = vpack.c.b16 %v588, %v586
  %v739 = vpack.c.b16 %v589, %v587
  %v740 = vpack.c.b16 %v592, %v590
  %v741 = vpack.c.b16 %v593, %v591
  %v742 = vpack.c.b16 %v596, %v594
  %v743 = vpack.c.b16 %v597, %v595
  %v744 = vpack.c.b16 %v600, %v598
  %v745 = vpack.c.b16 %v601, %v599
  %v746 = vpack.c.b16 %v604, %v602
  %v747 = vpack.c.b16 %v605, %v603
  %v748 = vpack.c.b16 %v608, %v606
  %v749 = vpack.c.b16 %v609, %v607
  %v750 = vpack.c.b16 %v612, %v610
  %v751 = vpack.c.b16 %v613, %v611
  %v752 = vpack.c.b16 %v616, %v614
  %v753 = vpack.c.b16 %v617, %v615
  %v754 = vpack.c.b16 %v620, %v618
  %v755 = vpack.c.b16 %v621, %v619
  %v756 = vpack.c.b16 %v624, %v622
  %v757 = vpack.c.b16 %v625, %v623
  %v758 = vpack.c.b16 %v628, %v626
  %v759 = vpack.c.b16 %v629, %v627
  %v760 = vpack.c.b16 %v632, %v630
  %v761 = vpack.c.b16 %v633, %v631
  %890 = vmatprep.subr.bf16.mxu0 %v649
  %891 = vmatpush1.bf16.msra.mxu0 %v648
  %892 = vmatprep.subr.bf16.mxu0 %v647
  %893 = vmatpush1.bf16.msra.mxu0 %v646
  %894 = vmatprep.subr.bf16.mxu0 %v645
  %895 = vmatpush1.bf16.msra.mxu0 %v644
  %896 = vmatprep.subr.bf16.mxu0 %v643
  %897 = vmatpush1.bf16.msra.mxu0 %v642
  %898 = vmatprep.subr.bf16.mxu0 %v641
  %899 = vmatpush1.bf16.msra.mxu0 %v640
  %900 = vmatprep.subr.bf16.mxu0 %v639
  %901 = vmatpush1.bf16.msra.mxu0 %v638
  %902 = vmatprep.subr.bf16.mxu0 %v637
  %903 = vmatpush1.bf16.msra.mxu0 %v636
  %904 = vmatprep.subr.bf16.mxu0 %v635
  %905 = vmatpush1.bf16.msra.mxu0 %v634
  %906 = vmatprep.subr.bf16.mxu0 %v665
  %907 = vmatpush2.bf16.msra.mxu0 %v664
  %908 = vmatprep.subr.bf16.mxu0 %v663
  %909 = vmatpush2.bf16.msra.mxu0 %v662
  %910 = vmatprep.subr.bf16.mxu0 %v661
  %911 = vmatpush2.bf16.msra.mxu0 %v660
  %912 = vmatprep.subr.bf16.mxu0 %v659
  %913 = vmatpush2.bf16.msra.mxu0 %v658
  %914 = vmatprep.subr.bf16.mxu0 %v657
  %915 = vmatpush2.bf16.msra.mxu0 %v656
  %916 = vmatprep.subr.bf16.mxu0 %v655
  %917 = vmatpush2.bf16.msra.mxu0 %v654
  %918 = vmatprep.subr.bf16.mxu0 %v653
  %919 = vmatpush2.bf16.msra.mxu0 %v652
  %920 = vmatprep.subr.bf16.mxu0 %v651
  %921 = vmatpush2.bf16.msra.mxu0 %v650
  %922 = vmatprep.mubr.bf16.mxu0 %v219
  %923 = vmatmul.mubr.bf16.gmra.mxu0 %v218
  %v924 = vpop.f32.mrf.mxu0
  %v925 = vadd.f32 %v163, %v924
  %v926 = vpop.f32.mrf.mxu0
  %v927 = vadd.f32 %v167, %v926
  %v928 = vpop.f32.mrf.mxu0
  %v929 = vadd.f32 %v163, %v928
  %v930 = vpop.f32.mrf.mxu0
  %v931 = vadd.f32 %v167, %v930
  %932 = vmatprep.mubr.bf16.mxu0 %v227
  %933 = vmatmul.mubr.bf16.gmra.mxu0 %v226
  %v934 = vpop.f32.mrf.mxu0
  %v935 = vadd.f32 %v163, %v934
  %v936 = vpop.f32.mrf.mxu0
  %v937 = vadd.f32 %v167, %v936
  %v938 = vpop.f32.mrf.mxu0
  %v939 = vadd.f32 %v163, %v938
  %v940 = vpop.f32.mrf.mxu0
  %v941 = vadd.f32 %v167, %v940
  %942 = vdwg.mxu0
  %943 = vmatprep.subr.bf16.mxu0 %v681
  %944 = vmatpush1.bf16.msra.mxu0 %v680
  %945 = vmatprep.subr.bf16.mxu0 %v679
  %946 = vmatpush1.bf16.msra.mxu0 %v678
  %947 = vmatprep.subr.bf16.mxu0 %v677
  %948 = vmatpush1.bf16.msra.mxu0 %v676
  %949 = vmatprep.subr.bf16.mxu0 %v675
  %950 = vmatpush1.bf16.msra.mxu0 %v674
  %951 = vmatprep.subr.bf16.mxu0 %v673
  %952 = vmatpush1.bf16.msra.mxu0 %v672
  %953 = vmatprep.subr.bf16.mxu0 %v671
  %954 = vmatpush1.bf16.msra.mxu0 %v670
  %955 = vmatprep.subr.bf16.mxu0 %v669
  %956 = vmatpush1.bf16.msra.mxu0 %v668
  %957 = vmatprep.subr.bf16.mxu0 %v667
  %958 = vmatpush1.bf16.msra.mxu0 %v666
  %959 = vmatprep.subr.bf16.mxu0 %v697
  %960 = vmatpush2.bf16.msra.mxu0 %v696
  %961 = vmatprep.subr.bf16.mxu0 %v695
  %962 = vmatpush2.bf16.msra.mxu0 %v694
  %963 = vmatprep.subr.bf16.mxu0 %v693
  %964 = vmatpush2.bf16.msra.mxu0 %v692
  %965 = vmatprep.subr.bf16.mxu0 %v691
  %966 = vmatpush2.bf16.msra.mxu0 %v690
  %967 = vmatprep.subr.bf16.mxu0 %v689
  %968 = vmatpush2.bf16.msra.mxu0 %v688
  %969 = vmatprep.subr.bf16.mxu0 %v687
  %970 = vmatpush2.bf16.msra.mxu0 %v686
  %971 = vmatprep.subr.bf16.mxu0 %v685
  %972 = vmatpush2.bf16.msra.mxu0 %v684
  %973 = vmatprep.subr.bf16.mxu0 %v683
  %974 = vmatpush2.bf16.msra.mxu0 %v682
  %975 = vmatprep.mubr.bf16.mxu0 %v221
  %976 = vmatmul.mubr.bf16.gmra.mxu0 %v220
  %v977 = vpop.f32.mrf.mxu0
  %v978 = vadd.f32 %v925, %v977
  %v979 = vpop.f32.mrf.mxu0
  %v980 = vadd.f32 %v927, %v979
  %v981 = vpop.f32.mrf.mxu0
  %v982 = vadd.f32 %v929, %v981
  %v983 = vpop.f32.mrf.mxu0
  %v984 = vadd.f32 %v931, %v983
  %985 = vmatprep.mubr.bf16.mxu0 %v229
  %986 = vmatmul.mubr.bf16.gmra.mxu0 %v228
  %v987 = vpop.f32.mrf.mxu0
  %v988 = vadd.f32 %v935, %v987
  %v989 = vpop.f32.mrf.mxu0
  %v990 = vadd.f32 %v937, %v989
  %v991 = vpop.f32.mrf.mxu0
  %v992 = vadd.f32 %v939, %v991
  %v993 = vpop.f32.mrf.mxu0
  %v994 = vadd.f32 %v941, %v993
  %995 = vdwg.mxu0
  %996 = vmatprep.subr.bf16.mxu0 %v713
  %997 = vmatpush1.bf16.msra.mxu0 %v712
  %998 = vmatprep.subr.bf16.mxu0 %v711
  %999 = vmatpush1.bf16.msra.mxu0 %v710
  %1000 = vmatprep.subr.bf16.mxu0 %v709
  %1001 = vmatpush1.bf16.msra.mxu0 %v708
  %1002 = vmatprep.subr.bf16.mxu0 %v707
  %1003 = vmatpush1.bf16.msra.mxu0 %v706
  %1004 = vmatprep.subr.bf16.mxu0 %v705
  %1005 = vmatpush1.bf16.msra.mxu0 %v704
  %1006 = vmatprep.subr.bf16.mxu0 %v703
  %1007 = vmatpush1.bf16.msra.mxu0 %v702
  %1008 = vmatprep.subr.bf16.mxu0 %v701
  %1009 = vmatpush1.bf16.msra.mxu0 %v700
  %1010 = vmatprep.subr.bf16.mxu0 %v699
  %1011 = vmatpush1.bf16.msra.mxu0 %v698
  %1012 = vmatprep.subr.bf16.mxu0 %v729
  %1013 = vmatpush2.bf16.msra.mxu0 %v728
  %1014 = vmatprep.subr.bf16.mxu0 %v727
  %1015 = vmatpush2.bf16.msra.mxu0 %v726
  %1016 = vmatprep.subr.bf16.mxu0 %v725
  %1017 = vmatpush2.bf16.msra.mxu0 %v724
  %1018 = vmatprep.subr.bf16.mxu0 %v723
  %1019 = vmatpush2.bf16.msra.mxu0 %v722
  %1020 = vmatprep.subr.bf16.mxu0 %v721
  %1021 = vmatpush2.bf16.msra.mxu0 %v720
  %1022 = vmatprep.subr.bf16.mxu0 %v719
  %1023 = vmatpush2.bf16.msra.mxu0 %v718
  %1024 = vmatprep.subr.bf16.mxu0 %v717
  %1025 = vmatpush2.bf16.msra.mxu0 %v716
  %1026 = vmatprep.subr.bf16.mxu0 %v715
  %1027 = vmatpush2.bf16.msra.mxu0 %v714
  %1028 = vmatprep.mubr.bf16.mxu0 %v223
  %1029 = vmatmul.mubr.bf16.gmra.mxu0 %v222
  %v1030 = vpop.f32.mrf.mxu0
  %v1031 = vadd.f32 %v978, %v1030
  %v1032 = vpop.f32.mrf.mxu0
  %v1033 = vadd.f32 %v980, %v1032
  %v1034 = vpop.f32.mrf.mxu0
  %v1035 = vadd.f32 %v982, %v1034
  %v1036 = vpop.f32.mrf.mxu0
  %v1037 = vadd.f32 %v984, %v1036
  %1038 = vmatprep.mubr.bf16.mxu0 %v231
  %1039 = vmatmul.mubr.bf16.gmra.mxu0 %v230
  %v1040 = vpop.f32.mrf.mxu0
  %v1041 = vadd.f32 %v988, %v1040
  %v1042 = vpop.f32.mrf.mxu0
  %v1043 = vadd.f32 %v990, %v1042
  %v1044 = vpop.f32.mrf.mxu0
  %v1045 = vadd.f32 %v992, %v1044
  %v1046 = vpop.f32.mrf.mxu0
  %v1047 = vadd.f32 %v994, %v1046
  %1048 = vdwg.mxu0
  %1049 = vmatprep.subr.bf16.mxu0 %v745
  %1050 = vmatpush1.bf16.msra.mxu0 %v744
  %1051 = vmatprep.subr.bf16.mxu0 %v743
  %1052 = vmatpush1.bf16.msra.mxu0 %v742
  %1053 = vmatprep.subr.bf16.mxu0 %v741
  %1054 = vmatpush1.bf16.msra.mxu0 %v740
  %1055 = vmatprep.subr.bf16.mxu0 %v739
  %1056 = vmatpush1.bf16.msra.mxu0 %v738
  %1057 = vmatprep.subr.bf16.mxu0 %v737
  %1058 = vmatpush1.bf16.msra.mxu0 %v736
  %1059 = vmatprep.subr.bf16.mxu0 %v735
  %1060 = vmatpush1.bf16.msra.mxu0 %v734
  %1061 = vmatprep.subr.bf16.mxu0 %v733
  %1062 = vmatpush1.bf16.msra.mxu0 %v732
  %1063 = vmatprep.subr.bf16.mxu0 %v731
  %1064 = vmatpush1.bf16.msra.mxu0 %v730
  %1065 = vmatprep.subr.bf16.mxu0 %v761
  %1066 = vmatpush2.bf16.msra.mxu0 %v760
  %1067 = vmatprep.subr.bf16.mxu0 %v759
  %1068 = vmatpush2.bf16.msra.mxu0 %v758
  %1069 = vmatprep.subr.bf16.mxu0 %v757
  %1070 = vmatpush2.bf16.msra.mxu0 %v756
  %1071 = vmatprep.subr.bf16.mxu0 %v755
  %1072 = vmatpush2.bf16.msra.mxu0 %v754
  %1073 = vmatprep.subr.bf16.mxu0 %v753
  %1074 = vmatpush2.bf16.msra.mxu0 %v752
  %1075 = vmatprep.subr.bf16.mxu0 %v751
  %1076 = vmatpush2.bf16.msra.mxu0 %v750
  %1077 = vmatprep.subr.bf16.mxu0 %v749
  %1078 = vmatpush2.bf16.msra.mxu0 %v748
  %1079 = vmatprep.subr.bf16.mxu0 %v747
  %1080 = vmatpush2.bf16.msra.mxu0 %v746
  %1081 = vmatprep.mubr.bf16.mxu0 %v225
  %1082 = vmatmul.mubr.bf16.gmra.mxu0 %v224
  %v1083 = vpop.f32.mrf.mxu0
  %v1084 = vadd.f32 %v1031, %v1083
  %v1085 = vpop.f32.mrf.mxu0
  %v1086 = vadd.f32 %v1033, %v1085
  %v1087 = vpop.f32.mrf.mxu0
  %v1088 = vadd.f32 %v1035, %v1087
  %v1089 = vpop.f32.mrf.mxu0
  %v1090 = vadd.f32 %v1037, %v1089
  %1091 = vmatprep.mubr.bf16.mxu0 %v233
  %1092 = vmatmul.mubr.bf16.gmra.mxu0 %v232
  %v1093 = vpop.f32.mrf.mxu0
  %v1094 = vadd.f32 %v1041, %v1093
  %v1095 = vpop.f32.mrf.mxu0
  %v1096 = vadd.f32 %v1043, %v1095
  %v1097 = vpop.f32.mrf.mxu0
  %v1098 = vadd.f32 %v1045, %v1097
  %v1099 = vpop.f32.mrf.mxu0
  %v1100 = vadd.f32 %v1047, %v1099
  %1101 = vdwg.mxu0
  %v1102 = vpack.c.bf16 %v1088, %v1084
  %v1103 = vpack.c.bf16 %v1090, %v1086
  %v1104 = vpack.c.bf16 %v1098, %v1094
  %v1105 = vpack.c.bf16 %v1100, %v1096
  %v1110 = vunpack.c.l.b16 %v1102
  %v1111 = vunpack.c.l.b16 %v1103
  %v1112 = vunpack.c.h.b16 %v1102
  %v1113 = vunpack.c.h.b16 %v1103
  %v1114 = vunpack.c.l.b16 %v1104
  %v1115 = vunpack.c.l.b16 %v1105
  %v1116 = vunpack.c.h.b16 %v1104
  %v1117 = vunpack.c.h.b16 %v1105
  %v1118 = vpack.c.b16 %v1111, %v1110
  %v1119 = vpack.c.b16 %v1113, %v1112
  %v1120 = vpack.c.b16 %v1115, %v1114
  %v1121 = vpack.c.b16 %v1117, %v1116
  %1126 = vst [vmem:[%s3] sm:$0xff] %v1118
  %1127 = vst [vmem:[%s3 + $0x8] sm:$0xff] %v1119
  %1128 = vst [vmem:[%s3 + $0x10] sm:$0xff] %v1120
  %1129 = vst [vmem:[%s3 + $0x18] sm:$0xff] %v1121
  // Predicated region
  $region14: #{vicreg_forward.5} parent=0 // pred_check
    _
  $region15: #{vicreg_forward.5} parent=0 // pred_check_branch
    %1131 = sbr.rel (0) target = $region17
  $region16: #{vicreg_forward.5} parent=0 // pred_region
    _
  $region17: #{vicreg_forward.5} parent=0 // pred_fallthru
    _
  // Predicated region
  $region18: #{vicreg_forward.5} parent=0 // pred_check
    _
  $region19: #{vicreg_forward.5} parent=0 // pred_check_branch
    %1133 = sbr.rel (0) target = $region21
  $region20: #{vicreg_forward.5} parent=0 // pred_region
    _
  $region21: #{vicreg_forward.5} parent=0 // pred_fallthru
    _

// kernel: vicreg_forward.8
$region0: #{vicreg_forward.8}
  #allocation0 [shape = 'u32[]', space=smem, size = 0x4, offset = 0x4, fixed_abs, tag = 'smem constant byte address 0x4 - core index']
  #allocation1 [shape = 'u32[144,128]{1,0:T(1,128)}', space=vmem, size = 0x12000, scoped, tag = 'internal scratch']
  %s0 = inlined_call_operand.vmem [shape: bf16[32,256], index: 0, kind: input, shape index: {}]
  %s1 = inlined_call_operand.vmem [shape: bf16[256,1024], index: 1, kind: input, shape index: {}]
  %s2 = inlined_call_operand.vmem [shape: f32[1,1024], index: 2, kind: input, shape index: {}]
  %s3 = inlined_call_operand.vmem [shape: f32[32,1024], index: 3, kind: output, shape index: {}]
  %s4 = sld [smem:[#allocation0]]
  $region102: #{vicreg_forward.8} parent=0
    _
  %s6 = ssub.s32 1, %s4
  %s7 = scalar_select 0, %s6, %s4
  $region1: #{vicreg_forward.8} parent=0
    #allocation2 [shape = 'u8[262144]{0}', space=vmem, size = 0x40000, scoped, tag = 'input window, operand 1']
    #allocation3 [shape = 'u8[65536]{0}', space=vmem, size = 0x10000, scoped, tag = 'output window, operand 0']
    loop: start=0, step=1, limit=6
    $region2: #{vicreg_forward.8} parent=1 // loop_pre_header
      _
    $region3: #{vicreg_forward.8} parent=1 // loop_header
      %s9 = sphi 0, %s13
      %p10 = scmp.ge.s32.totalorder %s9, 6
      %s17 = sphi 0, %s17
      %s19 = sphi 0, %s17
      %s20 = sphi 0, %s19
      %s34 = sphi 0, %s20
      %s40 = sphi 0, %s42
      %s43 = sphi 0, %s40
      %s44 = sphi 0, %s43
      %s60 = sphi 0, %s44
      %s66 = sphi 0, %s68
      %s69 = sphi 0, %s66
      %s70 = sphi 0, %s69
      %s86 = sphi 0, %s70
      %s92 = sphi 0, %s94
      %s95 = sphi 0, %s92
      %s96 = sphi 0, %s95
      %s112 = sphi 0, %s96
    $region4: #{vicreg_forward.8} parent=1 // loop_header_branch
      %12 = sbr.rel (%p10) target = $region8
    $region5: #{vicreg_forward.8} parent=1 // loop_body
      %s14 = ssub.s32 %s9, 1
      %s15 = ssub.s32 %s9, 2
      %s16 = sadd.s32 %s9, 1
      %s18 = sadd.s32 %s17, 1
      %p21 = scmp.eq.s32.totalorder %s9, 3
      %p22 = scmp.ne.s32.totalorder %s17, %s19
      %p23 = scmp.eq.s32.totalorder %s9, 0
      %p24 = por %p22, %p23
      %p25 = scmp.ne.s32.totalorder %s17, %s19
      %p26 = scmp.eq.s32.totalorder %s14, 3
      %p27 = por %p25, %p26
      %p28 = scmp.ne.s32.totalorder %s19, %s20
      %p29 = scmp.eq.s32.totalorder %s14, 0
      %p30 = por %p28, %p29
      %p31 = scmp.ne.s32.totalorder %s19, %s20
      %p32 = scmp.eq.s32.totalorder %s15, 3
      %p33 = por %p31, %p32
      %p35 = scmp.ne.s32.totalorder %s20, %s34
      %p36 = scmp.eq.s32.totalorder %s15, 0
      %p37 = por %p35, %p36
      %s38 = ssub.s32 %s9, %s16
      %p39 = scmp.eq.s32.totalorder %s38, 0
      %s41 = sadd.s32 %s40, 1
      %s42 = scalar_select %p39, %s40, %s41
      %p45 = pneg %p39
      %p46 = scmp.eq.s32.totalorder %s9, 3
      %p47 = por %p45, %p46
      %p48 = scmp.ne.s32.totalorder %s40, %s43
      %p49 = scmp.eq.s32.totalorder %s9, 0
      %p50 = por %p48, %p49
      %p51 = scmp.ne.s32.totalorder %s40, %s43
      %p52 = scmp.eq.s32.totalorder %s14, 3
      %p53 = por %p51, %p52
      %p54 = scmp.ne.s32.totalorder %s43, %s44
      %p55 = scmp.eq.s32.totalorder %s14, 0
      %p56 = por %p54, %p55
      %p57 = scmp.ne.s32.totalorder %s43, %s44
      %p58 = scmp.eq.s32.totalorder %s15, 3
      %p59 = por %p57, %p58
      %p61 = scmp.ne.s32.totalorder %s44, %s60
      %p62 = scmp.eq.s32.totalorder %s15, 0
      %p63 = por %p61, %p62
      %s64 = ssub.s32 %s9, %s16
      %p65 = scmp.eq.s32.totalorder %s64, 0
      %s67 = sadd.s32 %s66, 1
      %s68 = scalar_select %p65, %s66, %s67
      %p71 = pneg %p65
      %p72 = scmp.eq.s32.totalorder %s9, 3
      %p73 = por %p71, %p72
      %p74 = scmp.ne.s32.totalorder %s66, %s69
      %p75 = scmp.eq.s32.totalorder %s9, 0
      %p76 = por %p74, %p75
      %p77 = scmp.ne.s32.totalorder %s66, %s69
      %p78 = scmp.eq.s32.totalorder %s14, 3
      %p79 = por %p77, %p78
      %p80 = scmp.ne.s32.totalorder %s69, %s70
      %p81 = scmp.eq.s32.totalorder %s14, 0
      %p82 = por %p80, %p81
      %p83 = scmp.ne.s32.totalorder %s69, %s70
      %p84 = scmp.eq.s32.totalorder %s15, 3
      %p85 = por %p83, %p84
      %p87 = scmp.ne.s32.totalorder %s70, %s86
      %p88 = scmp.eq.s32.totalorder %s15, 0
      %p89 = por %p87, %p88
      %s90 = ssub.s32 %s9, %s16
      %p91 = scmp.eq.s32.totalorder %s90, 0
      %s93 = sadd.s32 %s92, 1
      %s94 = scalar_select %p91, %s92, %s93
      %p97 = pneg %p91
      %p98 = scmp.eq.s32.totalorder %s9, 3
      %p99 = por %p97, %p98
      %p100 = scmp.ne.s32.totalorder %s92, %s95
      %p101 = scmp.eq.s32.totalorder %s9, 0
      %p102 = por %p100, %p101
      %p103 = scmp.ne.s32.totalorder %s92, %s95
      %p104 = scmp.eq.s32.totalorder %s14, 3
      %p105 = por %p103, %p104
      %p106 = scmp.ne.s32.totalorder %s95, %s96
      %p107 = scmp.eq.s32.totalorder %s14, 0
      %p108 = por %p106, %p107
      %p109 = scmp.ne.s32.totalorder %s95, %s96
      %p110 = scmp.eq.s32.totalorder %s15, 3
      %p111 = por %p109, %p110
      %p113 = scmp.ne.s32.totalorder %s96, %s112
      %p114 = scmp.eq.s32.totalorder %s15, 0
      %p115 = por %p113, %p114
      %p116 = scmp.le.s32.totalorder 1, %s9
      %p117 = scmp.lt.s32.totalorder %s9, 5
      %p118 = pnand %p116, %p117
      %p119 = pneg %p118
      // Predicated region
      $region9: #{vicreg_forward.8} parent=5 // pred_check
        _
      $region10: #{vicreg_forward.8} parent=5 // pred_check_branch
        %121 = sbr.rel (%p118) target = $region12
      $region11: #{vicreg_forward.8} parent=5 // pred_region
        %s122 = ssub.s32 %s9, 1
        // Predicated region
        $region13: #{vicreg_forward.8} parent=11 // pred_check
          %p123 = pneg %p30
        $region14: #{vicreg_forward.8} parent=11 // pred_check_branch
          %125 = sbr.rel (%p123) target = $region16
        $region15: #{vicreg_forward.8} parent=11 // pred_region
          _
        $region16: #{vicreg_forward.8} parent=11 // pred_fallthru
          _
      $region12: #{vicreg_forward.8} parent=5 // pred_fallthru
        _
      %p126 = scmp.lt.s32.totalorder %s9, 4
      // Predicated region
      $region17: #{vicreg_forward.8} parent=5 // pred_check
        %p127 = pneg %p126
      $region18: #{vicreg_forward.8} parent=5 // pred_check_branch
        %129 = sbr.rel (%p127) target = $region20
      $region19: #{vicreg_forward.8} parent=5 // pred_region
        // Predicated region
        $region21: #{vicreg_forward.8} parent=19 // pred_check
          %p130 = pneg %p50
        $region22: #{vicreg_forward.8} parent=19 // pred_check_branch
          %132 = sbr.rel (%p130) target = $region24
        $region23: #{vicreg_forward.8} parent=19 // pred_region
          %s133 = sand.u32 %s40, 1
          %s134 = sand.u32 %s40, 1
          %s135 = smul.addr %s134, 256
          %s136 = scalar_lea.vmem [#allocation2], %s135
          %s137 = smul.u32 2, %s9
          %s138 = smul.addr %s137, 4
          %s139 = scalar_lea.vmem %s1, %s138
          // Predicated region
          $region25: #{vicreg_forward.8} parent=23 // pred_check
            _
          $region26: #{vicreg_forward.8} parent=23 // pred_check_branch
            %141 = sbr.rel (0) target = $region28
          $region27: #{vicreg_forward.8} parent=23 // pred_region
            // Predicated region
            $region29: #{vicreg_forward.8} parent=27 // pred_check
              _
            $region30: #{vicreg_forward.8} parent=27 // pred_check_branch
              %143 = sbr.rel (0) target = $region32
            $region31: #{vicreg_forward.8} parent=27 // pred_region
              // Predicated region
              $region44: #{vicreg_forward.8} parent=31 // pred_check
                _
              $region45: #{vicreg_forward.8} parent=31 // pred_check_branch
                %221 = sbr.rel (0) target = $region47
              $region46: #{vicreg_forward.8} parent=31 // pred_region
                loop: start=0, step=1, limit=1
                $region48: #{vicreg_forward.8} parent=46 // loop_pre_header
                  _
                $region49: #{vicreg_forward.8} parent=46 // loop_header
                  %s223 = sphi 0, %s227
                  %p224 = scmp.ge.s32.totalorder %s223, 1
                  %s228 = sphi %s139, %s139
                  %s229 = sphi %s136, %s136
                $region50: #{vicreg_forward.8} parent=46 // loop_header_branch
                  %226 = sbr.rel (%p224) target = $region54
                $region51: #{vicreg_forward.8} parent=46 // loop_body
                  %v230 = vld [vmem:[%s228] sm:$0xff]
                  %231 = vst [vmem:[%s229] sm:$0xff] %v230
                  %v232 = vld [vmem:[%s228 + $0x20] sm:$0xff]
                  %233 = vst [vmem:[%s229 + $0x8] sm:$0xff] %v232
                  %v234 = vld [vmem:[%s228 + $0x40] sm:$0xff]
                  %235 = vst [vmem:[%s229 + $0x10] sm:$0xff] %v234
                  %v236 = vld [vmem:[%s228 + $0x60] sm:$0xff]
                  %237 = vst [vmem:[%s229 + $0x18] sm:$0xff] %v236
                  %v238 = vld [vmem:[%s228 + $0x80] sm:$0xff]
                  %239 = vst [vmem:[%s229 + $0x20] sm:$0xff] %v238
                  %v240 = vld [vmem:[%s228 + $0xa0] sm:$0xff]
                  %241 = vst [vmem:[%s229 + $0x28] sm:$0xff] %v240
                  %v242 = vld [vmem:[%s228 + $0xc0] sm:$0xff]
                  %243 = vst [vmem:[%s229 + $0x30] sm:$0xff] %v242
                  %v244 = vld [vmem:[%s228 + $0xe0] sm:$0xff]
                  %245 = vst [vmem:[%s229 + $0x38] sm:$0xff] %v244
                  %v246 = vld [vmem:[%s228 + $0x100] sm:$0xff]
                  %247 = vst [vmem:[%s229 + $0x40] sm:$0xff] %v246
                  %v248 = vld [vmem:[%s228 + $0x120] sm:$0xff]
                  %249 = vst [vmem:[%s229 + $0x48] sm:$0xff] %v248
                  %v250 = vld [vmem:[%s228 + $0x140] sm:$0xff]
                  %251 = vst [vmem:[%s229 + $0x50] sm:$0xff] %v250
                  %v252 = vld [vmem:[%s228 + $0x160] sm:$0xff]
                  %253 = vst [vmem:[%s229 + $0x58] sm:$0xff] %v252
                  %v254 = vld [vmem:[%s228 + $0x180] sm:$0xff]
                  %255 = vst [vmem:[%s229 + $0x60] sm:$0xff] %v254
                  %v256 = vld [vmem:[%s228 + $0x1a0] sm:$0xff]
                  %257 = vst [vmem:[%s229 + $0x68] sm:$0xff] %v256
                  %v258 = vld [vmem:[%s228 + $0x1c0] sm:$0xff]
                  %259 = vst [vmem:[%s229 + $0x70] sm:$0xff] %v258
                  %v260 = vld [vmem:[%s228 + $0x1e0] sm:$0xff]
                  %261 = vst [vmem:[%s229 + $0x78] sm:$0xff] %v260
                  %v262 = vld [vmem:[%s228 + $0x200] sm:$0xff]
                  %263 = vst [vmem:[%s229 + $0x80] sm:$0xff] %v262
                  %v264 = vld [vmem:[%s228 + $0x220] sm:$0xff]
                  %265 = vst [vmem:[%s229 + $0x88] sm:$0xff] %v264
                  %v266 = vld [vmem:[%s228 + $0x240] sm:$0xff]
                  %267 = vst [vmem:[%s229 + $0x90] sm:$0xff] %v266
                  %v268 = vld [vmem:[%s228 + $0x260] sm:$0xff]
                  %269 = vst [vmem:[%s229 + $0x98] sm:$0xff] %v268
                  %v270 = vld [vmem:[%s228 + $0x280] sm:$0xff]
                  %271 = vst [vmem:[%s229 + $0xa0] sm:$0xff] %v270
                  %v272 = vld [vmem:[%s228 + $0x2a0] sm:$0xff]
                  %273 = vst [vmem:[%s229 + $0xa8] sm:$0xff] %v272
                  %v274 = vld [vmem:[%s228 + $0x2c0] sm:$0xff]
                  %275 = vst [vmem:[%s229 + $0xb0] sm:$0xff] %v274
                  %v276 = vld [vmem:[%s228 + $0x2e0] sm:$0xff]
                  %277 = vst [vmem:[%s229 + $0xb8] sm:$0xff] %v276
                  %v278 = vld [vmem:[%s228 + $0x300] sm:$0xff]
                  %279 = vst [vmem:[%s229 + $0xc0] sm:$0xff] %v278
                  %v280 = vld [vmem:[%s228 + $0x320] sm:$0xff]
                  %281 = vst [vmem:[%s229 + $0xc8] sm:$0xff] %v280
                  %v282 = vld [vmem:[%s228 + $0x340] sm:$0xff]
                  %283 = vst [vmem:[%s229 + $0xd0] sm:$0xff] %v282
                  %v284 = vld [vmem:[%s228 + $0x360] sm:$0xff]
                  %285 = vst [vmem:[%s229 + $0xd8] sm:$0xff] %v284
                  %v286 = vld [vmem:[%s228 + $0x380] sm:$0xff]
                  %287 = vst [vmem:[%s229 + $0xe0] sm:$0xff] %v286
                  %v288 = vld [vmem:[%s228 + $0x3a0] sm:$0xff]
                  %289 = vst [vmem:[%s229 + $0xe8] sm:$0xff] %v288
                  %v290 = vld [vmem:[%s228 + $0x3c0] sm:$0xff]
                  %291 = vst [vmem:[%s229 + $0xf0] sm:$0xff] %v290
                  %v292 = vld [vmem:[%s228 + $0x3e0] sm:$0xff]
                  %293 = vst [vmem:[%s229 + $0xf8] sm:$0xff] %v292
                $region52: #{vicreg_forward.8} parent=46 // loop_footer
                  %s227 = sadd.s32 1, %s223
                $region53: #{vicreg_forward.8} parent=46 // loop_footer_branch
                  %222 = sbr.rel target = $region49
                $region54: #{vicreg_forward.8} parent=46 // loop_exit
                  _
              $region47: #{vicreg_forward.8} parent=31 // pred_fallthru
                _
              // Predicated region
              $region55: #{vicreg_forward.8} parent=31 // pred_check
                _
              $region56: #{vicreg_forward.8} parent=31 // pred_check_branch
                %295 = sbr.rel target = $region58
              $region57: #{vicreg_forward.8} parent=31 // pred_region
                _
              $region58: #{vicreg_forward.8} parent=31 // pred_fallthru
                _
            $region32: #{vicreg_forward.8} parent=27 // pred_fallthru
              _
            // Predicated region
            $region33: #{vicreg_forward.8} parent=27 // pred_check
              _
            $region34: #{vicreg_forward.8} parent=27 // pred_check_branch
              %145 = sbr.rel target = $region36
            $region35: #{vicreg_forward.8} parent=27 // pred_region
              %s147 = ssub.s32 256, 1
              loop: start=0, step=1, limit=1
              $region37: #{vicreg_forward.8} parent=35 // loop_pre_header
                _
              $region38: #{vicreg_forward.8} parent=35 // loop_header
                %s149 = sphi 0, %s153
                %p150 = scmp.ge.s32.totalorder %s149, 1
                %s154 = sphi %s139, %s139
                %s155 = sphi %s136, %s136
              $region39: #{vicreg_forward.8} parent=35 // loop_header_branch
                %152 = sbr.rel (%p150) target = $region43
              $region40: #{vicreg_forward.8} parent=35 // loop_body
                %v156 = vld [vmem:[%s154] sm:%s147]
                %157 = vst [vmem:[%s155] sm:%s147] %v156
                %v158 = vld [vmem:[%s154 + $0x20] sm:%s147]
                %159 = vst [vmem:[%s155 + $0x8] sm:%s147] %v158
                %v160 = vld [vmem:[%s154 + $0x40] sm:%s147]
                %161 = vst [vmem:[%s155 + $0x10] sm:%s147] %v160
                %v162 = vld [vmem:[%s154 + $0x60] sm:%s147]
                %163 = vst [vmem:[%s155 + $0x18] sm:%s147] %v162
                %v164 = vld [vmem:[%s154 + $0x80] sm:%s147]
                %165 = vst [vmem:[%s155 + $0x20] sm:%s147] %v164
                %v166 = vld [vmem:[%s154 + $0xa0] sm:%s147]
                %167 = vst [vmem:[%s155 + $0x28] sm:%s147] %v166
                %v168 = vld [vmem:[%s154 + $0xc0] sm:%s147]
                %169 = vst [vmem:[%s155 + $0x30] sm:%s147] %v168
                %v170 = vld [vmem:[%s154 + $0xe0] sm:%s147]
                %171 = vst [vmem:[%s155 + $0x38] sm:%s147] %v170
                %v172 = vld [vmem:[%s154 + $0x100] sm:%s147]
                %173 = vst [vmem:[%s155 + $0x40] sm:%s147] %v172
                %v174 = vld [vmem:[%s154 + $0x120] sm:%s147]
                %175 = vst [vmem:[%s155 + $0x48] sm:%s147] %v174
                %v176 = vld [vmem:[%s154 + $0x140] sm:%s147]
                %177 = vst [vmem:[%s155 + $0x50] sm:%s147] %v176
                %v178 = vld [vmem:[%s154 + $0x160] sm:%s147]
                %179 = vst [vmem:[%s155 + $0x58] sm:%s147] %v178
                %v180 = vld [vmem:[%s154 + $0x180] sm:%s147]
                %181 = vst [vmem:[%s155 + $0x60] sm:%s147] %v180
                %v182 = vld [vmem:[%s154 + $0x1a0] sm:%s147]
                %183 = vst [vmem:[%s155 + $0x68] sm:%s147] %v182
                %v184 = vld [vmem:[%s154 + $0x1c0] sm:%s147]
                %185 = vst [vmem:[%s155 + $0x70] sm:%s147] %v184
                %v186 = vld [vmem:[%s154 + $0x1e0] sm:%s147]
                %187 = vst [vmem:[%s155 + $0x78] sm:%s147] %v186
                %v188 = vld [vmem:[%s154 + $0x200] sm:%s147]
                %189 = vst [vmem:[%s155 + $0x80] sm:%s147] %v188
                %v190 = vld [vmem:[%s154 + $0x220] sm:%s147]
                %191 = vst [vmem:[%s155 + $0x88] sm:%s147] %v190
                %v192 = vld [vmem:[%s154 + $0x240] sm:%s147]
                %193 = vst [vmem:[%s155 + $0x90] sm:%s147] %v192
                %v194 = vld [vmem:[%s154 + $0x260] sm:%s147]
                %195 = vst [vmem:[%s155 + $0x98] sm:%s147] %v194
                %v196 = vld [vmem:[%s154 + $0x280] sm:%s147]
                %197 = vst [vmem:[%s155 + $0xa0] sm:%s147] %v196
                %v198 = vld [vmem:[%s154 + $0x2a0] sm:%s147]
                %199 = vst [vmem:[%s155 + $0xa8] sm:%s147] %v198
                %v200 = vld [vmem:[%s154 + $0x2c0] sm:%s147]
                %201 = vst [vmem:[%s155 + $0xb0] sm:%s147] %v200
                %v202 = vld [vmem:[%s154 + $0x2e0] sm:%s147]
                %203 = vst [vmem:[%s155 + $0xb8] sm:%s147] %v202
                %v204 = vld [vmem:[%s154 + $0x300] sm:%s147]
                %205 = vst [vmem:[%s155 + $0xc0] sm:%s147] %v204
                %v206 = vld [vmem:[%s154 + $0x320] sm:%s147]
                %207 = vst [vmem:[%s155 + $0xc8] sm:%s147] %v206
                %v208 = vld [vmem:[%s154 + $0x340] sm:%s147]
                %209 = vst [vmem:[%s155 + $0xd0] sm:%s147] %v208
                %v210 = vld [vmem:[%s154 + $0x360] sm:%s147]
                %211 = vst [vmem:[%s155 + $0xd8] sm:%s147] %v210
                %v212 = vld [vmem:[%s154 + $0x380] sm:%s147]
                %213 = vst [vmem:[%s155 + $0xe0] sm:%s147] %v212
                %v214 = vld [vmem:[%s154 + $0x3a0] sm:%s147]
                %215 = vst [vmem:[%s155 + $0xe8] sm:%s147] %v214
                %v216 = vld [vmem:[%s154 + $0x3c0] sm:%s147]
                %217 = vst [vmem:[%s155 + $0xf0] sm:%s147] %v216
                %v218 = vld [vmem:[%s154 + $0x3e0] sm:%s147]
                %219 = vst [vmem:[%s155 + $0xf8] sm:%s147] %v218
              $region41: #{vicreg_forward.8} parent=35 // loop_footer
                %s153 = sadd.s32 1, %s149
              $region42: #{vicreg_forward.8} parent=35 // loop_footer_branch
                %148 = sbr.rel target = $region38
              $region43: #{vicreg_forward.8} parent=35 // loop_exit
                _
            $region36: #{vicreg_forward.8} parent=27 // pred_fallthru
              _
          $region28: #{vicreg_forward.8} parent=23 // pred_fallthru
            _
          %296 = vnop
        $region24: #{vicreg_forward.8} parent=19 // pred_fallthru
          _
        // Predicated region
        $region59: #{vicreg_forward.8} parent=19 // pred_check
          %p297 = pneg %p76
        $region60: #{vicreg_forward.8} parent=19 // pred_check_branch
          %299 = sbr.rel (%p297) target = $region62
        $region61: #{vicreg_forward.8} parent=19 // pred_region
          %s300 = smul.u32 2, %s9
          %p301 = scmp.lt.s32.totalorder %s300, 7
          %s302 = scalar_select %p301, %s300, 7
          %s303 = scalar_lea.vmem %s2, %s302
          %s304 = smul.u32 2, %s9
        $region62: #{vicreg_forward.8} parent=19 // pred_fallthru
          _
      $region20: #{vicreg_forward.8} parent=5 // pred_fallthru
        _
      %p305 = scmp.le.s32.totalorder 1, %s9
      %p306 = scmp.lt.s32.totalorder %s9, 5
      %p307 = pnand %p305, %p306
      %p308 = pneg %p307
      // Predicated region
      $region63: #{vicreg_forward.8} parent=5 // pred_check
        _
      $region64: #{vicreg_forward.8} parent=5 // pred_check_branch
        %310 = sbr.rel (%p307) target = $region66
      $region65: #{vicreg_forward.8} parent=5 // pred_region
        %s311 = ssub.s32 %s9, 1
        %s312 = sand.u32 %s43, 1
        %s313 = sand.u32 %s43, 1
        %s314 = smul.addr %s313, 256
        %s315 = scalar_lea.vmem [#allocation2], %s314
        // Predicated region
        $region67: #{vicreg_forward.8} parent=65 // pred_check
          %p316 = pneg %p56
        $region68: #{vicreg_forward.8} parent=65 // pred_check_branch
          %318 = sbr.rel (%p316) target = $region70
        $region69: #{vicreg_forward.8} parent=65 // pred_region
          _
        $region70: #{vicreg_forward.8} parent=65 // pred_fallthru
          _
        %p319 = pneg %p30
        %p320 = pneg %p27
        %s321 = sand.u32 %s43, 1
        %s322 = sand.u32 %s43, 1
        %s323 = smul.addr %s322, 256
        %s324 = scalar_lea.vmem [#allocation2], %s323
        %p325 = pneg %p56
        %p326 = pneg %p53
        %s327 = smul.u32 2, %s14
        %p328 = scmp.lt.s32.totalorder %s327, 7
        %s329 = scalar_select %p328, %s327, 7
        %s330 = scalar_lea.vmem %s2, %s329
        %p331 = pneg %p82
        %p332 = pneg %p79
        %p333 = pneg %p108
        %p334 = pneg %p105
        %s335 = sand.u32 %s95, 1
        %s336 = sand.u32 %s95, 1
        %s337 = smul.addr %s336, 64
        %s338 = scalar_lea.vmem [#allocation3], %s337
        %s339 = smul.u32 2, %s14
        %s340 = smul.u32 2, %s14
        %p341 = scmp.lt.s32.totalorder %s340, 7
        %s342 = scalar_select %p341, %s340, 7
        %s343 = scalar_lea.vmem %s2, %s342
        %s344 = smul.u32 2, %s14
        %s345 = smul.u32 2, %s14
        %v346 = vld [vmem:[%s0] sm:$0xff]
        %v347 = vld [vmem:[%s0 + $0x8] sm:$0xff]
        %v348 = vld [vmem:[%s0 + $0x10] sm:$0xff]
        %v349 = vld [vmem:[%s0 + $0x18] sm:$0xff]
        %v350 = vld [vmem:[%s315] sm:$0xff]
        %v351 = vld [vmem:[%s315 + $0x8] sm:$0xff]
        %v352 = vld [vmem:[%s315 + $0x10] sm:$0xff]
        %v353 = vld [vmem:[%s315 + $0x18] sm:$0xff]
        %v354 = vld [vmem:[%s315 + $0x20] sm:$0xff]
        %v355 = vld [vmem:[%s315 + $0x28] sm:$0xff]
        %v356 = vld [vmem:[%s315 + $0x30] sm:$0xff]
        %v357 = vld [vmem:[%s315 + $0x38] sm:$0xff]
        %v358 = vld [vmem:[%s315 + $0x40] sm:$0xff]
        %v359 = vld [vmem:[%s315 + $0x48] sm:$0xff]
        %v360 = vld [vmem:[%s315 + $0x50] sm:$0xff]
        %v361 = vld [vmem:[%s315 + $0x58] sm:$0xff]
        %v362 = vld [vmem:[%s315 + $0x60] sm:$0xff]
        %v363 = vld [vmem:[%s315 + $0x68] sm:$0xff]
        %v364 = vld [vmem:[%s315 + $0x70] sm:$0xff]
        %v365 = vld [vmem:[%s315 + $0x78] sm:$0xff]
        %v366 = vld [vmem:[%s315 + $0x80] sm:$0xff]
        %v367 = vld [vmem:[%s315 + $0x88] sm:$0xff]
        %v368 = vld [vmem:[%s315 + $0x90] sm:$0xff]
        %v369 = vld [vmem:[%s315 + $0x98] sm:$0xff]
        %v370 = vld [vmem:[%s315 + $0xa0] sm:$0xff]
        %v371 = vld [vmem:[%s315 + $0xa8] sm:$0xff]
        %v372 = vld [vmem:[%s315 + $0xb0] sm:$0xff]
        %v373 = vld [vmem:[%s315 + $0xb8] sm:$0xff]
        %v374 = vld [vmem:[%s315 + $0xc0] sm:$0xff]
        %v375 = vld [vmem:[%s315 + $0xc8] sm:$0xff]
        %v376 = vld [vmem:[%s315 + $0xd0] sm:$0xff]
        %v377 = vld [vmem:[%s315 + $0xd8] sm:$0xff]
        %v378 = vld [vmem:[%s315 + $0xe0] sm:$0xff]
        %v379 = vld [vmem:[%s315 + $0xe8] sm:$0xff]
        %v380 = vld [vmem:[%s315 + $0xf0] sm:$0xff]
        %v381 = vld [vmem:[%s315 + $0xf8] sm:$0xff]
        %v382 = vld [vmem:[%s343] sm:$0x3]
        %v384 = vlaneseq
        %v385 = vshrl.u32 %v384, 7
        %v386 = vsub.s32 0, %v385
        %v387 = vrot.slane %v382, %v386
        %v388 = vlaneseq
        %v389 = vshrl.u32 %v388, 7
        %v390 = vsub.s32 1, %v389
        %v391 = vrot.slane %v382, %v390
        %v398 = vunpack.c.l.b16 %v346
        %v399 = vunpack.c.h.b16 %v346
        %v400 = vunpack.c.l.b16 %v347
        %v401 = vunpack.c.h.b16 %v347
        %v402 = vunpack.c.l.b16 %v348
        %v403 = vunpack.c.h.b16 %v348
        %v404 = vunpack.c.l.b16 %v349
        %v405 = vunpack.c.h.b16 %v349
        %v406 = vpack.c.b16 %v400, %v398
        %v407 = vpack.c.b16 %v401, %v399
        %v408 = vpack.c.b16 %v404, %v402
        %v409 = vpack.c.b16 %v405, %v403
        %v446 = vunpack.c.l.b16 %v350
        %v447 = vunpack.c.h.b16 %v350
        %v448 = vunpack.c.l.b16 %v351
        %v449 = vunpack.c.h.b16 %v351
        %v450 = vunpack.c.l.b16 %v352
        %v451 = vunpack.c.h.b16 %v352
        %v452 = vunpack.c.l.b16 %v353
        %v453 = vunpack.c.h.b16 %v353
        %v454 = vunpack.c.l.b16 %v354
        %v455 = vunpack.c.h.b16 %v354
        %v456 = vunpack.c.l.b16 %v355
        %v457 = vunpack.c.h.b16 %v355
        %v458 = vunpack.c.l.b16 %v356
        %v459 = vunpack.c.h.b16 %v356
        %v460 = vunpack.c.l.b16 %v357
        %v461 = vunpack.c.h.b16 %v357
        %v462 = vunpack.c.l.b16 %v358
        %v463 = vunpack.c.h.b16 %v358
        %v464 = vunpack.c.l.b16 %v359
        %v465 = vunpack.c.h.b16 %v359
        %v466 = vunpack.c.l.b16 %v360
        %v467 = vunpack.c.h.b16 %v360
        %v468 = vunpack.c.l.b16 %v361
        %v469 = vunpack.c.h.b16 %v361
        %v470 = vunpack.c.l.b16 %v362
        %v471 = vunpack.c.h.b16 %v362
        %v472 = vunpack.c.l.b16 %v363
        %v473 = vunpack.c.h.b16 %v363
        %v474 = vunpack.c.l.b16 %v364
        %v475 = vunpack.c.h.b16 %v364
        %v476 = vunpack.c.l.b16 %v365
        %v477 = vunpack.c.h.b16 %v365
        %v478 = vunpack.c.l.b16 %v366
        %v479 = vunpack.c.h.b16 %v366
        %v480 = vunpack.c.l.b16 %v367
        %v481 = vunpack.c.h.b16 %v367
        %v482 = vunpack.c.l.b16 %v368
        %v483 = vunpack.c.h.b16 %v368
        %v484 = vunpack.c.l.b16 %v369
        %v485 = vunpack.c.h.b16 %v369
        %v486 = vunpack.c.l.b16 %v370
        %v487 = vunpack.c.h.b16 %v370
        %v488 = vunpack.c.l.b16 %v371
        %v489 = vunpack.c.h.b16 %v371
        %v490 = vunpack.c.l.b16 %v372
        %v491 = vunpack.c.h.b16 %v372
        %v492 = vunpack.c.l.b16 %v373
        %v493 = vunpack.c.h.b16 %v373
        %v494 = vunpack.c.l.b16 %v374
        %v495 = vunpack.c.h.b16 %v374
        %v496 = vunpack.c.l.b16 %v375
        %v497 = vunpack.c.h.b16 %v375
        %v498 = vunpack.c.l.b16 %v376
        %v499 = vunpack.c.h.b16 %v376
        %v500 = vunpack.c.l.b16 %v377
        %v501 = vunpack.c.h.b16 %v377
        %v502 = vunpack.c.l.b16 %v378
        %v503 = vunpack.c.h.b16 %v378
        %v504 = vunpack.c.l.b16 %v379
        %v505 = vunpack.c.h.b16 %v379
        %v506 = vunpack.c.l.b16 %v380
        %v507 = vunpack.c.h.b16 %v380
        %v508 = vunpack.c.l.b16 %v381
        %v509 = vunpack.c.h.b16 %v381
        %v510 = vpack.c.b16 %v448, %v446
        %v511 = vpack.c.b16 %v449, %v447
        %v512 = vpack.c.b16 %v452, %v450
        %v513 = vpack.c.b16 %v453, %v451
        %v514 = vpack.c.b16 %v456, %v454
        %v515 = vpack.c.b16 %v457, %v455
        %v516 = vpack.c.b16 %v460, %v458
        %v517 = vpack.c.b16 %v461, %v459
        %v518 = vpack.c.b16 %v464, %v462
        %v519 = vpack.c.b16 %v465, %v463
        %v520 = vpack.c.b16 %v468, %v466
        %v521 = vpack.c.b16 %v469, %v467
        %v522 = vpack.c.b16 %v472, %v470
        %v523 = vpack.c.b16 %v473, %v471
        %v524 = vpack.c.b16 %v476, %v474
        %v525 = vpack.c.b16 %v477, %v475
        %v526 = vpack.c.b16 %v480, %v478
        %v527 = vpack.c.b16 %v481, %v479
        %v528 = vpack.c.b16 %v484, %v482
        %v529 = vpack.c.b16 %v485, %v483
        %v530 = vpack.c.b16 %v488, %v486
        %v531 = vpack.c.b16 %v489, %v487
        %v532 = vpack.c.b16 %v492, %v490
        %v533 = vpack.c.b16 %v493, %v491
        %v534 = vpack.c.b16 %v496, %v494
        %v535 = vpack.c.b16 %v497, %v495
        %v536 = vpack.c.b16 %v500, %v498
        %v537 = vpack.c.b16 %v501, %v499
        %v538 = vpack.c.b16 %v504, %v502
        %v539 = vpack.c.b16 %v505, %v503
        %v540 = vpack.c.b16 %v508, %v506
        %v541 = vpack.c.b16 %v509, %v507
        %574 = vmatprep.subr.bf16.mxu0 %v525
        %575 = vmatpush1.bf16.msra.mxu0 %v524
        %576 = vmatprep.subr.bf16.mxu0 %v523
        %577 = vmatpush1.bf16.msra.mxu0 %v522
        %578 = vmatprep.subr.bf16.mxu0 %v521
        %579 = vmatpush1.bf16.msra.mxu0 %v520
        %580 = vmatprep.subr.bf16.mxu0 %v519
        %581 = vmatpush1.bf16.msra.mxu0 %v518
        %582 = vmatprep.subr.bf16.mxu0 %v517
        %583 = vmatpush1.bf16.msra.mxu0 %v516
        %584 = vmatprep.subr.bf16.mxu0 %v515
        %585 = vmatpush1.bf16.msra.mxu0 %v514
        %586 = vmatprep.subr.bf16.mxu0 %v513
        %587 = vmatpush1.bf16.msra.mxu0 %v512
        %588 = vmatprep.subr.bf16.mxu0 %v511
        %589 = vmatpush1.bf16.msra.mxu0 %v510
        %590 = vmatprep.subr.bf16.mxu0 %v541
        %591 = vmatpush2.bf16.msra.mxu0 %v540
        %592 = vmatprep.subr.bf16.mxu0 %v539
        %593 = vmatpush2.bf16.msra.mxu0 %v538
        %594 = vmatprep.subr.bf16.mxu0 %v537
        %595 = vmatpush2.bf16.msra.mxu0 %v536
        %596 = vmatprep.subr.bf16.mxu0 %v535
        %597 = vmatpush2.bf16.msra.mxu0 %v534
        %598 = vmatprep.subr.bf16.mxu0 %v533
        %599 = vmatpush2.bf16.msra.mxu0 %v532
        %600 = vmatprep.subr.bf16.mxu0 %v531
        %601 = vmatpush2.bf16.msra.mxu0 %v530
        %602 = vmatprep.subr.bf16.mxu0 %v529
        %603 = vmatpush2.bf16.msra.mxu0 %v528
        %604 = vmatprep.subr.bf16.mxu0 %v527
        %605 = vmatpush2.bf16.msra.mxu0 %v526
        %606 = vmatprep.mubr.bf16.mxu0 %v407
        %607 = vmatmul.mubr.bf16.gmra.mxu0 %v406
        %v608 = vpop.f32.mrf.mxu0
        %v609 = vadd.f32 %v387, %v608
        %v610 = vpop.f32.mrf.mxu0
        %v611 = vadd.f32 %v391, %v610
        %v612 = vpop.f32.mrf.mxu0
        %v613 = vadd.f32 %v387, %v612
        %v614 = vpop.f32.mrf.mxu0
        %v615 = vadd.f32 %v391, %v614
        %616 = vmatprep.mubr.bf16.mxu0 %v409
        %617 = vmatmul.mubr.bf16.gmra.mxu0 %v408
        %v618 = vpop.f32.mrf.mxu0
        %v619 = vadd.f32 %v387, %v618
        %v620 = vpop.f32.mrf.mxu0
        %v621 = vadd.f32 %v391, %v620
        %v622 = vpop.f32.mrf.mxu0
        %v623 = vadd.f32 %v387, %v622
        %v624 = vpop.f32.mrf.mxu0
        %v625 = vadd.f32 %v391, %v624
        %626 = vdwg.mxu0
        %627 = vst [vmem:[%s338] sm:$0xff] %v609
        %628 = vst [vmem:[%s338 + $0x8] sm:$0xff] %v611
        %629 = vst [vmem:[%s338 + $0x10] sm:$0xff] %v613
        %630 = vst [vmem:[%s338 + $0x18] sm:$0xff] %v615
        %631 = vst [vmem:[%s338 + $0x20] sm:$0xff] %v619
        %632 = vst [vmem:[%s338 + $0x28] sm:$0xff] %v621
        %633 = vst [vmem:[%s338 + $0x30] sm:$0xff] %v623
        %634 = vst [vmem:[%s338 + $0x38] sm:$0xff] %v625
        %s635 = sand.u32 %s95, 1
        %s636 = sand.u32 %s95, 1
        %s637 = smul.addr %s636, 64
        %s638 = scalar_lea.vmem [#allocation3], %s637
        // Predicated region
        $region71: #{vicreg_forward.8} parent=65 // pred_check
          %p639 = pneg %p105
        $region72: #{vicreg_forward.8} parent=65 // pred_check_branch
          %641 = sbr.rel (%p639) target = $region74
        $region73: #{vicreg_forward.8} parent=65 // pred_region
          %s642 = smul.u32 2, %s14
          %s643 = smul.addr %s642, 8
          %s644 = scalar_lea.vmem %s3, %s643
          // Predicated region
          $region75: #{vicreg_forward.8} parent=73 // pred_check
            _
          $region76: #{vicreg_forward.8} parent=73 // pred_check_branch
            %646 = sbr.rel (0) target = $region78
          $region77: #{vicreg_forward.8} parent=73 // pred_region
            // Predicated region
            $region79: #{vicreg_forward.8} parent=77 // pred_check
              _
            $region80: #{vicreg_forward.8} parent=77 // pred_check_branch
              %648 = sbr.rel (0) target = $region82
            $region81: #{vicreg_forward.8} parent=77 // pred_region
              loop: start=0, step=1, limit=1
              $region83: #{vicreg_forward.8} parent=81 // loop_pre_header
                _
              $region84: #{vicreg_forward.8} parent=81 // loop_header
                %s650 = sphi 0, %s654
                %p651 = scmp.ge.s32.totalorder %s650, 1
                %s655 = sphi %s638, %s638
                %s656 = sphi %s644, %s644
              $region85: #{vicreg_forward.8} parent=81 // loop_header_branch
                %653 = sbr.rel (%p651) target = $region89
              $region86: #{vicreg_forward.8} parent=81 // loop_body
                %v657 = vld [vmem:[%s655] sm:$0xff]
                %658 = vst [vmem:[%s656] sm:$0xff] %v657
                %v659 = vld [vmem:[%s655 + $0x8] sm:$0xff]
                %660 = vst [vmem:[%s656 + $0x8] sm:$0xff] %v659
                %v661 = vld [vmem:[%s655 + $0x10] sm:$0xff]
                %662 = vst [vmem:[%s656 + $0x40] sm:$0xff] %v661
                %v663 = vld [vmem:[%s655 + $0x18] sm:$0xff]
                %664 = vst [vmem:[%s656 + $0x48] sm:$0xff] %v663
                %v665 = vld [vmem:[%s655 + $0x20] sm:$0xff]
                %666 = vst [vmem:[%s656 + $0x80] sm:$0xff] %v665
                %v667 = vld [vmem:[%s655 + $0x28] sm:$0xff]
                %668 = vst [vmem:[%s656 + $0x88] sm:$0xff] %v667
                %v669 = vld [vmem:[%s655 + $0x30] sm:$0xff]
                %670 = vst [vmem:[%s656 + $0xc0] sm:$0xff] %v669
                %v671 = vld [vmem:[%s655 + $0x38] sm:$0xff]
                %672 = vst [vmem:[%s656 + $0xc8] sm:$0xff] %v671
              $region87: #{vicreg_forward.8} parent=81 // loop_footer
                %s654 = sadd.s32 1, %s650
              $region88: #{vicreg_forward.8} parent=81 // loop_footer_branch
                %649 = sbr.rel target = $region84
              $region89: #{vicreg_forward.8} parent=81 // loop_exit
                _
            $region82: #{vicreg_forward.8} parent=77 // pred_fallthru
              _
            // Predicated region
            $region90: #{vicreg_forward.8} parent=77 // pred_check
              _
            $region91: #{vicreg_forward.8} parent=77 // pred_check_branch
              %674 = sbr.rel target = $region93
            $region92: #{vicreg_forward.8} parent=77 // pred_region
              _
            $region93: #{vicreg_forward.8} parent=77 // pred_fallthru
              _
          $region78: #{vicreg_forward.8} parent=73 // pred_fallthru
            _
          %675 = vnop
        $region74: #{vicreg_forward.8} parent=65 // pred_fallthru
          _
      $region66: #{vicreg_forward.8} parent=5 // pred_fallthru
        _
      %p676 = scmp.le.s32.totalorder 2, %s9
      // Predicated region
      $region94: #{vicreg_forward.8} parent=5 // pred_check
        %p677 = pneg %p676
      $region95: #{vicreg_forward.8} parent=5 // pred_check_branch
        %679 = sbr.rel (%p677) target = $region97
      $region96: #{vicreg_forward.8} parent=5 // pred_region
        %s680 = ssub.s32 %s9, 2
        // Predicated region
        $region98: #{vicreg_forward.8} parent=96 // pred_check
          %p681 = pneg %p111
        $region99: #{vicreg_forward.8} parent=96 // pred_check_branch
          %683 = sbr.rel (%p681) target = $region101
        $region100: #{vicreg_forward.8} parent=96 // pred_region
          %s684 = sand.u32 %s96, 1
          %s685 = sand.u32 %s96, 1
          %s686 = smul.addr %s685, 64
          %s687 = scalar_lea.vmem [#allocation3], %s686
        $region101: #{vicreg_forward.8} parent=96 // pred_fallthru
          _
      $region97: #{vicreg_forward.8} parent=5 // pred_fallthru
        _
    $region6: #{vicreg_forward.8} parent=1 // loop_footer
      %s13 = sadd.s32 1, %s9
    $region7: #{vicreg_forward.8} parent=1 // loop_footer_branch
      %8 = sbr.rel target = $region3
    $region8: #{vicreg_forward.8} parent=1 // loop_exit
      _

// kernel: vicreg_forward.9
$region0: #{vicreg_forward.9}
  #allocation0 [shape = 'u32[]', space=smem, size = 0x4, offset = 0x4, fixed_abs, tag = 'smem constant byte address 0x4 - core index']
  #allocation1 [shape = 'u32[144,128]{1,0:T(1,128)}', space=vmem, size = 0x12000, scoped, tag = 'internal scratch']
  #allocation2 [shape = 'f32[16,16]{1,0:T(8,128)}', space=vmem, size = 0x2000, scoped, tag = 'scratch operand']
  #allocation3 [shape = 'f32[16,16]{1,0:T(8,128)}', space=vmem, size = 0x2000, scoped, tag = 'scratch operand']
  #allocation4 [shape = 'f32[1,1]{1,0:T(1,128)}', space=vmem, size = 0x200, scoped, tag = 'scratch operand']
  #allocation5 [shape = 'f32[1,1]{1,0:T(1,128)}', space=vmem, size = 0x200, scoped, tag = 'scratch operand']
  #allocation6 [shape = 'f32[1,1]{1,0:T(1,128)}', space=vmem, size = 0x200, scoped, tag = 'scratch operand']
  %s0 = inlined_call_operand.vmem [shape: f32[32,1024], index: 0, kind: input, shape index: {}, may-alias: {0,1}]
  %s1 = inlined_call_operand.vmem [shape: f32[32,1024], index: 1, kind: input, shape index: {}, may-alias: {0,1}]
  %s2 = inlined_call_operand.hbm [shape: f32[1,1], index: 2, kind: output, shape index: {}]
  %s3 = sld [smem:[#allocation0]]
  $region95: #{vicreg_forward.9} parent=0
    _
  %s5 = ssub.s32 1, %s3
  %s6 = scalar_select 0, %s5, %s3
  $region1: #{vicreg_forward.9} parent=0
    #allocation7 [shape = 'u8[65536]{0}', space=vmem, size = 0x10000, scoped, tag = 'input window, operand 0']
    #allocation8 [shape = 'u8[65536]{0}', space=vmem, size = 0x10000, scoped, tag = 'input window, operand 1']
    #allocation9 [shape = 'u8[512]{0}', space=vmem, size = 0x400, scoped, tag = 'output window, operand 0, single buffered']
    #allocation10 [shape = 's32[2]{0}', space=sflag, size = 0x8, scoped, tag = 'scoped memory for vicreg_forward.9']
    %7 = vsyncpa [#allocation10], 0
    loop: start=0, step=1, limit=4
    $region2: #{vicreg_forward.9} parent=1 // loop_pre_header
      _
    $region3: #{vicreg_forward.9} parent=1 // loop_header
      %s9 = sphi 0, %s13
      %p10 = scmp.ge.s32.totalorder %s9, 4
      %s19 = sphi 0, %s21
      %s22 = sphi 0, %s19
      %s23 = sphi 0, %s22
      %s39 = sphi 0, %s23
      %s45 = sphi 0, %s47
      %s48 = sphi 0, %s45
      %s49 = sphi 0, %s48
      %s65 = sphi 0, %s49
      %s69 = sphi 0, %s69
      %s71 = sphi 0, %s69
      %s72 = sphi 0, %s71
      %s86 = sphi 0, %s72
    $region4: #{vicreg_forward.9} parent=1 // loop_header_branch
      %12 = sbr.rel (%p10) target = $region8
    $region5: #{vicreg_forward.9} parent=1 // loop_body
      %s14 = ssub.s32 %s9, 1
      %s15 = ssub.s32 %s9, 2
      %s16 = sadd.s32 %s9, 1
      %s17 = ssub.s32 %s9, %s16
      %p18 = scmp.eq.s32.totalorder %s17, 0
      %s20 = sadd.s32 %s19, 1
      %s21 = scalar_select %p18, %s19, %s20
      %p24 = pneg %p18
      %p25 = scmp.eq.s32.totalorder %s9, 1
      %p26 = por %p24, %p25
      %p27 = scmp.ne.s32.totalorder %s19, %s22
      %p28 = scmp.eq.s32.totalorder %s9, 0
      %p29 = por %p27, %p28
      %p30 = scmp.ne.s32.totalorder %s19, %s22
      %p31 = scmp.eq.s32.totalorder %s14, 1
      %p32 = por %p30, %p31
      %p33 = scmp.ne.s32.totalorder %s22, %s23
      %p34 = scmp.eq.s32.totalorder %s14, 0
      %p35 = por %p33, %p34
      %p36 = scmp.ne.s32.totalorder %s22, %s23
      %p37 = scmp.eq.s32.totalorder %s15, 1
      %p38 = por %p36, %p37
      %p40 = scmp.ne.s32.totalorder %s23, %s39
      %p41 = scmp.eq.s32.totalorder %s15, 0
      %p42 = por %p40, %p41
      %s43 = ssub.s32 %s9, %s16
      %p44 = scmp.eq.s32.totalorder %s43, 0
      %s46 = sadd.s32 %s45, 1
      %s47 = scalar_select %p44, %s45, %s46
      %p50 = pneg %p44
      %p51 = scmp.eq.s32.totalorder %s9, 1
      %p52 = por %p50, %p51
      %p53 = scmp.ne.s32.totalorder %s45, %s48
      %p54 = scmp.eq.s32.totalorder %s9, 0
      %p55 = por %p53, %p54
      %p56 = scmp.ne.s32.totalorder %s45, %s48
      %p57 = scmp.eq.s32.totalorder %s14, 1
      %p58 = por %p56, %p57
      %p59 = scmp.ne.s32.totalorder %s48, %s49
      %p60 = scmp.eq.s32.totalorder %s14, 0
      %p61 = por %p59, %p60
      %p62 = scmp.ne.s32.totalorder %s48, %s49
      %p63 = scmp.eq.s32.totalorder %s15, 1
      %p64 = por %p62, %p63
      %p66 = scmp.ne.s32.totalorder %s49, %s65
      %p67 = scmp.eq.s32.totalorder %s15, 0
      %p68 = por %p66, %p67
      %s70 = sadd.s32 %s69, 1
      %p73 = scmp.eq.s32.totalorder %s9, 1
      %p74 = scmp.ne.s32.totalorder %s69, %s71
      %p75 = scmp.eq.s32.totalorder %s9, 0
      %p76 = por %p74, %p75
      %p77 = scmp.ne.s32.totalorder %s69, %s71
      %p78 = scmp.eq.s32.totalorder %s14, 1
      %p79 = por %p77, %p78
      %p80 = scmp.ne.s32.totalorder %s71, %s72
      %p81 = scmp.eq.s32.totalorder %s14, 0
      %p82 = por %p80, %p81
      %p83 = scmp.ne.s32.totalorder %s71, %s72
      %p84 = scmp.eq.s32.totalorder %s15, 1
      %p85 = por %p83, %p84
      %p87 = scmp.ne.s32.totalorder %s72, %s86
      %p88 = scmp.eq.s32.totalorder %s15, 0
      %p89 = por %p87, %p88
      %p90 = scmp.le.s32.totalorder 1, %s9
      %p91 = scmp.lt.s32.totalorder %s9, 3
      %p92 = pnand %p90, %p91
      %p93 = pneg %p92
      // Predicated region
      $region9: #{vicreg_forward.9} parent=5 // pred_check
        _
      $region10: #{vicreg_forward.9} parent=5 // pred_check_branch
        %95 = sbr.rel (%p92) target = $region12
      $region11: #{vicreg_forward.9} parent=5 // pred_region
        %s96 = ssub.s32 %s9, 1
      $region12: #{vicreg_forward.9} parent=5 // pred_fallthru
        _
      %p97 = scmp.lt.s32.totalorder %s9, 2
      // Predicated region
      $region13: #{vicreg_forward.9} parent=5 // pred_check
        %p98 = pneg %p97
      $region14: #{vicreg_forward.9} parent=5 // pred_check_branch
        %100 = sbr.rel (%p98) target = $region16
      $region15: #{vicreg_forward.9} parent=5 // pred_region
        // Predicated region
        $region17: #{vicreg_forward.9} parent=15 // pred_check
          %p101 = pneg %p29
        $region18: #{vicreg_forward.9} parent=15 // pred_check_branch
          %103 = sbr.rel (%p101) target = $region20
        $region19: #{vicreg_forward.9} parent=15 // pred_region
          %s104 = sand.u32 %s19, 1
          %s105 = sand.u32 %s19, 1
          %s106 = smul.addr %s105, 64
          %s107 = scalar_lea.vmem [#allocation7], %s106
          %s108 = smul.u32 4, %s9
          %s109 = smul.addr %s108, 8
          %s110 = scalar_lea.vmem %s0, %s109
          // Predicated region
          $region21: #{vicreg_forward.9} parent=19 // pred_check
            _
          $region22: #{vicreg_forward.9} parent=19 // pred_check_branch
            %112 = sbr.rel (0) target = $region24
          $region23: #{vicreg_forward.9} parent=19 // pred_region
            // Predicated region
            $region25: #{vicreg_forward.9} parent=23 // pred_check
              _
            $region26: #{vicreg_forward.9} parent=23 // pred_check_branch
              %114 = sbr.rel (0) target = $region28
            $region27: #{vicreg_forward.9} parent=23 // pred_region
              loop: start=0, step=1, limit=1
              $region29: #{vicreg_forward.9} parent=27 // loop_pre_header
                _
              $region30: #{vicreg_forward.9} parent=27 // loop_header
                %s116 = sphi 0, %s120
                %p117 = scmp.ge.s32.totalorder %s116, 1
                %s121 = sphi %s110, %s110
                %s122 = sphi %s107, %s107
              $region31: #{vicreg_forward.9} parent=27 // loop_header_branch
                %119 = sbr.rel (%p117) target = $region35
              $region32: #{vicreg_forward.9} parent=27 // loop_body
                %v123 = vld [vmem:[%s121] sm:$0xff]
                %124 = vst [vmem:[%s122] sm:$0xff] %v123
                %v125 = vld [vmem:[%s121 + $0x8] sm:$0xff]
                %126 = vst [vmem:[%s122 + $0x8] sm:$0xff] %v125
                %v127 = vld [vmem:[%s121 + $0x10] sm:$0xff]
                %128 = vst [vmem:[%s122 + $0x10] sm:$0xff] %v127
                %v129 = vld [vmem:[%s121 + $0x18] sm:$0xff]
                %130 = vst [vmem:[%s122 + $0x18] sm:$0xff] %v129
                %v131 = vld [vmem:[%s121 + $0x40] sm:$0xff]
                %132 = vst [vmem:[%s122 + $0x20] sm:$0xff] %v131
                %v133 = vld [vmem:[%s121 + $0x48] sm:$0xff]
                %134 = vst [vmem:[%s122 + $0x28] sm:$0xff] %v133
                %v135 = vld [vmem:[%s121 + $0x50] sm:$0xff]
                %136 = vst [vmem:[%s122 + $0x30] sm:$0xff] %v135
                %v137 = vld [vmem:[%s121 + $0x58] sm:$0xff]
                %138 = vst [vmem:[%s122 + $0x38] sm:$0xff] %v137
              $region33: #{vicreg_forward.9} parent=27 // loop_footer
                %s120 = sadd.s32 1, %s116
              $region34: #{vicreg_forward.9} parent=27 // loop_footer_branch
                %115 = sbr.rel target = $region30
              $region35: #{vicreg_forward.9} parent=27 // loop_exit
                _
            $region28: #{vicreg_forward.9} parent=23 // pred_fallthru
              _
            // Predicated region
            $region36: #{vicreg_forward.9} parent=23 // pred_check
              _
            $region37: #{vicreg_forward.9} parent=23 // pred_check_branch
              %140 = sbr.rel target = $region39
            $region38: #{vicreg_forward.9} parent=23 // pred_region
              _
            $region39: #{vicreg_forward.9} parent=23 // pred_fallthru
              _
          $region24: #{vicreg_forward.9} parent=19 // pred_fallthru
            _
          %141 = vnop
        $region20: #{vicreg_forward.9} parent=15 // pred_fallthru
          _
        // Predicated region
        $region40: #{vicreg_forward.9} parent=15 // pred_check
          %p142 = pneg %p55
        $region41: #{vicreg_forward.9} parent=15 // pred_check_branch
          %144 = sbr.rel (%p142) target = $region43
        $region42: #{vicreg_forward.9} parent=15 // pred_region
          %s145 = sand.u32 %s45, 1
          %s146 = sand.u32 %s45, 1
          %s147 = smul.addr %s146, 64
          %s148 = scalar_lea.vmem [#allocation8], %s147
          %s149 = smul.u32 4, %s9
          %s150 = sadd.s32 %s149, 16
          %s151 = smul.addr %s150, 8
          %s152 = scalar_lea.vmem %s1, %s151
          // Predicated region
          $region44: #{vicreg_forward.9} parent=42 // pred_check
            _
          $region45: #{vicreg_forward.9} parent=42 // pred_check_branch
            %154 = sbr.rel (0) target = $region47
          $region46: #{vicreg_forward.9} parent=42 // pred_region
            // Predicated region
            $region48: #{vicreg_forward.9} parent=46 // pred_check
              _
            $region49: #{vicreg_forward.9} parent=46 // pred_check_branch
              %156 = sbr.rel (0) target = $region51
            $region50: #{vicreg_forward.9} parent=46 // pred_region
              loop: start=0, step=1, limit=1
              $region52: #{vicreg_forward.9} parent=50 // loop_pre_header
                _
              $region53: #{vicreg_forward.9} parent=50 // loop_header
                %s158 = sphi 0, %s162
                %p159 = scmp.ge.s32.totalorder %s158, 1
                %s163 = sphi %s152, %s152
                %s164 = sphi %s148, %s148
              $region54: #{vicreg_forward.9} parent=50 // loop_header_branch
                %161 = sbr.rel (%p159) target = $region58
              $region55: #{vicreg_forward.9} parent=50 // loop_body
                %v165 = vld [vmem:[%s163] sm:$0xff]
                %166 = vst [vmem:[%s164] sm:$0xff] %v165
                %v167 = vld [vmem:[%s163 + $0x8] sm:$0xff]
                %168 = vst [vmem:[%s164 + $0x8] sm:$0xff] %v167
                %v169 = vld [vmem:[%s163 + $0x10] sm:$0xff]
                %170 = vst [vmem:[%s164 + $0x10] sm:$0xff] %v169
                %v171 = vld [vmem:[%s163 + $0x18] sm:$0xff]
                %172 = vst [vmem:[%s164 + $0x18] sm:$0xff] %v171
                %v173 = vld [vmem:[%s163 + $0x40] sm:$0xff]
                %174 = vst [vmem:[%s164 + $0x20] sm:$0xff] %v173
                %v175 = vld [vmem:[%s163 + $0x48] sm:$0xff]
                %176 = vst [vmem:[%s164 + $0x28] sm:$0xff] %v175
                %v177 = vld [vmem:[%s163 + $0x50] sm:$0xff]
                %178 = vst [vmem:[%s164 + $0x30] sm:$0xff] %v177
                %v179 = vld [vmem:[%s163 + $0x58] sm:$0xff]
                %180 = vst [vmem:[%s164 + $0x38] sm:$0xff] %v179
              $region56: #{vicreg_forward.9} parent=50 // loop_footer
                %s162 = sadd.s32 1, %s158
              $region57: #{vicreg_forward.9} parent=50 // loop_footer_branch
                %157 = sbr.rel target = $region53
              $region58: #{vicreg_forward.9} parent=50 // loop_exit
                _
            $region51: #{vicreg_forward.9} parent=46 // pred_fallthru
              _
            // Predicated region
            $region59: #{vicreg_forward.9} parent=46 // pred_check
              _
            $region60: #{vicreg_forward.9} parent=46 // pred_check_branch
              %182 = sbr.rel target = $region62
            $region61: #{vicreg_forward.9} parent=46 // pred_region
              _
            $region62: #{vicreg_forward.9} parent=46 // pred_fallthru
              _
          $region47: #{vicreg_forward.9} parent=42 // pred_fallthru
            _
          %183 = vnop
        $region43: #{vicreg_forward.9} parent=15 // pred_fallthru
          _
      $region16: #{vicreg_forward.9} parent=5 // pred_fallthru
        _
      %p184 = scmp.le.s32.totalorder 1, %s9
      %p185 = scmp.lt.s32.totalorder %s9, 3
      %p186 = pnand %p184, %p185
      %p187 = pneg %p186
      // Predicated region
      $region63: #{vicreg_forward.9} parent=5 // pred_check
        _
      $region64: #{vicreg_forward.9} parent=5 // pred_check_branch
        %189 = sbr.rel (%p186) target = $region66
      $region65: #{vicreg_forward.9} parent=5 // pred_region
        %s190 = ssub.s32 %s9, 1
        %s191 = sand.u32 %s22, 1
        %s192 = sand.u32 %s22, 1
        %s193 = smul.addr %s192, 64
        %s194 = scalar_lea.vmem [#allocation7], %s193
        // Predicated region
        $region67: #{vicreg_forward.9} parent=65 // pred_check
          %p195 = pneg %p35
        $region68: #{vicreg_forward.9} parent=65 // pred_check_branch
          %197 = sbr.rel (%p195) target = $region70
        $region69: #{vicreg_forward.9} parent=65 // pred_region
          _
        $region70: #{vicreg_forward.9} parent=65 // pred_fallthru
          _
        %s198 = sand.u32 %s48, 1
        %s199 = sand.u32 %s48, 1
        %s200 = smul.addr %s199, 64
        %s201 = scalar_lea.vmem [#allocation8], %s200
        // Predicated region
        $region71: #{vicreg_forward.9} parent=65 // pred_check
          %p202 = pneg %p61
        $region72: #{vicreg_forward.9} parent=65 // pred_check_branch
          %204 = sbr.rel (%p202) target = $region74
        $region73: #{vicreg_forward.9} parent=65 // pred_region
          _
        $region74: #{vicreg_forward.9} parent=65 // pred_fallthru
          _
        %s205 = sand.u32 %s22, 1
        %s206 = sand.u32 %s22, 1
        %s207 = smul.addr %s206, 64
        %s208 = scalar_lea.vmem [#allocation7], %s207
        %p209 = pneg %p35
        %p210 = pneg %p32
        %s211 = sand.u32 %s48, 1
        %s212 = sand.u32 %s48, 1
        %s213 = smul.addr %s212, 64
        %s214 = scalar_lea.vmem [#allocation8], %s213
        %p215 = pneg %p61
        %p216 = pneg %p58
        %p217 = pneg %p82
        %p218 = pneg %p79
        %s219 = smul.u32 4, %s14
        %s220 = smul.u32 4, %s14
        %p222 = scmp.eq.s32.totalorder %s14, 0
        // Predicated region
        $region75: #{vicreg_forward.9} parent=65 // pred_check
          %p223 = pneg %p222
        $region76: #{vicreg_forward.9} parent=65 // pred_check_branch
          %225 = sbr.rel (%p223) target = $region78
        $region77: #{vicreg_forward.9} parent=65 // pred_region
          %vm226 = vcmask 130048
          %227 = vst.msk [vmem:[#allocation2] sm:$0xff] %vm226, 0.0
          %228 = vst.msk [vmem:[#allocation2 + $0x8] sm:$0xff] %vm226, 0.0
          %229 = vst.msk [vmem:[#allocation3] sm:$0xff] %vm226, 0.0
          %230 = vst.msk [vmem:[#allocation3 + $0x8] sm:$0xff] %vm226, 0.0
          %vm231 = vcmask 0
          %232 = vst.msk [vmem:[#allocation4] sm:$0x1] %vm231, 0.0
          %233 = vst.msk [vmem:[#allocation5] sm:$0x1] %vm231, 0.0
          %234 = vst.msk [vmem:[#allocation6] sm:$0x1] %vm231, 0.0
        $region78: #{vicreg_forward.9} parent=65 // pred_fallthru
          _
        %v235 = vld [vmem:[%s194] sm:$0xff]
        %v236 = vld [vmem:[%s194 + $0x8] sm:$0xff]
        %v237 = vld [vmem:[%s194 + $0x10] sm:$0xff]
        %v238 = vld [vmem:[%s194 + $0x18] sm:$0xff]
        %v239 = vld [vmem:[%s194 + $0x20] sm:$0xff]
        %v240 = vld [vmem:[%s194 + $0x28] sm:$0xff]
        %v241 = vld [vmem:[%s194 + $0x30] sm:$0xff]
        %v242 = vld [vmem:[%s194 + $0x38] sm:$0xff]
        %v243 = vld [vmem:[%s201] sm:$0xff]
        %v244 = vld [vmem:[%s201 + $0x8] sm:$0xff]
        %v245 = vld [vmem:[%s201 + $0x10] sm:$0xff]
        %v246 = vld [vmem:[%s201 + $0x18] sm:$0xff]
        %v247 = vld [vmem:[%s201 + $0x20] sm:$0xff]
        %v248 = vld [vmem:[%s201 + $0x28] sm:$0xff]
        %v249 = vld [vmem:[%s201 + $0x30] sm:$0xff]
        %v250 = vld [vmem:[%s201 + $0x38] sm:$0xff]
        %v251 = vsub.f32 %v235, %v243
        %v252 = vsub.f32 %v236, %v244
        %v253 = vsub.f32 %v237, %v245
        %v254 = vsub.f32 %v238, %v246
        %v255 = vsub.f32 %v239, %v247
        %v256 = vsub.f32 %v240, %v248
        %v257 = vsub.f32 %v241, %v249
        %v258 = vsub.f32 %v242, %v250
        %v259 = vld [vmem:[#allocation4] sm:$0x1]
        %v260 = vmul.f32 %v251, %v251
        %v261 = vmul.f32 %v252, %v252
        %v262 = vmul.f32 %v253, %v253
        %v263 = vmul.f32 %v254, %v254
        %v264 = vmul.f32 %v255, %v255
        %v265 = vmul.f32 %v256, %v256
        %v266 = vmul.f32 %v257, %v257
        %v267 = vmul.f32 %v258, %v258
        %v268 = vadd.f32 %v260, %v261
        %v269 = vadd.f32 %v268, %v262
        %v270 = vadd.f32 %v269, %v263
        %271 = vadd.xlane.f32.xlu0 %v270
        %v272 = vpop.xlane.xlu0 %271
        %v273 = vadd.f32 %v264, %v265
        %v274 = vadd.f32 %v273, %v266
        %v275 = vadd.f32 %v274, %v267
        %276 = vadd.xlane.f32.xlu0 %v275
        %v277 = vpop.xlane.xlu0 %276
        %v278 = vadd.f32 %v272, %v277
        %v279 = vrot.slane %v278, 4
        %v280 = vadd.f32 %v278, %v279
        %v281 = vrot.slane %v280, 2
        %v282 = vadd.f32 %v280, %v281
        %v283 = vrot.slane %v282, 1
        %v284 = vadd.f32 %v282, %v283
        %v285 = vadd.f32 %v259, %v284
        %vm286 = vcmask 0
        %287 = vst.msk [vmem:[#allocation4] sm:$0x1] %vm286, %v285
        %v288 = vadd.f32 %v235, %v239
        %v289 = vrot.slane %v288, 4
        %v290 = vadd.f32 %v288, %v289
        %v291 = vrot.slane %v290, 2
        %v292 = vadd.f32 %v290, %v291
        %v293 = vrot.slane %v292, 1
        %v294 = vadd.f32 %v292, %v293
        %v295 = vadd.f32 %v236, %v240
        %v296 = vrot.slane %v295, 4
        %v297 = vadd.f32 %v295, %v296
        %v298 = vrot.slane %v297, 2
        %v299 = vadd.f32 %v297, %v298
        %v300 = vrot.slane %v299, 1
        %v301 = vadd.f32 %v299, %v300
        %v302 = vadd.f32 %v237, %v241
        %v303 = vrot.slane %v302, 4
        %v304 = vadd.f32 %v302, %v303
        %v305 = vrot.slane %v304, 2
        %v306 = vadd.f32 %v304, %v305
        %v307 = vrot.slane %v306, 1
        %v308 = vadd.f32 %v306, %v307
        %v309 = vadd.f32 %v238, %v242
        %v310 = vrot.slane %v309, 4
        %v311 = vadd.f32 %v309, %v310
        %v312 = vrot.slane %v311, 2
        %v313 = vadd.f32 %v311, %v312
        %v314 = vrot.slane %v313, 1
        %v315 = vadd.f32 %v313, %v314
        %v316 = vrcp.pop 16.0
        %v317 = vmul.f32 %v294, %v316
        %v318 = vmul.f32 %v301, %v316
        %v319 = vmul.f32 %v308, %v316
        %v320 = vmul.f32 %v315, %v316
        %v321 = vsub.f32 %v235, %v317
        %v322 = vsub.f32 %v236, %v318
        %v323 = vsub.f32 %v237, %v319
        %v324 = vsub.f32 %v238, %v320
        %v325 = vsub.f32 %v239, %v317
        %v326 = vsub.f32 %v240, %v318
        %v327 = vsub.f32 %v241, %v319
        %v328 = vsub.f32 %v242, %v320
        %v329 = vadd.f32 %v243, %v247
        %v330 = vrot.slane %v329, 4
        %v331 = vadd.f32 %v329, %v330
        %v332 = vrot.slane %v331, 2
        %v333 = vadd.f32 %v331, %v332
        %v334 = vrot.slane %v333, 1
        %v335 = vadd.f32 %v333, %v334
        %v336 = vadd.f32 %v244, %v248
        %v337 = vrot.slane %v336, 4
        %v338 = vadd.f32 %v336, %v337
        %v339 = vrot.slane %v338, 2
        %v340 = vadd.f32 %v338, %v339
        %v341 = vrot.slane %v340, 1
        %v342 = vadd.f32 %v340, %v341
        %v343 = vadd.f32 %v245, %v249
        %v344 = vrot.slane %v343, 4
        %v345 = vadd.f32 %v343, %v344
        %v346 = vrot.slane %v345, 2
        %v347 = vadd.f32 %v345, %v346
        %v348 = vrot.slane %v347, 1
        %v349 = vadd.f32 %v347, %v348
        %v350 = vadd.f32 %v246, %v250
        %v351 = vrot.slane %v350, 4
        %v352 = vadd.f32 %v350, %v351
        %v353 = vrot.slane %v352, 2
        %v354 = vadd.f32 %v352, %v353
        %v355 = vrot.slane %v354, 1
        %v356 = vadd.f32 %v354, %v355
        %v357 = vmul.f32 %v335, %v316
        %v358 = vmul.f32 %v342, %v316
        %v359 = vmul.f32 %v349, %v316
        %v360 = vmul.f32 %v356, %v316
        %v361 = vsub.f32 %v243, %v357
        %v362 = vsub.f32 %v244, %v358
        %v363 = vsub.f32 %v245, %v359
        %v364 = vsub.f32 %v246, %v360
        %v365 = vsub.f32 %v247, %v357
        %v366 = vsub.f32 %v248, %v358
        %v367 = vsub.f32 %v249, %v359
        %v368 = vsub.f32 %v250, %v360
        %v369 = vmul.f32 %v321, %v321
        %v370 = vmul.f32 %v322, %v322
        %v371 = vmul.f32 %v323, %v323
        %v372 = vmul.f32 %v324, %v324
        %v373 = vmul.f32 %v325, %v325
        %v374 = vmul.f32 %v326, %v326
        %v375 = vmul.f32 %v327, %v327
        %v376 = vmul.f32 %v328, %v328
        %v377 = vadd.f32 %v369, %v373
        %v378 = vrot.slane %v377, 4
        %v379 = vadd.f32 %v377, %v378
        %v380 = vrot.slane %v379, 2
        %v381 = vadd.f32 %v379, %v380
        %v382 = vrot.slane %v381, 1
        %v383 = vadd.f32 %v381, %v382
        %v384 = vadd.f32 %v370, %v374
        %v385 = vrot.slane %v384, 4
        %v386 = vadd.f32 %v384, %v385
        %v387 = vrot.slane %v386, 2
        %v388 = vadd.f32 %v386, %v387
        %v389 = vrot.slane %v388, 1
        %v390 = vadd.f32 %v388, %v389
        %v391 = vadd.f32 %v371, %v375
        %v392 = vrot.slane %v391, 4
        %v393 = vadd.f32 %v391, %v392
        %v394 = vrot.slane %v393, 2
        %v395 = vadd.f32 %v393, %v394
        %v396 = vrot.slane %v395, 1
        %v397 = vadd.f32 %v395, %v396
        %v398 = vadd.f32 %v372, %v376
        %v399 = vrot.slane %v398, 4
        %v400 = vadd.f32 %v398, %v399
        %v401 = vrot.slane %v400, 2
        %v402 = vadd.f32 %v400, %v401
        %v403 = vrot.slane %v402, 1
        %v404 = vadd.f32 %v402, %v403
        %v405 = vmul.f32 %v383, 0.06666667
        %v406 = vmul.f32 %v390, 0.06666667
        %v407 = vmul.f32 %v397, 0.06666667
        %v408 = vmul.f32 %v404, 0.06666667
        %v409 = vmul.f32 %v361, %v361
        %v410 = vmul.f32 %v362, %v362
        %v411 = vmul.f32 %v363, %v363
        %v412 = vmul.f32 %v364, %v364
        %v413 = vmul.f32 %v365, %v365
        %v414 = vmul.f32 %v366, %v366
        %v415 = vmul.f32 %v367, %v367
        %v416 = vmul.f32 %v368, %v368
        %v417 = vadd.f32 %v409, %v413
        %v418 = vrot.slane %v417, 4
        %v419 = vadd.f32 %v417, %v418
        %v420 = vrot.slane %v419, 2
        %v421 = vadd.f32 %v419, %v420
        %v422 = vrot.slane %v421, 1
        %v423 = vadd.f32 %v421, %v422
        %v424 = vadd.f32 %v410, %v414
        %v425 = vrot.slane %v424, 4
        %v426 = vadd.f32 %v424, %v425
        %v427 = vrot.slane %v426, 2
        %v428 = vadd.f32 %v426, %v427
        %v429 = vrot.slane %v428, 1
        %v430 = vadd.f32 %v428, %v429
        %v431 = vadd.f32 %v411, %v415
        %v432 = vrot.slane %v431, 4
        %v433 = vadd.f32 %v431, %v432
        %v434 = vrot.slane %v433, 2
        %v435 = vadd.f32 %v433, %v434
        %v436 = vrot.slane %v435, 1
        %v437 = vadd.f32 %v435, %v436
        %v438 = vadd.f32 %v412, %v416
        %v439 = vrot.slane %v438, 4
        %v440 = vadd.f32 %v438, %v439
        %v441 = vrot.slane %v440, 2
        %v442 = vadd.f32 %v440, %v441
        %v443 = vrot.slane %v442, 1
        %v444 = vadd.f32 %v442, %v443
        %v445 = vmul.f32 %v423, 0.06666667
        %v446 = vmul.f32 %v430, 0.06666667
        %v447 = vmul.f32 %v437, 0.06666667
        %v448 = vmul.f32 %v444, 0.06666667
        %v449 = vadd.f32 %v405, 0.0001
        %v450 = vadd.f32 %v406, 0.0001
        %v451 = vadd.f32 %v407, 0.0001
        %v452 = vadd.f32 %v408, 0.0001
        %v453 = vrsqrt.pop %v449
        %v454 = vmul.f32 %v449, %v453
        %vm455 = vcmp.eq.f32.partialorder %v449, inf
        %v456 = vsel %vm455, %v449, %v454
        %vm457 = vcmp.eq.f32.partialorder %v449, 0.0
        %v458 = vand.u32 %v449, 2147483648
        %v459 = vsel %vm457, %v458, %v456
        %v460 = vrsqrt.pop %v450
        %v461 = vmul.f32 %v450, %v460
        %vm462 = vcmp.eq.f32.partialorder %v450, inf
        %v463 = vsel %vm462, %v450, %v461
        %vm464 = vcmp.eq.f32.partialorder %v450, 0.0
        %v465 = vand.u32 %v450, 2147483648
        %v466 = vsel %vm464, %v465, %v463
        %v467 = vrsqrt.pop %v451
        %v468 = vmul.f32 %v451, %v467
        %vm469 = vcmp.eq.f32.partialorder %v451, inf
        %v470 = vsel %vm469, %v451, %v468
        %vm471 = vcmp.eq.f32.partialorder %v451, 0.0
        %v472 = vand.u32 %v451, 2147483648
        %v473 = vsel %vm471, %v472, %v470
        %v474 = vrsqrt.pop %v452
        %v475 = vmul.f32 %v452, %v474
        %vm476 = vcmp.eq.f32.partialorder %v452, inf
        %v477 = vsel %vm476, %v452, %v475
        %vm478 = vcmp.eq.f32.partialorder %v452, 0.0
        %v479 = vand.u32 %v452, 2147483648
        %v480 = vsel %vm478, %v479, %v477
        %v481 = vsub.f32 1.0, %v459
        %v482 = vsub.f32 1.0, %v466
        %v483 = vsub.f32 1.0, %v473
        %v484 = vsub.f32 1.0, %v480
        %v485 = vmax.f32 %v481, 0.0
        %v486 = vmax.f32 %v482, 0.0
        %v487 = vmax.f32 %v483, 0.0
        %v488 = vmax.f32 %v484, 0.0
        %v489 = vadd.f32 %v445, 0.0001
        %v490 = vadd.f32 %v446, 0.0001
        %v491 = vadd.f32 %v447, 0.0001
        %v492 = vadd.f32 %v448, 0.0001
        %v493 = vrsqrt.pop %v489
        %v494 = vmul.f32 %v489, %v493
        %vm495 = vcmp.eq.f32.partialorder %v489, inf
        %v496 = vsel %vm495, %v489, %v494
        %vm497 = vcmp.eq.f32.partialorder %v489, 0.0
        %v498 = vand.u32 %v489, 2147483648
        %v499 = vsel %vm497, %v498, %v496
        %v500 = vrsqrt.pop %v490
        %v501 = vmul.f32 %v490, %v500
        %vm502 = vcmp.eq.f32.partialorder %v490, inf
        %v503 = vsel %vm502, %v490, %v501
        %vm504 = vcmp.eq.f32.partialorder %v490, 0.0
        %v505 = vand.u32 %v490, 2147483648
        %v506 = vsel %vm504, %v505, %v503
        %v507 = vrsqrt.pop %v491
        %v508 = vmul.f32 %v491, %v507
        %vm509 = vcmp.eq.f32.partialorder %v491, inf
        %v510 = vsel %vm509, %v491, %v508
        %vm511 = vcmp.eq.f32.partialorder %v491, 0.0
        %v512 = vand.u32 %v491, 2147483648
        %v513 = vsel %vm511, %v512, %v510
        %v514 = vrsqrt.pop %v492
        %v515 = vmul.f32 %v492, %v514
        %vm516 = vcmp.eq.f32.partialorder %v492, inf
        %v517 = vsel %vm516, %v492, %v515
        %vm518 = vcmp.eq.f32.partialorder %v492, 0.0
        %v519 = vand.u32 %v492, 2147483648
        %v520 = vsel %vm518, %v519, %v517
        %v521 = vsub.f32 1.0, %v499
        %v522 = vsub.f32 1.0, %v506
        %v523 = vsub.f32 1.0, %v513
        %v524 = vsub.f32 1.0, %v520
        %v525 = vmax.f32 %v521, 0.0
        %v526 = vmax.f32 %v522, 0.0
        %v527 = vmax.f32 %v523, 0.0
        %v528 = vmax.f32 %v524, 0.0
        %v529 = vadd.f32 %v485, %v525
        %v530 = vadd.f32 %v486, %v526
        %v531 = vadd.f32 %v487, %v527
        %v532 = vadd.f32 %v488, %v528
        %v533 = vld [vmem:[#allocation5] sm:$0x1]
        %v534 = vadd.f32 %v529, %v530
        %v535 = vadd.f32 %v534, %v531
        %v536 = vadd.f32 %v535, %v532
        %537 = vadd.xlane.f32.xlu0 %v536
        %v538 = vpop.xlane.xlu0 %537
        %v539 = vadd.f32 %v533, %v538
        %540 = vst.msk [vmem:[#allocation5] sm:$0x1] %vm286, %v539
        %v541 = vld [vmem:[#allocation6] sm:$0x1]
        %v542 = vmul.f32 %v405, %v405
        %v543 = vmul.f32 %v406, %v406
        %v544 = vmul.f32 %v407, %v407
        %v545 = vmul.f32 %v408, %v408
        %v546 = vmul.f32 %v445, %v445
        %v547 = vmul.f32 %v446, %v446
        %v548 = vmul.f32 %v447, %v447
        %v549 = vmul.f32 %v448, %v448
        %v550 = vadd.f32 %v542, %v546
        %v551 = vadd.f32 %v543, %v547
        %v552 = vadd.f32 %v544, %v548
        %v553 = vadd.f32 %v545, %v549
        %v554 = vadd.f32 %v550, %v551
        %v555 = vadd.f32 %v554, %v552
        %v556 = vadd.f32 %v555, %v553
        %557 = vadd.xlane.f32.xlu0 %v556
        %v558 = vpop.xlane.xlu0 %557
        %v559 = vadd.f32 %v558, 0.0
        %v560 = vadd.f32 %v541, %v559
        %561 = vst.msk [vmem:[#allocation6] sm:$0x1] %vm286, %v560
        %v562 = vpack.c.bf16 %v325, %v321
        %v563 = vpack.c.bf16 %v326, %v322
        %v564 = vpack.c.bf16 %v327, %v323
        %v565 = vpack.c.bf16 %v328, %v324
        %v566 = vpack.c.bf16 %v365, %v361
        %v567 = vpack.c.bf16 %v366, %v362
        %v568 = vpack.c.bf16 %v367, %v363
        %v569 = vpack.c.bf16 %v368, %v364
        %v570 = vld [vmem:[#allocation2] sm:$0xff]
        %v571 = vld [vmem:[#allocation2 + $0x8] sm:$0xff]
        %572 = vmatprep.subr.bf16.mxu0 0
        %573 = vmatpush1.bf16.xpose.msra.mxu0 0
        %574 = vmatprep.subr.bf16.mxu0 0
        %575 = vmatpush1.bf16.xpose.msra.mxu0 0
        %576 = vmatprep.subr.bf16.mxu0 0
        %577 = vmatpush1.bf16.xpose.msra.mxu0 0
        %578 = vmatprep.subr.bf16.mxu0 0
        %579 = vmatpush1.bf16.xpose.msra.mxu0 0
        %580 = vmatprep.subr.bf16.mxu0 0
        %581 = vmatpush1.bf16.xpose.msra.mxu0 0
        %582 = vmatprep.subr.bf16.mxu0 0
        %583 = vmatpush1.bf16.xpose.msra.mxu0 0
        %584 = vmatprep.subr.bf16.mxu0 0
        %585 = vmatpush1.bf16.xpose.msra.mxu0 0
        %586 = vmatprep.subr.bf16.mxu0 %v563
        %587 = vmatpush1.bf16.xpose.msra.mxu0 %v562
        %588 = vmatprep.subr.bf16.mxu0 0
        %589 = vmatpush2.bf16.xpose.msra.mxu0 0
        %590 = vmatprep.subr.bf16.mxu0 0
        %591 = vmatpush2.bf16.xpose.msra.mxu0 0
        %592 = vmatprep.subr.bf16.mxu0 0
        %593 = vmatpush2.bf16.xpose.msra.mxu0 0
        %594 = vmatprep.subr.bf16.mxu0 0
        %595 = vmatpush2.bf16.xpose.msra.mxu0 0
        %596 = vmatprep.subr.bf16.mxu0 0
        %597 = vmatpush2.bf16.xpose.msra.mxu0 0
        %598 = vmatprep.subr.bf16.mxu0 0
        %599 = vmatpush2.bf16.xpose.msra.mxu0 0
        %600 = vmatprep.subr.bf16.mxu0 0
        %601 = vmatpush2.bf16.xpose.msra.mxu0 0
        %602 = vmatprep.subr.bf16.mxu0 0
        %603 = vmatpush2.bf16.xpose.msra.mxu0 0
        %604 = vmatprep.mubr.bf16.mxu0 %v563
        %605 = vmatmul.mubr.bf16.gmra.mxu0 %v562
        %v606 = vpop.f32.mrf.mxu0
        %v607 = vadd.f32 0.0, %v606
        %v608 = vpop.f32.mrf.mxu0
        %v609 = vpop.f32.mrf.mxu0
        %v610 = vadd.f32 0.0, %v609
        %v611 = vpop.f32.mrf.mxu0
        %612 = vdwg.mxu0
        %613 = vmatprep.subr.bf16.mxu0 0
        %614 = vmatpush1.bf16.xpose.msra.mxu0 0
        %615 = vmatprep.subr.bf16.mxu0 0
        %616 = vmatpush1.bf16.xpose.msra.mxu0 0
        %617 = vmatprep.subr.bf16.mxu0 0
        %618 = vmatpush1.bf16.xpose.msra.mxu0 0
        %619 = vmatprep.subr.bf16.mxu0 0
        %620 = vmatpush1.bf16.xpose.msra.mxu0 0
        %621 = vmatprep.subr.bf16.mxu0 0
        %622 = vmatpush1.bf16.xpose.msra.mxu0 0
        %623 = vmatprep.subr.bf16.mxu0 0
        %624 = vmatpush1.bf16.xpose.msra.mxu0 0
        %625 = vmatprep.subr.bf16.mxu0 0
        %626 = vmatpush1.bf16.xpose.msra.mxu0 0
        %627 = vmatprep.subr.bf16.mxu0 %v565
        %628 = vmatpush1.bf16.xpose.msra.mxu0 %v564
        %629 = vmatprep.subr.bf16.mxu0 0
        %630 = vmatpush2.bf16.xpose.msra.mxu0 0
        %631 = vmatprep.subr.bf16.mxu0 0
        %632 = vmatpush2.bf16.xpose.msra.mxu0 0
        %633 = vmatprep.subr.bf16.mxu0 0
        %634 = vmatpush2.bf16.xpose.msra.mxu0 0
        %635 = vmatprep.subr.bf16.mxu0 0
        %636 = vmatpush2.bf16.xpose.msra.mxu0 0
        %637 = vmatprep.subr.bf16.mxu0 0
        %638 = vmatpush2.bf16.xpose.msra.mxu0 0
        %639 = vmatprep.subr.bf16.mxu0 0
        %640 = vmatpush2.bf16.xpose.msra.mxu0 0
        %641 = vmatprep.subr.bf16.mxu0 0
        %642 = vmatpush2.bf16.xpose.msra.mxu0 0
        %643 = vmatprep.subr.bf16.mxu0 0
        %644 = vmatpush2.bf16.xpose.msra.mxu0 0
        %645 = vmatprep.mubr.bf16.mxu0 %v565
        %646 = vmatmul.mubr.bf16.gmra.mxu0 %v564
        %v647 = vpop.f32.mrf.mxu0
        %v648 = vadd.f32 %v607, %v647
        %v649 = vpop.f32.mrf.mxu0
        %v650 = vpop.f32.mrf.mxu0
        %v651 = vadd.f32 %v610, %v650
        %v652 = vpop.f32.mrf.mxu0
        %653 = vdwg.mxu0
        %v654 = vadd.f32 %v570, %v648
        %v655 = vadd.f32 %v571, %v651
        %vm656 = vcmask 130048
        %657 = vst.msk [vmem:[#allocation2] sm:$0xff] %vm656, %v654
        %658 = vst.msk [vmem:[#allocation2 + $0x8] sm:$0xff] %vm656, %v655
        %v659 = vld [vmem:[#allocation3] sm:$0xff]
        %v660 = vld [vmem:[#allocation3 + $0x8] sm:$0xff]
        %661 = vmatprep.subr.bf16.mxu0 0
        %662 = vmatpush1.bf16.xpose.msra.mxu0 0
        %663 = vmatprep.subr.bf16.mxu0 0
        %664 = vmatpush1.bf16.xpose.msra.mxu0 0
        %665 = vmatprep.subr.bf16.mxu0 0
        %666 = vmatpush1.bf16.xpose.msra.mxu0 0
        %667 = vmatprep.subr.bf16.mxu0 0
        %668 = vmatpush1.bf16.xpose.msra.mxu0 0
        %669 = vmatprep.subr.bf16.mxu0 0
        %670 = vmatpush1.bf16.xpose.msra.mxu0 0
        %671 = vmatprep.subr.bf16.mxu0 0
        %672 = vmatpush1.bf16.xpose.msra.mxu0 0
        %673 = vmatprep.subr.bf16.mxu0 0
        %674 = vmatpush1.bf16.xpose.msra.mxu0 0
        %675 = vmatprep.subr.bf16.mxu0 %v567
        %676 = vmatpush1.bf16.xpose.msra.mxu0 %v566
        %677 = vmatprep.subr.bf16.mxu0 0
        %678 = vmatpush2.bf16.xpose.msra.mxu0 0
        %679 = vmatprep.subr.bf16.mxu0 0
        %680 = vmatpush2.bf16.xpose.msra.mxu0 0
        %681 = vmatprep.subr.bf16.mxu0 0
        %682 = vmatpush2.bf16.xpose.msra.mxu0 0
        %683 = vmatprep.subr.bf16.mxu0 0
        %684 = vmatpush2.bf16.xpose.msra.mxu0 0
        %685 = vmatprep.subr.bf16.mxu0 0
        %686 = vmatpush2.bf16.xpose.msra.mxu0 0
        %687 = vmatprep.subr.bf16.mxu0 0
        %688 = vmatpush2.bf16.xpose.msra.mxu0 0
        %689 = vmatprep.subr.bf16.mxu0 0
        %690 = vmatpush2.bf16.xpose.msra.mxu0 0
        %691 = vmatprep.subr.bf16.mxu0 0
        %692 = vmatpush2.bf16.xpose.msra.mxu0 0
        %693 = vmatprep.mubr.bf16.mxu0 %v567
        %694 = vmatmul.mubr.bf16.gmra.mxu0 %v566
        %v695 = vpop.f32.mrf.mxu0
        %v696 = vadd.f32 0.0, %v695
        %v697 = vpop.f32.mrf.mxu0
        %v698 = vpop.f32.mrf.mxu0
        %v699 = vadd.f32 0.0, %v698
        %v700 = vpop.f32.mrf.mxu0
        %701 = vdwg.mxu0
        %702 = vmatprep.subr.bf16.mxu0 0
        %703 = vmatpush1.bf16.xpose.msra.mxu0 0
        %704 = vmatprep.subr.bf16.mxu0 0
        %705 = vmatpush1.bf16.xpose.msra.mxu0 0
        %706 = vmatprep.subr.bf16.mxu0 0
        %707 = vmatpush1.bf16.xpose.msra.mxu0 0
        %708 = vmatprep.subr.bf16.mxu0 0
        %709 = vmatpush1.bf16.xpose.msra.mxu0 0
        %710 = vmatprep.subr.bf16.mxu0 0
        %711 = vmatpush1.bf16.xpose.msra.mxu0 0
        %712 = vmatprep.subr.bf16.mxu0 0
        %713 = vmatpush1.bf16.xpose.msra.mxu0 0
        %714 = vmatprep.subr.bf16.mxu0 0
        %715 = vmatpush1.bf16.xpose.msra.mxu0 0
        %716 = vmatprep.subr.bf16.mxu0 %v569
        %717 = vmatpush1.bf16.xpose.msra.mxu0 %v568
        %718 = vmatprep.subr.bf16.mxu0 0
        %719 = vmatpush2.bf16.xpose.msra.mxu0 0
        %720 = vmatprep.subr.bf16.mxu0 0
        %721 = vmatpush2.bf16.xpose.msra.mxu0 0
        %722 = vmatprep.subr.bf16.mxu0 0
        %723 = vmatpush2.bf16.xpose.msra.mxu0 0
        %724 = vmatprep.subr.bf16.mxu0 0
        %725 = vmatpush2.bf16.xpose.msra.mxu0 0
        %726 = vmatprep.subr.bf16.mxu0 0
        %727 = vmatpush2.bf16.xpose.msra.mxu0 0
        %728 = vmatprep.subr.bf16.mxu0 0
        %729 = vmatpush2.bf16.xpose.msra.mxu0 0
        %730 = vmatprep.subr.bf16.mxu0 0
        %731 = vmatpush2.bf16.xpose.msra.mxu0 0
        %732 = vmatprep.subr.bf16.mxu0 0
        %733 = vmatpush2.bf16.xpose.msra.mxu0 0
        %734 = vmatprep.mubr.bf16.mxu0 %v569
        %735 = vmatmul.mubr.bf16.gmra.mxu0 %v568
        %v736 = vpop.f32.mrf.mxu0
        %v737 = vadd.f32 %v696, %v736
        %v738 = vpop.f32.mrf.mxu0
        %v739 = vpop.f32.mrf.mxu0
        %v740 = vadd.f32 %v699, %v739
        %v741 = vpop.f32.mrf.mxu0
        %742 = vdwg.mxu0
        %v743 = vadd.f32 %v659, %v737
        %v744 = vadd.f32 %v660, %v740
        %745 = vst.msk [vmem:[#allocation3] sm:$0xff] %vm656, %v743
        %746 = vst.msk [vmem:[#allocation3 + $0x8] sm:$0xff] %vm656, %v744
        %p747 = scmp.eq.s32.totalorder %s14, 1
        // Predicated region
        $region79: #{vicreg_forward.9} parent=65 // pred_check
          %p748 = pneg %p747
        $region80: #{vicreg_forward.9} parent=65 // pred_check_branch
          %750 = sbr.rel (%p748) target = $region82
        $region81: #{vicreg_forward.9} parent=65 // pred_region
          %v751 = vld [vmem:[#allocation2] sm:$0xff]
          %v752 = vld [vmem:[#allocation2 + $0x8] sm:$0xff]
          %v753 = vmul.f32 %v751, %v751
          %v754 = vmul.f32 %v752, %v752
          %v755 = vld [vmem:[#allocation3] sm:$0xff]
          %v756 = vld [vmem:[#allocation3 + $0x8] sm:$0xff]
          %v757 = vmul.f32 %v755, %v755
          %v758 = vmul.f32 %v756, %v756
          %v759 = vadd.f32 %v753, %v757
          %v760 = vadd.f32 %v754, %v758
          %v761 = vsel %vm656, %v759, 0.0
          %762 = vadd.xlane.f32.xlu0 %v761
          %v763 = vpop.xlane.xlu0 %762
          %v764 = vsel %vm656, %v760, 0.0
          %765 = vadd.xlane.f32.xlu0 %v764
          %v766 = vpop.xlane.xlu0 %765
          %v767 = vadd.f32 %v763, %v766
          %v768 = vrot.slane %v767, 4
          %v769 = vadd.f32 %v767, %v768
          %v770 = vrot.slane %v769, 2
          %v771 = vadd.f32 %v769, %v770
          %v772 = vrot.slane %v771, 1
          %v773 = vadd.f32 %v771, %v772
          %v774 = vmul.f32 %v773, 0.0044444446
          %v775 = vld [vmem:[#allocation4] sm:$0x1]
          %v776 = vmul.f32 %v775, 6.1035156e-05
          %v777 = vld [vmem:[#allocation5] sm:$0x1]
          %v778 = vmul.f32 %v777, 0.00048828125
          %v779 = vld [vmem:[#allocation6] sm:$0x1]
          %v780 = vsub.f32 %v774, %v779
          %v781 = vmul.f32 %v780, 0.0009765625
          %v782 = vmul.f32 %v776, 25.0
          %v783 = vmul.f32 %v778, 25.0
          %v784 = vadd.f32 %v782, %v783
          %v785 = vadd.f32 %v784, %v781
          %786 = vst.msk [vmem:[#allocation9] sm:$0x1] %vm286, %v785
        $region82: #{vicreg_forward.9} parent=65 // pred_fallthru
          _
        // Predicated region
        $region83: #{vicreg_forward.9} parent=65 // pred_check
          %p787 = pneg %p79
        $region84: #{vicreg_forward.9} parent=65 // pred_check_branch
          %789 = sbr.rel (%p787) target = $region86
        $region85: #{vicreg_forward.9} parent=65 // pred_region
          %s791 = ssub.s32 16, 16
          %792 = vsyncadd [#allocation10], %s791
          %s794 = sshll.u32 [#allocation9], 4
          %s795 = int_to_ptr.vmem [resolvable:$true] %s794
          %797 = dma.vmem_to_hbm [thread:$0]  %s795, 16, %s2, [#allocation10]
        $region86: #{vicreg_forward.9} parent=65 // pred_fallthru
          _
        // Predicated region
        $region87: #{vicreg_forward.9} parent=65 // pred_check
          %p798 = pneg %p79
        $region88: #{vicreg_forward.9} parent=65 // pred_check_branch
          %800 = sbr.rel (%p798) target = $region90
        $region89: #{vicreg_forward.9} parent=65 // pred_region
          %801 = dma.done [#allocation10], 16
        $region90: #{vicreg_forward.9} parent=65 // pred_fallthru
          _
      $region66: #{vicreg_forward.9} parent=5 // pred_fallthru
        _
      %p802 = scmp.le.s32.totalorder 2, %s9
      // Predicated region
      $region91: #{vicreg_forward.9} parent=5 // pred_check
        %p803 = pneg %p802
      $region92: #{vicreg_forward.9} parent=5 // pred_check_branch
        %805 = sbr.rel (%p803) target = $region94
      $region93: #{vicreg_forward.9} parent=5 // pred_region
        %s806 = ssub.s32 %s9, 2
      $region94: #{vicreg_forward.9} parent=5 // pred_fallthru
        _
    $region6: #{vicreg_forward.9} parent=1 // loop_footer
      %s13 = sadd.s32 1, %s9
    $region7: #{vicreg_forward.9} parent=1 // loop_footer_branch
      %8 = sbr.rel target = $region3
    $region8: #{vicreg_forward.9} parent=1 // loop_exit
      _
    %807 = vsyncpa [#allocation10], 1
    %s808 = scalar_lea.sflag [#allocation10], 1
    %809 = vsyncpa %s808, 1

</llo_original>
